<compile_context>
chip_gen: v7x
topology: tpu7x:2x2x1
jax: 0.10.0
libtpu: 0.0.40
codegen_flags: <defaults>
</compile_context>

<pallas_src>
import jax
import jax.numpy as jnp
from jax.experimental import pallas as pl
from jax.experimental.pallas import tpu as pltpu


# ----------------------------------------------------------------------------
# Fused kernel: one grid step = G graphs, rows packed along the sublane axis.
# ----------------------------------------------------------------------------
def _fused_n2g_pool_kernel(key1_ref,   # (1, 1, GN)  int32: packed subgraph2 row id per node
                           key2_ref,   # (1, 1, GN)  int32: GS2 + packed original-node row id
                           ckey_ref,   # (1, RT, 1)  int32: -1 for pool rows, packed node id for center rows
                           idxss_ref,  # (1, 1, GS2) int32: packed subgraph row id per subgraph2
                           x_ref,      # (GN, H)     f32   packed node features (G graphs)
                           ew1_ref,    # (3H, 4H)    f32   edge MLP W1 (out-dim zero-padded to 4H)
                           eb1_ref,    # (1, 4H)
                           ew2_ref,    # (4H, 4H)          edge MLP W2 (rows/cols zero-padded)
                           eb2_ref,    # (1, 4H)
                           nw1_ref,    # (4H, 4H)          node MLP W1
                           nb1_ref,    # (1, 4H)
                           nw2_ref,    # (4H, 4H)          node MLP W2
                           nb2_ref,    # (1, 4H)
                           out_ref):   # (GS1, 4H)   f32
    GN, H = x_ref.shape
    GS2 = idxss_ref.shape[2]
    GS1 = out_ref.shape[0]
    RP = GS2 + GS1                    # rows used by the two mean-pools
    RT = ckey_ref.shape[1]            # RP + 2*GS2 (center0 + center1 gathers)

    x = x_ref[...]

    # ---- fused selector: [subgraph2-mean | orig-node-mean | center0 | center1]
    # One (RT, GN) 0/1 matrix, one MXU matmul; slice boundaries are 8-aligned.
    rows = jax.lax.broadcasted_iota(jnp.int32, (RT, GN), 0)
    cols = jax.lax.broadcasted_iota(jnp.int32, (RT, GN), 1)
    key1 = key1_ref[0]                # (1, GN),  values in [0, GS2)
    key2 = key2_ref[0]                # (1, GN),  values in [GS2, RP)
    ckey = ckey_ref[0]                # (RT, 1),  -1 for r < RP, packed node id otherwise
    sel = ((rows == key1) | (rows == key2) | (cols == ckey)).astype(jnp.float32)

    pooled = jnp.dot(sel, x, preferred_element_type=jnp.float32)      # (RT, H)
    cnt = jnp.sum(sel[0:RP, :], axis=-1, keepdims=True)               # (RP, 1): both pools at once
    cnt = jnp.maximum(cnt, 1.0)

    s2_mean = pooled[0:GS2] / cnt[0:GS2]          # (GS2, H)  exact division (no approx recip)
    x_node  = pooled[GS2:RP] / cnt[GS2:RP]        # (GS1, H)
    center0 = pooled[RP:RP + GS2]                 # (GS2, H)
    center1 = pooled[RP + GS2:RT]                 # (GS2, H)

    # ---- edge_pooling_nn: relu(concat([s2_mean,center0,center1]) @ W1 + b1) @ W2 + b2
    # concat eliminated by splitting W1 into row blocks; lanes padded to 4H.
    h = (jnp.dot(s2_mean, ew1_ref[0:H, :], preferred_element_type=jnp.float32)
         + jnp.dot(center0, ew1_ref[H:2 * H, :], preferred_element_type=jnp.float32)
         + jnp.dot(center1, ew1_ref[2 * H:3 * H, :], preferred_element_type=jnp.float32)
         + eb1_ref[...])
    h = jnp.maximum(h, 0.0)                                            # (GS2, 4H)
    s2 = jnp.dot(h, ew2_ref[...], preferred_element_type=jnp.float32) + eb2_ref[...]
    # s2: (GS2, 4H); lanes [3H:4H] are exactly zero (zero-padded weights / bias).

    # ---- global_mean_pool(s2, subgraph2_to_subgraph) -> (GS1, 4H) ------------
    segs = jax.lax.broadcasted_iota(jnp.int32, (GS1, GS2), 0)
    ohs = (segs == idxss_ref[0]).astype(jnp.float32)                   # (GS1, GS2)
    g_sum = jnp.dot(ohs, s2, preferred_element_type=jnp.float32)       # (GS1, 4H)
    g_cnt = jnp.maximum(jnp.sum(ohs, axis=-1, keepdims=True), 1.0)
    g = g_sum / g_cnt

    # ---- node_pooling_nn on concat([g, x_node]) via W1 row-split -------------
    # g's padded lanes [3H:4H] are zero, so the full nw1 contributes only rows
    # [0:3H]; rows [3H:4H] are applied to x_node explicitly.
    h2 = (jnp.dot(g, nw1_ref[...], preferred_element_type=jnp.float32)
          + jnp.dot(x_node, nw1_ref[3 * H:4 * H, :], preferred_element_type=jnp.float32)
          + nb1_ref[...])
    h2 = jnp.maximum(h2, 0.0)
    out = jnp.dot(h2, nw2_ref[...], preferred_element_type=jnp.float32) + nb2_ref[...]
    out_ref[...] = out.astype(out_ref.dtype)       # (GS1, 4H): lane- & sublane-dense store


# ----------------------------------------------------------------------------
# Wrapper: batched pallas_call with a "parallel" per-graph-block grid axis.
# Only tiny int32 index vectors are massaged here; one-hot selectors and
# 1/count are built in-kernel (per review guidance).
# ----------------------------------------------------------------------------
def create_pooling_func_forward(x, data, params, *, num_subgraph2, num_subgraph,
                                num_original_nodes, graphs_per_step=8):
    """Batched create_pooling_func forward.

    x:    (B, N, H) node features (B graphs, N fine-grained nodes each).
    data: per-graph int32 index arrays:
        node_to_subgraph2     (B, N),  subgraph2_to_subgraph (B, S2),
        node_to_original_node (B, N),  center_idx            (B, S2, 2)
    params: PyTorch Linear weights supplied in [in, out] layout.
    Returns (B * S1, 4H).
    """
    # 'mean-context' concat requires one subgraph per original node.
    assert num_subgraph == num_original_nodes
    B, N, H = x.shape
    S2, S1 = num_subgraph2, num_subgraph
    G = graphs_per_step
    assert B % G == 0, "pad the graph batch to a multiple of graphs_per_step"
    # TODO(synk): pad ragged batches (B % G != 0) with empty graphs instead of asserting.
    nsteps = B // G
    GN, GS2, GS1 = G * N, G * S2, G * S1
    RP, RT = GS2 + GS1, GS2 + GS1 + 2 * GS2
    S2D, S1D = 3 * H, 4 * H
    assert GN % 8 == 0 and GS2 % 8 == 0 and GS1 % 8 == 0 and RP % 8 == 0, (
        "pick graphs_per_step so packed row counts stay 8-sublane aligned")

    # --- tiny int32 index plumbing: add per-graph row/column offsets so the
    #     packed one-hot selectors are block-diagonal across the G graphs. ----
    i32 = jnp.int32
    gpos = jnp.arange(B, dtype=i32) % G                      # graph position within its step
    key1 = (data["node_to_subgraph2"].astype(i32)
            + gpos[:, None] * S2).reshape(nsteps, 1, GN)
    key2 = (GS2 + data["node_to_original_node"].astype(i32)
            + gpos[:, None] * S1).reshape(nsteps, 1, GN)
    idxss = (data["subgraph2_to_subgraph"].astype(i32)
             + gpos[:, None] * S1).reshape(nsteps, 1, GS2)
    cidx = data["center_idx"].astype(i32) + gpos[:, None, None] * N    # packed node ids
    ckey = jnp.concatenate(
        [jnp.full((nsteps, RP), -1, i32),
         cidx[..., 0].reshape(nsteps, GS2),
         cidx[..., 1].reshape(nsteps, GS2)], axis=1).reshape(nsteps, RT, 1)

    x_flat = x.reshape(B * N, H)

    # --- weights: edge MLP zero-padded 3H -> 4H lanes; biases as (1, dim) rows.
    f32 = jnp.float32
    ew1p = jnp.zeros((S2D, S1D), f32).at[:, :S2D].set(params["e_w1"].astype(f32))
    eb1p = jnp.zeros((1, S1D), f32).at[:, :S2D].set(params["e_b1"].reshape(1, S2D).astype(f32))
    ew2p = jnp.zeros((S1D, S1D), f32).at[:S2D, :S2D].set(params["e_w2"].astype(f32))
    eb2p = jnp.zeros((1, S1D), f32).at[:, :S2D].set(params["e_b2"].reshape(1, S2D).astype(f32))
    nw1 = params["n_w1"].astype(f32)
    nb1 = params["n_b1"].reshape(1, S1D).astype(f32)
    nw2 = params["n_w2"].astype(f32)
    nb2 = params["n_b2"].reshape(1, S1D).astype(f32)

    # Constant index_map -> weights DMA'd once and VMEM-resident for all steps.
    def w_spec(shape):
        return pl.BlockSpec(shape, lambda b, n=len(shape): (0,) * n)

    flops = 2 * nsteps * (RT * GN * H              # fused selector matmul
                          + 3 * GS2 * H * S1D      # edge MLP layer 1 (row-split)
                          + GS2 * S1D * S1D        # edge MLP layer 2
                          + GS1 * GS2 * S1D        # subgraph2 -> subgraph pool
                          + GS1 * (S1D + H) * S1D  # node MLP layer 1 (row-split)
                          + GS1 * S1D * S1D)       # node MLP layer 2
    bytes_accessed = 4 * (x_flat.size + B * S1 * S1D
                          + ew1p.size + ew2p.size + nw1.size + nw2.size + 4 * S1D
                          + key1.size + key2.size + ckey.size + idxss.size)

    return pl.pallas_call(
        _fused_n2g_pool_kernel,
        out_shape=jax.ShapeDtypeStruct((B * S1, S1D), x.dtype),
        grid=(nsteps,),
        in_specs=[
            pl.BlockSpec((1, 1, GN), lambda b: (b, 0, 0)),     # key1
            pl.BlockSpec((1, 1, GN), lambda b: (b, 0, 0)),     # key2
            pl.BlockSpec((1, RT, 1), lambda b: (b, 0, 0)),     # ckey
            pl.BlockSpec((1, 1, GS2), lambda b: (b, 0, 0)),    # subgraph2 -> subgraph ids
            pl.BlockSpec((GN, H), lambda b: (b, 0)),           # x (G graphs per step)
            w_spec((S2D, S1D)), w_spec((1, S1D)),              # e_w1, e_b1 (padded)
            w_spec((S1D, S1D)), w_spec((1, S1D)),              # e_w2, e_b2 (padded)
            w_spec((S1D, S1D)), w_spec((1, S1D)),              # n_w1, n_b1
            w_spec((S1D, S1D)), w_spec((1, S1D)),              # n_w2, n_b2
        ],
        out_specs=pl.BlockSpec((GS1, S1D), lambda b: (b, 0)),
        compiler_params=pltpu.CompilerParams(
            dimension_semantics=("parallel",)),                # v7x: both TensorCores
        cost_estimate=pl.CostEstimate(flops=flops, transcendentals=0,
                                      bytes_accessed=bytes_accessed),
    )(key1, key2, ckey, idxss, x_flat,
      ew1p, eb1p, ew2p, eb2p, nw1, nb1, nw2, nb2)


# ----------------------------------------------------------------------------
# Pure-JAX reference (per-graph, vmapped) for verification
# ----------------------------------------------------------------------------
def _ref_segment_mean(x, idx, num_segments):
    sums = jax.ops.segment_sum(x, idx, num_segments=num_segments)
    cnt = jax.ops.segment_sum(jnp.ones((x.shape[0],), x.dtype), idx,
                              num_segments=num_segments)
    return sums / jnp.maximum(cnt, 1.0)[:, None]


def _ref_forward_single(x, n2s2, n2on, s22s, cidx, params, S2, S1):
    x_node = _ref_segment_mean(x, n2on, S1)
    s2 = jnp.concatenate(
        [_ref_segment_mean(x, n2s2, S2), x[cidx[:, 0]], x[cidx[:, 1]]], axis=-1)
    s2 = (jnp.maximum(s2 @ params["e_w1"] + params["e_b1"], 0.0)
          @ params["e_w2"] + params["e_b2"])
    g = _ref_segment_mean(s2, s22s, S1)
    g = jnp.concatenate([g, x_node], axis=-1)
    return (jnp.maximum(g @ params["n_w1"] + params["n_b1"], 0.0)
            @ params["n_w2"] + params["n_b2"])


def _ref_forward(x, data, params, S2, S1):
    fn = lambda xg, a, b, c, d: _ref_forward_single(xg, a, b, c, d, params, S2, S1)
    out = jax.vmap(fn)(x, data["node_to_subgraph2"], data["node_to_original_node"],
                       data["subgraph2_to_subgraph"], data["center_idx"])
    return out.reshape(-1, out.shape[-1])


# ----------------------------------------------------------------------------
if __name__ == "__main__":
    # Full-precision f32 matmuls for both the kernel trace and the reference so
    # the comparison tolerance can be tight now that the approximate reciprocal
    # is gone.
    jax.config.update("jax_default_matmul_precision", "highest")

    key = jax.random.PRNGKey(0)
    H = 32            # h_dim
    N = 16            # fine-grained nodes per graph
    S2 = 6            # subgraph2 count per graph (= len(center_idx))
    S1 = 4            # subgraph count per graph == number of original nodes
    B = 32            # graphs in the batch
    G = 8             # graphs per grid step (production: size so G*S1 >= 128/256)
    S2DIM, S1DIM = 3 * H, 4 * H

    keys = jax.random.split(key, 9)
    x = jax.random.normal(keys[0], (B, N, H), dtype=jnp.float32)

    gids = jnp.arange(B, dtype=jnp.int32)[:, None]
    nids = jnp.arange(N, dtype=jnp.int32)[None, :]
    sids = jnp.arange(S2, dtype=jnp.int32)[None, :]
    data = {
        # every segment in every graph has at least one member; per-graph shifts
        # make the graphs differ while staying deterministic
        "node_to_subgraph2": (nids + gids) % S2,                           # (B, N)
        "node_to_original_node": (nids * 3 + gids) % S1,                   # (B, N)
        "subgraph2_to_subgraph": (sids + gids) % S1,                       # (B, S2)
        "center_idx": jnp.stack([(sids * 2 + gids) % N,
                                 (sids * 5 + 1 + 2 * gids) % N], axis=-1), # (B, S2, 2)
    }

    params = {
        "e_w1": 0.1 * jax.random.normal(keys[1], (S2DIM, S2DIM), jnp.float32),
        "e_b1": 0.1 * jax.random.normal(keys[2], (S2DIM,), jnp.float32),
        "e_w2": 0.1 * jax.random.normal(keys[3], (S2DIM, S2DIM), jnp.float32),
        "e_b2": 0.1 * jax.random.normal(keys[4], (S2DIM,), jnp.float32),
        "n_w1": 0.1 * jax.random.normal(keys[5], (S1DIM, S1DIM), jnp.float32),
        "n_b1": 0.1 * jax.random.normal(keys[6], (S1DIM,), jnp.float32),
        "n_w2": 0.1 * jax.random.normal(keys[7], (S1DIM, S1DIM), jnp.float32),
        "n_b2": 0.1 * jax.random.normal(keys[8], (S1DIM,), jnp.float32),
    }

    out = create_pooling_func_forward(
        x, data, params, num_subgraph2=S2, num_subgraph=S1,
        num_original_nodes=S1, graphs_per_step=G)
    out = jax.block_until_ready(out)

    ref = _ref_forward(x, data, params, S2, S1)
    assert out.shape == (B * S1, S1DIM), out.shape
    # Tolerance tightened from 1e-3 (approx reciprocal removed; exact division).
    assert jnp.allclose(out, ref, atol=2e-4, rtol=2e-4), (
        float(jnp.max(jnp.abs(out - ref))))

    print("KERNEL_OK")
</pallas_src>

<mosaic_0001>
module attributes {stable_mosaic.version = 11 : i64} {
  func.func @_fused_n2g_pool_kernel(%arg0: i32, %arg1: memref<1x1x128xi32, #tpu.memory_space<vmem>>, %arg2: memref<1x1x128xi32, #tpu.memory_space<vmem>>, %arg3: memref<1x176x1xi32, #tpu.memory_space<vmem>>, %arg4: memref<1x1x48xi32, #tpu.memory_space<vmem>>, %arg5: memref<128x32xf32, #tpu.memory_space<vmem>>, %arg6: memref<96x128xf32, #tpu.memory_space<vmem>>, %arg7: memref<1x128xf32, #tpu.memory_space<vmem>>, %arg8: memref<128x128xf32, #tpu.memory_space<vmem>>, %arg9: memref<1x128xf32, #tpu.memory_space<vmem>>, %arg10: memref<128x128xf32, #tpu.memory_space<vmem>>, %arg11: memref<1x128xf32, #tpu.memory_space<vmem>>, %arg12: memref<128x128xf32, #tpu.memory_space<vmem>>, %arg13: memref<1x128xf32, #tpu.memory_space<vmem>>, %arg14: memref<32x128xf32, #tpu.memory_space<vmem>>) attributes {dimension_semantics = [#tpu.dimension_semantics<parallel>], iteration_bounds = array<i64: 4>, scalar_prefetch = 0 : i64, scratch_operands = 0 : i64, tpu.core_type = #tpu.core_type<tc>, window_params = [{transform_indices = @transform_0, window_bounds = array<i64: 1, 1, 128>}, {transform_indices = @transform_1, window_bounds = array<i64: 1, 1, 128>}, {transform_indices = @transform_2, window_bounds = array<i64: 1, 176, 1>}, {transform_indices = @transform_3, window_bounds = array<i64: 1, 1, 48>}, {transform_indices = @transform_4, window_bounds = array<i64: 128, 32>}, {pipeline_mode = #tpu.pipeline_mode<synchronous>, transform_indices = @transform_5, window_bounds = array<i64: 96, 128>}, {pipeline_mode = #tpu.pipeline_mode<synchronous>, transform_indices = @transform_6, window_bounds = array<i64: 1, 128>}, {pipeline_mode = #tpu.pipeline_mode<synchronous>, transform_indices = @transform_7, window_bounds = array<i64: 128, 128>}, {pipeline_mode = #tpu.pipeline_mode<synchronous>, transform_indices = @transform_8, window_bounds = array<i64: 1, 128>}, {pipeline_mode = #tpu.pipeline_mode<synchronous>, transform_indices = @transform_9, window_bounds = array<i64: 128, 128>}, {pipeline_mode = #tpu.pipeline_mode<synchronous>, transform_indices = @transform_10, window_bounds = array<i64: 1, 128>}, {pipeline_mode = #tpu.pipeline_mode<synchronous>, transform_indices = @transform_11, window_bounds = array<i64: 128, 128>}, {pipeline_mode = #tpu.pipeline_mode<synchronous>, transform_indices = @transform_12, window_bounds = array<i64: 1, 128>}, {transform_indices = @transform_13, window_bounds = array<i64: 32, 128>}]} {
    %c0 = arith.constant 0 : index
    %c0_0 = arith.constant 0 : index
    %0 = vector.load %arg5[%c0, %c0_0] : memref<128x32xf32, #tpu.memory_space<vmem>>, vector<128x32xf32>
    %1 = tpu.iota {dimensions = array<i32: 0>} : vector<176x128xi32>
    %2 = tpu.iota {dimensions = array<i32: 1>} : vector<176x128xi32>
    %c0_1 = arith.constant 0 : index
    %c0_2 = arith.constant 0 : index
    %c0_3 = arith.constant 0 : index
    %3 = vector.load %arg1[%c0_1, %c0_2, %c0_3] : memref<1x1x128xi32, #tpu.memory_space<vmem>>, vector<1x1x128xi32>
    %4 = vector.shape_cast %3 : vector<1x1x128xi32> to vector<1x128xi32>
    %c0_4 = arith.constant 0 : index
    %c0_5 = arith.constant 0 : index
    %c0_6 = arith.constant 0 : index
    %5 = vector.load %arg2[%c0_4, %c0_5, %c0_6] : memref<1x1x128xi32, #tpu.memory_space<vmem>>, vector<1x1x128xi32>
    %6 = vector.shape_cast %5 : vector<1x1x128xi32> to vector<1x128xi32>
    %c0_7 = arith.constant 0 : index
    %c0_8 = arith.constant 0 : index
    %c0_9 = arith.constant 0 : index
    %7 = vector.load %arg3[%c0_7, %c0_8, %c0_9] : memref<1x176x1xi32, #tpu.memory_space<vmem>>, vector<1x176x1xi32>
    %8 = vector.shape_cast %7 : vector<1x176x1xi32> to vector<176x1xi32>
    %9 = vector.broadcast %4 : vector<1x128xi32> to vector<176x128xi32>
    %10 = arith.cmpi eq, %1, %9 : vector<176x128xi32>
    %11 = vector.broadcast %6 : vector<1x128xi32> to vector<176x128xi32>
    %12 = arith.cmpi eq, %1, %11 : vector<176x128xi32>
    %13 = arith.ori %10, %12 : vector<176x128xi1>
    %14 = vector.broadcast %8 : vector<176x1xi32> to vector<176x128xi32>
    %15 = arith.cmpi eq, %2, %14 : vector<176x128xi32>
    %16 = arith.ori %13, %15 : vector<176x128xi1>
    %17 = arith.extui %16 : vector<176x128xi1> to vector<176x128xi32>
    %18 = arith.sitofp %17 : vector<176x128xi32> to vector<176x128xf32>
    %cst = arith.constant dense<0.000000e+00> : vector<176x32xf32>
    %19 = tpu.matmul %18, %0, %cst {dimension_numbers = #tpu.dot_dimension_numbers<[1], [0], [0], [1], [0, 0, 1, 1], [], []>, precision = #tpu.contract_precision<fp32>} : vector<176x128xf32>, vector<128x32xf32>, vector<176x32xf32> -> vector<176x32xf32>
    %20 = vector.extract_strided_slice %18 {offsets = [0, 0], sizes = [80, 128], strides = [1, 1]} : vector<176x128xf32> to vector<80x128xf32>
    %cst_10 = arith.constant dense<0.000000e+00> : vector<80xf32>
    %21 = vector.multi_reduction <add>, %20, %cst_10 [1] : vector<80x128xf32> to vector<80xf32>
    %22 = vector.shape_cast %21 : vector<80xf32> to vector<80x1xf32>
    %cst_11 = arith.constant 1.000000e+00 : f32
    %23 = vector.broadcast %cst_11 : f32 to vector<80x1xf32>
    %24 = arith.maximumf %22, %23 : vector<80x1xf32>
    %25 = vector.extract_strided_slice %19 {offsets = [0, 0], sizes = [48, 32], strides = [1, 1]} : vector<176x32xf32> to vector<48x32xf32>
    %26 = vector.extract_strided_slice %24 {offsets = [0, 0], sizes = [48, 1], strides = [1, 1]} : vector<80x1xf32> to vector<48x1xf32>
    %27 = vector.broadcast %26 : vector<48x1xf32> to vector<48x32xf32>
    %28 = arith.divf %25, %27 : vector<48x32xf32>
    %29 = vector.extract_strided_slice %19 {offsets = [48, 0], sizes = [32, 32], strides = [1, 1]} : vector<176x32xf32> to vector<32x32xf32>
    %30 = vector.extract_strided_slice %24 {offsets = [48, 0], sizes = [32, 1], strides = [1, 1]} : vector<80x1xf32> to vector<32x1xf32>
    %31 = vector.broadcast %30 : vector<32x1xf32> to vector<32x32xf32>
    %32 = arith.divf %29, %31 : vector<32x32xf32>
    %33 = vector.extract_strided_slice %19 {offsets = [80, 0], sizes = [48, 32], strides = [1, 1]} : vector<176x32xf32> to vector<48x32xf32>
    %34 = vector.extract_strided_slice %19 {offsets = [128, 0], sizes = [48, 32], strides = [1, 1]} : vector<176x32xf32> to vector<48x32xf32>
    %c0_12 = arith.constant 0 : index
    %c0_13 = arith.constant 0 : index
    %35 = vector.load %arg6[%c0_12, %c0_13] : memref<96x128xf32, #tpu.memory_space<vmem>>, vector<32x128xf32>
    %cst_14 = arith.constant dense<0.000000e+00> : vector<48x128xf32>
    %36 = tpu.matmul %28, %35, %cst_14 {dimension_numbers = #tpu.dot_dimension_numbers<[1], [0], [0], [1], [0, 0, 1, 1], [], []>, precision = #tpu.contract_precision<fp32>} : vector<48x32xf32>, vector<32x128xf32>, vector<48x128xf32> -> vector<48x128xf32>
    %c32 = arith.constant 32 : index
    %c0_15 = arith.constant 0 : index
    %37 = vector.load %arg6[%c32, %c0_15] : memref<96x128xf32, #tpu.memory_space<vmem>>, vector<32x128xf32>
    %cst_16 = arith.constant dense<0.000000e+00> : vector<48x128xf32>
    %38 = tpu.matmul %33, %37, %cst_16 {dimension_numbers = #tpu.dot_dimension_numbers<[1], [0], [0], [1], [0, 0, 1, 1], [], []>, precision = #tpu.contract_precision<fp32>} : vector<48x32xf32>, vector<32x128xf32>, vector<48x128xf32> -> vector<48x128xf32>
    %39 = arith.addf %36, %38 : vector<48x128xf32>
    %c64 = arith.constant 64 : index
    %c0_17 = arith.constant 0 : index
    %40 = vector.load %arg6[%c64, %c0_17] : memref<96x128xf32, #tpu.memory_space<vmem>>, vector<32x128xf32>
    %cst_18 = arith.constant dense<0.000000e+00> : vector<48x128xf32>
    %41 = tpu.matmul %34, %40, %cst_18 {dimension_numbers = #tpu.dot_dimension_numbers<[1], [0], [0], [1], [0, 0, 1, 1], [], []>, precision = #tpu.contract_precision<fp32>} : vector<48x32xf32>, vector<32x128xf32>, vector<48x128xf32> -> vector<48x128xf32>
    %42 = arith.addf %39, %41 : vector<48x128xf32>
    %c0_19 = arith.constant 0 : index
    %c0_20 = arith.constant 0 : index
    %43 = vector.load %arg7[%c0_19, %c0_20] : memref<1x128xf32, #tpu.memory_space<vmem>>, vector<1x128xf32>
    %44 = vector.broadcast %43 : vector<1x128xf32> to vector<48x128xf32>
    %45 = arith.addf %42, %44 : vector<48x128xf32>
    %cst_21 = arith.constant 0.000000e+00 : f32
    %46 = vector.broadcast %cst_21 : f32 to vector<48x128xf32>
    %47 = arith.maximumf %45, %46 : vector<48x128xf32>
    %c0_22 = arith.constant 0 : index
    %c0_23 = arith.constant 0 : index
    %48 = vector.load %arg8[%c0_22, %c0_23] : memref<128x128xf32, #tpu.memory_space<vmem>>, vector<128x128xf32>
    %cst_24 = arith.constant dense<0.000000e+00> : vector<48x128xf32>
    %49 = tpu.matmul %47, %48, %cst_24 {dimension_numbers = #tpu.dot_dimension_numbers<[1], [0], [0], [1], [0, 0, 1, 1], [], []>, precision = #tpu.contract_precision<fp32>} : vector<48x128xf32>, vector<128x128xf32>, vector<48x128xf32> -> vector<48x128xf32>
    %c0_25 = arith.constant 0 : index
    %c0_26 = arith.constant 0 : index
    %50 = vector.load %arg9[%c0_25, %c0_26] : memref<1x128xf32, #tpu.memory_space<vmem>>, vector<1x128xf32>
    %51 = vector.broadcast %50 : vector<1x128xf32> to vector<48x128xf32>
    %52 = arith.addf %49, %51 : vector<48x128xf32>
    %53 = tpu.iota {dimensions = array<i32: 0>} : vector<32x48xi32>
    %c0_27 = arith.constant 0 : index
    %c0_28 = arith.constant 0 : index
    %c0_29 = arith.constant 0 : index
    %54 = vector.load %arg4[%c0_27, %c0_28, %c0_29] : memref<1x1x48xi32, #tpu.memory_space<vmem>>, vector<1x1x48xi32>
    %55 = vector.shape_cast %54 : vector<1x1x48xi32> to vector<1x48xi32>
    %56 = vector.broadcast %55 : vector<1x48xi32> to vector<32x48xi32>
    %57 = arith.cmpi eq, %53, %56 : vector<32x48xi32>
    %58 = arith.extui %57 : vector<32x48xi1> to vector<32x48xi32>
    %59 = arith.sitofp %58 : vector<32x48xi32> to vector<32x48xf32>
    %cst_30 = arith.constant dense<0.000000e+00> : vector<32x128xf32>
    %60 = tpu.matmul %59, %52, %cst_30 {dimension_numbers = #tpu.dot_dimension_numbers<[1], [0], [0], [1], [0, 0, 1, 1], [], []>, precision = #tpu.contract_precision<fp32>} : vector<32x48xf32>, vector<48x128xf32>, vector<32x128xf32> -> vector<32x128xf32>
    %cst_31 = arith.constant dense<0.000000e+00> : vector<32xf32>
    %61 = vector.multi_reduction <add>, %59, %cst_31 [1] : vector<32x48xf32> to vector<32xf32>
    %62 = vector.shape_cast %61 : vector<32xf32> to vector<32x1xf32>
    %cst_32 = arith.constant 1.000000e+00 : f32
    %63 = vector.broadcast %cst_32 : f32 to vector<32x1xf32>
    %64 = arith.maximumf %62, %63 : vector<32x1xf32>
    %65 = vector.broadcast %64 : vector<32x1xf32> to vector<32x128xf32>
    %66 = arith.divf %60, %65 : vector<32x128xf32>
    %c0_33 = arith.constant 0 : index
    %c0_34 = arith.constant 0 : index
    %67 = vector.load %arg10[%c0_33, %c0_34] : memref<128x128xf32, #tpu.memory_space<vmem>>, vector<128x128xf32>
    %cst_35 = arith.constant dense<0.000000e+00> : vector<32x128xf32>
    %68 = tpu.matmul %66, %67, %cst_35 {dimension_numbers = #tpu.dot_dimension_numbers<[1], [0], [0], [1], [0, 0, 1, 1], [], []>, precision = #tpu.contract_precision<fp32>} : vector<32x128xf32>, vector<128x128xf32>, vector<32x128xf32> -> vector<32x128xf32>
    %c96 = arith.constant 96 : index
    %c0_36 = arith.constant 0 : index
    %69 = vector.load %arg10[%c96, %c0_36] : memref<128x128xf32, #tpu.memory_space<vmem>>, vector<32x128xf32>
    %cst_37 = arith.constant dense<0.000000e+00> : vector<32x128xf32>
    %70 = tpu.matmul %32, %69, %cst_37 {dimension_numbers = #tpu.dot_dimension_numbers<[1], [0], [0], [1], [0, 0, 1, 1], [], []>, precision = #tpu.contract_precision<fp32>} : vector<32x32xf32>, vector<32x128xf32>, vector<32x128xf32> -> vector<32x128xf32>
    %71 = arith.addf %68, %70 : vector<32x128xf32>
    %c0_38 = arith.constant 0 : index
    %c0_39 = arith.constant 0 : index
    %72 = vector.load %arg11[%c0_38, %c0_39] : memref<1x128xf32, #tpu.memory_space<vmem>>, vector<1x128xf32>
    %73 = vector.broadcast %72 : vector<1x128xf32> to vector<32x128xf32>
    %74 = arith.addf %71, %73 : vector<32x128xf32>
    %cst_40 = arith.constant 0.000000e+00 : f32
    %75 = vector.broadcast %cst_40 : f32 to vector<32x128xf32>
    %76 = arith.maximumf %74, %75 : vector<32x128xf32>
    %c0_41 = arith.constant 0 : index
    %c0_42 = arith.constant 0 : index
    %77 = vector.load %arg12[%c0_41, %c0_42] : memref<128x128xf32, #tpu.memory_space<vmem>>, vector<128x128xf32>
    %cst_43 = arith.constant dense<0.000000e+00> : vector<32x128xf32>
    %78 = tpu.matmul %76, %77, %cst_43 {dimension_numbers = #tpu.dot_dimension_numbers<[1], [0], [0], [1], [0, 0, 1, 1], [], []>, precision = #tpu.contract_precision<fp32>} : vector<32x128xf32>, vector<128x128xf32>, vector<32x128xf32> -> vector<32x128xf32>
    %c0_44 = arith.constant 0 : index
    %c0_45 = arith.constant 0 : index
    %79 = vector.load %arg13[%c0_44, %c0_45] : memref<1x128xf32, #tpu.memory_space<vmem>>, vector<1x128xf32>
    %80 = vector.broadcast %79 : vector<1x128xf32> to vector<32x128xf32>
    %81 = arith.addf %78, %80 : vector<32x128xf32>
    %c0_46 = arith.constant 0 : index
    %c0_47 = arith.constant 0 : index
    %82 = vector.load %arg14[%c0_46, %c0_47] : memref<32x128xf32, #tpu.memory_space<vmem>>, vector<32x128xf32>
    tpu.vector_store %arg14[%c0_46, %c0_47], %81 {strides = array<i32>} : memref<32x128xf32, #tpu.memory_space<vmem>>, vector<32x128xf32>,
    return
  }
  func.func @transform_0(%arg0: i32) -> (i32, i32, i32) {
    %c0_i32 = arith.constant 0 : i32
    %c0_i32_0 = arith.constant 0 : i32
    %c0_i32_1 = arith.constant 0 : i32
    return %arg0, %c0_i32, %c0_i32_0 : i32, i32, i32
  }
  func.func @transform_1(%arg0: i32) -> (i32, i32, i32) {
    %c0_i32 = arith.constant 0 : i32
    %c0_i32_0 = arith.constant 0 : i32
    %c0_i32_1 = arith.constant 0 : i32
    return %arg0, %c0_i32, %c0_i32_0 : i32, i32, i32
  }
  func.func @transform_2(%arg0: i32) -> (i32, i32, i32) {
    %c0_i32 = arith.constant 0 : i32
    %c0_i32_0 = arith.constant 0 : i32
    %c0_i32_1 = arith.constant 0 : i32
    return %arg0, %c0_i32, %c0_i32_0 : i32, i32, i32
  }
  func.func @transform_3(%arg0: i32) -> (i32, i32, i32) {
    %c0_i32 = arith.constant 0 : i32
    %c0_i32_0 = arith.constant 0 : i32
    %c0_i32_1 = arith.constant 0 : i32
    return %arg0, %c0_i32, %c0_i32_0 : i32, i32, i32
  }
  func.func @transform_4(%arg0: i32) -> (i32, i32) {
    %c0_i32 = arith.constant 0 : i32
    %c0_i32_0 = arith.constant 0 : i32
    return %arg0, %c0_i32 : i32, i32
  }
  func.func @transform_5(%arg0: i32) -> (i32, i32) {
    %c0_i32 = arith.constant 0 : i32
    %c0_i32_0 = arith.constant 0 : i32
    %c0_i32_1 = arith.constant 0 : i32
    return %c0_i32, %c0_i32_0 : i32, i32
  }
  func.func @transform_6(%arg0: i32) -> (i32, i32) {
    %c0_i32 = arith.constant 0 : i32
    %c0_i32_0 = arith.constant 0 : i32
    %c0_i32_1 = arith.constant 0 : i32
    return %c0_i32, %c0_i32_0 : i32, i32
  }
  func.func @transform_7(%arg0: i32) -> (i32, i32) {
    %c0_i32 = arith.constant 0 : i32
    %c0_i32_0 = arith.constant 0 : i32
    %c0_i32_1 = arith.constant 0 : i32
    return %c0_i32, %c0_i32_0 : i32, i32
  }
  func.func @transform_8(%arg0: i32) -> (i32, i32) {
    %c0_i32 = arith.constant 0 : i32
    %c0_i32_0 = arith.constant 0 : i32
    %c0_i32_1 = arith.constant 0 : i32
    return %c0_i32, %c0_i32_0 : i32, i32
  }
  func.func @transform_9(%arg0: i32) -> (i32, i32) {
    %c0_i32 = arith.constant 0 : i32
    %c0_i32_0 = arith.constant 0 : i32
    %c0_i32_1 = arith.constant 0 : i32
    return %c0_i32, %c0_i32_0 : i32, i32
  }
  func.func @transform_10(%arg0: i32) -> (i32, i32) {
    %c0_i32 = arith.constant 0 : i32
    %c0_i32_0 = arith.constant 0 : i32
    %c0_i32_1 = arith.constant 0 : i32
    return %c0_i32, %c0_i32_0 : i32, i32
  }
  func.func @transform_11(%arg0: i32) -> (i32, i32) {
    %c0_i32 = arith.constant 0 : i32
    %c0_i32_0 = arith.constant 0 : i32
    %c0_i32_1 = arith.constant 0 : i32
    return %c0_i32, %c0_i32_0 : i32, i32
  }
  func.func @transform_12(%arg0: i32) -> (i32, i32) {
    %c0_i32 = arith.constant 0 : i32
    %c0_i32_0 = arith.constant 0 : i32
    %c0_i32_1 = arith.constant 0 : i32
    return %c0_i32, %c0_i32_0 : i32, i32
  }
  func.func @transform_13(%arg0: i32) -> (i32, i32) {
    %c0_i32 = arith.constant 0 : i32
    %c0_i32_0 = arith.constant 0 : i32
    return %arg0, %c0_i32 : i32, i32
  }
}

</mosaic_0001>

<llo_original>
// kernel: tpu_custom_call.1
$region0: #{tpu_custom_call.1}
  #allocation0 [shape = 'u32[]', space=smem, size = 0x4, offset = 0x4, fixed_abs, tag = 'smem constant byte address 0x4 - core index']
  #allocation1 [shape = 'u32[144,128]{1,0:T(1,128)}', space=vmem, size = 0x12000, scoped, tag = 'internal scratch']
  %s0 = inlined_call_operand.vmem [shape: s32[4,1,128], index: 0, kind: input, shape index: {}]
  %s1 = inlined_call_operand.vmem [shape: s32[4,1,128], index: 1, kind: input, shape index: {}]
  %s2 = inlined_call_operand.vmem [shape: s32[4,176,1], index: 2, kind: input, shape index: {}]
  %s3 = inlined_call_operand.vmem [shape: s32[4,1,48], index: 3, kind: input, shape index: {}]
  %s4 = inlined_call_operand.vmem [shape: f32[512,32], index: 4, kind: input, shape index: {}]
  %s5 = inlined_call_operand.vmem [shape: f32[96,128], index: 5, kind: input, shape index: {}]
  %s6 = inlined_call_operand.vmem [shape: f32[1,128], index: 6, kind: input, shape index: {}]
  %s7 = inlined_call_operand.vmem [shape: f32[128,128], index: 7, kind: input, shape index: {}]
  %s8 = inlined_call_operand.vmem [shape: f32[1,128], index: 8, kind: input, shape index: {}]
  %s9 = inlined_call_operand.vmem [shape: f32[128,128], index: 9, kind: input, shape index: {}]
  %s10 = inlined_call_operand.vmem [shape: f32[1,128], index: 10, kind: input, shape index: {}]
  %s11 = inlined_call_operand.vmem [shape: f32[128,128], index: 11, kind: input, shape index: {}]
  %s12 = inlined_call_operand.vmem [shape: f32[1,128], index: 12, kind: input, shape index: {}]
  %s13 = inlined_call_operand.hbm [shape: f32[128,128], index: 13, kind: output, shape index: {}]
  %s14 = sld [smem:[#allocation0]]
  $region85: #{tpu_custom_call.1} parent=0
    _
  %s16 = ssub.s32 1, %s14
  %s17 = scalar_select 0, %s16, %s14
  $region1: #{tpu_custom_call.1} parent=0
    #allocation2 [shape = 'u8[32768]{0}', space=vmem, size = 0x8000, scoped, tag = 'output window, operand 0']
    #allocation3 [shape = 's32[2]{0}', space=sflag, size = 0x8, scoped, tag = 'scoped memory for tpu_custom_call.1']
    %18 = vsyncpa [#allocation3], 0
    %s19 = scalar_lea.sflag [#allocation3], 1
    %20 = vsyncpa %s19, 0
    loop: start=0, step=1, limit=6
    $region2: #{tpu_custom_call.1} parent=1 // loop_pre_header
      _
    $region3: #{tpu_custom_call.1} parent=1 // loop_header
      %s22 = sphi 0, %s26
      %p23 = scmp.ge.s32.totalorder %s22, 6
      %s32 = sphi 0, %s34
      %s35 = sphi 0, %s32
      %s36 = sphi 0, %s35
      %s52 = sphi 0, %s36
      %s58 = sphi 0, %s60
      %s61 = sphi 0, %s58
      %s62 = sphi 0, %s61
      %s78 = sphi 0, %s62
      %s84 = sphi 0, %s86
      %s87 = sphi 0, %s84
      %s88 = sphi 0, %s87
      %s104 = sphi 0, %s88
      %s110 = sphi 0, %s112
      %s113 = sphi 0, %s110
      %s114 = sphi 0, %s113
      %s130 = sphi 0, %s114
      %s136 = sphi 0, %s138
      %s139 = sphi 0, %s136
      %s140 = sphi 0, %s139
      %s156 = sphi 0, %s140
      %s160 = sphi 0, %s160
      %s162 = sphi 0, %s160
      %s163 = sphi 0, %s162
      %s177 = sphi 0, %s163
      %s181 = sphi 0, %s181
      %s183 = sphi 0, %s181
      %s184 = sphi 0, %s183
      %s198 = sphi 0, %s184
      %s202 = sphi 0, %s202
      %s204 = sphi 0, %s202
      %s205 = sphi 0, %s204
      %s219 = sphi 0, %s205
      %s223 = sphi 0, %s223
      %s225 = sphi 0, %s223
      %s226 = sphi 0, %s225
      %s240 = sphi 0, %s226
      %s244 = sphi 0, %s244
      %s246 = sphi 0, %s244
      %s247 = sphi 0, %s246
      %s261 = sphi 0, %s247
      %s265 = sphi 0, %s265
      %s267 = sphi 0, %s265
      %s268 = sphi 0, %s267
      %s282 = sphi 0, %s268
      %s286 = sphi 0, %s286
      %s288 = sphi 0, %s286
      %s289 = sphi 0, %s288
      %s303 = sphi 0, %s289
      %s307 = sphi 0, %s307
      %s309 = sphi 0, %s307
      %s310 = sphi 0, %s309
      %s324 = sphi 0, %s310
      %s330 = sphi 0, %s332
      %s333 = sphi 0, %s330
      %s334 = sphi 0, %s333
      %s350 = sphi 0, %s334
    $region4: #{tpu_custom_call.1} parent=1 // loop_header_branch
      %25 = sbr.rel (%p23) target = $region8
    $region5: #{tpu_custom_call.1} parent=1 // loop_body
      %s27 = ssub.s32 %s22, 1
      %s28 = ssub.s32 %s22, 2
      %s29 = sadd.s32 %s22, 1
      %s30 = ssub.s32 %s22, %s29
      %p31 = scmp.eq.s32.totalorder %s30, 0
      %s33 = sadd.s32 %s32, 1
      %s34 = scalar_select %p31, %s32, %s33
      %p37 = pneg %p31
      %p38 = scmp.eq.s32.totalorder %s22, 3
      %p39 = por %p37, %p38
      %p40 = scmp.ne.s32.totalorder %s32, %s35
      %p41 = scmp.eq.s32.totalorder %s22, 0
      %p42 = por %p40, %p41
      %p43 = scmp.ne.s32.totalorder %s32, %s35
      %p44 = scmp.eq.s32.totalorder %s27, 3
      %p45 = por %p43, %p44
      %p46 = scmp.ne.s32.totalorder %s35, %s36
      %p47 = scmp.eq.s32.totalorder %s27, 0
      %p48 = por %p46, %p47
      %p49 = scmp.ne.s32.totalorder %s35, %s36
      %p50 = scmp.eq.s32.totalorder %s28, 3
      %p51 = por %p49, %p50
      %p53 = scmp.ne.s32.totalorder %s36, %s52
      %p54 = scmp.eq.s32.totalorder %s28, 0
      %p55 = por %p53, %p54
      %s56 = ssub.s32 %s22, %s29
      %p57 = scmp.eq.s32.totalorder %s56, 0
      %s59 = sadd.s32 %s58, 1
      %s60 = scalar_select %p57, %s58, %s59
      %p63 = pneg %p57
      %p64 = scmp.eq.s32.totalorder %s22, 3
      %p65 = por %p63, %p64
      %p66 = scmp.ne.s32.totalorder %s58, %s61
      %p67 = scmp.eq.s32.totalorder %s22, 0
      %p68 = por %p66, %p67
      %p69 = scmp.ne.s32.totalorder %s58, %s61
      %p70 = scmp.eq.s32.totalorder %s27, 3
      %p71 = por %p69, %p70
      %p72 = scmp.ne.s32.totalorder %s61, %s62
      %p73 = scmp.eq.s32.totalorder %s27, 0
      %p74 = por %p72, %p73
      %p75 = scmp.ne.s32.totalorder %s61, %s62
      %p76 = scmp.eq.s32.totalorder %s28, 3
      %p77 = por %p75, %p76
      %p79 = scmp.ne.s32.totalorder %s62, %s78
      %p80 = scmp.eq.s32.totalorder %s28, 0
      %p81 = por %p79, %p80
      %s82 = ssub.s32 %s22, %s29
      %p83 = scmp.eq.s32.totalorder %s82, 0
      %s85 = sadd.s32 %s84, 1
      %s86 = scalar_select %p83, %s84, %s85
      %p89 = pneg %p83
      %p90 = scmp.eq.s32.totalorder %s22, 3
      %p91 = por %p89, %p90
      %p92 = scmp.ne.s32.totalorder %s84, %s87
      %p93 = scmp.eq.s32.totalorder %s22, 0
      %p94 = por %p92, %p93
      %p95 = scmp.ne.s32.totalorder %s84, %s87
      %p96 = scmp.eq.s32.totalorder %s27, 3
      %p97 = por %p95, %p96
      %p98 = scmp.ne.s32.totalorder %s87, %s88
      %p99 = scmp.eq.s32.totalorder %s27, 0
      %p100 = por %p98, %p99
      %p101 = scmp.ne.s32.totalorder %s87, %s88
      %p102 = scmp.eq.s32.totalorder %s28, 3
      %p103 = por %p101, %p102
      %p105 = scmp.ne.s32.totalorder %s88, %s104
      %p106 = scmp.eq.s32.totalorder %s28, 0
      %p107 = por %p105, %p106
      %s108 = ssub.s32 %s22, %s29
      %p109 = scmp.eq.s32.totalorder %s108, 0
      %s111 = sadd.s32 %s110, 1
      %s112 = scalar_select %p109, %s110, %s111
      %p115 = pneg %p109
      %p116 = scmp.eq.s32.totalorder %s22, 3
      %p117 = por %p115, %p116
      %p118 = scmp.ne.s32.totalorder %s110, %s113
      %p119 = scmp.eq.s32.totalorder %s22, 0
      %p120 = por %p118, %p119
      %p121 = scmp.ne.s32.totalorder %s110, %s113
      %p122 = scmp.eq.s32.totalorder %s27, 3
      %p123 = por %p121, %p122
      %p124 = scmp.ne.s32.totalorder %s113, %s114
      %p125 = scmp.eq.s32.totalorder %s27, 0
      %p126 = por %p124, %p125
      %p127 = scmp.ne.s32.totalorder %s113, %s114
      %p128 = scmp.eq.s32.totalorder %s28, 3
      %p129 = por %p127, %p128
      %p131 = scmp.ne.s32.totalorder %s114, %s130
      %p132 = scmp.eq.s32.totalorder %s28, 0
      %p133 = por %p131, %p132
      %s134 = ssub.s32 %s22, %s29
      %p135 = scmp.eq.s32.totalorder %s134, 0
      %s137 = sadd.s32 %s136, 1
      %s138 = scalar_select %p135, %s136, %s137
      %p141 = pneg %p135
      %p142 = scmp.eq.s32.totalorder %s22, 3
      %p143 = por %p141, %p142
      %p144 = scmp.ne.s32.totalorder %s136, %s139
      %p145 = scmp.eq.s32.totalorder %s22, 0
      %p146 = por %p144, %p145
      %p147 = scmp.ne.s32.totalorder %s136, %s139
      %p148 = scmp.eq.s32.totalorder %s27, 3
      %p149 = por %p147, %p148
      %p150 = scmp.ne.s32.totalorder %s139, %s140
      %p151 = scmp.eq.s32.totalorder %s27, 0
      %p152 = por %p150, %p151
      %p153 = scmp.ne.s32.totalorder %s139, %s140
      %p154 = scmp.eq.s32.totalorder %s28, 3
      %p155 = por %p153, %p154
      %p157 = scmp.ne.s32.totalorder %s140, %s156
      %p158 = scmp.eq.s32.totalorder %s28, 0
      %p159 = por %p157, %p158
      %s161 = sadd.s32 %s160, 1
      %p164 = scmp.eq.s32.totalorder %s22, 3
      %p165 = scmp.ne.s32.totalorder %s160, %s162
      %p166 = scmp.eq.s32.totalorder %s22, 0
      %p167 = por %p165, %p166
      %p168 = scmp.ne.s32.totalorder %s160, %s162
      %p169 = scmp.eq.s32.totalorder %s27, 3
      %p170 = por %p168, %p169
      %p171 = scmp.ne.s32.totalorder %s162, %s163
      %p172 = scmp.eq.s32.totalorder %s27, 0
      %p173 = por %p171, %p172
      %p174 = scmp.ne.s32.totalorder %s162, %s163
      %p175 = scmp.eq.s32.totalorder %s28, 3
      %p176 = por %p174, %p175
      %p178 = scmp.ne.s32.totalorder %s163, %s177
      %p179 = scmp.eq.s32.totalorder %s28, 0
      %p180 = por %p178, %p179
      %s182 = sadd.s32 %s181, 1
      %p185 = scmp.eq.s32.totalorder %s22, 3
      %p186 = scmp.ne.s32.totalorder %s181, %s183
      %p187 = scmp.eq.s32.totalorder %s22, 0
      %p188 = por %p186, %p187
      %p189 = scmp.ne.s32.totalorder %s181, %s183
      %p190 = scmp.eq.s32.totalorder %s27, 3
      %p191 = por %p189, %p190
      %p192 = scmp.ne.s32.totalorder %s183, %s184
      %p193 = scmp.eq.s32.totalorder %s27, 0
      %p194 = por %p192, %p193
      %p195 = scmp.ne.s32.totalorder %s183, %s184
      %p196 = scmp.eq.s32.totalorder %s28, 3
      %p197 = por %p195, %p196
      %p199 = scmp.ne.s32.totalorder %s184, %s198
      %p200 = scmp.eq.s32.totalorder %s28, 0
      %p201 = por %p199, %p200
      %s203 = sadd.s32 %s202, 1
      %p206 = scmp.eq.s32.totalorder %s22, 3
      %p207 = scmp.ne.s32.totalorder %s202, %s204
      %p208 = scmp.eq.s32.totalorder %s22, 0
      %p209 = por %p207, %p208
      %p210 = scmp.ne.s32.totalorder %s202, %s204
      %p211 = scmp.eq.s32.totalorder %s27, 3
      %p212 = por %p210, %p211
      %p213 = scmp.ne.s32.totalorder %s204, %s205
      %p214 = scmp.eq.s32.totalorder %s27, 0
      %p215 = por %p213, %p214
      %p216 = scmp.ne.s32.totalorder %s204, %s205
      %p217 = scmp.eq.s32.totalorder %s28, 3
      %p218 = por %p216, %p217
      %p220 = scmp.ne.s32.totalorder %s205, %s219
      %p221 = scmp.eq.s32.totalorder %s28, 0
      %p222 = por %p220, %p221
      %s224 = sadd.s32 %s223, 1
      %p227 = scmp.eq.s32.totalorder %s22, 3
      %p228 = scmp.ne.s32.totalorder %s223, %s225
      %p229 = scmp.eq.s32.totalorder %s22, 0
      %p230 = por %p228, %p229
      %p231 = scmp.ne.s32.totalorder %s223, %s225
      %p232 = scmp.eq.s32.totalorder %s27, 3
      %p233 = por %p231, %p232
      %p234 = scmp.ne.s32.totalorder %s225, %s226
      %p235 = scmp.eq.s32.totalorder %s27, 0
      %p236 = por %p234, %p235
      %p237 = scmp.ne.s32.totalorder %s225, %s226
      %p238 = scmp.eq.s32.totalorder %s28, 3
      %p239 = por %p237, %p238
      %p241 = scmp.ne.s32.totalorder %s226, %s240
      %p242 = scmp.eq.s32.totalorder %s28, 0
      %p243 = por %p241, %p242
      %s245 = sadd.s32 %s244, 1
      %p248 = scmp.eq.s32.totalorder %s22, 3
      %p249 = scmp.ne.s32.totalorder %s244, %s246
      %p250 = scmp.eq.s32.totalorder %s22, 0
      %p251 = por %p249, %p250
      %p252 = scmp.ne.s32.totalorder %s244, %s246
      %p253 = scmp.eq.s32.totalorder %s27, 3
      %p254 = por %p252, %p253
      %p255 = scmp.ne.s32.totalorder %s246, %s247
      %p256 = scmp.eq.s32.totalorder %s27, 0
      %p257 = por %p255, %p256
      %p258 = scmp.ne.s32.totalorder %s246, %s247
      %p259 = scmp.eq.s32.totalorder %s28, 3
      %p260 = por %p258, %p259
      %p262 = scmp.ne.s32.totalorder %s247, %s261
      %p263 = scmp.eq.s32.totalorder %s28, 0
      %p264 = por %p262, %p263
      %s266 = sadd.s32 %s265, 1
      %p269 = scmp.eq.s32.totalorder %s22, 3
      %p270 = scmp.ne.s32.totalorder %s265, %s267
      %p271 = scmp.eq.s32.totalorder %s22, 0
      %p272 = por %p270, %p271
      %p273 = scmp.ne.s32.totalorder %s265, %s267
      %p274 = scmp.eq.s32.totalorder %s27, 3
      %p275 = por %p273, %p274
      %p276 = scmp.ne.s32.totalorder %s267, %s268
      %p277 = scmp.eq.s32.totalorder %s27, 0
      %p278 = por %p276, %p277
      %p279 = scmp.ne.s32.totalorder %s267, %s268
      %p280 = scmp.eq.s32.totalorder %s28, 3
      %p281 = por %p279, %p280
      %p283 = scmp.ne.s32.totalorder %s268, %s282
      %p284 = scmp.eq.s32.totalorder %s28, 0
      %p285 = por %p283, %p284
      %s287 = sadd.s32 %s286, 1
      %p290 = scmp.eq.s32.totalorder %s22, 3
      %p291 = scmp.ne.s32.totalorder %s286, %s288
      %p292 = scmp.eq.s32.totalorder %s22, 0
      %p293 = por %p291, %p292
      %p294 = scmp.ne.s32.totalorder %s286, %s288
      %p295 = scmp.eq.s32.totalorder %s27, 3
      %p296 = por %p294, %p295
      %p297 = scmp.ne.s32.totalorder %s288, %s289
      %p298 = scmp.eq.s32.totalorder %s27, 0
      %p299 = por %p297, %p298
      %p300 = scmp.ne.s32.totalorder %s288, %s289
      %p301 = scmp.eq.s32.totalorder %s28, 3
      %p302 = por %p300, %p301
      %p304 = scmp.ne.s32.totalorder %s289, %s303
      %p305 = scmp.eq.s32.totalorder %s28, 0
      %p306 = por %p304, %p305
      %s308 = sadd.s32 %s307, 1
      %p311 = scmp.eq.s32.totalorder %s22, 3
      %p312 = scmp.ne.s32.totalorder %s307, %s309
      %p313 = scmp.eq.s32.totalorder %s22, 0
      %p314 = por %p312, %p313
      %p315 = scmp.ne.s32.totalorder %s307, %s309
      %p316 = scmp.eq.s32.totalorder %s27, 3
      %p317 = por %p315, %p316
      %p318 = scmp.ne.s32.totalorder %s309, %s310
      %p319 = scmp.eq.s32.totalorder %s27, 0
      %p320 = por %p318, %p319
      %p321 = scmp.ne.s32.totalorder %s309, %s310
      %p322 = scmp.eq.s32.totalorder %s28, 3
      %p323 = por %p321, %p322
      %p325 = scmp.ne.s32.totalorder %s310, %s324
      %p326 = scmp.eq.s32.totalorder %s28, 0
      %p327 = por %p325, %p326
      %s328 = ssub.s32 %s22, %s29
      %p329 = scmp.eq.s32.totalorder %s328, 0
      %s331 = sadd.s32 %s330, 1
      %s332 = scalar_select %p329, %s330, %s331
      %p335 = pneg %p329
      %p336 = scmp.eq.s32.totalorder %s22, 3
      %p337 = por %p335, %p336
      %p338 = scmp.ne.s32.totalorder %s330, %s333
      %p339 = scmp.eq.s32.totalorder %s22, 0
      %p340 = por %p338, %p339
      %p341 = scmp.ne.s32.totalorder %s330, %s333
      %p342 = scmp.eq.s32.totalorder %s27, 3
      %p343 = por %p341, %p342
      %p344 = scmp.ne.s32.totalorder %s333, %s334
      %p345 = scmp.eq.s32.totalorder %s27, 0
      %p346 = por %p344, %p345
      %p347 = scmp.ne.s32.totalorder %s333, %s334
      %p348 = scmp.eq.s32.totalorder %s28, 3
      %p349 = por %p347, %p348
      %p351 = scmp.ne.s32.totalorder %s334, %s350
      %p352 = scmp.eq.s32.totalorder %s28, 0
      %p353 = por %p351, %p352
      %p354 = scmp.le.s32.totalorder 1, %s22
      %p355 = scmp.lt.s32.totalorder %s22, 5
      %p356 = pnand %p354, %p355
      %p357 = pneg %p356
      // Predicated region
      $region9: #{tpu_custom_call.1} parent=5 // pred_check
        _
      $region10: #{tpu_custom_call.1} parent=5 // pred_check_branch
        %359 = sbr.rel (%p356) target = $region12
      $region11: #{tpu_custom_call.1} parent=5 // pred_region
        %s360 = ssub.s32 %s22, 1
        // Predicated region
        $region13: #{tpu_custom_call.1} parent=11 // pred_check
          %p361 = pneg %p173
        $region14: #{tpu_custom_call.1} parent=11 // pred_check_branch
          %363 = sbr.rel (%p361) target = $region16
        $region15: #{tpu_custom_call.1} parent=11 // pred_region
          _
        $region16: #{tpu_custom_call.1} parent=11 // pred_fallthru
          _
        // Predicated region
        $region17: #{tpu_custom_call.1} parent=11 // pred_check
          %p364 = pneg %p194
        $region18: #{tpu_custom_call.1} parent=11 // pred_check_branch
          %366 = sbr.rel (%p364) target = $region20
        $region19: #{tpu_custom_call.1} parent=11 // pred_region
          _
        $region20: #{tpu_custom_call.1} parent=11 // pred_fallthru
          _
        // Predicated region
        $region21: #{tpu_custom_call.1} parent=11 // pred_check
          %p367 = pneg %p215
        $region22: #{tpu_custom_call.1} parent=11 // pred_check_branch
          %369 = sbr.rel (%p367) target = $region24
        $region23: #{tpu_custom_call.1} parent=11 // pred_region
          _
        $region24: #{tpu_custom_call.1} parent=11 // pred_fallthru
          _
        // Predicated region
        $region25: #{tpu_custom_call.1} parent=11 // pred_check
          %p370 = pneg %p236
        $region26: #{tpu_custom_call.1} parent=11 // pred_check_branch
          %372 = sbr.rel (%p370) target = $region28
        $region27: #{tpu_custom_call.1} parent=11 // pred_region
          _
        $region28: #{tpu_custom_call.1} parent=11 // pred_fallthru
          _
        // Predicated region
        $region29: #{tpu_custom_call.1} parent=11 // pred_check
          %p373 = pneg %p257
        $region30: #{tpu_custom_call.1} parent=11 // pred_check_branch
          %375 = sbr.rel (%p373) target = $region32
        $region31: #{tpu_custom_call.1} parent=11 // pred_region
          _
        $region32: #{tpu_custom_call.1} parent=11 // pred_fallthru
          _
        // Predicated region
        $region33: #{tpu_custom_call.1} parent=11 // pred_check
          %p376 = pneg %p278
        $region34: #{tpu_custom_call.1} parent=11 // pred_check_branch
          %378 = sbr.rel (%p376) target = $region36
        $region35: #{tpu_custom_call.1} parent=11 // pred_region
          _
        $region36: #{tpu_custom_call.1} parent=11 // pred_fallthru
          _
        // Predicated region
        $region37: #{tpu_custom_call.1} parent=11 // pred_check
          %p379 = pneg %p299
        $region38: #{tpu_custom_call.1} parent=11 // pred_check_branch
          %381 = sbr.rel (%p379) target = $region40
        $region39: #{tpu_custom_call.1} parent=11 // pred_region
          _
        $region40: #{tpu_custom_call.1} parent=11 // pred_fallthru
          _
        // Predicated region
        $region41: #{tpu_custom_call.1} parent=11 // pred_check
          %p382 = pneg %p320
        $region42: #{tpu_custom_call.1} parent=11 // pred_check_branch
          %384 = sbr.rel (%p382) target = $region44
        $region43: #{tpu_custom_call.1} parent=11 // pred_region
          _
        $region44: #{tpu_custom_call.1} parent=11 // pred_fallthru
          _
      $region12: #{tpu_custom_call.1} parent=5 // pred_fallthru
        _
      %p385 = scmp.lt.s32.totalorder %s22, 4
      // Predicated region
      $region45: #{tpu_custom_call.1} parent=5 // pred_check
        %p386 = pneg %p385
      $region46: #{tpu_custom_call.1} parent=5 // pred_check_branch
        %388 = sbr.rel (%p386) target = $region48
      $region47: #{tpu_custom_call.1} parent=5 // pred_region
        // Predicated region
        $region49: #{tpu_custom_call.1} parent=47 // pred_check
          %p389 = pneg %p42
        $region50: #{tpu_custom_call.1} parent=47 // pred_check_branch
          %391 = sbr.rel (%p389) target = $region52
        $region51: #{tpu_custom_call.1} parent=47 // pred_region
          %p392 = scmp.lt.s32.totalorder %s22, 3
          %s393 = scalar_select %p392, %s22, 3
          %s394 = scalar_lea.vmem %s0, %s393
        $region52: #{tpu_custom_call.1} parent=47 // pred_fallthru
          _
        // Predicated region
        $region53: #{tpu_custom_call.1} parent=47 // pred_check
          %p395 = pneg %p68
        $region54: #{tpu_custom_call.1} parent=47 // pred_check_branch
          %397 = sbr.rel (%p395) target = $region56
        $region55: #{tpu_custom_call.1} parent=47 // pred_region
          %p398 = scmp.lt.s32.totalorder %s22, 3
          %s399 = scalar_select %p398, %s22, 3
          %s400 = scalar_lea.vmem %s1, %s399
        $region56: #{tpu_custom_call.1} parent=47 // pred_fallthru
          _
        // Predicated region
        $region57: #{tpu_custom_call.1} parent=47 // pred_check
          %p401 = pneg %p94
        $region58: #{tpu_custom_call.1} parent=47 // pred_check_branch
          %403 = sbr.rel (%p401) target = $region60
        $region59: #{tpu_custom_call.1} parent=47 // pred_region
          %p404 = scmp.lt.s32.totalorder %s22, 3
          %s405 = scalar_select %p404, %s22, 3
          %s406 = smul.addr %s405, 22
          %s407 = smul.addr %s406, 8
          %s408 = scalar_lea.vmem %s2, %s407
        $region60: #{tpu_custom_call.1} parent=47 // pred_fallthru
          _
        // Predicated region
        $region61: #{tpu_custom_call.1} parent=47 // pred_check
          %p409 = pneg %p120
        $region62: #{tpu_custom_call.1} parent=47 // pred_check_branch
          %411 = sbr.rel (%p409) target = $region64
        $region63: #{tpu_custom_call.1} parent=47 // pred_region
          %p412 = scmp.lt.s32.totalorder %s22, 3
          %s413 = scalar_select %p412, %s22, 3
          %s414 = scalar_lea.vmem %s3, %s413
        $region64: #{tpu_custom_call.1} parent=47 // pred_fallthru
          _
        // Predicated region
        $region65: #{tpu_custom_call.1} parent=47 // pred_check
          %p415 = pneg %p146
        $region66: #{tpu_custom_call.1} parent=47 // pred_check_branch
          %417 = sbr.rel (%p415) target = $region68
        $region67: #{tpu_custom_call.1} parent=47 // pred_region
          %s418 = smul.u32 16, %s22
          %p419 = scmp.lt.s32.totalorder %s418, 63
          %s420 = scalar_select %p419, %s418, 63
          %s421 = smul.addr %s420, 8
          %s422 = scalar_lea.vmem %s4, %s421
          %s423 = smul.u32 16, %s22
        $region68: #{tpu_custom_call.1} parent=47 // pred_fallthru
          _
      $region48: #{tpu_custom_call.1} parent=5 // pred_fallthru
        _
      %p424 = scmp.le.s32.totalorder 1, %s22
      %p425 = scmp.lt.s32.totalorder %s22, 5
      %p426 = pnand %p424, %p425
      %p427 = pneg %p426
      // Predicated region
      $region69: #{tpu_custom_call.1} parent=5 // pred_check
        _
      $region70: #{tpu_custom_call.1} parent=5 // pred_check_branch
        %429 = sbr.rel (%p426) target = $region72
      $region71: #{tpu_custom_call.1} parent=5 // pred_region
        %s430 = ssub.s32 %s22, 1
        %p431 = scmp.lt.s32.totalorder %s27, 3
        %s432 = scalar_select %p431, %s27, 3
        %s433 = scalar_lea.vmem %s0, %s432
        %p434 = pneg %p48
        %p435 = pneg %p45
        %p436 = scmp.lt.s32.totalorder %s27, 3
        %s437 = scalar_select %p436, %s27, 3
        %s438 = scalar_lea.vmem %s1, %s437
        %p439 = pneg %p74
        %p440 = pneg %p71
        %p441 = scmp.lt.s32.totalorder %s27, 3
        %s442 = scalar_select %p441, %s27, 3
        %s443 = smul.addr %s442, 22
        %s444 = smul.addr %s443, 8
        %s445 = scalar_lea.vmem %s2, %s444
        %p446 = pneg %p100
        %p447 = pneg %p97
        %p448 = scmp.lt.s32.totalorder %s27, 3
        %s449 = scalar_select %p448, %s27, 3
        %s450 = scalar_lea.vmem %s3, %s449
        %p451 = pneg %p126
        %p452 = pneg %p123
        %s453 = smul.u32 16, %s27
        %p454 = scmp.lt.s32.totalorder %s453, 63
        %s455 = scalar_select %p454, %s453, 63
        %s456 = smul.addr %s455, 8
        %s457 = scalar_lea.vmem %s4, %s456
        %p458 = pneg %p152
        %p459 = pneg %p149
        %p460 = pneg %p173
        %p461 = pneg %p170
        %p462 = pneg %p194
        %p463 = pneg %p191
        %p464 = pneg %p215
        %p465 = pneg %p212
        %p466 = pneg %p236
        %p467 = pneg %p233
        %p468 = pneg %p257
        %p469 = pneg %p254
        %p470 = pneg %p278
        %p471 = pneg %p275
        %p472 = pneg %p299
        %p473 = pneg %p296
        %p474 = pneg %p320
        %p475 = pneg %p317
        %p476 = pneg %p346
        %p477 = pneg %p343
        %s478 = sand.u32 %s333, 1
        %s479 = scalar_lea.sflag [#allocation3], %s478
        %s480 = sand.u32 %s333, 1
        %s481 = smul.addr %s480, 32
        %s482 = scalar_lea.vmem [#allocation2], %s481
        %p483 = scmp.lt.s32.totalorder %s27, 3
        %s484 = scalar_select %p483, %s27, 3
        %s485 = scalar_lea.vmem %s0, %s484
        %p486 = scmp.lt.s32.totalorder %s27, 3
        %s487 = scalar_select %p486, %s27, 3
        %s488 = scalar_lea.vmem %s1, %s487
        %p489 = scmp.lt.s32.totalorder %s27, 3
        %s490 = scalar_select %p489, %s27, 3
        %s491 = smul.addr %s490, 22
        %s492 = smul.addr %s491, 8
        %s493 = scalar_lea.vmem %s2, %s492
        %p494 = scmp.lt.s32.totalorder %s27, 3
        %s495 = scalar_select %p494, %s27, 3
        %s496 = scalar_lea.vmem %s3, %s495
        %s497 = smul.u32 16, %s27
        %p498 = scmp.lt.s32.totalorder %s497, 63
        %s499 = scalar_select %p498, %s497, 63
        %s500 = smul.addr %s499, 8
        %s501 = scalar_lea.vmem %s4, %s500
        %s502 = smul.u32 16, %s27
        %s503 = smul.u32 4, %s27
        %v504 = vld [vmem:[%s501] sm:$0xff]
        %v505 = vld [vmem:[%s501 + $0x8] sm:$0xff]
        %v506 = vld [vmem:[%s501 + $0x10] sm:$0xff]
        %v507 = vld [vmem:[%s501 + $0x18] sm:$0xff]
        %v508 = vld [vmem:[%s501 + $0x20] sm:$0xff]
        %v509 = vld [vmem:[%s501 + $0x28] sm:$0xff]
        %v510 = vld [vmem:[%s501 + $0x30] sm:$0xff]
        %v511 = vld [vmem:[%s501 + $0x38] sm:$0xff]
        %v512 = vld [vmem:[%s501 + $0x40] sm:$0xff]
        %v513 = vld [vmem:[%s501 + $0x48] sm:$0xff]
        %v514 = vld [vmem:[%s501 + $0x50] sm:$0xff]
        %v515 = vld [vmem:[%s501 + $0x58] sm:$0xff]
        %v516 = vld [vmem:[%s501 + $0x60] sm:$0xff]
        %v517 = vld [vmem:[%s501 + $0x68] sm:$0xff]
        %v518 = vld [vmem:[%s501 + $0x70] sm:$0xff]
        %v519 = vld [vmem:[%s501 + $0x78] sm:$0xff]
        %v520 = vlaneseq
        %v521 = vshrl.u32 %v520, 7
        %v522 = vadd.s32 %v521, 8
        %v523 = vadd.s32 %v521, 16
        %v524 = vadd.s32 %v521, 24
        %v525 = vadd.s32 %v521, 32
        %v526 = vadd.s32 %v521, 40
        %v527 = vadd.s32 %v521, 48
        %v528 = vadd.s32 %v521, 56
        %v529 = vadd.s32 %v521, 64
        %v530 = vadd.s32 %v521, 72
        %v531 = vadd.s32 %v521, 80
        %v532 = vadd.s32 %v521, 88
        %v533 = vadd.s32 %v521, 96
        %v534 = vadd.s32 %v521, 104
        %v535 = vadd.s32 %v521, 112
        %v536 = vadd.s32 %v521, 120
        %v537 = vadd.s32 %v521, 128
        %v538 = vadd.s32 %v521, 136
        %v539 = vadd.s32 %v521, 144
        %v540 = vadd.s32 %v521, 152
        %v541 = vadd.s32 %v521, 160
        %v542 = vadd.s32 %v521, 168
        %v543 = vlaneseq
        %v544 = vand.u32 %v543, 127
        %v545 = vld [vmem:[%s485] sm:$0x1]
        %v546 = vld [vmem:[%s488] sm:$0x1]
        %v547 = vld [vmem:[%s493] sm:$0xff]
        %v548 = vld [vmem:[%s493 + $0x8] sm:$0xff]
        %v549 = vld [vmem:[%s493 + $0x10] sm:$0xff]
        %v550 = vld [vmem:[%s493 + $0x18] sm:$0xff]
        %v551 = vld [vmem:[%s493 + $0x20] sm:$0xff]
        %v552 = vld [vmem:[%s493 + $0x28] sm:$0xff]
        %v553 = vld [vmem:[%s493 + $0x30] sm:$0xff]
        %v554 = vld [vmem:[%s493 + $0x38] sm:$0xff]
        %v555 = vld [vmem:[%s493 + $0x40] sm:$0xff]
        %v556 = vld [vmem:[%s493 + $0x48] sm:$0xff]
        %v557 = vld [vmem:[%s493 + $0x50] sm:$0xff]
        %v558 = vld [vmem:[%s493 + $0x58] sm:$0xff]
        %v559 = vld [vmem:[%s493 + $0x60] sm:$0xff]
        %v560 = vld [vmem:[%s493 + $0x68] sm:$0xff]
        %v561 = vld [vmem:[%s493 + $0x70] sm:$0xff]
        %v562 = vld [vmem:[%s493 + $0x78] sm:$0xff]
        %v563 = vld [vmem:[%s493 + $0x80] sm:$0xff]
        %v564 = vld [vmem:[%s493 + $0x88] sm:$0xff]
        %v565 = vld [vmem:[%s493 + $0x90] sm:$0xff]
        %v566 = vld [vmem:[%s493 + $0x98] sm:$0xff]
        %v567 = vld [vmem:[%s493 + $0xa0] sm:$0xff]
        %v568 = vld [vmem:[%s493 + $0xa8] sm:$0xff]
        %v569 = vlaneseq
        %v570 = vshrl.u32 %v569, 7
        %v571 = vsub.s32 0, %v570
        %v572 = vrot.slane %v545, %v571
        %vm573 = vcmp.eq.s32.totalorder %v521, %v572
        %vm574 = vcmp.eq.s32.totalorder %v522, %v572
        %vm575 = vcmp.eq.s32.totalorder %v523, %v572
        %vm576 = vcmp.eq.s32.totalorder %v524, %v572
        %vm577 = vcmp.eq.s32.totalorder %v525, %v572
        %vm578 = vcmp.eq.s32.totalorder %v526, %v572
        %vm579 = vcmp.eq.s32.totalorder %v527, %v572
        %vm580 = vcmp.eq.s32.totalorder %v528, %v572
        %vm581 = vcmp.eq.s32.totalorder %v529, %v572
        %vm582 = vcmp.eq.s32.totalorder %v530, %v572
        %vm583 = vcmp.eq.s32.totalorder %v531, %v572
        %vm584 = vcmp.eq.s32.totalorder %v532, %v572
        %vm585 = vcmp.eq.s32.totalorder %v533, %v572
        %vm586 = vcmp.eq.s32.totalorder %v534, %v572
        %vm587 = vcmp.eq.s32.totalorder %v535, %v572
        %vm588 = vcmp.eq.s32.totalorder %v536, %v572
        %vm589 = vcmp.eq.s32.totalorder %v537, %v572
        %vm590 = vcmp.eq.s32.totalorder %v538, %v572
        %vm591 = vcmp.eq.s32.totalorder %v539, %v572
        %vm592 = vcmp.eq.s32.totalorder %v540, %v572
        %vm593 = vcmp.eq.s32.totalorder %v541, %v572
        %vm594 = vcmp.eq.s32.totalorder %v542, %v572
        %v595 = vlaneseq
        %v596 = vshrl.u32 %v595, 7
        %v597 = vsub.s32 0, %v596
        %v598 = vrot.slane %v546, %v597
        %vm599 = vcmp.eq.s32.totalorder %v521, %v598
        %vm600 = vcmp.eq.s32.totalorder %v522, %v598
        %vm601 = vcmp.eq.s32.totalorder %v523, %v598
        %vm602 = vcmp.eq.s32.totalorder %v524, %v598
        %vm603 = vcmp.eq.s32.totalorder %v525, %v598
        %vm604 = vcmp.eq.s32.totalorder %v526, %v598
        %vm605 = vcmp.eq.s32.totalorder %v527, %v598
        %vm606 = vcmp.eq.s32.totalorder %v528, %v598
        %vm607 = vcmp.eq.s32.totalorder %v529, %v598
        %vm608 = vcmp.eq.s32.totalorder %v530, %v598
        %vm609 = vcmp.eq.s32.totalorder %v531, %v598
        %vm610 = vcmp.eq.s32.totalorder %v532, %v598
        %vm611 = vcmp.eq.s32.totalorder %v533, %v598
        %vm612 = vcmp.eq.s32.totalorder %v534, %v598
        %vm613 = vcmp.eq.s32.totalorder %v535, %v598
        %vm614 = vcmp.eq.s32.totalorder %v536, %v598
        %vm615 = vcmp.eq.s32.totalorder %v537, %v598
        %vm616 = vcmp.eq.s32.totalorder %v538, %v598
        %vm617 = vcmp.eq.s32.totalorder %v539, %v598
        %vm618 = vcmp.eq.s32.totalorder %v540, %v598
        %vm619 = vcmp.eq.s32.totalorder %v541, %v598
        %vm620 = vcmp.eq.s32.totalorder %v542, %v598
        %vm621 = vmor %vm573, %vm599
        %vm622 = vmor %vm574, %vm600
        %vm623 = vmor %vm575, %vm601
        %vm624 = vmor %vm576, %vm602
        %vm625 = vmor %vm577, %vm603
        %vm626 = vmor %vm578, %vm604
        %vm627 = vmor %vm579, %vm605
        %vm628 = vmor %vm580, %vm606
        %vm629 = vmor %vm581, %vm607
        %vm630 = vmor %vm582, %vm608
        %vm631 = vmor %vm583, %vm609
        %vm632 = vmor %vm584, %vm610
        %vm633 = vmor %vm585, %vm611
        %vm634 = vmor %vm586, %vm612
        %vm635 = vmor %vm587, %vm613
        %vm636 = vmor %vm588, %vm614
        %vm637 = vmor %vm589, %vm615
        %vm638 = vmor %vm590, %vm616
        %vm639 = vmor %vm591, %vm617
        %vm640 = vmor %vm592, %vm618
        %vm641 = vmor %vm593, %vm619
        %vm642 = vmor %vm594, %vm620
        %643 = vset.pattern.permute.xlu0 0
        %644 = vperm.xlu0 %643, %v547
        %v645 = vpop.permute.xlu0 %644
        %646 = vset.pattern.permute.xlu0 0
        %647 = vperm.xlu0 %646, %v548
        %v648 = vpop.permute.xlu0 %647
        %649 = vset.pattern.permute.xlu0 0
        %650 = vperm.xlu0 %649, %v549
        %v651 = vpop.permute.xlu0 %650
        %652 = vset.pattern.permute.xlu0 0
        %653 = vperm.xlu0 %652, %v550
        %v654 = vpop.permute.xlu0 %653
        %655 = vset.pattern.permute.xlu0 0
        %656 = vperm.xlu0 %655, %v551
        %v657 = vpop.permute.xlu0 %656
        %658 = vset.pattern.permute.xlu0 0
        %659 = vperm.xlu0 %658, %v552
        %v660 = vpop.permute.xlu0 %659
        %661 = vset.pattern.permute.xlu0 0
        %662 = vperm.xlu0 %661, %v553
        %v663 = vpop.permute.xlu0 %662
        %664 = vset.pattern.permute.xlu0 0
        %665 = vperm.xlu0 %664, %v554
        %v666 = vpop.permute.xlu0 %665
        %667 = vset.pattern.permute.xlu0 0
        %668 = vperm.xlu0 %667, %v555
        %v669 = vpop.permute.xlu0 %668
        %670 = vset.pattern.permute.xlu0 0
        %671 = vperm.xlu0 %670, %v556
        %v672 = vpop.permute.xlu0 %671
        %673 = vset.pattern.permute.xlu0 0
        %674 = vperm.xlu0 %673, %v557
        %v675 = vpop.permute.xlu0 %674
        %676 = vset.pattern.permute.xlu0 0
        %677 = vperm.xlu0 %676, %v558
        %v678 = vpop.permute.xlu0 %677
        %679 = vset.pattern.permute.xlu0 0
        %680 = vperm.xlu0 %679, %v559
        %v681 = vpop.permute.xlu0 %680
        %682 = vset.pattern.permute.xlu0 0
        %683 = vperm.xlu0 %682, %v560
        %v684 = vpop.permute.xlu0 %683
        %685 = vset.pattern.permute.xlu0 0
        %686 = vperm.xlu0 %685, %v561
        %v687 = vpop.permute.xlu0 %686
        %688 = vset.pattern.permute.xlu0 0
        %689 = vperm.xlu0 %688, %v562
        %v690 = vpop.permute.xlu0 %689
        %691 = vset.pattern.permute.xlu0 0
        %692 = vperm.xlu0 %691, %v563
        %v693 = vpop.permute.xlu0 %692
        %694 = vset.pattern.permute.xlu0 0
        %695 = vperm.xlu0 %694, %v564
        %v696 = vpop.permute.xlu0 %695
        %697 = vset.pattern.permute.xlu0 0
        %698 = vperm.xlu0 %697, %v565
        %v699 = vpop.permute.xlu0 %698
        %700 = vset.pattern.permute.xlu0 0
        %701 = vperm.xlu0 %700, %v566
        %v702 = vpop.permute.xlu0 %701
        %703 = vset.pattern.permute.xlu0 0
        %704 = vperm.xlu0 %703, %v567
        %v705 = vpop.permute.xlu0 %704
        %706 = vset.pattern.permute.xlu0 0
        %707 = vperm.xlu0 %706, %v568
        %v708 = vpop.permute.xlu0 %707
        %vm709 = vcmp.eq.s32.totalorder %v544, %v645
        %vm710 = vcmp.eq.s32.totalorder %v544, %v648
        %vm711 = vcmp.eq.s32.totalorder %v544, %v651
        %vm712 = vcmp.eq.s32.totalorder %v544, %v654
        %vm713 = vcmp.eq.s32.totalorder %v544, %v657
        %vm714 = vcmp.eq.s32.totalorder %v544, %v660
        %vm715 = vcmp.eq.s32.totalorder %v544, %v663
        %vm716 = vcmp.eq.s32.totalorder %v544, %v666
        %vm717 = vcmp.eq.s32.totalorder %v544, %v669
        %vm718 = vcmp.eq.s32.totalorder %v544, %v672
        %vm719 = vcmp.eq.s32.totalorder %v544, %v675
        %vm720 = vcmp.eq.s32.totalorder %v544, %v678
        %vm721 = vcmp.eq.s32.totalorder %v544, %v681
        %vm722 = vcmp.eq.s32.totalorder %v544, %v684
        %vm723 = vcmp.eq.s32.totalorder %v544, %v687
        %vm724 = vcmp.eq.s32.totalorder %v544, %v690
        %vm725 = vcmp.eq.s32.totalorder %v544, %v693
        %vm726 = vcmp.eq.s32.totalorder %v544, %v696
        %vm727 = vcmp.eq.s32.totalorder %v544, %v699
        %vm728 = vcmp.eq.s32.totalorder %v544, %v702
        %vm729 = vcmp.eq.s32.totalorder %v544, %v705
        %vm730 = vcmp.eq.s32.totalorder %v544, %v708
        %vm731 = vmor %vm621, %vm709
        %vm732 = vmor %vm622, %vm710
        %vm733 = vmor %vm623, %vm711
        %vm734 = vmor %vm624, %vm712
        %vm735 = vmor %vm625, %vm713
        %vm736 = vmor %vm626, %vm714
        %vm737 = vmor %vm627, %vm715
        %vm738 = vmor %vm628, %vm716
        %vm739 = vmor %vm629, %vm717
        %vm740 = vmor %vm630, %vm718
        %vm741 = vmor %vm631, %vm719
        %vm742 = vmor %vm632, %vm720
        %vm743 = vmor %vm633, %vm721
        %vm744 = vmor %vm634, %vm722
        %vm745 = vmor %vm635, %vm723
        %vm746 = vmor %vm636, %vm724
        %vm747 = vmor %vm637, %vm725
        %vm748 = vmor %vm638, %vm726
        %vm749 = vmor %vm639, %vm727
        %vm750 = vmor %vm640, %vm728
        %vm751 = vmor %vm641, %vm729
        %vm752 = vmor %vm642, %vm730
        %v753 = vsel %vm731, 1, 0
        %v754 = vsel %vm732, 1, 0
        %v755 = vsel %vm733, 1, 0
        %v756 = vsel %vm734, 1, 0
        %v757 = vsel %vm735, 1, 0
        %v758 = vsel %vm736, 1, 0
        %v759 = vsel %vm737, 1, 0
        %v760 = vsel %vm738, 1, 0
        %v761 = vsel %vm739, 1, 0
        %v762 = vsel %vm740, 1, 0
        %v763 = vsel %vm741, 1, 0
        %v764 = vsel %vm742, 1, 0
        %v765 = vsel %vm743, 1, 0
        %v766 = vsel %vm744, 1, 0
        %v767 = vsel %vm745, 1, 0
        %v768 = vsel %vm746, 1, 0
        %v769 = vsel %vm747, 1, 0
        %v770 = vsel %vm748, 1, 0
        %v771 = vsel %vm749, 1, 0
        %v772 = vsel %vm750, 1, 0
        %v773 = vsel %vm751, 1, 0
        %v774 = vsel %vm752, 1, 0
        %v775 = vcvt.s32.f32 %v753
        %v776 = vcvt.s32.f32 %v754
        %v777 = vcvt.s32.f32 %v755
        %v778 = vcvt.s32.f32 %v756
        %v779 = vcvt.s32.f32 %v757
        %v780 = vcvt.s32.f32 %v758
        %v781 = vcvt.s32.f32 %v759
        %v782 = vcvt.s32.f32 %v760
        %v783 = vcvt.s32.f32 %v761
        %v784 = vcvt.s32.f32 %v762
        %v785 = vcvt.s32.f32 %v763
        %v786 = vcvt.s32.f32 %v764
        %v787 = vcvt.s32.f32 %v765
        %v788 = vcvt.s32.f32 %v766
        %v789 = vcvt.s32.f32 %v767
        %v790 = vcvt.s32.f32 %v768
        %v791 = vcvt.s32.f32 %v769
        %v792 = vcvt.s32.f32 %v770
        %v793 = vcvt.s32.f32 %v771
        %v794 = vcvt.s32.f32 %v772
        %v795 = vcvt.s32.f32 %v773
        %v796 = vcvt.s32.f32 %v774
        %797 = vmatprep.subr.mxu0 0.0
        %v798 = vand.u32 %v504, 4294901760
        %799 = vmatpush1.msra.mxu0 %v798
        %800 = vmatprep.subr.mxu0 0.0
        %v801 = vand.u32 %v505, 4294901760
        %802 = vmatpush1.msra.mxu0 %v801
        %803 = vmatprep.subr.mxu0 0.0
        %v804 = vand.u32 %v506, 4294901760
        %805 = vmatpush1.msra.mxu0 %v804
        %806 = vmatprep.subr.mxu0 0.0
        %v807 = vand.u32 %v507, 4294901760
        %808 = vmatpush1.msra.mxu0 %v807
        %809 = vmatprep.subr.mxu0 0.0
        %v810 = vand.u32 %v508, 4294901760
        %811 = vmatpush1.msra.mxu0 %v810
        %812 = vmatprep.subr.mxu0 0.0
        %v813 = vand.u32 %v509, 4294901760
        %814 = vmatpush1.msra.mxu0 %v813
        %815 = vmatprep.subr.mxu0 0.0
        %v816 = vand.u32 %v510, 4294901760
        %817 = vmatpush1.msra.mxu0 %v816
        %818 = vmatprep.subr.mxu0 0.0
        %v819 = vand.u32 %v511, 4294901760
        %820 = vmatpush1.msra.mxu0 %v819
        %821 = vmatprep.subr.mxu0 0.0
        %v822 = vand.u32 %v512, 4294901760
        %823 = vmatpush1.msra.mxu0 %v822
        %824 = vmatprep.subr.mxu0 0.0
        %v825 = vand.u32 %v513, 4294901760
        %826 = vmatpush1.msra.mxu0 %v825
        %827 = vmatprep.subr.mxu0 0.0
        %v828 = vand.u32 %v514, 4294901760
        %829 = vmatpush1.msra.mxu0 %v828
        %830 = vmatprep.subr.mxu0 0.0
        %v831 = vand.u32 %v515, 4294901760
        %832 = vmatpush1.msra.mxu0 %v831
        %833 = vmatprep.subr.mxu0 0.0
        %v834 = vand.u32 %v516, 4294901760
        %835 = vmatpush1.msra.mxu0 %v834
        %836 = vmatprep.subr.mxu0 0.0
        %v837 = vand.u32 %v517, 4294901760
        %838 = vmatpush1.msra.mxu0 %v837
        %839 = vmatprep.subr.mxu0 0.0
        %v840 = vand.u32 %v518, 4294901760
        %841 = vmatpush1.msra.mxu0 %v840
        %842 = vmatprep.subr.mxu0 0.0
        %v843 = vand.u32 %v519, 4294901760
        %844 = vmatpush1.msra.mxu0 %v843
        %845 = vmatprep.subr.mxu0 0.0
        %846 = vmatpush1.msra.mxu0 0.0
        %847 = vmatprep.subr.mxu0 0.0
        %848 = vmatpush1.msra.mxu0 0.0
        %849 = vmatprep.subr.mxu0 0.0
        %850 = vmatpush1.msra.mxu0 0.0
        %851 = vmatprep.subr.mxu0 0.0
        %852 = vmatpush1.msra.mxu0 0.0
        %853 = vmatprep.subr.mxu0 0.0
        %854 = vmatpush1.msra.mxu0 0.0
        %855 = vmatprep.subr.mxu0 0.0
        %856 = vmatpush1.msra.mxu0 0.0
        %857 = vmatprep.subr.mxu0 0.0
        %858 = vmatpush1.msra.mxu0 0.0
        %859 = vmatprep.subr.mxu0 0.0
        %860 = vmatpush1.msra.mxu0 0.0
        %861 = vmatprep.subr.mxu0 0.0
        %862 = vmatpush1.msra.mxu0 0.0
        %863 = vmatprep.subr.mxu0 0.0
        %864 = vmatpush1.msra.mxu0 0.0
        %865 = vmatprep.subr.mxu0 0.0
        %866 = vmatpush1.msra.mxu0 0.0
        %867 = vmatprep.subr.mxu0 0.0
        %868 = vmatpush1.msra.mxu0 0.0
        %869 = vmatprep.subr.mxu0 0.0
        %870 = vmatpush1.msra.mxu0 0.0
        %871 = vmatprep.subr.mxu0 0.0
        %872 = vmatpush1.msra.mxu0 0.0
        %873 = vmatprep.subr.mxu0 0.0
        %874 = vmatpush1.msra.mxu0 0.0
        %875 = vmatprep.subr.mxu0 0.0
        %876 = vmatpush1.msra.mxu0 0.0
        %877 = vmatprep.mubr.f32.mxu0 0.0
        %v878 = vand.u32 %v775, 4294901760
        %v879 = vsub.f32 %v775, %v878
        %v880 = vand.u32 %v879, 4294901760
        %v881 = vsub.f32 %v879, %v880
        %v882 = vand.u32 %v881, 4294901760
        %883 = vmatmul.mubr.f32.gmra.mrb[0].mxu0 %v882
        %v884 = vpop.f32.mrb[0].mxu0
        %v885 = vadd.f32 0.0, %v884
        %v886 = vpop.f32.mrb[0].mxu0
        %887 = vmatprep.mubr.f32.mxu0 0.0
        %v888 = vand.u32 %v776, 4294901760
        %v889 = vsub.f32 %v776, %v888
        %v890 = vand.u32 %v889, 4294901760
        %v891 = vsub.f32 %v889, %v890
        %v892 = vand.u32 %v891, 4294901760
        %893 = vmatmul.mubr.f32.gmra.mrb[0].mxu0 %v892
        %v894 = vpop.f32.mrb[0].mxu0
        %v895 = vadd.f32 0.0, %v894
        %v896 = vpop.f32.mrb[0].mxu0
        %897 = vmatprep.mubr.f32.mxu0 0.0
        %v898 = vand.u32 %v777, 4294901760
        %v899 = vsub.f32 %v777, %v898
        %v900 = vand.u32 %v899, 4294901760
        %v901 = vsub.f32 %v899, %v900
        %v902 = vand.u32 %v901, 4294901760
        %903 = vmatmul.mubr.f32.gmra.mrb[0].mxu0 %v902
        %v904 = vpop.f32.mrb[0].mxu0
        %v905 = vadd.f32 0.0, %v904
        %v906 = vpop.f32.mrb[0].mxu0
        %907 = vmatprep.mubr.f32.mxu0 0.0
        %v908 = vand.u32 %v778, 4294901760
        %v909 = vsub.f32 %v778, %v908
        %v910 = vand.u32 %v909, 4294901760
        %v911 = vsub.f32 %v909, %v910
        %v912 = vand.u32 %v911, 4294901760
        %913 = vmatmul.mubr.f32.gmra.mrb[0].mxu0 %v912
        %v914 = vpop.f32.mrb[0].mxu0
        %v915 = vadd.f32 0.0, %v914
        %v916 = vpop.f32.mrb[0].mxu0
        %917 = vmatprep.mubr.f32.mxu0 0.0
        %v918 = vand.u32 %v779, 4294901760
        %v919 = vsub.f32 %v779, %v918
        %v920 = vand.u32 %v919, 4294901760
        %v921 = vsub.f32 %v919, %v920
        %v922 = vand.u32 %v921, 4294901760
        %923 = vmatmul.mubr.f32.gmra.mrb[0].mxu0 %v922
        %v924 = vpop.f32.mrb[0].mxu0
        %v925 = vadd.f32 0.0, %v924
        %v926 = vpop.f32.mrb[0].mxu0
        %927 = vmatprep.mubr.f32.mxu0 0.0
        %v928 = vand.u32 %v780, 4294901760
        %v929 = vsub.f32 %v780, %v928
        %v930 = vand.u32 %v929, 4294901760
        %v931 = vsub.f32 %v929, %v930
        %v932 = vand.u32 %v931, 4294901760
        %933 = vmatmul.mubr.f32.gmra.mrb[0].mxu0 %v932
        %v934 = vpop.f32.mrb[0].mxu0
        %v935 = vadd.f32 0.0, %v934
        %v936 = vpop.f32.mrb[0].mxu0
        %937 = vmatprep.mubr.f32.mxu0 0.0
        %v938 = vand.u32 %v781, 4294901760
        %v939 = vsub.f32 %v781, %v938
        %v940 = vand.u32 %v939, 4294901760
        %v941 = vsub.f32 %v939, %v940
        %v942 = vand.u32 %v941, 4294901760
        %943 = vmatmul.mubr.f32.gmra.mrb[0].mxu0 %v942
        %v944 = vpop.f32.mrb[0].mxu0
        %v945 = vadd.f32 0.0, %v944
        %v946 = vpop.f32.mrb[0].mxu0
        %947 = vmatprep.mubr.f32.mxu0 0.0
        %v948 = vand.u32 %v782, 4294901760
        %v949 = vsub.f32 %v782, %v948
        %v950 = vand.u32 %v949, 4294901760
        %v951 = vsub.f32 %v949, %v950
        %v952 = vand.u32 %v951, 4294901760
        %953 = vmatmul.mubr.f32.gmra.mrb[0].mxu0 %v952
        %v954 = vpop.f32.mrb[0].mxu0
        %v955 = vadd.f32 0.0, %v954
        %v956 = vpop.f32.mrb[0].mxu0
        %957 = vmatprep.mubr.f32.mxu0 0.0
        %v958 = vand.u32 %v783, 4294901760
        %v959 = vsub.f32 %v783, %v958
        %v960 = vand.u32 %v959, 4294901760
        %v961 = vsub.f32 %v959, %v960
        %v962 = vand.u32 %v961, 4294901760
        %963 = vmatmul.mubr.f32.gmra.mrb[0].mxu0 %v962
        %v964 = vpop.f32.mrb[0].mxu0
        %v965 = vadd.f32 0.0, %v964
        %v966 = vpop.f32.mrb[0].mxu0
        %967 = vmatprep.mubr.f32.mxu0 0.0
        %v968 = vand.u32 %v784, 4294901760
        %v969 = vsub.f32 %v784, %v968
        %v970 = vand.u32 %v969, 4294901760
        %v971 = vsub.f32 %v969, %v970
        %v972 = vand.u32 %v971, 4294901760
        %973 = vmatmul.mubr.f32.gmra.mrb[0].mxu0 %v972
        %v974 = vpop.f32.mrb[0].mxu0
        %v975 = vadd.f32 0.0, %v974
        %v976 = vpop.f32.mrb[0].mxu0
        %977 = vmatprep.mubr.f32.mxu0 0.0
        %v978 = vand.u32 %v785, 4294901760
        %v979 = vsub.f32 %v785, %v978
        %v980 = vand.u32 %v979, 4294901760
        %v981 = vsub.f32 %v979, %v980
        %v982 = vand.u32 %v981, 4294901760
        %983 = vmatmul.mubr.f32.gmra.mrb[0].mxu0 %v982
        %v984 = vpop.f32.mrb[0].mxu0
        %v985 = vadd.f32 0.0, %v984
        %v986 = vpop.f32.mrb[0].mxu0
        %987 = vmatprep.mubr.f32.mxu0 0.0
        %v988 = vand.u32 %v786, 4294901760
        %v989 = vsub.f32 %v786, %v988
        %v990 = vand.u32 %v989, 4294901760
        %v991 = vsub.f32 %v989, %v990
        %v992 = vand.u32 %v991, 4294901760
        %993 = vmatmul.mubr.f32.gmra.mrb[0].mxu0 %v992
        %v994 = vpop.f32.mrb[0].mxu0
        %v995 = vadd.f32 0.0, %v994
        %v996 = vpop.f32.mrb[0].mxu0
        %997 = vmatprep.mubr.f32.mxu0 0.0
        %v998 = vand.u32 %v787, 4294901760
        %v999 = vsub.f32 %v787, %v998
        %v1000 = vand.u32 %v999, 4294901760
        %v1001 = vsub.f32 %v999, %v1000
        %v1002 = vand.u32 %v1001, 4294901760
        %1003 = vmatmul.mubr.f32.gmra.mrb[0].mxu0 %v1002
        %v1004 = vpop.f32.mrb[0].mxu0
        %v1005 = vadd.f32 0.0, %v1004
        %v1006 = vpop.f32.mrb[0].mxu0
        %1007 = vmatprep.mubr.f32.mxu0 0.0
        %v1008 = vand.u32 %v788, 4294901760
        %v1009 = vsub.f32 %v788, %v1008
        %v1010 = vand.u32 %v1009, 4294901760
        %v1011 = vsub.f32 %v1009, %v1010
        %v1012 = vand.u32 %v1011, 4294901760
        %1013 = vmatmul.mubr.f32.gmra.mrb[0].mxu0 %v1012
        %v1014 = vpop.f32.mrb[0].mxu0
        %v1015 = vadd.f32 0.0, %v1014
        %v1016 = vpop.f32.mrb[0].mxu0
        %1017 = vmatprep.mubr.f32.mxu0 0.0
        %v1018 = vand.u32 %v789, 4294901760
        %v1019 = vsub.f32 %v789, %v1018
        %v1020 = vand.u32 %v1019, 4294901760
        %v1021 = vsub.f32 %v1019, %v1020
        %v1022 = vand.u32 %v1021, 4294901760
        %1023 = vmatmul.mubr.f32.gmra.mrb[0].mxu0 %v1022
        %v1024 = vpop.f32.mrb[0].mxu0
        %v1025 = vadd.f32 0.0, %v1024
        %v1026 = vpop.f32.mrb[0].mxu0
        %1027 = vmatprep.mubr.f32.mxu0 0.0
        %v1028 = vand.u32 %v790, 4294901760
        %v1029 = vsub.f32 %v790, %v1028
        %v1030 = vand.u32 %v1029, 4294901760
        %v1031 = vsub.f32 %v1029, %v1030
        %v1032 = vand.u32 %v1031, 4294901760
        %1033 = vmatmul.mubr.f32.gmra.mrb[0].mxu0 %v1032
        %v1034 = vpop.f32.mrb[0].mxu0
        %v1035 = vadd.f32 0.0, %v1034
        %v1036 = vpop.f32.mrb[0].mxu0
        %1037 = vmatprep.mubr.f32.mxu0 0.0
        %v1038 = vand.u32 %v791, 4294901760
        %v1039 = vsub.f32 %v791, %v1038
        %v1040 = vand.u32 %v1039, 4294901760
        %v1041 = vsub.f32 %v1039, %v1040
        %v1042 = vand.u32 %v1041, 4294901760
        %1043 = vmatmul.mubr.f32.gmra.mrb[0].mxu0 %v1042
        %v1044 = vpop.f32.mrb[0].mxu0
        %v1045 = vadd.f32 0.0, %v1044
        %v1046 = vpop.f32.mrb[0].mxu0
        %1047 = vmatprep.mubr.f32.mxu0 0.0
        %v1048 = vand.u32 %v792, 4294901760
        %v1049 = vsub.f32 %v792, %v1048
        %v1050 = vand.u32 %v1049, 4294901760
        %v1051 = vsub.f32 %v1049, %v1050
        %v1052 = vand.u32 %v1051, 4294901760
        %1053 = vmatmul.mubr.f32.gmra.mrb[0].mxu0 %v1052
        %v1054 = vpop.f32.mrb[0].mxu0
        %v1055 = vadd.f32 0.0, %v1054
        %v1056 = vpop.f32.mrb[0].mxu0
        %1057 = vmatprep.mubr.f32.mxu0 0.0
        %v1058 = vand.u32 %v793, 4294901760
        %v1059 = vsub.f32 %v793, %v1058
        %v1060 = vand.u32 %v1059, 4294901760
        %v1061 = vsub.f32 %v1059, %v1060
        %v1062 = vand.u32 %v1061, 4294901760
        %1063 = vmatmul.mubr.f32.gmra.mrb[0].mxu0 %v1062
        %v1064 = vpop.f32.mrb[0].mxu0
        %v1065 = vadd.f32 0.0, %v1064
        %v1066 = vpop.f32.mrb[0].mxu0
        %1067 = vmatprep.mubr.f32.mxu0 0.0
        %v1068 = vand.u32 %v794, 4294901760
        %v1069 = vsub.f32 %v794, %v1068
        %v1070 = vand.u32 %v1069, 4294901760
        %v1071 = vsub.f32 %v1069, %v1070
        %v1072 = vand.u32 %v1071, 4294901760
        %1073 = vmatmul.mubr.f32.gmra.mrb[0].mxu0 %v1072
        %v1074 = vpop.f32.mrb[0].mxu0
        %v1075 = vadd.f32 0.0, %v1074
        %v1076 = vpop.f32.mrb[0].mxu0
        %1077 = vmatprep.mubr.f32.mxu0 0.0
        %v1078 = vand.u32 %v795, 4294901760
        %v1079 = vsub.f32 %v795, %v1078
        %v1080 = vand.u32 %v1079, 4294901760
        %v1081 = vsub.f32 %v1079, %v1080
        %v1082 = vand.u32 %v1081, 4294901760
        %1083 = vmatmul.mubr.f32.gmra.mrb[0].mxu0 %v1082
        %v1084 = vpop.f32.mrb[0].mxu0
        %v1085 = vadd.f32 0.0, %v1084
        %v1086 = vpop.f32.mrb[0].mxu0
        %1087 = vmatprep.mubr.f32.mxu0 0.0
        %v1088 = vand.u32 %v796, 4294901760
        %v1089 = vsub.f32 %v796, %v1088
        %v1090 = vand.u32 %v1089, 4294901760
        %v1091 = vsub.f32 %v1089, %v1090
        %v1092 = vand.u32 %v1091, 4294901760
        %1093 = vmatmul.mubr.f32.gmra.mrb[0].mxu0 %v1092
        %v1094 = vpop.f32.mrb[0].mxu0
        %v1095 = vadd.f32 0.0, %v1094
        %v1096 = vpop.f32.mrb[0].mxu0
        %1097 = vdwg.mxu0
        %1098 = vmatprep.subr.mxu0 0.0
        %v1099 = vand.u32 %v504, 4294901760
        %v1100 = vsub.f32 %v504, %v1099
        %v1101 = vand.u32 %v1100, 4294901760
        %v1102 = vsub.f32 %v1100, %v1101
        %v1103 = vand.u32 %v1102, 4294901760
        %1104 = vmatpush1.msra.mxu0 %v1103
        %1105 = vmatprep.subr.mxu0 0.0
        %v1106 = vand.u32 %v505, 4294901760
        %v1107 = vsub.f32 %v505, %v1106
        %v1108 = vand.u32 %v1107, 4294901760
        %v1109 = vsub.f32 %v1107, %v1108
        %v1110 = vand.u32 %v1109, 4294901760
        %1111 = vmatpush1.msra.mxu0 %v1110
        %1112 = vmatprep.subr.mxu0 0.0
        %v1113 = vand.u32 %v506, 4294901760
        %v1114 = vsub.f32 %v506, %v1113
        %v1115 = vand.u32 %v1114, 4294901760
        %v1116 = vsub.f32 %v1114, %v1115
        %v1117 = vand.u32 %v1116, 4294901760
        %1118 = vmatpush1.msra.mxu0 %v1117
        %1119 = vmatprep.subr.mxu0 0.0
        %v1120 = vand.u32 %v507, 4294901760
        %v1121 = vsub.f32 %v507, %v1120
        %v1122 = vand.u32 %v1121, 4294901760
        %v1123 = vsub.f32 %v1121, %v1122
        %v1124 = vand.u32 %v1123, 4294901760
        %1125 = vmatpush1.msra.mxu0 %v1124
        %1126 = vmatprep.subr.mxu0 0.0
        %v1127 = vand.u32 %v508, 4294901760
        %v1128 = vsub.f32 %v508, %v1127
        %v1129 = vand.u32 %v1128, 4294901760
        %v1130 = vsub.f32 %v1128, %v1129
        %v1131 = vand.u32 %v1130, 4294901760
        %1132 = vmatpush1.msra.mxu0 %v1131
        %1133 = vmatprep.subr.mxu0 0.0
        %v1134 = vand.u32 %v509, 4294901760
        %v1135 = vsub.f32 %v509, %v1134
        %v1136 = vand.u32 %v1135, 4294901760
        %v1137 = vsub.f32 %v1135, %v1136
        %v1138 = vand.u32 %v1137, 4294901760
        %1139 = vmatpush1.msra.mxu0 %v1138
        %1140 = vmatprep.subr.mxu0 0.0
        %v1141 = vand.u32 %v510, 4294901760
        %v1142 = vsub.f32 %v510, %v1141
        %v1143 = vand.u32 %v1142, 4294901760
        %v1144 = vsub.f32 %v1142, %v1143
        %v1145 = vand.u32 %v1144, 4294901760
        %1146 = vmatpush1.msra.mxu0 %v1145
        %1147 = vmatprep.subr.mxu0 0.0
        %v1148 = vand.u32 %v511, 4294901760
        %v1149 = vsub.f32 %v511, %v1148
        %v1150 = vand.u32 %v1149, 4294901760
        %v1151 = vsub.f32 %v1149, %v1150
        %v1152 = vand.u32 %v1151, 4294901760
        %1153 = vmatpush1.msra.mxu0 %v1152
        %1154 = vmatprep.subr.mxu0 0.0
        %v1155 = vand.u32 %v512, 4294901760
        %v1156 = vsub.f32 %v512, %v1155
        %v1157 = vand.u32 %v1156, 4294901760
        %v1158 = vsub.f32 %v1156, %v1157
        %v1159 = vand.u32 %v1158, 4294901760
        %1160 = vmatpush1.msra.mxu0 %v1159
        %1161 = vmatprep.subr.mxu0 0.0
        %v1162 = vand.u32 %v513, 4294901760
        %v1163 = vsub.f32 %v513, %v1162
        %v1164 = vand.u32 %v1163, 4294901760
        %v1165 = vsub.f32 %v1163, %v1164
        %v1166 = vand.u32 %v1165, 4294901760
        %1167 = vmatpush1.msra.mxu0 %v1166
        %1168 = vmatprep.subr.mxu0 0.0
        %v1169 = vand.u32 %v514, 4294901760
        %v1170 = vsub.f32 %v514, %v1169
        %v1171 = vand.u32 %v1170, 4294901760
        %v1172 = vsub.f32 %v1170, %v1171
        %v1173 = vand.u32 %v1172, 4294901760
        %1174 = vmatpush1.msra.mxu0 %v1173
        %1175 = vmatprep.subr.mxu0 0.0
        %v1176 = vand.u32 %v515, 4294901760
        %v1177 = vsub.f32 %v515, %v1176
        %v1178 = vand.u32 %v1177, 4294901760
        %v1179 = vsub.f32 %v1177, %v1178
        %v1180 = vand.u32 %v1179, 4294901760
        %1181 = vmatpush1.msra.mxu0 %v1180
        %1182 = vmatprep.subr.mxu0 0.0
        %v1183 = vand.u32 %v516, 4294901760
        %v1184 = vsub.f32 %v516, %v1183
        %v1185 = vand.u32 %v1184, 4294901760
        %v1186 = vsub.f32 %v1184, %v1185
        %v1187 = vand.u32 %v1186, 4294901760
        %1188 = vmatpush1.msra.mxu0 %v1187
        %1189 = vmatprep.subr.mxu0 0.0
        %v1190 = vand.u32 %v517, 4294901760
        %v1191 = vsub.f32 %v517, %v1190
        %v1192 = vand.u32 %v1191, 4294901760
        %v1193 = vsub.f32 %v1191, %v1192
        %v1194 = vand.u32 %v1193, 4294901760
        %1195 = vmatpush1.msra.mxu0 %v1194
        %1196 = vmatprep.subr.mxu0 0.0
        %v1197 = vand.u32 %v518, 4294901760
        %v1198 = vsub.f32 %v518, %v1197
        %v1199 = vand.u32 %v1198, 4294901760
        %v1200 = vsub.f32 %v1198, %v1199
        %v1201 = vand.u32 %v1200, 4294901760
        %1202 = vmatpush1.msra.mxu0 %v1201
        %1203 = vmatprep.subr.mxu0 0.0
        %v1204 = vand.u32 %v519, 4294901760
        %v1205 = vsub.f32 %v519, %v1204
        %v1206 = vand.u32 %v1205, 4294901760
        %v1207 = vsub.f32 %v1205, %v1206
        %v1208 = vand.u32 %v1207, 4294901760
        %1209 = vmatpush1.msra.mxu0 %v1208
        %1210 = vmatprep.subr.mxu0 0.0
        %1211 = vmatpush1.msra.mxu0 0.0
        %1212 = vmatprep.subr.mxu0 0.0
        %1213 = vmatpush1.msra.mxu0 0.0
        %1214 = vmatprep.subr.mxu0 0.0
        %1215 = vmatpush1.msra.mxu0 0.0
        %1216 = vmatprep.subr.mxu0 0.0
        %1217 = vmatpush1.msra.mxu0 0.0
        %1218 = vmatprep.subr.mxu0 0.0
        %1219 = vmatpush1.msra.mxu0 0.0
        %1220 = vmatprep.subr.mxu0 0.0
        %1221 = vmatpush1.msra.mxu0 0.0
        %1222 = vmatprep.subr.mxu0 0.0
        %1223 = vmatpush1.msra.mxu0 0.0
        %1224 = vmatprep.subr.mxu0 0.0
        %1225 = vmatpush1.msra.mxu0 0.0
        %1226 = vmatprep.subr.mxu0 0.0
        %1227 = vmatpush1.msra.mxu0 0.0
        %1228 = vmatprep.subr.mxu0 0.0
        %1229 = vmatpush1.msra.mxu0 0.0
        %1230 = vmatprep.subr.mxu0 0.0
        %1231 = vmatpush1.msra.mxu0 0.0
        %1232 = vmatprep.subr.mxu0 0.0
        %1233 = vmatpush1.msra.mxu0 0.0
        %1234 = vmatprep.subr.mxu0 0.0
        %1235 = vmatpush1.msra.mxu0 0.0
        %1236 = vmatprep.subr.mxu0 0.0
        %1237 = vmatpush1.msra.mxu0 0.0
        %1238 = vmatprep.subr.mxu0 0.0
        %1239 = vmatpush1.msra.mxu0 0.0
        %1240 = vmatprep.subr.mxu0 0.0
        %1241 = vmatpush1.msra.mxu0 0.0
        %1242 = vmatprep.mubr.f32.mxu0 0.0
        %v1243 = vand.u32 %v775, 4294901760
        %1244 = vmatmul.mubr.f32.gmra.mrb[0].mxu0 %v1243
        %v1245 = vpop.f32.mrb[0].mxu0
        %v1246 = vadd.f32 %v885, %v1245
        %v1247 = vpop.f32.mrb[0].mxu0
        %1248 = vmatprep.mubr.f32.mxu0 0.0
        %v1249 = vand.u32 %v776, 4294901760
        %1250 = vmatmul.mubr.f32.gmra.mrb[0].mxu0 %v1249
        %v1251 = vpop.f32.mrb[0].mxu0
        %v1252 = vadd.f32 %v895, %v1251
        %v1253 = vpop.f32.mrb[0].mxu0
        %1254 = vmatprep.mubr.f32.mxu0 0.0
        %v1255 = vand.u32 %v777, 4294901760
        %1256 = vmatmul.mubr.f32.gmra.mrb[0].mxu0 %v1255
        %v1257 = vpop.f32.mrb[0].mxu0
        %v1258 = vadd.f32 %v905, %v1257
        %v1259 = vpop.f32.mrb[0].mxu0
        %1260 = vmatprep.mubr.f32.mxu0 0.0
        %v1261 = vand.u32 %v778, 4294901760
        %1262 = vmatmul.mubr.f32.gmra.mrb[0].mxu0 %v1261
        %v1263 = vpop.f32.mrb[0].mxu0
        %v1264 = vadd.f32 %v915, %v1263
        %v1265 = vpop.f32.mrb[0].mxu0
        %1266 = vmatprep.mubr.f32.mxu0 0.0
        %v1267 = vand.u32 %v779, 4294901760
        %1268 = vmatmul.mubr.f32.gmra.mrb[0].mxu0 %v1267
        %v1269 = vpop.f32.mrb[0].mxu0
        %v1270 = vadd.f32 %v925, %v1269
        %v1271 = vpop.f32.mrb[0].mxu0
        %1272 = vmatprep.mubr.f32.mxu0 0.0
        %v1273 = vand.u32 %v780, 4294901760
        %1274 = vmatmul.mubr.f32.gmra.mrb[0].mxu0 %v1273
        %v1275 = vpop.f32.mrb[0].mxu0
        %v1276 = vadd.f32 %v935, %v1275
        %v1277 = vpop.f32.mrb[0].mxu0
        %1278 = vmatprep.mubr.f32.mxu0 0.0
        %v1279 = vand.u32 %v781, 4294901760
        %1280 = vmatmul.mubr.f32.gmra.mrb[0].mxu0 %v1279
        %v1281 = vpop.f32.mrb[0].mxu0
        %v1282 = vadd.f32 %v945, %v1281
        %v1283 = vpop.f32.mrb[0].mxu0
        %1284 = vmatprep.mubr.f32.mxu0 0.0
        %v1285 = vand.u32 %v782, 4294901760
        %1286 = vmatmul.mubr.f32.gmra.mrb[0].mxu0 %v1285
        %v1287 = vpop.f32.mrb[0].mxu0
        %v1288 = vadd.f32 %v955, %v1287
        %v1289 = vpop.f32.mrb[0].mxu0
        %1290 = vmatprep.mubr.f32.mxu0 0.0
        %v1291 = vand.u32 %v783, 4294901760
        %1292 = vmatmul.mubr.f32.gmra.mrb[0].mxu0 %v1291
        %v1293 = vpop.f32.mrb[0].mxu0
        %v1294 = vadd.f32 %v965, %v1293
        %v1295 = vpop.f32.mrb[0].mxu0
        %1296 = vmatprep.mubr.f32.mxu0 0.0
        %v1297 = vand.u32 %v784, 4294901760
        %1298 = vmatmul.mubr.f32.gmra.mrb[0].mxu0 %v1297
        %v1299 = vpop.f32.mrb[0].mxu0
        %v1300 = vadd.f32 %v975, %v1299
        %v1301 = vpop.f32.mrb[0].mxu0
        %1302 = vmatprep.mubr.f32.mxu0 0.0
        %v1303 = vand.u32 %v785, 4294901760
        %1304 = vmatmul.mubr.f32.gmra.mrb[0].mxu0 %v1303
        %v1305 = vpop.f32.mrb[0].mxu0
        %v1306 = vadd.f32 %v985, %v1305
        %v1307 = vpop.f32.mrb[0].mxu0
        %1308 = vmatprep.mubr.f32.mxu0 0.0
        %v1309 = vand.u32 %v786, 4294901760
        %1310 = vmatmul.mubr.f32.gmra.mrb[0].mxu0 %v1309
        %v1311 = vpop.f32.mrb[0].mxu0
        %v1312 = vadd.f32 %v995, %v1311
        %v1313 = vpop.f32.mrb[0].mxu0
        %1314 = vmatprep.mubr.f32.mxu0 0.0
        %v1315 = vand.u32 %v787, 4294901760
        %1316 = vmatmul.mubr.f32.gmra.mrb[0].mxu0 %v1315
        %v1317 = vpop.f32.mrb[0].mxu0
        %v1318 = vadd.f32 %v1005, %v1317
        %v1319 = vpop.f32.mrb[0].mxu0
        %1320 = vmatprep.mubr.f32.mxu0 0.0
        %v1321 = vand.u32 %v788, 4294901760
        %1322 = vmatmul.mubr.f32.gmra.mrb[0].mxu0 %v1321
        %v1323 = vpop.f32.mrb[0].mxu0
        %v1324 = vadd.f32 %v1015, %v1323
        %v1325 = vpop.f32.mrb[0].mxu0
        %1326 = vmatprep.mubr.f32.mxu0 0.0
        %v1327 = vand.u32 %v789, 4294901760
        %1328 = vmatmul.mubr.f32.gmra.mrb[0].mxu0 %v1327
        %v1329 = vpop.f32.mrb[0].mxu0
        %v1330 = vadd.f32 %v1025, %v1329
        %v1331 = vpop.f32.mrb[0].mxu0
        %1332 = vmatprep.mubr.f32.mxu0 0.0
        %v1333 = vand.u32 %v790, 4294901760
        %1334 = vmatmul.mubr.f32.gmra.mrb[0].mxu0 %v1333
        %v1335 = vpop.f32.mrb[0].mxu0
        %v1336 = vadd.f32 %v1035, %v1335
        %v1337 = vpop.f32.mrb[0].mxu0
        %1338 = vmatprep.mubr.f32.mxu0 0.0
        %v1339 = vand.u32 %v791, 4294901760
        %1340 = vmatmul.mubr.f32.gmra.mrb[0].mxu0 %v1339
        %v1341 = vpop.f32.mrb[0].mxu0
        %v1342 = vadd.f32 %v1045, %v1341
        %v1343 = vpop.f32.mrb[0].mxu0
        %1344 = vmatprep.mubr.f32.mxu0 0.0
        %v1345 = vand.u32 %v792, 4294901760
        %1346 = vmatmul.mubr.f32.gmra.mrb[0].mxu0 %v1345
        %v1347 = vpop.f32.mrb[0].mxu0
        %v1348 = vadd.f32 %v1055, %v1347
        %v1349 = vpop.f32.mrb[0].mxu0
        %1350 = vmatprep.mubr.f32.mxu0 0.0
        %v1351 = vand.u32 %v793, 4294901760
        %1352 = vmatmul.mubr.f32.gmra.mrb[0].mxu0 %v1351
        %v1353 = vpop.f32.mrb[0].mxu0
        %v1354 = vadd.f32 %v1065, %v1353
        %v1355 = vpop.f32.mrb[0].mxu0
        %1356 = vmatprep.mubr.f32.mxu0 0.0
        %v1357 = vand.u32 %v794, 4294901760
        %1358 = vmatmul.mubr.f32.gmra.mrb[0].mxu0 %v1357
        %v1359 = vpop.f32.mrb[0].mxu0
        %v1360 = vadd.f32 %v1075, %v1359
        %v1361 = vpop.f32.mrb[0].mxu0
        %1362 = vmatprep.mubr.f32.mxu0 0.0
        %v1363 = vand.u32 %v795, 4294901760
        %1364 = vmatmul.mubr.f32.gmra.mrb[0].mxu0 %v1363
        %v1365 = vpop.f32.mrb[0].mxu0
        %v1366 = vadd.f32 %v1085, %v1365
        %v1367 = vpop.f32.mrb[0].mxu0
        %1368 = vmatprep.mubr.f32.mxu0 0.0
        %v1369 = vand.u32 %v796, 4294901760
        %1370 = vmatmul.mubr.f32.gmra.mrb[0].mxu0 %v1369
        %v1371 = vpop.f32.mrb[0].mxu0
        %v1372 = vadd.f32 %v1095, %v1371
        %v1373 = vpop.f32.mrb[0].mxu0
        %1374 = vdwg.mxu0
        %1375 = vmatprep.subr.mxu0 0.0
        %v1376 = vand.u32 %v504, 4294901760
        %v1377 = vsub.f32 %v504, %v1376
        %1378 = vmatpush1.msra.mxu0 %v1377
        %1379 = vmatprep.subr.mxu0 0.0
        %v1380 = vand.u32 %v505, 4294901760
        %v1381 = vsub.f32 %v505, %v1380
        %1382 = vmatpush1.msra.mxu0 %v1381
        %1383 = vmatprep.subr.mxu0 0.0
        %v1384 = vand.u32 %v506, 4294901760
        %v1385 = vsub.f32 %v506, %v1384
        %1386 = vmatpush1.msra.mxu0 %v1385
        %1387 = vmatprep.subr.mxu0 0.0
        %v1388 = vand.u32 %v507, 4294901760
        %v1389 = vsub.f32 %v507, %v1388
        %1390 = vmatpush1.msra.mxu0 %v1389
        %1391 = vmatprep.subr.mxu0 0.0
        %v1392 = vand.u32 %v508, 4294901760
        %v1393 = vsub.f32 %v508, %v1392
        %1394 = vmatpush1.msra.mxu0 %v1393
        %1395 = vmatprep.subr.mxu0 0.0
        %v1396 = vand.u32 %v509, 4294901760
        %v1397 = vsub.f32 %v509, %v1396
        %1398 = vmatpush1.msra.mxu0 %v1397
        %1399 = vmatprep.subr.mxu0 0.0
        %v1400 = vand.u32 %v510, 4294901760
        %v1401 = vsub.f32 %v510, %v1400
        %1402 = vmatpush1.msra.mxu0 %v1401
        %1403 = vmatprep.subr.mxu0 0.0
        %v1404 = vand.u32 %v511, 4294901760
        %v1405 = vsub.f32 %v511, %v1404
        %1406 = vmatpush1.msra.mxu0 %v1405
        %1407 = vmatprep.subr.mxu0 0.0
        %v1408 = vand.u32 %v512, 4294901760
        %v1409 = vsub.f32 %v512, %v1408
        %1410 = vmatpush1.msra.mxu0 %v1409
        %1411 = vmatprep.subr.mxu0 0.0
        %v1412 = vand.u32 %v513, 4294901760
        %v1413 = vsub.f32 %v513, %v1412
        %1414 = vmatpush1.msra.mxu0 %v1413
        %1415 = vmatprep.subr.mxu0 0.0
        %v1416 = vand.u32 %v514, 4294901760
        %v1417 = vsub.f32 %v514, %v1416
        %1418 = vmatpush1.msra.mxu0 %v1417
        %1419 = vmatprep.subr.mxu0 0.0
        %v1420 = vand.u32 %v515, 4294901760
        %v1421 = vsub.f32 %v515, %v1420
        %1422 = vmatpush1.msra.mxu0 %v1421
        %1423 = vmatprep.subr.mxu0 0.0
        %v1424 = vand.u32 %v516, 4294901760
        %v1425 = vsub.f32 %v516, %v1424
        %1426 = vmatpush1.msra.mxu0 %v1425
        %1427 = vmatprep.subr.mxu0 0.0
        %v1428 = vand.u32 %v517, 4294901760
        %v1429 = vsub.f32 %v517, %v1428
        %1430 = vmatpush1.msra.mxu0 %v1429
        %1431 = vmatprep.subr.mxu0 0.0
        %v1432 = vand.u32 %v518, 4294901760
        %v1433 = vsub.f32 %v518, %v1432
        %1434 = vmatpush1.msra.mxu0 %v1433
        %1435 = vmatprep.subr.mxu0 0.0
        %v1436 = vand.u32 %v519, 4294901760
        %v1437 = vsub.f32 %v519, %v1436
        %1438 = vmatpush1.msra.mxu0 %v1437
        %1439 = vmatprep.subr.mxu0 0.0
        %1440 = vmatpush1.msra.mxu0 0.0
        %1441 = vmatprep.subr.mxu0 0.0
        %1442 = vmatpush1.msra.mxu0 0.0
        %1443 = vmatprep.subr.mxu0 0.0
        %1444 = vmatpush1.msra.mxu0 0.0
        %1445 = vmatprep.subr.mxu0 0.0
        %1446 = vmatpush1.msra.mxu0 0.0
        %1447 = vmatprep.subr.mxu0 0.0
        %1448 = vmatpush1.msra.mxu0 0.0
        %1449 = vmatprep.subr.mxu0 0.0
        %1450 = vmatpush1.msra.mxu0 0.0
        %1451 = vmatprep.subr.mxu0 0.0
        %1452 = vmatpush1.msra.mxu0 0.0
        %1453 = vmatprep.subr.mxu0 0.0
        %1454 = vmatpush1.msra.mxu0 0.0
        %1455 = vmatprep.subr.mxu0 0.0
        %1456 = vmatpush1.msra.mxu0 0.0
        %1457 = vmatprep.subr.mxu0 0.0
        %1458 = vmatpush1.msra.mxu0 0.0
        %1459 = vmatprep.subr.mxu0 0.0
        %1460 = vmatpush1.msra.mxu0 0.0
        %1461 = vmatprep.subr.mxu0 0.0
        %1462 = vmatpush1.msra.mxu0 0.0
        %1463 = vmatprep.subr.mxu0 0.0
        %1464 = vmatpush1.msra.mxu0 0.0
        %1465 = vmatprep.subr.mxu0 0.0
        %1466 = vmatpush1.msra.mxu0 0.0
        %1467 = vmatprep.subr.mxu0 0.0
        %1468 = vmatpush1.msra.mxu0 0.0
        %1469 = vmatprep.subr.mxu0 0.0
        %1470 = vmatpush1.msra.mxu0 0.0
        %1471 = vmatprep.mubr.f32.mxu0 0.0
        %v1472 = vand.u32 %v775, 4294901760
        %v1473 = vsub.f32 %v775, %v1472
        %1474 = vmatmul.mubr.f32.gmra.mrb[0].mxu0 %v1473
        %v1475 = vpop.f32.mrb[0].mxu0
        %v1476 = vadd.f32 %v1246, %v1475
        %v1477 = vpop.f32.mrb[0].mxu0
        %1478 = vmatprep.mubr.f32.mxu0 0.0
        %v1479 = vand.u32 %v776, 4294901760
        %v1480 = vsub.f32 %v776, %v1479
        %1481 = vmatmul.mubr.f32.gmra.mrb[0].mxu0 %v1480
        %v1482 = vpop.f32.mrb[0].mxu0
        %v1483 = vadd.f32 %v1252, %v1482
        %v1484 = vpop.f32.mrb[0].mxu0
        %1485 = vmatprep.mubr.f32.mxu0 0.0
        %v1486 = vand.u32 %v777, 4294901760
        %v1487 = vsub.f32 %v777, %v1486
        %1488 = vmatmul.mubr.f32.gmra.mrb[0].mxu0 %v1487
        %v1489 = vpop.f32.mrb[0].mxu0
        %v1490 = vadd.f32 %v1258, %v1489
        %v1491 = vpop.f32.mrb[0].mxu0
        %1492 = vmatprep.mubr.f32.mxu0 0.0
        %v1493 = vand.u32 %v778, 4294901760
        %v1494 = vsub.f32 %v778, %v1493
        %1495 = vmatmul.mubr.f32.gmra.mrb[0].mxu0 %v1494
        %v1496 = vpop.f32.mrb[0].mxu0
        %v1497 = vadd.f32 %v1264, %v1496
        %v1498 = vpop.f32.mrb[0].mxu0
        %1499 = vmatprep.mubr.f32.mxu0 0.0
        %v1500 = vand.u32 %v779, 4294901760
        %v1501 = vsub.f32 %v779, %v1500
        %1502 = vmatmul.mubr.f32.gmra.mrb[0].mxu0 %v1501
        %v1503 = vpop.f32.mrb[0].mxu0
        %v1504 = vadd.f32 %v1270, %v1503
        %v1505 = vpop.f32.mrb[0].mxu0
        %1506 = vmatprep.mubr.f32.mxu0 0.0
        %v1507 = vand.u32 %v780, 4294901760
        %v1508 = vsub.f32 %v780, %v1507
        %1509 = vmatmul.mubr.f32.gmra.mrb[0].mxu0 %v1508
        %v1510 = vpop.f32.mrb[0].mxu0
        %v1511 = vadd.f32 %v1276, %v1510
        %v1512 = vpop.f32.mrb[0].mxu0
        %1513 = vmatprep.mubr.f32.mxu0 0.0
        %v1514 = vand.u32 %v781, 4294901760
        %v1515 = vsub.f32 %v781, %v1514
        %1516 = vmatmul.mubr.f32.gmra.mrb[0].mxu0 %v1515
        %v1517 = vpop.f32.mrb[0].mxu0
        %v1518 = vadd.f32 %v1282, %v1517
        %v1519 = vpop.f32.mrb[0].mxu0
        %1520 = vmatprep.mubr.f32.mxu0 0.0
        %v1521 = vand.u32 %v782, 4294901760
        %v1522 = vsub.f32 %v782, %v1521
        %1523 = vmatmul.mubr.f32.gmra.mrb[0].mxu0 %v1522
        %v1524 = vpop.f32.mrb[0].mxu0
        %v1525 = vadd.f32 %v1288, %v1524
        %v1526 = vpop.f32.mrb[0].mxu0
        %1527 = vmatprep.mubr.f32.mxu0 0.0
        %v1528 = vand.u32 %v783, 4294901760
        %v1529 = vsub.f32 %v783, %v1528
        %1530 = vmatmul.mubr.f32.gmra.mrb[0].mxu0 %v1529
        %v1531 = vpop.f32.mrb[0].mxu0
        %v1532 = vadd.f32 %v1294, %v1531
        %v1533 = vpop.f32.mrb[0].mxu0
        %1534 = vmatprep.mubr.f32.mxu0 0.0
        %v1535 = vand.u32 %v784, 4294901760
        %v1536 = vsub.f32 %v784, %v1535
        %1537 = vmatmul.mubr.f32.gmra.mrb[0].mxu0 %v1536
        %v1538 = vpop.f32.mrb[0].mxu0
        %v1539 = vadd.f32 %v1300, %v1538
        %v1540 = vpop.f32.mrb[0].mxu0
        %1541 = vmatprep.mubr.f32.mxu0 0.0
        %v1542 = vand.u32 %v785, 4294901760
        %v1543 = vsub.f32 %v785, %v1542
        %1544 = vmatmul.mubr.f32.gmra.mrb[0].mxu0 %v1543
        %v1545 = vpop.f32.mrb[0].mxu0
        %v1546 = vadd.f32 %v1306, %v1545
        %v1547 = vpop.f32.mrb[0].mxu0
        %1548 = vmatprep.mubr.f32.mxu0 0.0
        %v1549 = vand.u32 %v786, 4294901760
        %v1550 = vsub.f32 %v786, %v1549
        %1551 = vmatmul.mubr.f32.gmra.mrb[0].mxu0 %v1550
        %v1552 = vpop.f32.mrb[0].mxu0
        %v1553 = vadd.f32 %v1312, %v1552
        %v1554 = vpop.f32.mrb[0].mxu0
        %1555 = vmatprep.mubr.f32.mxu0 0.0
        %v1556 = vand.u32 %v787, 4294901760
        %v1557 = vsub.f32 %v787, %v1556
        %1558 = vmatmul.mubr.f32.gmra.mrb[0].mxu0 %v1557
        %v1559 = vpop.f32.mrb[0].mxu0
        %v1560 = vadd.f32 %v1318, %v1559
        %v1561 = vpop.f32.mrb[0].mxu0
        %1562 = vmatprep.mubr.f32.mxu0 0.0
        %v1563 = vand.u32 %v788, 4294901760
        %v1564 = vsub.f32 %v788, %v1563
        %1565 = vmatmul.mubr.f32.gmra.mrb[0].mxu0 %v1564
        %v1566 = vpop.f32.mrb[0].mxu0
        %v1567 = vadd.f32 %v1324, %v1566
        %v1568 = vpop.f32.mrb[0].mxu0
        %1569 = vmatprep.mubr.f32.mxu0 0.0
        %v1570 = vand.u32 %v789, 4294901760
        %v1571 = vsub.f32 %v789, %v1570
        %1572 = vmatmul.mubr.f32.gmra.mrb[0].mxu0 %v1571
        %v1573 = vpop.f32.mrb[0].mxu0
        %v1574 = vadd.f32 %v1330, %v1573
        %v1575 = vpop.f32.mrb[0].mxu0
        %1576 = vmatprep.mubr.f32.mxu0 0.0
        %v1577 = vand.u32 %v790, 4294901760
        %v1578 = vsub.f32 %v790, %v1577
        %1579 = vmatmul.mubr.f32.gmra.mrb[0].mxu0 %v1578
        %v1580 = vpop.f32.mrb[0].mxu0
        %v1581 = vadd.f32 %v1336, %v1580
        %v1582 = vpop.f32.mrb[0].mxu0
        %1583 = vmatprep.mubr.f32.mxu0 0.0
        %v1584 = vand.u32 %v791, 4294901760
        %v1585 = vsub.f32 %v791, %v1584
        %1586 = vmatmul.mubr.f32.gmra.mrb[0].mxu0 %v1585
        %v1587 = vpop.f32.mrb[0].mxu0
        %v1588 = vadd.f32 %v1342, %v1587
        %v1589 = vpop.f32.mrb[0].mxu0
        %1590 = vmatprep.mubr.f32.mxu0 0.0
        %v1591 = vand.u32 %v792, 4294901760
        %v1592 = vsub.f32 %v792, %v1591
        %1593 = vmatmul.mubr.f32.gmra.mrb[0].mxu0 %v1592
        %v1594 = vpop.f32.mrb[0].mxu0
        %v1595 = vadd.f32 %v1348, %v1594
        %v1596 = vpop.f32.mrb[0].mxu0
        %1597 = vmatprep.mubr.f32.mxu0 0.0
        %v1598 = vand.u32 %v793, 4294901760
        %v1599 = vsub.f32 %v793, %v1598
        %1600 = vmatmul.mubr.f32.gmra.mrb[0].mxu0 %v1599
        %v1601 = vpop.f32.mrb[0].mxu0
        %v1602 = vadd.f32 %v1354, %v1601
        %v1603 = vpop.f32.mrb[0].mxu0
        %1604 = vmatprep.mubr.f32.mxu0 0.0
        %v1605 = vand.u32 %v794, 4294901760
        %v1606 = vsub.f32 %v794, %v1605
        %1607 = vmatmul.mubr.f32.gmra.mrb[0].mxu0 %v1606
        %v1608 = vpop.f32.mrb[0].mxu0
        %v1609 = vadd.f32 %v1360, %v1608
        %v1610 = vpop.f32.mrb[0].mxu0
        %1611 = vmatprep.mubr.f32.mxu0 0.0
        %v1612 = vand.u32 %v795, 4294901760
        %v1613 = vsub.f32 %v795, %v1612
        %1614 = vmatmul.mubr.f32.gmra.mrb[0].mxu0 %v1613
        %v1615 = vpop.f32.mrb[0].mxu0
        %v1616 = vadd.f32 %v1366, %v1615
        %v1617 = vpop.f32.mrb[0].mxu0
        %1618 = vmatprep.mubr.f32.mxu0 0.0
        %v1619 = vand.u32 %v796, 4294901760
        %v1620 = vsub.f32 %v796, %v1619
        %1621 = vmatmul.mubr.f32.gmra.mrb[0].mxu0 %v1620
        %v1622 = vpop.f32.mrb[0].mxu0
        %v1623 = vadd.f32 %v1372, %v1622
        %v1624 = vpop.f32.mrb[0].mxu0
        %1625 = vdwg.mxu0
        %1626 = vmatprep.subr.mxu0 0.0
        %v1627 = vand.u32 %v504, 4294901760
        %1628 = vmatpush1.msra.mxu0 %v1627
        %1629 = vmatprep.subr.mxu0 0.0
        %v1630 = vand.u32 %v505, 4294901760
        %1631 = vmatpush1.msra.mxu0 %v1630
        %1632 = vmatprep.subr.mxu0 0.0
        %v1633 = vand.u32 %v506, 4294901760
        %1634 = vmatpush1.msra.mxu0 %v1633
        %1635 = vmatprep.subr.mxu0 0.0
        %v1636 = vand.u32 %v507, 4294901760
        %1637 = vmatpush1.msra.mxu0 %v1636
        %1638 = vmatprep.subr.mxu0 0.0
        %v1639 = vand.u32 %v508, 4294901760
        %1640 = vmatpush1.msra.mxu0 %v1639
        %1641 = vmatprep.subr.mxu0 0.0
        %v1642 = vand.u32 %v509, 4294901760
        %1643 = vmatpush1.msra.mxu0 %v1642
        %1644 = vmatprep.subr.mxu0 0.0
        %v1645 = vand.u32 %v510, 4294901760
        %1646 = vmatpush1.msra.mxu0 %v1645
        %1647 = vmatprep.subr.mxu0 0.0
        %v1648 = vand.u32 %v511, 4294901760
        %1649 = vmatpush1.msra.mxu0 %v1648
        %1650 = vmatprep.subr.mxu0 0.0
        %v1651 = vand.u32 %v512, 4294901760
        %1652 = vmatpush1.msra.mxu0 %v1651
        %1653 = vmatprep.subr.mxu0 0.0
        %v1654 = vand.u32 %v513, 4294901760
        %1655 = vmatpush1.msra.mxu0 %v1654
        %1656 = vmatprep.subr.mxu0 0.0
        %v1657 = vand.u32 %v514, 4294901760
        %1658 = vmatpush1.msra.mxu0 %v1657
        %1659 = vmatprep.subr.mxu0 0.0
        %v1660 = vand.u32 %v515, 4294901760
        %1661 = vmatpush1.msra.mxu0 %v1660
        %1662 = vmatprep.subr.mxu0 0.0
        %v1663 = vand.u32 %v516, 4294901760
        %1664 = vmatpush1.msra.mxu0 %v1663
        %1665 = vmatprep.subr.mxu0 0.0
        %v1666 = vand.u32 %v517, 4294901760
        %1667 = vmatpush1.msra.mxu0 %v1666
        %1668 = vmatprep.subr.mxu0 0.0
        %v1669 = vand.u32 %v518, 4294901760
        %1670 = vmatpush1.msra.mxu0 %v1669
        %1671 = vmatprep.subr.mxu0 0.0
        %v1672 = vand.u32 %v519, 4294901760
        %1673 = vmatpush1.msra.mxu0 %v1672
        %1674 = vmatprep.subr.mxu0 0.0
        %1675 = vmatpush1.msra.mxu0 0.0
        %1676 = vmatprep.subr.mxu0 0.0
        %1677 = vmatpush1.msra.mxu0 0.0
        %1678 = vmatprep.subr.mxu0 0.0
        %1679 = vmatpush1.msra.mxu0 0.0
        %1680 = vmatprep.subr.mxu0 0.0
        %1681 = vmatpush1.msra.mxu0 0.0
        %1682 = vmatprep.subr.mxu0 0.0
        %1683 = vmatpush1.msra.mxu0 0.0
        %1684 = vmatprep.subr.mxu0 0.0
        %1685 = vmatpush1.msra.mxu0 0.0
        %1686 = vmatprep.subr.mxu0 0.0
        %1687 = vmatpush1.msra.mxu0 0.0
        %1688 = vmatprep.subr.mxu0 0.0
        %1689 = vmatpush1.msra.mxu0 0.0
        %1690 = vmatprep.subr.mxu0 0.0
        %1691 = vmatpush1.msra.mxu0 0.0
        %1692 = vmatprep.subr.mxu0 0.0
        %1693 = vmatpush1.msra.mxu0 0.0
        %1694 = vmatprep.subr.mxu0 0.0
        %1695 = vmatpush1.msra.mxu0 0.0
        %1696 = vmatprep.subr.mxu0 0.0
        %1697 = vmatpush1.msra.mxu0 0.0
        %1698 = vmatprep.subr.mxu0 0.0
        %1699 = vmatpush1.msra.mxu0 0.0
        %1700 = vmatprep.subr.mxu0 0.0
        %1701 = vmatpush1.msra.mxu0 0.0
        %1702 = vmatprep.subr.mxu0 0.0
        %1703 = vmatpush1.msra.mxu0 0.0
        %1704 = vmatprep.subr.mxu0 0.0
        %1705 = vmatpush1.msra.mxu0 0.0
        %1706 = vmatprep.mubr.f32.mxu0 0.0
        %v1707 = vand.u32 %v775, 4294901760
        %v1708 = vsub.f32 %v775, %v1707
        %v1709 = vand.u32 %v1708, 4294901760
        %1710 = vmatmul.mubr.f32.gmra.mrb[0].mxu0 %v1709
        %v1711 = vpop.f32.mrb[0].mxu0
        %v1712 = vadd.f32 %v1476, %v1711
        %v1713 = vpop.f32.mrb[0].mxu0
        %1714 = vmatprep.mubr.f32.mxu0 0.0
        %v1715 = vand.u32 %v776, 4294901760
        %v1716 = vsub.f32 %v776, %v1715
        %v1717 = vand.u32 %v1716, 4294901760
        %1718 = vmatmul.mubr.f32.gmra.mrb[0].mxu0 %v1717
        %v1719 = vpop.f32.mrb[0].mxu0
        %v1720 = vadd.f32 %v1483, %v1719
        %v1721 = vpop.f32.mrb[0].mxu0
        %1722 = vmatprep.mubr.f32.mxu0 0.0
        %v1723 = vand.u32 %v777, 4294901760
        %v1724 = vsub.f32 %v777, %v1723
        %v1725 = vand.u32 %v1724, 4294901760
        %1726 = vmatmul.mubr.f32.gmra.mrb[0].mxu0 %v1725
        %v1727 = vpop.f32.mrb[0].mxu0
        %v1728 = vadd.f32 %v1490, %v1727
        %v1729 = vpop.f32.mrb[0].mxu0
        %1730 = vmatprep.mubr.f32.mxu0 0.0
        %v1731 = vand.u32 %v778, 4294901760
        %v1732 = vsub.f32 %v778, %v1731
        %v1733 = vand.u32 %v1732, 4294901760
        %1734 = vmatmul.mubr.f32.gmra.mrb[0].mxu0 %v1733
        %v1735 = vpop.f32.mrb[0].mxu0
        %v1736 = vadd.f32 %v1497, %v1735
        %v1737 = vpop.f32.mrb[0].mxu0
        %1738 = vmatprep.mubr.f32.mxu0 0.0
        %v1739 = vand.u32 %v779, 4294901760
        %v1740 = vsub.f32 %v779, %v1739
        %v1741 = vand.u32 %v1740, 4294901760
        %1742 = vmatmul.mubr.f32.gmra.mrb[0].mxu0 %v1741
        %v1743 = vpop.f32.mrb[0].mxu0
        %v1744 = vadd.f32 %v1504, %v1743
        %v1745 = vpop.f32.mrb[0].mxu0
        %1746 = vmatprep.mubr.f32.mxu0 0.0
        %v1747 = vand.u32 %v780, 4294901760
        %v1748 = vsub.f32 %v780, %v1747
        %v1749 = vand.u32 %v1748, 4294901760
        %1750 = vmatmul.mubr.f32.gmra.mrb[0].mxu0 %v1749
        %v1751 = vpop.f32.mrb[0].mxu0
        %v1752 = vadd.f32 %v1511, %v1751
        %v1753 = vpop.f32.mrb[0].mxu0
        %1754 = vmatprep.mubr.f32.mxu0 0.0
        %v1755 = vand.u32 %v781, 4294901760
        %v1756 = vsub.f32 %v781, %v1755
        %v1757 = vand.u32 %v1756, 4294901760
        %1758 = vmatmul.mubr.f32.gmra.mrb[0].mxu0 %v1757
        %v1759 = vpop.f32.mrb[0].mxu0
        %v1760 = vadd.f32 %v1518, %v1759
        %v1761 = vpop.f32.mrb[0].mxu0
        %1762 = vmatprep.mubr.f32.mxu0 0.0
        %v1763 = vand.u32 %v782, 4294901760
        %v1764 = vsub.f32 %v782, %v1763
        %v1765 = vand.u32 %v1764, 4294901760
        %1766 = vmatmul.mubr.f32.gmra.mrb[0].mxu0 %v1765
        %v1767 = vpop.f32.mrb[0].mxu0
        %v1768 = vadd.f32 %v1525, %v1767
        %v1769 = vpop.f32.mrb[0].mxu0
        %1770 = vmatprep.mubr.f32.mxu0 0.0
        %v1771 = vand.u32 %v783, 4294901760
        %v1772 = vsub.f32 %v783, %v1771
        %v1773 = vand.u32 %v1772, 4294901760
        %1774 = vmatmul.mubr.f32.gmra.mrb[0].mxu0 %v1773
        %v1775 = vpop.f32.mrb[0].mxu0
        %v1776 = vadd.f32 %v1532, %v1775
        %v1777 = vpop.f32.mrb[0].mxu0
        %1778 = vmatprep.mubr.f32.mxu0 0.0
        %v1779 = vand.u32 %v784, 4294901760
        %v1780 = vsub.f32 %v784, %v1779
        %v1781 = vand.u32 %v1780, 4294901760
        %1782 = vmatmul.mubr.f32.gmra.mrb[0].mxu0 %v1781
        %v1783 = vpop.f32.mrb[0].mxu0
        %v1784 = vadd.f32 %v1539, %v1783
        %v1785 = vpop.f32.mrb[0].mxu0
        %1786 = vmatprep.mubr.f32.mxu0 0.0
        %v1787 = vand.u32 %v785, 4294901760
        %v1788 = vsub.f32 %v785, %v1787
        %v1789 = vand.u32 %v1788, 4294901760
        %1790 = vmatmul.mubr.f32.gmra.mrb[0].mxu0 %v1789
        %v1791 = vpop.f32.mrb[0].mxu0
        %v1792 = vadd.f32 %v1546, %v1791
        %v1793 = vpop.f32.mrb[0].mxu0
        %1794 = vmatprep.mubr.f32.mxu0 0.0
        %v1795 = vand.u32 %v786, 4294901760
        %v1796 = vsub.f32 %v786, %v1795
        %v1797 = vand.u32 %v1796, 4294901760
        %1798 = vmatmul.mubr.f32.gmra.mrb[0].mxu0 %v1797
        %v1799 = vpop.f32.mrb[0].mxu0
        %v1800 = vadd.f32 %v1553, %v1799
        %v1801 = vpop.f32.mrb[0].mxu0
        %1802 = vmatprep.mubr.f32.mxu0 0.0
        %v1803 = vand.u32 %v787, 4294901760
        %v1804 = vsub.f32 %v787, %v1803
        %v1805 = vand.u32 %v1804, 4294901760
        %1806 = vmatmul.mubr.f32.gmra.mrb[0].mxu0 %v1805
        %v1807 = vpop.f32.mrb[0].mxu0
        %v1808 = vadd.f32 %v1560, %v1807
        %v1809 = vpop.f32.mrb[0].mxu0
        %1810 = vmatprep.mubr.f32.mxu0 0.0
        %v1811 = vand.u32 %v788, 4294901760
        %v1812 = vsub.f32 %v788, %v1811
        %v1813 = vand.u32 %v1812, 4294901760
        %1814 = vmatmul.mubr.f32.gmra.mrb[0].mxu0 %v1813
        %v1815 = vpop.f32.mrb[0].mxu0
        %v1816 = vadd.f32 %v1567, %v1815
        %v1817 = vpop.f32.mrb[0].mxu0
        %1818 = vmatprep.mubr.f32.mxu0 0.0
        %v1819 = vand.u32 %v789, 4294901760
        %v1820 = vsub.f32 %v789, %v1819
        %v1821 = vand.u32 %v1820, 4294901760
        %1822 = vmatmul.mubr.f32.gmra.mrb[0].mxu0 %v1821
        %v1823 = vpop.f32.mrb[0].mxu0
        %v1824 = vadd.f32 %v1574, %v1823
        %v1825 = vpop.f32.mrb[0].mxu0
        %1826 = vmatprep.mubr.f32.mxu0 0.0
        %v1827 = vand.u32 %v790, 4294901760
        %v1828 = vsub.f32 %v790, %v1827
        %v1829 = vand.u32 %v1828, 4294901760
        %1830 = vmatmul.mubr.f32.gmra.mrb[0].mxu0 %v1829
        %v1831 = vpop.f32.mrb[0].mxu0
        %v1832 = vadd.f32 %v1581, %v1831
        %v1833 = vpop.f32.mrb[0].mxu0
        %1834 = vmatprep.mubr.f32.mxu0 0.0
        %v1835 = vand.u32 %v791, 4294901760
        %v1836 = vsub.f32 %v791, %v1835
        %v1837 = vand.u32 %v1836, 4294901760
        %1838 = vmatmul.mubr.f32.gmra.mrb[0].mxu0 %v1837
        %v1839 = vpop.f32.mrb[0].mxu0
        %v1840 = vadd.f32 %v1588, %v1839
        %v1841 = vpop.f32.mrb[0].mxu0
        %1842 = vmatprep.mubr.f32.mxu0 0.0
        %v1843 = vand.u32 %v792, 4294901760
        %v1844 = vsub.f32 %v792, %v1843
        %v1845 = vand.u32 %v1844, 4294901760
        %1846 = vmatmul.mubr.f32.gmra.mrb[0].mxu0 %v1845
        %v1847 = vpop.f32.mrb[0].mxu0
        %v1848 = vadd.f32 %v1595, %v1847
        %v1849 = vpop.f32.mrb[0].mxu0
        %1850 = vmatprep.mubr.f32.mxu0 0.0
        %v1851 = vand.u32 %v793, 4294901760
        %v1852 = vsub.f32 %v793, %v1851
        %v1853 = vand.u32 %v1852, 4294901760
        %1854 = vmatmul.mubr.f32.gmra.mrb[0].mxu0 %v1853
        %v1855 = vpop.f32.mrb[0].mxu0
        %v1856 = vadd.f32 %v1602, %v1855
        %v1857 = vpop.f32.mrb[0].mxu0
        %1858 = vmatprep.mubr.f32.mxu0 0.0
        %v1859 = vand.u32 %v794, 4294901760
        %v1860 = vsub.f32 %v794, %v1859
        %v1861 = vand.u32 %v1860, 4294901760
        %1862 = vmatmul.mubr.f32.gmra.mrb[0].mxu0 %v1861
        %v1863 = vpop.f32.mrb[0].mxu0
        %v1864 = vadd.f32 %v1609, %v1863
        %v1865 = vpop.f32.mrb[0].mxu0
        %1866 = vmatprep.mubr.f32.mxu0 0.0
        %v1867 = vand.u32 %v795, 4294901760
        %v1868 = vsub.f32 %v795, %v1867
        %v1869 = vand.u32 %v1868, 4294901760
        %1870 = vmatmul.mubr.f32.gmra.mrb[0].mxu0 %v1869
        %v1871 = vpop.f32.mrb[0].mxu0
        %v1872 = vadd.f32 %v1616, %v1871
        %v1873 = vpop.f32.mrb[0].mxu0
        %1874 = vmatprep.mubr.f32.mxu0 0.0
        %v1875 = vand.u32 %v796, 4294901760
        %v1876 = vsub.f32 %v796, %v1875
        %v1877 = vand.u32 %v1876, 4294901760
        %1878 = vmatmul.mubr.f32.gmra.mrb[0].mxu0 %v1877
        %v1879 = vpop.f32.mrb[0].mxu0
        %v1880 = vadd.f32 %v1623, %v1879
        %v1881 = vpop.f32.mrb[0].mxu0
        %1882 = vdwg.mxu0
        %1883 = vmatprep.subr.mxu0 0.0
        %v1884 = vand.u32 %v504, 4294901760
        %v1885 = vsub.f32 %v504, %v1884
        %v1886 = vand.u32 %v1885, 4294901760
        %1887 = vmatpush1.msra.mxu0 %v1886
        %1888 = vmatprep.subr.mxu0 0.0
        %v1889 = vand.u32 %v505, 4294901760
        %v1890 = vsub.f32 %v505, %v1889
        %v1891 = vand.u32 %v1890, 4294901760
        %1892 = vmatpush1.msra.mxu0 %v1891
        %1893 = vmatprep.subr.mxu0 0.0
        %v1894 = vand.u32 %v506, 4294901760
        %v1895 = vsub.f32 %v506, %v1894
        %v1896 = vand.u32 %v1895, 4294901760
        %1897 = vmatpush1.msra.mxu0 %v1896
        %1898 = vmatprep.subr.mxu0 0.0
        %v1899 = vand.u32 %v507, 4294901760
        %v1900 = vsub.f32 %v507, %v1899
        %v1901 = vand.u32 %v1900, 4294901760
        %1902 = vmatpush1.msra.mxu0 %v1901
        %1903 = vmatprep.subr.mxu0 0.0
        %v1904 = vand.u32 %v508, 4294901760
        %v1905 = vsub.f32 %v508, %v1904
        %v1906 = vand.u32 %v1905, 4294901760
        %1907 = vmatpush1.msra.mxu0 %v1906
        %1908 = vmatprep.subr.mxu0 0.0
        %v1909 = vand.u32 %v509, 4294901760
        %v1910 = vsub.f32 %v509, %v1909
        %v1911 = vand.u32 %v1910, 4294901760
        %1912 = vmatpush1.msra.mxu0 %v1911
        %1913 = vmatprep.subr.mxu0 0.0
        %v1914 = vand.u32 %v510, 4294901760
        %v1915 = vsub.f32 %v510, %v1914
        %v1916 = vand.u32 %v1915, 4294901760
        %1917 = vmatpush1.msra.mxu0 %v1916
        %1918 = vmatprep.subr.mxu0 0.0
        %v1919 = vand.u32 %v511, 4294901760
        %v1920 = vsub.f32 %v511, %v1919
        %v1921 = vand.u32 %v1920, 4294901760
        %1922 = vmatpush1.msra.mxu0 %v1921
        %1923 = vmatprep.subr.mxu0 0.0
        %v1924 = vand.u32 %v512, 4294901760
        %v1925 = vsub.f32 %v512, %v1924
        %v1926 = vand.u32 %v1925, 4294901760
        %1927 = vmatpush1.msra.mxu0 %v1926
        %1928 = vmatprep.subr.mxu0 0.0
        %v1929 = vand.u32 %v513, 4294901760
        %v1930 = vsub.f32 %v513, %v1929
        %v1931 = vand.u32 %v1930, 4294901760
        %1932 = vmatpush1.msra.mxu0 %v1931
        %1933 = vmatprep.subr.mxu0 0.0
        %v1934 = vand.u32 %v514, 4294901760
        %v1935 = vsub.f32 %v514, %v1934
        %v1936 = vand.u32 %v1935, 4294901760
        %1937 = vmatpush1.msra.mxu0 %v1936
        %1938 = vmatprep.subr.mxu0 0.0
        %v1939 = vand.u32 %v515, 4294901760
        %v1940 = vsub.f32 %v515, %v1939
        %v1941 = vand.u32 %v1940, 4294901760
        %1942 = vmatpush1.msra.mxu0 %v1941
        %1943 = vmatprep.subr.mxu0 0.0
        %v1944 = vand.u32 %v516, 4294901760
        %v1945 = vsub.f32 %v516, %v1944
        %v1946 = vand.u32 %v1945, 4294901760
        %1947 = vmatpush1.msra.mxu0 %v1946
        %1948 = vmatprep.subr.mxu0 0.0
        %v1949 = vand.u32 %v517, 4294901760
        %v1950 = vsub.f32 %v517, %v1949
        %v1951 = vand.u32 %v1950, 4294901760
        %1952 = vmatpush1.msra.mxu0 %v1951
        %1953 = vmatprep.subr.mxu0 0.0
        %v1954 = vand.u32 %v518, 4294901760
        %v1955 = vsub.f32 %v518, %v1954
        %v1956 = vand.u32 %v1955, 4294901760
        %1957 = vmatpush1.msra.mxu0 %v1956
        %1958 = vmatprep.subr.mxu0 0.0
        %v1959 = vand.u32 %v519, 4294901760
        %v1960 = vsub.f32 %v519, %v1959
        %v1961 = vand.u32 %v1960, 4294901760
        %1962 = vmatpush1.msra.mxu0 %v1961
        %1963 = vmatprep.subr.mxu0 0.0
        %1964 = vmatpush1.msra.mxu0 0.0
        %1965 = vmatprep.subr.mxu0 0.0
        %1966 = vmatpush1.msra.mxu0 0.0
        %1967 = vmatprep.subr.mxu0 0.0
        %1968 = vmatpush1.msra.mxu0 0.0
        %1969 = vmatprep.subr.mxu0 0.0
        %1970 = vmatpush1.msra.mxu0 0.0
        %1971 = vmatprep.subr.mxu0 0.0
        %1972 = vmatpush1.msra.mxu0 0.0
        %1973 = vmatprep.subr.mxu0 0.0
        %1974 = vmatpush1.msra.mxu0 0.0
        %1975 = vmatprep.subr.mxu0 0.0
        %1976 = vmatpush1.msra.mxu0 0.0
        %1977 = vmatprep.subr.mxu0 0.0
        %1978 = vmatpush1.msra.mxu0 0.0
        %1979 = vmatprep.subr.mxu0 0.0
        %1980 = vmatpush1.msra.mxu0 0.0
        %1981 = vmatprep.subr.mxu0 0.0
        %1982 = vmatpush1.msra.mxu0 0.0
        %1983 = vmatprep.subr.mxu0 0.0
        %1984 = vmatpush1.msra.mxu0 0.0
        %1985 = vmatprep.subr.mxu0 0.0
        %1986 = vmatpush1.msra.mxu0 0.0
        %1987 = vmatprep.subr.mxu0 0.0
        %1988 = vmatpush1.msra.mxu0 0.0
        %1989 = vmatprep.subr.mxu0 0.0
        %1990 = vmatpush1.msra.mxu0 0.0
        %1991 = vmatprep.subr.mxu0 0.0
        %1992 = vmatpush1.msra.mxu0 0.0
        %1993 = vmatprep.subr.mxu0 0.0
        %1994 = vmatpush1.msra.mxu0 0.0
        %1995 = vmatprep.mubr.f32.mxu0 0.0
        %v1996 = vand.u32 %v775, 4294901760
        %1997 = vmatmul.mubr.f32.gmra.mrb[0].mxu0 %v1996
        %v1998 = vpop.f32.mrb[0].mxu0
        %v1999 = vadd.f32 %v1712, %v1998
        %v2000 = vpop.f32.mrb[0].mxu0
        %2001 = vmatprep.mubr.f32.mxu0 0.0
        %v2002 = vand.u32 %v776, 4294901760
        %2003 = vmatmul.mubr.f32.gmra.mrb[0].mxu0 %v2002
        %v2004 = vpop.f32.mrb[0].mxu0
        %v2005 = vadd.f32 %v1720, %v2004
        %v2006 = vpop.f32.mrb[0].mxu0
        %2007 = vmatprep.mubr.f32.mxu0 0.0
        %v2008 = vand.u32 %v777, 4294901760
        %2009 = vmatmul.mubr.f32.gmra.mrb[0].mxu0 %v2008
        %v2010 = vpop.f32.mrb[0].mxu0
        %v2011 = vadd.f32 %v1728, %v2010
        %v2012 = vpop.f32.mrb[0].mxu0
        %2013 = vmatprep.mubr.f32.mxu0 0.0
        %v2014 = vand.u32 %v778, 4294901760
        %2015 = vmatmul.mubr.f32.gmra.mrb[0].mxu0 %v2014
        %v2016 = vpop.f32.mrb[0].mxu0
        %v2017 = vadd.f32 %v1736, %v2016
        %v2018 = vpop.f32.mrb[0].mxu0
        %2019 = vmatprep.mubr.f32.mxu0 0.0
        %v2020 = vand.u32 %v779, 4294901760
        %2021 = vmatmul.mubr.f32.gmra.mrb[0].mxu0 %v2020
        %v2022 = vpop.f32.mrb[0].mxu0
        %v2023 = vadd.f32 %v1744, %v2022
        %v2024 = vpop.f32.mrb[0].mxu0
        %2025 = vmatprep.mubr.f32.mxu0 0.0
        %v2026 = vand.u32 %v780, 4294901760
        %2027 = vmatmul.mubr.f32.gmra.mrb[0].mxu0 %v2026
        %v2028 = vpop.f32.mrb[0].mxu0
        %v2029 = vadd.f32 %v1752, %v2028
        %v2030 = vpop.f32.mrb[0].mxu0
        %2031 = vmatprep.mubr.f32.mxu0 0.0
        %v2032 = vand.u32 %v781, 4294901760
        %2033 = vmatmul.mubr.f32.gmra.mrb[0].mxu0 %v2032
        %v2034 = vpop.f32.mrb[0].mxu0
        %v2035 = vadd.f32 %v1760, %v2034
        %v2036 = vpop.f32.mrb[0].mxu0
        %2037 = vmatprep.mubr.f32.mxu0 0.0
        %v2038 = vand.u32 %v782, 4294901760
        %2039 = vmatmul.mubr.f32.gmra.mrb[0].mxu0 %v2038
        %v2040 = vpop.f32.mrb[0].mxu0
        %v2041 = vadd.f32 %v1768, %v2040
        %v2042 = vpop.f32.mrb[0].mxu0
        %2043 = vmatprep.mubr.f32.mxu0 0.0
        %v2044 = vand.u32 %v783, 4294901760
        %2045 = vmatmul.mubr.f32.gmra.mrb[0].mxu0 %v2044
        %v2046 = vpop.f32.mrb[0].mxu0
        %v2047 = vadd.f32 %v1776, %v2046
        %v2048 = vpop.f32.mrb[0].mxu0
        %2049 = vmatprep.mubr.f32.mxu0 0.0
        %v2050 = vand.u32 %v784, 4294901760
        %2051 = vmatmul.mubr.f32.gmra.mrb[0].mxu0 %v2050
        %v2052 = vpop.f32.mrb[0].mxu0
        %v2053 = vadd.f32 %v1784, %v2052
        %v2054 = vpop.f32.mrb[0].mxu0
        %2055 = vmatprep.mubr.f32.mxu0 0.0
        %v2056 = vand.u32 %v785, 4294901760
        %2057 = vmatmul.mubr.f32.gmra.mrb[0].mxu0 %v2056
        %v2058 = vpop.f32.mrb[0].mxu0
        %v2059 = vadd.f32 %v1792, %v2058
        %v2060 = vpop.f32.mrb[0].mxu0
        %2061 = vmatprep.mubr.f32.mxu0 0.0
        %v2062 = vand.u32 %v786, 4294901760
        %2063 = vmatmul.mubr.f32.gmra.mrb[0].mxu0 %v2062
        %v2064 = vpop.f32.mrb[0].mxu0
        %v2065 = vadd.f32 %v1800, %v2064
        %v2066 = vpop.f32.mrb[0].mxu0
        %2067 = vmatprep.mubr.f32.mxu0 0.0
        %v2068 = vand.u32 %v787, 4294901760
        %2069 = vmatmul.mubr.f32.gmra.mrb[0].mxu0 %v2068
        %v2070 = vpop.f32.mrb[0].mxu0
        %v2071 = vadd.f32 %v1808, %v2070
        %v2072 = vpop.f32.mrb[0].mxu0
        %2073 = vmatprep.mubr.f32.mxu0 0.0
        %v2074 = vand.u32 %v788, 4294901760
        %2075 = vmatmul.mubr.f32.gmra.mrb[0].mxu0 %v2074
        %v2076 = vpop.f32.mrb[0].mxu0
        %v2077 = vadd.f32 %v1816, %v2076
        %v2078 = vpop.f32.mrb[0].mxu0
        %2079 = vmatprep.mubr.f32.mxu0 0.0
        %v2080 = vand.u32 %v789, 4294901760
        %2081 = vmatmul.mubr.f32.gmra.mrb[0].mxu0 %v2080
        %v2082 = vpop.f32.mrb[0].mxu0
        %v2083 = vadd.f32 %v1824, %v2082
        %v2084 = vpop.f32.mrb[0].mxu0
        %2085 = vmatprep.mubr.f32.mxu0 0.0
        %v2086 = vand.u32 %v790, 4294901760
        %2087 = vmatmul.mubr.f32.gmra.mrb[0].mxu0 %v2086
        %v2088 = vpop.f32.mrb[0].mxu0
        %v2089 = vadd.f32 %v1832, %v2088
        %v2090 = vpop.f32.mrb[0].mxu0
        %2091 = vmatprep.mubr.f32.mxu0 0.0
        %v2092 = vand.u32 %v791, 4294901760
        %2093 = vmatmul.mubr.f32.gmra.mrb[0].mxu0 %v2092
        %v2094 = vpop.f32.mrb[0].mxu0
        %v2095 = vadd.f32 %v1840, %v2094
        %v2096 = vpop.f32.mrb[0].mxu0
        %2097 = vmatprep.mubr.f32.mxu0 0.0
        %v2098 = vand.u32 %v792, 4294901760
        %2099 = vmatmul.mubr.f32.gmra.mrb[0].mxu0 %v2098
        %v2100 = vpop.f32.mrb[0].mxu0
        %v2101 = vadd.f32 %v1848, %v2100
        %v2102 = vpop.f32.mrb[0].mxu0
        %2103 = vmatprep.mubr.f32.mxu0 0.0
        %v2104 = vand.u32 %v793, 4294901760
        %2105 = vmatmul.mubr.f32.gmra.mrb[0].mxu0 %v2104
        %v2106 = vpop.f32.mrb[0].mxu0
        %v2107 = vadd.f32 %v1856, %v2106
        %v2108 = vpop.f32.mrb[0].mxu0
        %2109 = vmatprep.mubr.f32.mxu0 0.0
        %v2110 = vand.u32 %v794, 4294901760
        %2111 = vmatmul.mubr.f32.gmra.mrb[0].mxu0 %v2110
        %v2112 = vpop.f32.mrb[0].mxu0
        %v2113 = vadd.f32 %v1864, %v2112
        %v2114 = vpop.f32.mrb[0].mxu0
        %2115 = vmatprep.mubr.f32.mxu0 0.0
        %v2116 = vand.u32 %v795, 4294901760
        %2117 = vmatmul.mubr.f32.gmra.mrb[0].mxu0 %v2116
        %v2118 = vpop.f32.mrb[0].mxu0
        %v2119 = vadd.f32 %v1872, %v2118
        %v2120 = vpop.f32.mrb[0].mxu0
        %2121 = vmatprep.mubr.f32.mxu0 0.0
        %v2122 = vand.u32 %v796, 4294901760
        %2123 = vmatmul.mubr.f32.gmra.mrb[0].mxu0 %v2122
        %v2124 = vpop.f32.mrb[0].mxu0
        %v2125 = vadd.f32 %v1880, %v2124
        %v2126 = vpop.f32.mrb[0].mxu0
        %2127 = vdwg.mxu0
        %2128 = vmatprep.subr.mxu0 0.0
        %v2129 = vand.u32 %v504, 4294901760
        %2130 = vmatpush1.msra.mxu0 %v2129
        %2131 = vmatprep.subr.mxu0 0.0
        %v2132 = vand.u32 %v505, 4294901760
        %2133 = vmatpush1.msra.mxu0 %v2132
        %2134 = vmatprep.subr.mxu0 0.0
        %v2135 = vand.u32 %v506, 4294901760
        %2136 = vmatpush1.msra.mxu0 %v2135
        %2137 = vmatprep.subr.mxu0 0.0
        %v2138 = vand.u32 %v507, 4294901760
        %2139 = vmatpush1.msra.mxu0 %v2138
        %2140 = vmatprep.subr.mxu0 0.0
        %v2141 = vand.u32 %v508, 4294901760
        %2142 = vmatpush1.msra.mxu0 %v2141
        %2143 = vmatprep.subr.mxu0 0.0
        %v2144 = vand.u32 %v509, 4294901760
        %2145 = vmatpush1.msra.mxu0 %v2144
        %2146 = vmatprep.subr.mxu0 0.0
        %v2147 = vand.u32 %v510, 4294901760
        %2148 = vmatpush1.msra.mxu0 %v2147
        %2149 = vmatprep.subr.mxu0 0.0
        %v2150 = vand.u32 %v511, 4294901760
        %2151 = vmatpush1.msra.mxu0 %v2150
        %2152 = vmatprep.subr.mxu0 0.0
        %v2153 = vand.u32 %v512, 4294901760
        %2154 = vmatpush1.msra.mxu0 %v2153
        %2155 = vmatprep.subr.mxu0 0.0
        %v2156 = vand.u32 %v513, 4294901760
        %2157 = vmatpush1.msra.mxu0 %v2156
        %2158 = vmatprep.subr.mxu0 0.0
        %v2159 = vand.u32 %v514, 4294901760
        %2160 = vmatpush1.msra.mxu0 %v2159
        %2161 = vmatprep.subr.mxu0 0.0
        %v2162 = vand.u32 %v515, 4294901760
        %2163 = vmatpush1.msra.mxu0 %v2162
        %2164 = vmatprep.subr.mxu0 0.0
        %v2165 = vand.u32 %v516, 4294901760
        %2166 = vmatpush1.msra.mxu0 %v2165
        %2167 = vmatprep.subr.mxu0 0.0
        %v2168 = vand.u32 %v517, 4294901760
        %2169 = vmatpush1.msra.mxu0 %v2168
        %2170 = vmatprep.subr.mxu0 0.0
        %v2171 = vand.u32 %v518, 4294901760
        %2172 = vmatpush1.msra.mxu0 %v2171
        %2173 = vmatprep.subr.mxu0 0.0
        %v2174 = vand.u32 %v519, 4294901760
        %2175 = vmatpush1.msra.mxu0 %v2174
        %2176 = vmatprep.subr.mxu0 0.0
        %2177 = vmatpush1.msra.mxu0 0.0
        %2178 = vmatprep.subr.mxu0 0.0
        %2179 = vmatpush1.msra.mxu0 0.0
        %2180 = vmatprep.subr.mxu0 0.0
        %2181 = vmatpush1.msra.mxu0 0.0
        %2182 = vmatprep.subr.mxu0 0.0
        %2183 = vmatpush1.msra.mxu0 0.0
        %2184 = vmatprep.subr.mxu0 0.0
        %2185 = vmatpush1.msra.mxu0 0.0
        %2186 = vmatprep.subr.mxu0 0.0
        %2187 = vmatpush1.msra.mxu0 0.0
        %2188 = vmatprep.subr.mxu0 0.0
        %2189 = vmatpush1.msra.mxu0 0.0
        %2190 = vmatprep.subr.mxu0 0.0
        %2191 = vmatpush1.msra.mxu0 0.0
        %2192 = vmatprep.subr.mxu0 0.0
        %2193 = vmatpush1.msra.mxu0 0.0
        %2194 = vmatprep.subr.mxu0 0.0
        %2195 = vmatpush1.msra.mxu0 0.0
        %2196 = vmatprep.subr.mxu0 0.0
        %2197 = vmatpush1.msra.mxu0 0.0
        %2198 = vmatprep.subr.mxu0 0.0
        %2199 = vmatpush1.msra.mxu0 0.0
        %2200 = vmatprep.subr.mxu0 0.0
        %2201 = vmatpush1.msra.mxu0 0.0
        %2202 = vmatprep.subr.mxu0 0.0
        %2203 = vmatpush1.msra.mxu0 0.0
        %2204 = vmatprep.subr.mxu0 0.0
        %2205 = vmatpush1.msra.mxu0 0.0
        %2206 = vmatprep.subr.mxu0 0.0
        %2207 = vmatpush1.msra.mxu0 0.0
        %2208 = vmatprep.mubr.f32.mxu0 0.0
        %v2209 = vand.u32 %v775, 4294901760
        %2210 = vmatmul.mubr.f32.gmra.mrb[0].mxu0 %v2209
        %v2211 = vpop.f32.mrb[0].mxu0
        %v2212 = vadd.f32 %v1999, %v2211
        %v2213 = vpop.f32.mrb[0].mxu0
        %2214 = vmatprep.mubr.f32.mxu0 0.0
        %v2215 = vand.u32 %v776, 4294901760
        %2216 = vmatmul.mubr.f32.gmra.mrb[0].mxu0 %v2215
        %v2217 = vpop.f32.mrb[0].mxu0
        %v2218 = vadd.f32 %v2005, %v2217
        %v2219 = vpop.f32.mrb[0].mxu0
        %2220 = vmatprep.mubr.f32.mxu0 0.0
        %v2221 = vand.u32 %v777, 4294901760
        %2222 = vmatmul.mubr.f32.gmra.mrb[0].mxu0 %v2221
        %v2223 = vpop.f32.mrb[0].mxu0
        %v2224 = vadd.f32 %v2011, %v2223
        %v2225 = vpop.f32.mrb[0].mxu0
        %2226 = vmatprep.mubr.f32.mxu0 0.0
        %v2227 = vand.u32 %v778, 4294901760
        %2228 = vmatmul.mubr.f32.gmra.mrb[0].mxu0 %v2227
        %v2229 = vpop.f32.mrb[0].mxu0
        %v2230 = vadd.f32 %v2017, %v2229
        %v2231 = vpop.f32.mrb[0].mxu0
        %2232 = vmatprep.mubr.f32.mxu0 0.0
        %v2233 = vand.u32 %v779, 4294901760
        %2234 = vmatmul.mubr.f32.gmra.mrb[0].mxu0 %v2233
        %v2235 = vpop.f32.mrb[0].mxu0
        %v2236 = vadd.f32 %v2023, %v2235
        %v2237 = vpop.f32.mrb[0].mxu0
        %2238 = vmatprep.mubr.f32.mxu0 0.0
        %v2239 = vand.u32 %v780, 4294901760
        %2240 = vmatmul.mubr.f32.gmra.mrb[0].mxu0 %v2239
        %v2241 = vpop.f32.mrb[0].mxu0
        %v2242 = vadd.f32 %v2029, %v2241
        %v2243 = vpop.f32.mrb[0].mxu0
        %2244 = vmatprep.mubr.f32.mxu0 0.0
        %v2245 = vand.u32 %v781, 4294901760
        %2246 = vmatmul.mubr.f32.gmra.mrb[0].mxu0 %v2245
        %v2247 = vpop.f32.mrb[0].mxu0
        %v2248 = vadd.f32 %v2035, %v2247
        %v2249 = vpop.f32.mrb[0].mxu0
        %2250 = vmatprep.mubr.f32.mxu0 0.0
        %v2251 = vand.u32 %v782, 4294901760
        %2252 = vmatmul.mubr.f32.gmra.mrb[0].mxu0 %v2251
        %v2253 = vpop.f32.mrb[0].mxu0
        %v2254 = vadd.f32 %v2041, %v2253
        %v2255 = vpop.f32.mrb[0].mxu0
        %2256 = vmatprep.mubr.f32.mxu0 0.0
        %v2257 = vand.u32 %v783, 4294901760
        %2258 = vmatmul.mubr.f32.gmra.mrb[0].mxu0 %v2257
        %v2259 = vpop.f32.mrb[0].mxu0
        %v2260 = vadd.f32 %v2047, %v2259
        %v2261 = vpop.f32.mrb[0].mxu0
        %2262 = vmatprep.mubr.f32.mxu0 0.0
        %v2263 = vand.u32 %v784, 4294901760
        %2264 = vmatmul.mubr.f32.gmra.mrb[0].mxu0 %v2263
        %v2265 = vpop.f32.mrb[0].mxu0
        %v2266 = vadd.f32 %v2053, %v2265
        %v2267 = vpop.f32.mrb[0].mxu0
        %2268 = vmatprep.mubr.f32.mxu0 0.0
        %v2269 = vand.u32 %v785, 4294901760
        %2270 = vmatmul.mubr.f32.gmra.mrb[0].mxu0 %v2269
        %v2271 = vpop.f32.mrb[0].mxu0
        %v2272 = vadd.f32 %v2059, %v2271
        %v2273 = vpop.f32.mrb[0].mxu0
        %2274 = vmatprep.mubr.f32.mxu0 0.0
        %v2275 = vand.u32 %v786, 4294901760
        %2276 = vmatmul.mubr.f32.gmra.mrb[0].mxu0 %v2275
        %v2277 = vpop.f32.mrb[0].mxu0
        %v2278 = vadd.f32 %v2065, %v2277
        %v2279 = vpop.f32.mrb[0].mxu0
        %2280 = vmatprep.mubr.f32.mxu0 0.0
        %v2281 = vand.u32 %v787, 4294901760
        %2282 = vmatmul.mubr.f32.gmra.mrb[0].mxu0 %v2281
        %v2283 = vpop.f32.mrb[0].mxu0
        %v2284 = vadd.f32 %v2071, %v2283
        %v2285 = vpop.f32.mrb[0].mxu0
        %2286 = vmatprep.mubr.f32.mxu0 0.0
        %v2287 = vand.u32 %v788, 4294901760
        %2288 = vmatmul.mubr.f32.gmra.mrb[0].mxu0 %v2287
        %v2289 = vpop.f32.mrb[0].mxu0
        %v2290 = vadd.f32 %v2077, %v2289
        %v2291 = vpop.f32.mrb[0].mxu0
        %2292 = vmatprep.mubr.f32.mxu0 0.0
        %v2293 = vand.u32 %v789, 4294901760
        %2294 = vmatmul.mubr.f32.gmra.mrb[0].mxu0 %v2293
        %v2295 = vpop.f32.mrb[0].mxu0
        %v2296 = vadd.f32 %v2083, %v2295
        %v2297 = vpop.f32.mrb[0].mxu0
        %2298 = vmatprep.mubr.f32.mxu0 0.0
        %v2299 = vand.u32 %v790, 4294901760
        %2300 = vmatmul.mubr.f32.gmra.mrb[0].mxu0 %v2299
        %v2301 = vpop.f32.mrb[0].mxu0
        %v2302 = vadd.f32 %v2089, %v2301
        %v2303 = vpop.f32.mrb[0].mxu0
        %2304 = vmatprep.mubr.f32.mxu0 0.0
        %v2305 = vand.u32 %v791, 4294901760
        %2306 = vmatmul.mubr.f32.gmra.mrb[0].mxu0 %v2305
        %v2307 = vpop.f32.mrb[0].mxu0
        %v2308 = vadd.f32 %v2095, %v2307
        %v2309 = vpop.f32.mrb[0].mxu0
        %2310 = vmatprep.mubr.f32.mxu0 0.0
        %v2311 = vand.u32 %v792, 4294901760
        %2312 = vmatmul.mubr.f32.gmra.mrb[0].mxu0 %v2311
        %v2313 = vpop.f32.mrb[0].mxu0
        %v2314 = vadd.f32 %v2101, %v2313
        %v2315 = vpop.f32.mrb[0].mxu0
        %2316 = vmatprep.mubr.f32.mxu0 0.0
        %v2317 = vand.u32 %v793, 4294901760
        %2318 = vmatmul.mubr.f32.gmra.mrb[0].mxu0 %v2317
        %v2319 = vpop.f32.mrb[0].mxu0
        %v2320 = vadd.f32 %v2107, %v2319
        %v2321 = vpop.f32.mrb[0].mxu0
        %2322 = vmatprep.mubr.f32.mxu0 0.0
        %v2323 = vand.u32 %v794, 4294901760
        %2324 = vmatmul.mubr.f32.gmra.mrb[0].mxu0 %v2323
        %v2325 = vpop.f32.mrb[0].mxu0
        %v2326 = vadd.f32 %v2113, %v2325
        %v2327 = vpop.f32.mrb[0].mxu0
        %2328 = vmatprep.mubr.f32.mxu0 0.0
        %v2329 = vand.u32 %v795, 4294901760
        %2330 = vmatmul.mubr.f32.gmra.mrb[0].mxu0 %v2329
        %v2331 = vpop.f32.mrb[0].mxu0
        %v2332 = vadd.f32 %v2119, %v2331
        %v2333 = vpop.f32.mrb[0].mxu0
        %2334 = vmatprep.mubr.f32.mxu0 0.0
        %v2335 = vand.u32 %v796, 4294901760
        %2336 = vmatmul.mubr.f32.gmra.mrb[0].mxu0 %v2335
        %v2337 = vpop.f32.mrb[0].mxu0
        %v2338 = vadd.f32 %v2125, %v2337
        %v2339 = vpop.f32.mrb[0].mxu0
        %2340 = vdwg.mxu0
        %2341 = vadd.xlane.f32.xlu0 %v775
        %v2342 = vpop.xlane.xlu0 %2341
        %2343 = vadd.xlane.f32.xlu0 %v776
        %v2344 = vpop.xlane.xlu0 %2343
        %2345 = vadd.xlane.f32.xlu0 %v777
        %v2346 = vpop.xlane.xlu0 %2345
        %2347 = vadd.xlane.f32.xlu0 %v778
        %v2348 = vpop.xlane.xlu0 %2347
        %2349 = vadd.xlane.f32.xlu0 %v779
        %v2350 = vpop.xlane.xlu0 %2349
        %2351 = vadd.xlane.f32.xlu0 %v780
        %v2352 = vpop.xlane.xlu0 %2351
        %2353 = vadd.xlane.f32.xlu0 %v781
        %v2354 = vpop.xlane.xlu0 %2353
        %2355 = vadd.xlane.f32.xlu0 %v782
        %v2356 = vpop.xlane.xlu0 %2355
        %2357 = vadd.xlane.f32.xlu0 %v783
        %v2358 = vpop.xlane.xlu0 %2357
        %2359 = vadd.xlane.f32.xlu0 %v784
        %v2360 = vpop.xlane.xlu0 %2359
        %v2361 = vmax.f32 %v2342, 1.0
        %v2362 = vmax.f32 %v2344, 1.0
        %v2363 = vmax.f32 %v2346, 1.0
        %v2364 = vmax.f32 %v2348, 1.0
        %v2365 = vmax.f32 %v2350, 1.0
        %v2366 = vmax.f32 %v2352, 1.0
        %v2367 = vmax.f32 %v2354, 1.0
        %v2368 = vmax.f32 %v2356, 1.0
        %v2369 = vmax.f32 %v2358, 1.0
        %v2370 = vmax.f32 %v2360, 1.0
        %v2371 = vrcp.pop %v2361
        %v2372 = vmul.f32 %v2212, %v2371
        %v2373 = vrcp.pop %v2362
        %v2374 = vmul.f32 %v2218, %v2373
        %v2375 = vrcp.pop %v2363
        %v2376 = vmul.f32 %v2224, %v2375
        %v2377 = vrcp.pop %v2364
        %v2378 = vmul.f32 %v2230, %v2377
        %v2379 = vrcp.pop %v2365
        %v2380 = vmul.f32 %v2236, %v2379
        %v2381 = vrcp.pop %v2366
        %v2382 = vmul.f32 %v2242, %v2381
        %v2383 = vrcp.pop %v2367
        %v2384 = vmul.f32 %v2248, %v2383
        %v2385 = vrcp.pop %v2368
        %v2386 = vmul.f32 %v2254, %v2385
        %v2387 = vrcp.pop %v2369
        %v2388 = vmul.f32 %v2260, %v2387
        %v2389 = vrcp.pop %v2370
        %v2390 = vmul.f32 %v2266, %v2389
        %v2391 = vld [vmem:[%s5] sm:$0xff]
        %v2392 = vld [vmem:[%s5 + $0x8] sm:$0xff]
        %v2393 = vld [vmem:[%s5 + $0x10] sm:$0xff]
        %v2394 = vld [vmem:[%s5 + $0x18] sm:$0xff]
        %v2395 = vld [vmem:[%s5 + $0x20] sm:$0xff]
        %v2396 = vld [vmem:[%s5 + $0x28] sm:$0xff]
        %v2397 = vld [vmem:[%s5 + $0x30] sm:$0xff]
        %v2398 = vld [vmem:[%s5 + $0x38] sm:$0xff]
        %vm2399 = vcmask 261120
        %v2401 = vsel %vm2399, %v2272, 0
        %v2404 = vsel %vm2399, %v2278, 0
        %v2407 = vsel %vm2399, %v2284, 0
        %v2410 = vsel %vm2399, %v2290, 0
        %v2413 = vsel %vm2399, %v2296, 0
        %v2416 = vsel %vm2399, %v2302, 0
        %2418 = vmatprep.subr.mxu0 0.0
        %v2419 = vand.u32 %v2395, 4294901760
        %2420 = vmatpush1.msra.mxu0 %v2419
        %2421 = vmatprep.subr.mxu0 0.0
        %v2422 = vand.u32 %v2396, 4294901760
        %2423 = vmatpush1.msra.mxu0 %v2422
        %2424 = vmatprep.subr.mxu0 0.0
        %v2425 = vand.u32 %v2397, 4294901760
        %2426 = vmatpush1.msra.mxu0 %v2425
        %2427 = vmatprep.subr.mxu0 0.0
        %v2428 = vand.u32 %v2398, 4294901760
        %2429 = vmatpush1.msra.mxu0 %v2428
        %2430 = vmatprep.subr.mxu0 0.0
        %2431 = vmatpush1.msra.mxu0 0.0
        %2432 = vmatprep.subr.mxu0 0.0
        %2433 = vmatpush1.msra.mxu0 0.0
        %2434 = vmatprep.subr.mxu0 0.0
        %2435 = vmatpush1.msra.mxu0 0.0
        %2436 = vmatprep.subr.mxu0 0.0
        %2437 = vmatpush1.msra.mxu0 0.0
        %2438 = vmatprep.subr.mxu0 0.0
        %2439 = vmatpush1.msra.mxu0 0.0
        %2440 = vmatprep.subr.mxu0 0.0
        %2441 = vmatpush1.msra.mxu0 0.0
        %2442 = vmatprep.subr.mxu0 0.0
        %2443 = vmatpush1.msra.mxu0 0.0
        %2444 = vmatprep.subr.mxu0 0.0
        %2445 = vmatpush1.msra.mxu0 0.0
        %2446 = vmatprep.subr.mxu0 0.0
        %2447 = vmatpush1.msra.mxu0 0.0
        %2448 = vmatprep.subr.mxu0 0.0
        %2449 = vmatpush1.msra.mxu0 0.0
        %2450 = vmatprep.subr.mxu0 0.0
        %2451 = vmatpush1.msra.mxu0 0.0
        %2452 = vmatprep.subr.mxu0 0.0
        %2453 = vmatpush1.msra.mxu0 0.0
        %2454 = vmatprep.subr.mxu0 0.0
        %2455 = vmatpush1.msra.mxu0 0.0
        %2456 = vmatprep.subr.mxu0 0.0
        %2457 = vmatpush1.msra.mxu0 0.0
        %2458 = vmatprep.subr.mxu0 0.0
        %2459 = vmatpush1.msra.mxu0 0.0
        %2460 = vmatprep.subr.mxu0 0.0
        %2461 = vmatpush1.msra.mxu0 0.0
        %2462 = vmatprep.subr.mxu0 0.0
        %2463 = vmatpush1.msra.mxu0 0.0
        %2464 = vmatprep.subr.mxu0 0.0
        %2465 = vmatpush1.msra.mxu0 0.0
        %2466 = vmatprep.subr.mxu0 0.0
        %2467 = vmatpush1.msra.mxu0 0.0
        %2468 = vmatprep.subr.mxu0 0.0
        %2469 = vmatpush1.msra.mxu0 0.0
        %2470 = vmatprep.subr.mxu0 0.0
        %2471 = vmatpush1.msra.mxu0 0.0
        %2472 = vmatprep.subr.mxu0 0.0
        %2473 = vmatpush1.msra.mxu0 0.0
        %2474 = vmatprep.subr.mxu0 0.0
        %2475 = vmatpush1.msra.mxu0 0.0
        %2476 = vmatprep.subr.mxu0 0.0
        %2477 = vmatpush1.msra.mxu0 0.0
        %2478 = vmatprep.subr.mxu0 0.0
        %2479 = vmatpush1.msra.mxu0 0.0
        %2480 = vmatprep.subr.mxu0 0.0
        %2481 = vmatpush1.msra.mxu0 0.0
        %2482 = vmatprep.subr.mxu0 0.0
        %2483 = vmatpush1.msra.mxu0 0.0
        %2484 = vmatprep.subr.mxu0 0.0
        %2485 = vmatpush1.msra.mxu0 0.0
        %2486 = vmatprep.mubr.f32.mxu0 0.0
        %v2487 = vand.u32 %v2401, 4294901760
        %v2488 = vsub.f32 %v2401, %v2487
        %v2489 = vand.u32 %v2488, 4294901760
        %v2490 = vsub.f32 %v2488, %v2489
        %v2491 = vand.u32 %v2490, 4294901760
        %2492 = vmatmul.mubr.f32.gmra.mrb[0].mxu0 %v2491
        %v2493 = vpop.f32.mrb[0].mxu0
        %v2494 = vadd.f32 0.0, %v2493
        %v2495 = vpop.f32.mrb[0].mxu0
        %2496 = vmatprep.mubr.f32.mxu0 0.0
        %v2497 = vand.u32 %v2404, 4294901760
        %v2498 = vsub.f32 %v2404, %v2497
        %v2499 = vand.u32 %v2498, 4294901760
        %v2500 = vsub.f32 %v2498, %v2499
        %v2501 = vand.u32 %v2500, 4294901760
        %2502 = vmatmul.mubr.f32.gmra.mrb[0].mxu0 %v2501
        %v2503 = vpop.f32.mrb[0].mxu0
        %v2504 = vadd.f32 0.0, %v2503
        %v2505 = vpop.f32.mrb[0].mxu0
        %2506 = vmatprep.mubr.f32.mxu0 0.0
        %v2507 = vand.u32 %v2407, 4294901760
        %v2508 = vsub.f32 %v2407, %v2507
        %v2509 = vand.u32 %v2508, 4294901760
        %v2510 = vsub.f32 %v2508, %v2509
        %v2511 = vand.u32 %v2510, 4294901760
        %2512 = vmatmul.mubr.f32.gmra.mrb[0].mxu0 %v2511
        %v2513 = vpop.f32.mrb[0].mxu0
        %v2514 = vadd.f32 0.0, %v2513
        %v2515 = vpop.f32.mrb[0].mxu0
        %2516 = vmatprep.mubr.f32.mxu0 0.0
        %v2517 = vand.u32 %v2410, 4294901760
        %v2518 = vsub.f32 %v2410, %v2517
        %v2519 = vand.u32 %v2518, 4294901760
        %v2520 = vsub.f32 %v2518, %v2519
        %v2521 = vand.u32 %v2520, 4294901760
        %2522 = vmatmul.mubr.f32.gmra.mrb[0].mxu0 %v2521
        %v2523 = vpop.f32.mrb[0].mxu0
        %v2524 = vadd.f32 0.0, %v2523
        %v2525 = vpop.f32.mrb[0].mxu0
        %2526 = vmatprep.mubr.f32.mxu0 0.0
        %v2527 = vand.u32 %v2413, 4294901760
        %v2528 = vsub.f32 %v2413, %v2527
        %v2529 = vand.u32 %v2528, 4294901760
        %v2530 = vsub.f32 %v2528, %v2529
        %v2531 = vand.u32 %v2530, 4294901760
        %2532 = vmatmul.mubr.f32.gmra.mrb[0].mxu0 %v2531
        %v2533 = vpop.f32.mrb[0].mxu0
        %v2534 = vadd.f32 0.0, %v2533
        %v2535 = vpop.f32.mrb[0].mxu0
        %2536 = vmatprep.mubr.f32.mxu0 0.0
        %v2537 = vand.u32 %v2416, 4294901760
        %v2538 = vsub.f32 %v2416, %v2537
        %v2539 = vand.u32 %v2538, 4294901760
        %v2540 = vsub.f32 %v2538, %v2539
        %v2541 = vand.u32 %v2540, 4294901760
        %2542 = vmatmul.mubr.f32.gmra.mrb[0].mxu0 %v2541
        %v2543 = vpop.f32.mrb[0].mxu0
        %v2544 = vadd.f32 0.0, %v2543
        %v2545 = vpop.f32.mrb[0].mxu0
        %2546 = vdwg.mxu0
        %2547 = vmatprep.subr.mxu0 0.0
        %v2548 = vand.u32 %v2395, 4294901760
        %v2549 = vsub.f32 %v2395, %v2548
        %v2550 = vand.u32 %v2549, 4294901760
        %v2551 = vsub.f32 %v2549, %v2550
        %v2552 = vand.u32 %v2551, 4294901760
        %2553 = vmatpush1.msra.mxu0 %v2552
        %2554 = vmatprep.subr.mxu0 0.0
        %v2555 = vand.u32 %v2396, 4294901760
        %v2556 = vsub.f32 %v2396, %v2555
        %v2557 = vand.u32 %v2556, 4294901760
        %v2558 = vsub.f32 %v2556, %v2557
        %v2559 = vand.u32 %v2558, 4294901760
        %2560 = vmatpush1.msra.mxu0 %v2559
        %2561 = vmatprep.subr.mxu0 0.0
        %v2562 = vand.u32 %v2397, 4294901760
        %v2563 = vsub.f32 %v2397, %v2562
        %v2564 = vand.u32 %v2563, 4294901760
        %v2565 = vsub.f32 %v2563, %v2564
        %v2566 = vand.u32 %v2565, 4294901760
        %2567 = vmatpush1.msra.mxu0 %v2566
        %2568 = vmatprep.subr.mxu0 0.0
        %v2569 = vand.u32 %v2398, 4294901760
        %v2570 = vsub.f32 %v2398, %v2569
        %v2571 = vand.u32 %v2570, 4294901760
        %v2572 = vsub.f32 %v2570, %v2571
        %v2573 = vand.u32 %v2572, 4294901760
        %2574 = vmatpush1.msra.mxu0 %v2573
        %2575 = vmatprep.subr.mxu0 0.0
        %2576 = vmatpush1.msra.mxu0 0.0
        %2577 = vmatprep.subr.mxu0 0.0
        %2578 = vmatpush1.msra.mxu0 0.0
        %2579 = vmatprep.subr.mxu0 0.0
        %2580 = vmatpush1.msra.mxu0 0.0
        %2581 = vmatprep.subr.mxu0 0.0
        %2582 = vmatpush1.msra.mxu0 0.0
        %2583 = vmatprep.subr.mxu0 0.0
        %2584 = vmatpush1.msra.mxu0 0.0
        %2585 = vmatprep.subr.mxu0 0.0
        %2586 = vmatpush1.msra.mxu0 0.0
        %2587 = vmatprep.subr.mxu0 0.0
        %2588 = vmatpush1.msra.mxu0 0.0
        %2589 = vmatprep.subr.mxu0 0.0
        %2590 = vmatpush1.msra.mxu0 0.0
        %2591 = vmatprep.subr.mxu0 0.0
        %2592 = vmatpush1.msra.mxu0 0.0
        %2593 = vmatprep.subr.mxu0 0.0
        %2594 = vmatpush1.msra.mxu0 0.0
        %2595 = vmatprep.subr.mxu0 0.0
        %2596 = vmatpush1.msra.mxu0 0.0
        %2597 = vmatprep.subr.mxu0 0.0
        %2598 = vmatpush1.msra.mxu0 0.0
        %2599 = vmatprep.subr.mxu0 0.0
        %2600 = vmatpush1.msra.mxu0 0.0
        %2601 = vmatprep.subr.mxu0 0.0
        %2602 = vmatpush1.msra.mxu0 0.0
        %2603 = vmatprep.subr.mxu0 0.0
        %2604 = vmatpush1.msra.mxu0 0.0
        %2605 = vmatprep.subr.mxu0 0.0
        %2606 = vmatpush1.msra.mxu0 0.0
        %2607 = vmatprep.subr.mxu0 0.0
        %2608 = vmatpush1.msra.mxu0 0.0
        %2609 = vmatprep.subr.mxu0 0.0
        %2610 = vmatpush1.msra.mxu0 0.0
        %2611 = vmatprep.subr.mxu0 0.0
        %2612 = vmatpush1.msra.mxu0 0.0
        %2613 = vmatprep.subr.mxu0 0.0
        %2614 = vmatpush1.msra.mxu0 0.0
        %2615 = vmatprep.subr.mxu0 0.0
        %2616 = vmatpush1.msra.mxu0 0.0
        %2617 = vmatprep.subr.mxu0 0.0
        %2618 = vmatpush1.msra.mxu0 0.0
        %2619 = vmatprep.subr.mxu0 0.0
        %2620 = vmatpush1.msra.mxu0 0.0
        %2621 = vmatprep.subr.mxu0 0.0
        %2622 = vmatpush1.msra.mxu0 0.0
        %2623 = vmatprep.subr.mxu0 0.0
        %2624 = vmatpush1.msra.mxu0 0.0
        %2625 = vmatprep.subr.mxu0 0.0
        %2626 = vmatpush1.msra.mxu0 0.0
        %2627 = vmatprep.subr.mxu0 0.0
        %2628 = vmatpush1.msra.mxu0 0.0
        %2629 = vmatprep.subr.mxu0 0.0
        %2630 = vmatpush1.msra.mxu0 0.0
        %2631 = vmatprep.mubr.f32.mxu0 0.0
        %v2632 = vand.u32 %v2401, 4294901760
        %2633 = vmatmul.mubr.f32.gmra.mrb[0].mxu0 %v2632
        %v2634 = vpop.f32.mrb[0].mxu0
        %v2635 = vadd.f32 %v2494, %v2634
        %v2636 = vpop.f32.mrb[0].mxu0
        %2637 = vmatprep.mubr.f32.mxu0 0.0
        %v2638 = vand.u32 %v2404, 4294901760
        %2639 = vmatmul.mubr.f32.gmra.mrb[0].mxu0 %v2638
        %v2640 = vpop.f32.mrb[0].mxu0
        %v2641 = vadd.f32 %v2504, %v2640
        %v2642 = vpop.f32.mrb[0].mxu0
        %2643 = vmatprep.mubr.f32.mxu0 0.0
        %v2644 = vand.u32 %v2407, 4294901760
        %2645 = vmatmul.mubr.f32.gmra.mrb[0].mxu0 %v2644
        %v2646 = vpop.f32.mrb[0].mxu0
        %v2647 = vadd.f32 %v2514, %v2646
        %v2648 = vpop.f32.mrb[0].mxu0
        %2649 = vmatprep.mubr.f32.mxu0 0.0
        %v2650 = vand.u32 %v2410, 4294901760
        %2651 = vmatmul.mubr.f32.gmra.mrb[0].mxu0 %v2650
        %v2652 = vpop.f32.mrb[0].mxu0
        %v2653 = vadd.f32 %v2524, %v2652
        %v2654 = vpop.f32.mrb[0].mxu0
        %2655 = vmatprep.mubr.f32.mxu0 0.0
        %v2656 = vand.u32 %v2413, 4294901760
        %2657 = vmatmul.mubr.f32.gmra.mrb[0].mxu0 %v2656
        %v2658 = vpop.f32.mrb[0].mxu0
        %v2659 = vadd.f32 %v2534, %v2658
        %v2660 = vpop.f32.mrb[0].mxu0
        %2661 = vmatprep.mubr.f32.mxu0 0.0
        %v2662 = vand.u32 %v2416, 4294901760
        %2663 = vmatmul.mubr.f32.gmra.mrb[0].mxu0 %v2662
        %v2664 = vpop.f32.mrb[0].mxu0
        %v2665 = vadd.f32 %v2544, %v2664
        %v2666 = vpop.f32.mrb[0].mxu0
        %2667 = vdwg.mxu0
        %2668 = vmatprep.subr.mxu0 0.0
        %v2669 = vand.u32 %v2395, 4294901760
        %v2670 = vsub.f32 %v2395, %v2669
        %2671 = vmatpush1.msra.mxu0 %v2670
        %2672 = vmatprep.subr.mxu0 0.0
        %v2673 = vand.u32 %v2396, 4294901760
        %v2674 = vsub.f32 %v2396, %v2673
        %2675 = vmatpush1.msra.mxu0 %v2674
        %2676 = vmatprep.subr.mxu0 0.0
        %v2677 = vand.u32 %v2397, 4294901760
        %v2678 = vsub.f32 %v2397, %v2677
        %2679 = vmatpush1.msra.mxu0 %v2678
        %2680 = vmatprep.subr.mxu0 0.0
        %v2681 = vand.u32 %v2398, 4294901760
        %v2682 = vsub.f32 %v2398, %v2681
        %2683 = vmatpush1.msra.mxu0 %v2682
        %2684 = vmatprep.subr.mxu0 0.0
        %2685 = vmatpush1.msra.mxu0 0.0
        %2686 = vmatprep.subr.mxu0 0.0
        %2687 = vmatpush1.msra.mxu0 0.0
        %2688 = vmatprep.subr.mxu0 0.0
        %2689 = vmatpush1.msra.mxu0 0.0
        %2690 = vmatprep.subr.mxu0 0.0
        %2691 = vmatpush1.msra.mxu0 0.0
        %2692 = vmatprep.subr.mxu0 0.0
        %2693 = vmatpush1.msra.mxu0 0.0
        %2694 = vmatprep.subr.mxu0 0.0
        %2695 = vmatpush1.msra.mxu0 0.0
        %2696 = vmatprep.subr.mxu0 0.0
        %2697 = vmatpush1.msra.mxu0 0.0
        %2698 = vmatprep.subr.mxu0 0.0
        %2699 = vmatpush1.msra.mxu0 0.0
        %2700 = vmatprep.subr.mxu0 0.0
        %2701 = vmatpush1.msra.mxu0 0.0
        %2702 = vmatprep.subr.mxu0 0.0
        %2703 = vmatpush1.msra.mxu0 0.0
        %2704 = vmatprep.subr.mxu0 0.0
        %2705 = vmatpush1.msra.mxu0 0.0
        %2706 = vmatprep.subr.mxu0 0.0
        %2707 = vmatpush1.msra.mxu0 0.0
        %2708 = vmatprep.subr.mxu0 0.0
        %2709 = vmatpush1.msra.mxu0 0.0
        %2710 = vmatprep.subr.mxu0 0.0
        %2711 = vmatpush1.msra.mxu0 0.0
        %2712 = vmatprep.subr.mxu0 0.0
        %2713 = vmatpush1.msra.mxu0 0.0
        %2714 = vmatprep.subr.mxu0 0.0
        %2715 = vmatpush1.msra.mxu0 0.0
        %2716 = vmatprep.subr.mxu0 0.0
        %2717 = vmatpush1.msra.mxu0 0.0
        %2718 = vmatprep.subr.mxu0 0.0
        %2719 = vmatpush1.msra.mxu0 0.0
        %2720 = vmatprep.subr.mxu0 0.0
        %2721 = vmatpush1.msra.mxu0 0.0
        %2722 = vmatprep.subr.mxu0 0.0
        %2723 = vmatpush1.msra.mxu0 0.0
        %2724 = vmatprep.subr.mxu0 0.0
        %2725 = vmatpush1.msra.mxu0 0.0
        %2726 = vmatprep.subr.mxu0 0.0
        %2727 = vmatpush1.msra.mxu0 0.0
        %2728 = vmatprep.subr.mxu0 0.0
        %2729 = vmatpush1.msra.mxu0 0.0
        %2730 = vmatprep.subr.mxu0 0.0
        %2731 = vmatpush1.msra.mxu0 0.0
        %2732 = vmatprep.subr.mxu0 0.0
        %2733 = vmatpush1.msra.mxu0 0.0
        %2734 = vmatprep.subr.mxu0 0.0
        %2735 = vmatpush1.msra.mxu0 0.0
        %2736 = vmatprep.subr.mxu0 0.0
        %2737 = vmatpush1.msra.mxu0 0.0
        %2738 = vmatprep.subr.mxu0 0.0
        %2739 = vmatpush1.msra.mxu0 0.0
        %2740 = vmatprep.mubr.f32.mxu0 0.0
        %v2741 = vand.u32 %v2401, 4294901760
        %v2742 = vsub.f32 %v2401, %v2741
        %2743 = vmatmul.mubr.f32.gmra.mrb[0].mxu0 %v2742
        %v2744 = vpop.f32.mrb[0].mxu0
        %v2745 = vadd.f32 %v2635, %v2744
        %v2746 = vpop.f32.mrb[0].mxu0
        %2747 = vmatprep.mubr.f32.mxu0 0.0
        %v2748 = vand.u32 %v2404, 4294901760
        %v2749 = vsub.f32 %v2404, %v2748
        %2750 = vmatmul.mubr.f32.gmra.mrb[0].mxu0 %v2749
        %v2751 = vpop.f32.mrb[0].mxu0
        %v2752 = vadd.f32 %v2641, %v2751
        %v2753 = vpop.f32.mrb[0].mxu0
        %2754 = vmatprep.mubr.f32.mxu0 0.0
        %v2755 = vand.u32 %v2407, 4294901760
        %v2756 = vsub.f32 %v2407, %v2755
        %2757 = vmatmul.mubr.f32.gmra.mrb[0].mxu0 %v2756
        %v2758 = vpop.f32.mrb[0].mxu0
        %v2759 = vadd.f32 %v2647, %v2758
        %v2760 = vpop.f32.mrb[0].mxu0
        %2761 = vmatprep.mubr.f32.mxu0 0.0
        %v2762 = vand.u32 %v2410, 4294901760
        %v2763 = vsub.f32 %v2410, %v2762
        %2764 = vmatmul.mubr.f32.gmra.mrb[0].mxu0 %v2763
        %v2765 = vpop.f32.mrb[0].mxu0
        %v2766 = vadd.f32 %v2653, %v2765
        %v2767 = vpop.f32.mrb[0].mxu0
        %2768 = vmatprep.mubr.f32.mxu0 0.0
        %v2769 = vand.u32 %v2413, 4294901760
        %v2770 = vsub.f32 %v2413, %v2769
        %2771 = vmatmul.mubr.f32.gmra.mrb[0].mxu0 %v2770
        %v2772 = vpop.f32.mrb[0].mxu0
        %v2773 = vadd.f32 %v2659, %v2772
        %v2774 = vpop.f32.mrb[0].mxu0
        %2775 = vmatprep.mubr.f32.mxu0 0.0
        %v2776 = vand.u32 %v2416, 4294901760
        %v2777 = vsub.f32 %v2416, %v2776
        %2778 = vmatmul.mubr.f32.gmra.mrb[0].mxu0 %v2777
        %v2779 = vpop.f32.mrb[0].mxu0
        %v2780 = vadd.f32 %v2665, %v2779
        %v2781 = vpop.f32.mrb[0].mxu0
        %2782 = vdwg.mxu0
        %2783 = vmatprep.subr.mxu0 0.0
        %v2784 = vand.u32 %v2395, 4294901760
        %2785 = vmatpush1.msra.mxu0 %v2784
        %2786 = vmatprep.subr.mxu0 0.0
        %v2787 = vand.u32 %v2396, 4294901760
        %2788 = vmatpush1.msra.mxu0 %v2787
        %2789 = vmatprep.subr.mxu0 0.0
        %v2790 = vand.u32 %v2397, 4294901760
        %2791 = vmatpush1.msra.mxu0 %v2790
        %2792 = vmatprep.subr.mxu0 0.0
        %v2793 = vand.u32 %v2398, 4294901760
        %2794 = vmatpush1.msra.mxu0 %v2793
        %2795 = vmatprep.subr.mxu0 0.0
        %2796 = vmatpush1.msra.mxu0 0.0
        %2797 = vmatprep.subr.mxu0 0.0
        %2798 = vmatpush1.msra.mxu0 0.0
        %2799 = vmatprep.subr.mxu0 0.0
        %2800 = vmatpush1.msra.mxu0 0.0
        %2801 = vmatprep.subr.mxu0 0.0
        %2802 = vmatpush1.msra.mxu0 0.0
        %2803 = vmatprep.subr.mxu0 0.0
        %2804 = vmatpush1.msra.mxu0 0.0
        %2805 = vmatprep.subr.mxu0 0.0
        %2806 = vmatpush1.msra.mxu0 0.0
        %2807 = vmatprep.subr.mxu0 0.0
        %2808 = vmatpush1.msra.mxu0 0.0
        %2809 = vmatprep.subr.mxu0 0.0
        %2810 = vmatpush1.msra.mxu0 0.0
        %2811 = vmatprep.subr.mxu0 0.0
        %2812 = vmatpush1.msra.mxu0 0.0
        %2813 = vmatprep.subr.mxu0 0.0
        %2814 = vmatpush1.msra.mxu0 0.0
        %2815 = vmatprep.subr.mxu0 0.0
        %2816 = vmatpush1.msra.mxu0 0.0
        %2817 = vmatprep.subr.mxu0 0.0
        %2818 = vmatpush1.msra.mxu0 0.0
        %2819 = vmatprep.subr.mxu0 0.0
        %2820 = vmatpush1.msra.mxu0 0.0
        %2821 = vmatprep.subr.mxu0 0.0
        %2822 = vmatpush1.msra.mxu0 0.0
        %2823 = vmatprep.subr.mxu0 0.0
        %2824 = vmatpush1.msra.mxu0 0.0
        %2825 = vmatprep.subr.mxu0 0.0
        %2826 = vmatpush1.msra.mxu0 0.0
        %2827 = vmatprep.subr.mxu0 0.0
        %2828 = vmatpush1.msra.mxu0 0.0
        %2829 = vmatprep.subr.mxu0 0.0
        %2830 = vmatpush1.msra.mxu0 0.0
        %2831 = vmatprep.subr.mxu0 0.0
        %2832 = vmatpush1.msra.mxu0 0.0
        %2833 = vmatprep.subr.mxu0 0.0
        %2834 = vmatpush1.msra.mxu0 0.0
        %2835 = vmatprep.subr.mxu0 0.0
        %2836 = vmatpush1.msra.mxu0 0.0
        %2837 = vmatprep.subr.mxu0 0.0
        %2838 = vmatpush1.msra.mxu0 0.0
        %2839 = vmatprep.subr.mxu0 0.0
        %2840 = vmatpush1.msra.mxu0 0.0
        %2841 = vmatprep.subr.mxu0 0.0
        %2842 = vmatpush1.msra.mxu0 0.0
        %2843 = vmatprep.subr.mxu0 0.0
        %2844 = vmatpush1.msra.mxu0 0.0
        %2845 = vmatprep.subr.mxu0 0.0
        %2846 = vmatpush1.msra.mxu0 0.0
        %2847 = vmatprep.subr.mxu0 0.0
        %2848 = vmatpush1.msra.mxu0 0.0
        %2849 = vmatprep.subr.mxu0 0.0
        %2850 = vmatpush1.msra.mxu0 0.0
        %2851 = vmatprep.mubr.f32.mxu0 0.0
        %v2852 = vand.u32 %v2401, 4294901760
        %v2853 = vsub.f32 %v2401, %v2852
        %v2854 = vand.u32 %v2853, 4294901760
        %2855 = vmatmul.mubr.f32.gmra.mrb[0].mxu0 %v2854
        %v2856 = vpop.f32.mrb[0].mxu0
        %v2857 = vadd.f32 %v2745, %v2856
        %v2858 = vpop.f32.mrb[0].mxu0
        %2859 = vmatprep.mubr.f32.mxu0 0.0
        %v2860 = vand.u32 %v2404, 4294901760
        %v2861 = vsub.f32 %v2404, %v2860
        %v2862 = vand.u32 %v2861, 4294901760
        %2863 = vmatmul.mubr.f32.gmra.mrb[0].mxu0 %v2862
        %v2864 = vpop.f32.mrb[0].mxu0
        %v2865 = vadd.f32 %v2752, %v2864
        %v2866 = vpop.f32.mrb[0].mxu0
        %2867 = vmatprep.mubr.f32.mxu0 0.0
        %v2868 = vand.u32 %v2407, 4294901760
        %v2869 = vsub.f32 %v2407, %v2868
        %v2870 = vand.u32 %v2869, 4294901760
        %2871 = vmatmul.mubr.f32.gmra.mrb[0].mxu0 %v2870
        %v2872 = vpop.f32.mrb[0].mxu0
        %v2873 = vadd.f32 %v2759, %v2872
        %v2874 = vpop.f32.mrb[0].mxu0
        %2875 = vmatprep.mubr.f32.mxu0 0.0
        %v2876 = vand.u32 %v2410, 4294901760
        %v2877 = vsub.f32 %v2410, %v2876
        %v2878 = vand.u32 %v2877, 4294901760
        %2879 = vmatmul.mubr.f32.gmra.mrb[0].mxu0 %v2878
        %v2880 = vpop.f32.mrb[0].mxu0
        %v2881 = vadd.f32 %v2766, %v2880
        %v2882 = vpop.f32.mrb[0].mxu0
        %2883 = vmatprep.mubr.f32.mxu0 0.0
        %v2884 = vand.u32 %v2413, 4294901760
        %v2885 = vsub.f32 %v2413, %v2884
        %v2886 = vand.u32 %v2885, 4294901760
        %2887 = vmatmul.mubr.f32.gmra.mrb[0].mxu0 %v2886
        %v2888 = vpop.f32.mrb[0].mxu0
        %v2889 = vadd.f32 %v2773, %v2888
        %v2890 = vpop.f32.mrb[0].mxu0
        %2891 = vmatprep.mubr.f32.mxu0 0.0
        %v2892 = vand.u32 %v2416, 4294901760
        %v2893 = vsub.f32 %v2416, %v2892
        %v2894 = vand.u32 %v2893, 4294901760
        %2895 = vmatmul.mubr.f32.gmra.mrb[0].mxu0 %v2894
        %v2896 = vpop.f32.mrb[0].mxu0
        %v2897 = vadd.f32 %v2780, %v2896
        %v2898 = vpop.f32.mrb[0].mxu0
        %2899 = vdwg.mxu0
        %2900 = vmatprep.subr.mxu0 0.0
        %v2901 = vand.u32 %v2395, 4294901760
        %v2902 = vsub.f32 %v2395, %v2901
        %v2903 = vand.u32 %v2902, 4294901760
        %2904 = vmatpush1.msra.mxu0 %v2903
        %2905 = vmatprep.subr.mxu0 0.0
        %v2906 = vand.u32 %v2396, 4294901760
        %v2907 = vsub.f32 %v2396, %v2906
        %v2908 = vand.u32 %v2907, 4294901760
        %2909 = vmatpush1.msra.mxu0 %v2908
        %2910 = vmatprep.subr.mxu0 0.0
        %v2911 = vand.u32 %v2397, 4294901760
        %v2912 = vsub.f32 %v2397, %v2911
        %v2913 = vand.u32 %v2912, 4294901760
        %2914 = vmatpush1.msra.mxu0 %v2913
        %2915 = vmatprep.subr.mxu0 0.0
        %v2916 = vand.u32 %v2398, 4294901760
        %v2917 = vsub.f32 %v2398, %v2916
        %v2918 = vand.u32 %v2917, 4294901760
        %2919 = vmatpush1.msra.mxu0 %v2918
        %2920 = vmatprep.subr.mxu0 0.0
        %2921 = vmatpush1.msra.mxu0 0.0
        %2922 = vmatprep.subr.mxu0 0.0
        %2923 = vmatpush1.msra.mxu0 0.0
        %2924 = vmatprep.subr.mxu0 0.0
        %2925 = vmatpush1.msra.mxu0 0.0
        %2926 = vmatprep.subr.mxu0 0.0
        %2927 = vmatpush1.msra.mxu0 0.0
        %2928 = vmatprep.subr.mxu0 0.0
        %2929 = vmatpush1.msra.mxu0 0.0
        %2930 = vmatprep.subr.mxu0 0.0
        %2931 = vmatpush1.msra.mxu0 0.0
        %2932 = vmatprep.subr.mxu0 0.0
        %2933 = vmatpush1.msra.mxu0 0.0
        %2934 = vmatprep.subr.mxu0 0.0
        %2935 = vmatpush1.msra.mxu0 0.0
        %2936 = vmatprep.subr.mxu0 0.0
        %2937 = vmatpush1.msra.mxu0 0.0
        %2938 = vmatprep.subr.mxu0 0.0
        %2939 = vmatpush1.msra.mxu0 0.0
        %2940 = vmatprep.subr.mxu0 0.0
        %2941 = vmatpush1.msra.mxu0 0.0
        %2942 = vmatprep.subr.mxu0 0.0
        %2943 = vmatpush1.msra.mxu0 0.0
        %2944 = vmatprep.subr.mxu0 0.0
        %2945 = vmatpush1.msra.mxu0 0.0
        %2946 = vmatprep.subr.mxu0 0.0
        %2947 = vmatpush1.msra.mxu0 0.0
        %2948 = vmatprep.subr.mxu0 0.0
        %2949 = vmatpush1.msra.mxu0 0.0
        %2950 = vmatprep.subr.mxu0 0.0
        %2951 = vmatpush1.msra.mxu0 0.0
        %2952 = vmatprep.subr.mxu0 0.0
        %2953 = vmatpush1.msra.mxu0 0.0
        %2954 = vmatprep.subr.mxu0 0.0
        %2955 = vmatpush1.msra.mxu0 0.0
        %2956 = vmatprep.subr.mxu0 0.0
        %2957 = vmatpush1.msra.mxu0 0.0
        %2958 = vmatprep.subr.mxu0 0.0
        %2959 = vmatpush1.msra.mxu0 0.0
        %2960 = vmatprep.subr.mxu0 0.0
        %2961 = vmatpush1.msra.mxu0 0.0
        %2962 = vmatprep.subr.mxu0 0.0
        %2963 = vmatpush1.msra.mxu0 0.0
        %2964 = vmatprep.subr.mxu0 0.0
        %2965 = vmatpush1.msra.mxu0 0.0
        %2966 = vmatprep.subr.mxu0 0.0
        %2967 = vmatpush1.msra.mxu0 0.0
        %2968 = vmatprep.subr.mxu0 0.0
        %2969 = vmatpush1.msra.mxu0 0.0
        %2970 = vmatprep.subr.mxu0 0.0
        %2971 = vmatpush1.msra.mxu0 0.0
        %2972 = vmatprep.subr.mxu0 0.0
        %2973 = vmatpush1.msra.mxu0 0.0
        %2974 = vmatprep.subr.mxu0 0.0
        %2975 = vmatpush1.msra.mxu0 0.0
        %2976 = vmatprep.mubr.f32.mxu0 0.0
        %v2977 = vand.u32 %v2401, 4294901760
        %2978 = vmatmul.mubr.f32.gmra.mrb[0].mxu0 %v2977
        %v2979 = vpop.f32.mrb[0].mxu0
        %v2980 = vadd.f32 %v2857, %v2979
        %v2981 = vpop.f32.mrb[0].mxu0
        %2982 = vmatprep.mubr.f32.mxu0 0.0
        %v2983 = vand.u32 %v2404, 4294901760
        %2984 = vmatmul.mubr.f32.gmra.mrb[0].mxu0 %v2983
        %v2985 = vpop.f32.mrb[0].mxu0
        %v2986 = vadd.f32 %v2865, %v2985
        %v2987 = vpop.f32.mrb[0].mxu0
        %2988 = vmatprep.mubr.f32.mxu0 0.0
        %v2989 = vand.u32 %v2407, 4294901760
        %2990 = vmatmul.mubr.f32.gmra.mrb[0].mxu0 %v2989
        %v2991 = vpop.f32.mrb[0].mxu0
        %v2992 = vadd.f32 %v2873, %v2991
        %v2993 = vpop.f32.mrb[0].mxu0
        %2994 = vmatprep.mubr.f32.mxu0 0.0
        %v2995 = vand.u32 %v2410, 4294901760
        %2996 = vmatmul.mubr.f32.gmra.mrb[0].mxu0 %v2995
        %v2997 = vpop.f32.mrb[0].mxu0
        %v2998 = vadd.f32 %v2881, %v2997
        %v2999 = vpop.f32.mrb[0].mxu0
        %3000 = vmatprep.mubr.f32.mxu0 0.0
        %v3001 = vand.u32 %v2413, 4294901760
        %3002 = vmatmul.mubr.f32.gmra.mrb[0].mxu0 %v3001
        %v3003 = vpop.f32.mrb[0].mxu0
        %v3004 = vadd.f32 %v2889, %v3003
        %v3005 = vpop.f32.mrb[0].mxu0
        %3006 = vmatprep.mubr.f32.mxu0 0.0
        %v3007 = vand.u32 %v2416, 4294901760
        %3008 = vmatmul.mubr.f32.gmra.mrb[0].mxu0 %v3007
        %v3009 = vpop.f32.mrb[0].mxu0
        %v3010 = vadd.f32 %v2897, %v3009
        %v3011 = vpop.f32.mrb[0].mxu0
        %3012 = vdwg.mxu0
        %3013 = vmatprep.subr.mxu0 0.0
        %v3014 = vand.u32 %v2395, 4294901760
        %3015 = vmatpush1.msra.mxu0 %v3014
        %3016 = vmatprep.subr.mxu0 0.0
        %v3017 = vand.u32 %v2396, 4294901760
        %3018 = vmatpush1.msra.mxu0 %v3017
        %3019 = vmatprep.subr.mxu0 0.0
        %v3020 = vand.u32 %v2397, 4294901760
        %3021 = vmatpush1.msra.mxu0 %v3020
        %3022 = vmatprep.subr.mxu0 0.0
        %v3023 = vand.u32 %v2398, 4294901760
        %3024 = vmatpush1.msra.mxu0 %v3023
        %3025 = vmatprep.subr.mxu0 0.0
        %3026 = vmatpush1.msra.mxu0 0.0
        %3027 = vmatprep.subr.mxu0 0.0
        %3028 = vmatpush1.msra.mxu0 0.0
        %3029 = vmatprep.subr.mxu0 0.0
        %3030 = vmatpush1.msra.mxu0 0.0
        %3031 = vmatprep.subr.mxu0 0.0
        %3032 = vmatpush1.msra.mxu0 0.0
        %3033 = vmatprep.subr.mxu0 0.0
        %3034 = vmatpush1.msra.mxu0 0.0
        %3035 = vmatprep.subr.mxu0 0.0
        %3036 = vmatpush1.msra.mxu0 0.0
        %3037 = vmatprep.subr.mxu0 0.0
        %3038 = vmatpush1.msra.mxu0 0.0
        %3039 = vmatprep.subr.mxu0 0.0
        %3040 = vmatpush1.msra.mxu0 0.0
        %3041 = vmatprep.subr.mxu0 0.0
        %3042 = vmatpush1.msra.mxu0 0.0
        %3043 = vmatprep.subr.mxu0 0.0
        %3044 = vmatpush1.msra.mxu0 0.0
        %3045 = vmatprep.subr.mxu0 0.0
        %3046 = vmatpush1.msra.mxu0 0.0
        %3047 = vmatprep.subr.mxu0 0.0
        %3048 = vmatpush1.msra.mxu0 0.0
        %3049 = vmatprep.subr.mxu0 0.0
        %3050 = vmatpush1.msra.mxu0 0.0
        %3051 = vmatprep.subr.mxu0 0.0
        %3052 = vmatpush1.msra.mxu0 0.0
        %3053 = vmatprep.subr.mxu0 0.0
        %3054 = vmatpush1.msra.mxu0 0.0
        %3055 = vmatprep.subr.mxu0 0.0
        %3056 = vmatpush1.msra.mxu0 0.0
        %3057 = vmatprep.subr.mxu0 0.0
        %3058 = vmatpush1.msra.mxu0 0.0
        %3059 = vmatprep.subr.mxu0 0.0
        %3060 = vmatpush1.msra.mxu0 0.0
        %3061 = vmatprep.subr.mxu0 0.0
        %3062 = vmatpush1.msra.mxu0 0.0
        %3063 = vmatprep.subr.mxu0 0.0
        %3064 = vmatpush1.msra.mxu0 0.0
        %3065 = vmatprep.subr.mxu0 0.0
        %3066 = vmatpush1.msra.mxu0 0.0
        %3067 = vmatprep.subr.mxu0 0.0
        %3068 = vmatpush1.msra.mxu0 0.0
        %3069 = vmatprep.subr.mxu0 0.0
        %3070 = vmatpush1.msra.mxu0 0.0
        %3071 = vmatprep.subr.mxu0 0.0
        %3072 = vmatpush1.msra.mxu0 0.0
        %3073 = vmatprep.subr.mxu0 0.0
        %3074 = vmatpush1.msra.mxu0 0.0
        %3075 = vmatprep.subr.mxu0 0.0
        %3076 = vmatpush1.msra.mxu0 0.0
        %3077 = vmatprep.subr.mxu0 0.0
        %3078 = vmatpush1.msra.mxu0 0.0
        %3079 = vmatprep.subr.mxu0 0.0
        %3080 = vmatpush1.msra.mxu0 0.0
        %3081 = vmatprep.mubr.f32.mxu0 0.0
        %v3082 = vand.u32 %v2401, 4294901760
        %3083 = vmatmul.mubr.f32.gmra.mrb[0].mxu0 %v3082
        %v3084 = vpop.f32.mrb[0].mxu0
        %v3085 = vadd.f32 %v2980, %v3084
        %v3086 = vpop.f32.mrb[0].mxu0
        %3087 = vmatprep.mubr.f32.mxu0 0.0
        %v3088 = vand.u32 %v2404, 4294901760
        %3089 = vmatmul.mubr.f32.gmra.mrb[0].mxu0 %v3088
        %v3090 = vpop.f32.mrb[0].mxu0
        %v3091 = vadd.f32 %v2986, %v3090
        %v3092 = vpop.f32.mrb[0].mxu0
        %3093 = vmatprep.mubr.f32.mxu0 0.0
        %v3094 = vand.u32 %v2407, 4294901760
        %3095 = vmatmul.mubr.f32.gmra.mrb[0].mxu0 %v3094
        %v3096 = vpop.f32.mrb[0].mxu0
        %v3097 = vadd.f32 %v2992, %v3096
        %v3098 = vpop.f32.mrb[0].mxu0
        %3099 = vmatprep.mubr.f32.mxu0 0.0
        %v3100 = vand.u32 %v2410, 4294901760
        %3101 = vmatmul.mubr.f32.gmra.mrb[0].mxu0 %v3100
        %v3102 = vpop.f32.mrb[0].mxu0
        %v3103 = vadd.f32 %v2998, %v3102
        %v3104 = vpop.f32.mrb[0].mxu0
        %3105 = vmatprep.mubr.f32.mxu0 0.0
        %v3106 = vand.u32 %v2413, 4294901760
        %3107 = vmatmul.mubr.f32.gmra.mrb[0].mxu0 %v3106
        %v3108 = vpop.f32.mrb[0].mxu0
        %v3109 = vadd.f32 %v3004, %v3108
        %v3110 = vpop.f32.mrb[0].mxu0
        %3111 = vmatprep.mubr.f32.mxu0 0.0
        %v3112 = vand.u32 %v2416, 4294901760
        %3113 = vmatmul.mubr.f32.gmra.mrb[0].mxu0 %v3112
        %v3114 = vpop.f32.mrb[0].mxu0
        %v3115 = vadd.f32 %v3010, %v3114
        %v3116 = vpop.f32.mrb[0].mxu0
        %3117 = vdwg.mxu0
        %v3119 = vsel %vm2399, %v2372, 0
        %v3122 = vsel %vm2399, %v2374, 0
        %v3125 = vsel %vm2399, %v2376, 0
        %v3128 = vsel %vm2399, %v2378, 0
        %v3131 = vsel %vm2399, %v2380, 0
        %v3134 = vsel %vm2399, %v2382, 0
        %3136 = vmatprep.subr.mxu0 0.0
        %v3137 = vand.u32 %v2391, 4294901760
        %3138 = vmatpush1.msra.mxu0 %v3137
        %3139 = vmatprep.subr.mxu0 0.0
        %v3140 = vand.u32 %v2392, 4294901760
        %3141 = vmatpush1.msra.mxu0 %v3140
        %3142 = vmatprep.subr.mxu0 0.0
        %v3143 = vand.u32 %v2393, 4294901760
        %3144 = vmatpush1.msra.mxu0 %v3143
        %3145 = vmatprep.subr.mxu0 0.0
        %v3146 = vand.u32 %v2394, 4294901760
        %3147 = vmatpush1.msra.mxu0 %v3146
        %3148 = vmatprep.subr.mxu0 0.0
        %3149 = vmatpush1.msra.mxu0 0.0
        %3150 = vmatprep.subr.mxu0 0.0
        %3151 = vmatpush1.msra.mxu0 0.0
        %3152 = vmatprep.subr.mxu0 0.0
        %3153 = vmatpush1.msra.mxu0 0.0
        %3154 = vmatprep.subr.mxu0 0.0
        %3155 = vmatpush1.msra.mxu0 0.0
        %3156 = vmatprep.subr.mxu0 0.0
        %3157 = vmatpush1.msra.mxu0 0.0
        %3158 = vmatprep.subr.mxu0 0.0
        %3159 = vmatpush1.msra.mxu0 0.0
        %3160 = vmatprep.subr.mxu0 0.0
        %3161 = vmatpush1.msra.mxu0 0.0
        %3162 = vmatprep.subr.mxu0 0.0
        %3163 = vmatpush1.msra.mxu0 0.0
        %3164 = vmatprep.subr.mxu0 0.0
        %3165 = vmatpush1.msra.mxu0 0.0
        %3166 = vmatprep.subr.mxu0 0.0
        %3167 = vmatpush1.msra.mxu0 0.0
        %3168 = vmatprep.subr.mxu0 0.0
        %3169 = vmatpush1.msra.mxu0 0.0
        %3170 = vmatprep.subr.mxu0 0.0
        %3171 = vmatpush1.msra.mxu0 0.0
        %3172 = vmatprep.subr.mxu0 0.0
        %3173 = vmatpush1.msra.mxu0 0.0
        %3174 = vmatprep.subr.mxu0 0.0
        %3175 = vmatpush1.msra.mxu0 0.0
        %3176 = vmatprep.subr.mxu0 0.0
        %3177 = vmatpush1.msra.mxu0 0.0
        %3178 = vmatprep.subr.mxu0 0.0
        %3179 = vmatpush1.msra.mxu0 0.0
        %3180 = vmatprep.subr.mxu0 0.0
        %3181 = vmatpush1.msra.mxu0 0.0
        %3182 = vmatprep.subr.mxu0 0.0
        %3183 = vmatpush1.msra.mxu0 0.0
        %3184 = vmatprep.subr.mxu0 0.0
        %3185 = vmatpush1.msra.mxu0 0.0
        %3186 = vmatprep.subr.mxu0 0.0
        %3187 = vmatpush1.msra.mxu0 0.0
        %3188 = vmatprep.subr.mxu0 0.0
        %3189 = vmatpush1.msra.mxu0 0.0
        %3190 = vmatprep.subr.mxu0 0.0
        %3191 = vmatpush1.msra.mxu0 0.0
        %3192 = vmatprep.subr.mxu0 0.0
        %3193 = vmatpush1.msra.mxu0 0.0
        %3194 = vmatprep.subr.mxu0 0.0
        %3195 = vmatpush1.msra.mxu0 0.0
        %3196 = vmatprep.subr.mxu0 0.0
        %3197 = vmatpush1.msra.mxu0 0.0
        %3198 = vmatprep.subr.mxu0 0.0
        %3199 = vmatpush1.msra.mxu0 0.0
        %3200 = vmatprep.subr.mxu0 0.0
        %3201 = vmatpush1.msra.mxu0 0.0
        %3202 = vmatprep.subr.mxu0 0.0
        %3203 = vmatpush1.msra.mxu0 0.0
        %3204 = vmatprep.mubr.f32.mxu0 0.0
        %v3205 = vand.u32 %v3119, 4294901760
        %v3206 = vsub.f32 %v3119, %v3205
        %v3207 = vand.u32 %v3206, 4294901760
        %v3208 = vsub.f32 %v3206, %v3207
        %v3209 = vand.u32 %v3208, 4294901760
        %3210 = vmatmul.mubr.f32.gmra.mrb[0].mxu0 %v3209
        %v3211 = vpop.f32.mrb[0].mxu0
        %v3212 = vadd.f32 %v3085, %v3211
        %v3213 = vpop.f32.mrb[0].mxu0
        %3214 = vmatprep.mubr.f32.mxu0 0.0
        %v3215 = vand.u32 %v3122, 4294901760
        %v3216 = vsub.f32 %v3122, %v3215
        %v3217 = vand.u32 %v3216, 4294901760
        %v3218 = vsub.f32 %v3216, %v3217
        %v3219 = vand.u32 %v3218, 4294901760
        %3220 = vmatmul.mubr.f32.gmra.mrb[0].mxu0 %v3219
        %v3221 = vpop.f32.mrb[0].mxu0
        %v3222 = vadd.f32 %v3091, %v3221
        %v3223 = vpop.f32.mrb[0].mxu0
        %3224 = vmatprep.mubr.f32.mxu0 0.0
        %v3225 = vand.u32 %v3125, 4294901760
        %v3226 = vsub.f32 %v3125, %v3225
        %v3227 = vand.u32 %v3226, 4294901760
        %v3228 = vsub.f32 %v3226, %v3227
        %v3229 = vand.u32 %v3228, 4294901760
        %3230 = vmatmul.mubr.f32.gmra.mrb[0].mxu0 %v3229
        %v3231 = vpop.f32.mrb[0].mxu0
        %v3232 = vadd.f32 %v3097, %v3231
        %v3233 = vpop.f32.mrb[0].mxu0
        %3234 = vmatprep.mubr.f32.mxu0 0.0
        %v3235 = vand.u32 %v3128, 4294901760
        %v3236 = vsub.f32 %v3128, %v3235
        %v3237 = vand.u32 %v3236, 4294901760
        %v3238 = vsub.f32 %v3236, %v3237
        %v3239 = vand.u32 %v3238, 4294901760
        %3240 = vmatmul.mubr.f32.gmra.mrb[0].mxu0 %v3239
        %v3241 = vpop.f32.mrb[0].mxu0
        %v3242 = vadd.f32 %v3103, %v3241
        %v3243 = vpop.f32.mrb[0].mxu0
        %3244 = vmatprep.mubr.f32.mxu0 0.0
        %v3245 = vand.u32 %v3131, 4294901760
        %v3246 = vsub.f32 %v3131, %v3245
        %v3247 = vand.u32 %v3246, 4294901760
        %v3248 = vsub.f32 %v3246, %v3247
        %v3249 = vand.u32 %v3248, 4294901760
        %3250 = vmatmul.mubr.f32.gmra.mrb[0].mxu0 %v3249
        %v3251 = vpop.f32.mrb[0].mxu0
        %v3252 = vadd.f32 %v3109, %v3251
        %v3253 = vpop.f32.mrb[0].mxu0
        %3254 = vmatprep.mubr.f32.mxu0 0.0
        %v3255 = vand.u32 %v3134, 4294901760
        %v3256 = vsub.f32 %v3134, %v3255
        %v3257 = vand.u32 %v3256, 4294901760
        %v3258 = vsub.f32 %v3256, %v3257
        %v3259 = vand.u32 %v3258, 4294901760
        %3260 = vmatmul.mubr.f32.gmra.mrb[0].mxu0 %v3259
        %v3261 = vpop.f32.mrb[0].mxu0
        %v3262 = vadd.f32 %v3115, %v3261
        %v3263 = vpop.f32.mrb[0].mxu0
        %3264 = vdwg.mxu0
        %3265 = vmatprep.subr.mxu0 0.0
        %v3266 = vand.u32 %v2391, 4294901760
        %v3267 = vsub.f32 %v2391, %v3266
        %v3268 = vand.u32 %v3267, 4294901760
        %v3269 = vsub.f32 %v3267, %v3268
        %v3270 = vand.u32 %v3269, 4294901760
        %3271 = vmatpush1.msra.mxu0 %v3270
        %3272 = vmatprep.subr.mxu0 0.0
        %v3273 = vand.u32 %v2392, 4294901760
        %v3274 = vsub.f32 %v2392, %v3273
        %v3275 = vand.u32 %v3274, 4294901760
        %v3276 = vsub.f32 %v3274, %v3275
        %v3277 = vand.u32 %v3276, 4294901760
        %3278 = vmatpush1.msra.mxu0 %v3277
        %3279 = vmatprep.subr.mxu0 0.0
        %v3280 = vand.u32 %v2393, 4294901760
        %v3281 = vsub.f32 %v2393, %v3280
        %v3282 = vand.u32 %v3281, 4294901760
        %v3283 = vsub.f32 %v3281, %v3282
        %v3284 = vand.u32 %v3283, 4294901760
        %3285 = vmatpush1.msra.mxu0 %v3284
        %3286 = vmatprep.subr.mxu0 0.0
        %v3287 = vand.u32 %v2394, 4294901760
        %v3288 = vsub.f32 %v2394, %v3287
        %v3289 = vand.u32 %v3288, 4294901760
        %v3290 = vsub.f32 %v3288, %v3289
        %v3291 = vand.u32 %v3290, 4294901760
        %3292 = vmatpush1.msra.mxu0 %v3291
        %3293 = vmatprep.subr.mxu0 0.0
        %3294 = vmatpush1.msra.mxu0 0.0
        %3295 = vmatprep.subr.mxu0 0.0
        %3296 = vmatpush1.msra.mxu0 0.0
        %3297 = vmatprep.subr.mxu0 0.0
        %3298 = vmatpush1.msra.mxu0 0.0
        %3299 = vmatprep.subr.mxu0 0.0
        %3300 = vmatpush1.msra.mxu0 0.0
        %3301 = vmatprep.subr.mxu0 0.0
        %3302 = vmatpush1.msra.mxu0 0.0
        %3303 = vmatprep.subr.mxu0 0.0
        %3304 = vmatpush1.msra.mxu0 0.0
        %3305 = vmatprep.subr.mxu0 0.0
        %3306 = vmatpush1.msra.mxu0 0.0
        %3307 = vmatprep.subr.mxu0 0.0
        %3308 = vmatpush1.msra.mxu0 0.0
        %3309 = vmatprep.subr.mxu0 0.0
        %3310 = vmatpush1.msra.mxu0 0.0
        %3311 = vmatprep.subr.mxu0 0.0
        %3312 = vmatpush1.msra.mxu0 0.0
        %3313 = vmatprep.subr.mxu0 0.0
        %3314 = vmatpush1.msra.mxu0 0.0
        %3315 = vmatprep.subr.mxu0 0.0
        %3316 = vmatpush1.msra.mxu0 0.0
        %3317 = vmatprep.subr.mxu0 0.0
        %3318 = vmatpush1.msra.mxu0 0.0
        %3319 = vmatprep.subr.mxu0 0.0
        %3320 = vmatpush1.msra.mxu0 0.0
        %3321 = vmatprep.subr.mxu0 0.0
        %3322 = vmatpush1.msra.mxu0 0.0
        %3323 = vmatprep.subr.mxu0 0.0
        %3324 = vmatpush1.msra.mxu0 0.0
        %3325 = vmatprep.subr.mxu0 0.0
        %3326 = vmatpush1.msra.mxu0 0.0
        %3327 = vmatprep.subr.mxu0 0.0
        %3328 = vmatpush1.msra.mxu0 0.0
        %3329 = vmatprep.subr.mxu0 0.0
        %3330 = vmatpush1.msra.mxu0 0.0
        %3331 = vmatprep.subr.mxu0 0.0
        %3332 = vmatpush1.msra.mxu0 0.0
        %3333 = vmatprep.subr.mxu0 0.0
        %3334 = vmatpush1.msra.mxu0 0.0
        %3335 = vmatprep.subr.mxu0 0.0
        %3336 = vmatpush1.msra.mxu0 0.0
        %3337 = vmatprep.subr.mxu0 0.0
        %3338 = vmatpush1.msra.mxu0 0.0
        %3339 = vmatprep.subr.mxu0 0.0
        %3340 = vmatpush1.msra.mxu0 0.0
        %3341 = vmatprep.subr.mxu0 0.0
        %3342 = vmatpush1.msra.mxu0 0.0
        %3343 = vmatprep.subr.mxu0 0.0
        %3344 = vmatpush1.msra.mxu0 0.0
        %3345 = vmatprep.subr.mxu0 0.0
        %3346 = vmatpush1.msra.mxu0 0.0
        %3347 = vmatprep.subr.mxu0 0.0
        %3348 = vmatpush1.msra.mxu0 0.0
        %3349 = vmatprep.mubr.f32.mxu0 0.0
        %v3350 = vand.u32 %v3119, 4294901760
        %3351 = vmatmul.mubr.f32.gmra.mrb[0].mxu0 %v3350
        %v3352 = vpop.f32.mrb[0].mxu0
        %v3353 = vadd.f32 %v3212, %v3352
        %v3354 = vpop.f32.mrb[0].mxu0
        %3355 = vmatprep.mubr.f32.mxu0 0.0
        %v3356 = vand.u32 %v3122, 4294901760
        %3357 = vmatmul.mubr.f32.gmra.mrb[0].mxu0 %v3356
        %v3358 = vpop.f32.mrb[0].mxu0
        %v3359 = vadd.f32 %v3222, %v3358
        %v3360 = vpop.f32.mrb[0].mxu0
        %3361 = vmatprep.mubr.f32.mxu0 0.0
        %v3362 = vand.u32 %v3125, 4294901760
        %3363 = vmatmul.mubr.f32.gmra.mrb[0].mxu0 %v3362
        %v3364 = vpop.f32.mrb[0].mxu0
        %v3365 = vadd.f32 %v3232, %v3364
        %v3366 = vpop.f32.mrb[0].mxu0
        %3367 = vmatprep.mubr.f32.mxu0 0.0
        %v3368 = vand.u32 %v3128, 4294901760
        %3369 = vmatmul.mubr.f32.gmra.mrb[0].mxu0 %v3368
        %v3370 = vpop.f32.mrb[0].mxu0
        %v3371 = vadd.f32 %v3242, %v3370
        %v3372 = vpop.f32.mrb[0].mxu0
        %3373 = vmatprep.mubr.f32.mxu0 0.0
        %v3374 = vand.u32 %v3131, 4294901760
        %3375 = vmatmul.mubr.f32.gmra.mrb[0].mxu0 %v3374
        %v3376 = vpop.f32.mrb[0].mxu0
        %v3377 = vadd.f32 %v3252, %v3376
        %v3378 = vpop.f32.mrb[0].mxu0
        %3379 = vmatprep.mubr.f32.mxu0 0.0
        %v3380 = vand.u32 %v3134, 4294901760
        %3381 = vmatmul.mubr.f32.gmra.mrb[0].mxu0 %v3380
        %v3382 = vpop.f32.mrb[0].mxu0
        %v3383 = vadd.f32 %v3262, %v3382
        %v3384 = vpop.f32.mrb[0].mxu0
        %3385 = vdwg.mxu0
        %3386 = vmatprep.subr.mxu0 0.0
        %v3387 = vand.u32 %v2391, 4294901760
        %v3388 = vsub.f32 %v2391, %v3387
        %3389 = vmatpush1.msra.mxu0 %v3388
        %3390 = vmatprep.subr.mxu0 0.0
        %v3391 = vand.u32 %v2392, 4294901760
        %v3392 = vsub.f32 %v2392, %v3391
        %3393 = vmatpush1.msra.mxu0 %v3392
        %3394 = vmatprep.subr.mxu0 0.0
        %v3395 = vand.u32 %v2393, 4294901760
        %v3396 = vsub.f32 %v2393, %v3395
        %3397 = vmatpush1.msra.mxu0 %v3396
        %3398 = vmatprep.subr.mxu0 0.0
        %v3399 = vand.u32 %v2394, 4294901760
        %v3400 = vsub.f32 %v2394, %v3399
        %3401 = vmatpush1.msra.mxu0 %v3400
        %3402 = vmatprep.subr.mxu0 0.0
        %3403 = vmatpush1.msra.mxu0 0.0
        %3404 = vmatprep.subr.mxu0 0.0
        %3405 = vmatpush1.msra.mxu0 0.0
        %3406 = vmatprep.subr.mxu0 0.0
        %3407 = vmatpush1.msra.mxu0 0.0
        %3408 = vmatprep.subr.mxu0 0.0
        %3409 = vmatpush1.msra.mxu0 0.0
        %3410 = vmatprep.subr.mxu0 0.0
        %3411 = vmatpush1.msra.mxu0 0.0
        %3412 = vmatprep.subr.mxu0 0.0
        %3413 = vmatpush1.msra.mxu0 0.0
        %3414 = vmatprep.subr.mxu0 0.0
        %3415 = vmatpush1.msra.mxu0 0.0
        %3416 = vmatprep.subr.mxu0 0.0
        %3417 = vmatpush1.msra.mxu0 0.0
        %3418 = vmatprep.subr.mxu0 0.0
        %3419 = vmatpush1.msra.mxu0 0.0
        %3420 = vmatprep.subr.mxu0 0.0
        %3421 = vmatpush1.msra.mxu0 0.0
        %3422 = vmatprep.subr.mxu0 0.0
        %3423 = vmatpush1.msra.mxu0 0.0
        %3424 = vmatprep.subr.mxu0 0.0
        %3425 = vmatpush1.msra.mxu0 0.0
        %3426 = vmatprep.subr.mxu0 0.0
        %3427 = vmatpush1.msra.mxu0 0.0
        %3428 = vmatprep.subr.mxu0 0.0
        %3429 = vmatpush1.msra.mxu0 0.0
        %3430 = vmatprep.subr.mxu0 0.0
        %3431 = vmatpush1.msra.mxu0 0.0
        %3432 = vmatprep.subr.mxu0 0.0
        %3433 = vmatpush1.msra.mxu0 0.0
        %3434 = vmatprep.subr.mxu0 0.0
        %3435 = vmatpush1.msra.mxu0 0.0
        %3436 = vmatprep.subr.mxu0 0.0
        %3437 = vmatpush1.msra.mxu0 0.0
        %3438 = vmatprep.subr.mxu0 0.0
        %3439 = vmatpush1.msra.mxu0 0.0
        %3440 = vmatprep.subr.mxu0 0.0
        %3441 = vmatpush1.msra.mxu0 0.0
        %3442 = vmatprep.subr.mxu0 0.0
        %3443 = vmatpush1.msra.mxu0 0.0
        %3444 = vmatprep.subr.mxu0 0.0
        %3445 = vmatpush1.msra.mxu0 0.0
        %3446 = vmatprep.subr.mxu0 0.0
        %3447 = vmatpush1.msra.mxu0 0.0
        %3448 = vmatprep.subr.mxu0 0.0
        %3449 = vmatpush1.msra.mxu0 0.0
        %3450 = vmatprep.subr.mxu0 0.0
        %3451 = vmatpush1.msra.mxu0 0.0
        %3452 = vmatprep.subr.mxu0 0.0
        %3453 = vmatpush1.msra.mxu0 0.0
        %3454 = vmatprep.subr.mxu0 0.0
        %3455 = vmatpush1.msra.mxu0 0.0
        %3456 = vmatprep.subr.mxu0 0.0
        %3457 = vmatpush1.msra.mxu0 0.0
        %3458 = vmatprep.mubr.f32.mxu0 0.0
        %v3459 = vand.u32 %v3119, 4294901760
        %v3460 = vsub.f32 %v3119, %v3459
        %3461 = vmatmul.mubr.f32.gmra.mrb[0].mxu0 %v3460
        %v3462 = vpop.f32.mrb[0].mxu0
        %v3463 = vadd.f32 %v3353, %v3462
        %v3464 = vpop.f32.mrb[0].mxu0
        %3465 = vmatprep.mubr.f32.mxu0 0.0
        %v3466 = vand.u32 %v3122, 4294901760
        %v3467 = vsub.f32 %v3122, %v3466
        %3468 = vmatmul.mubr.f32.gmra.mrb[0].mxu0 %v3467
        %v3469 = vpop.f32.mrb[0].mxu0
        %v3470 = vadd.f32 %v3359, %v3469
        %v3471 = vpop.f32.mrb[0].mxu0
        %3472 = vmatprep.mubr.f32.mxu0 0.0
        %v3473 = vand.u32 %v3125, 4294901760
        %v3474 = vsub.f32 %v3125, %v3473
        %3475 = vmatmul.mubr.f32.gmra.mrb[0].mxu0 %v3474
        %v3476 = vpop.f32.mrb[0].mxu0
        %v3477 = vadd.f32 %v3365, %v3476
        %v3478 = vpop.f32.mrb[0].mxu0
        %3479 = vmatprep.mubr.f32.mxu0 0.0
        %v3480 = vand.u32 %v3128, 4294901760
        %v3481 = vsub.f32 %v3128, %v3480
        %3482 = vmatmul.mubr.f32.gmra.mrb[0].mxu0 %v3481
        %v3483 = vpop.f32.mrb[0].mxu0
        %v3484 = vadd.f32 %v3371, %v3483
        %v3485 = vpop.f32.mrb[0].mxu0
        %3486 = vmatprep.mubr.f32.mxu0 0.0
        %v3487 = vand.u32 %v3131, 4294901760
        %v3488 = vsub.f32 %v3131, %v3487
        %3489 = vmatmul.mubr.f32.gmra.mrb[0].mxu0 %v3488
        %v3490 = vpop.f32.mrb[0].mxu0
        %v3491 = vadd.f32 %v3377, %v3490
        %v3492 = vpop.f32.mrb[0].mxu0
        %3493 = vmatprep.mubr.f32.mxu0 0.0
        %v3494 = vand.u32 %v3134, 4294901760
        %v3495 = vsub.f32 %v3134, %v3494
        %3496 = vmatmul.mubr.f32.gmra.mrb[0].mxu0 %v3495
        %v3497 = vpop.f32.mrb[0].mxu0
        %v3498 = vadd.f32 %v3383, %v3497
        %v3499 = vpop.f32.mrb[0].mxu0
        %3500 = vdwg.mxu0
        %3501 = vmatprep.subr.mxu0 0.0
        %v3502 = vand.u32 %v2391, 4294901760
        %3503 = vmatpush1.msra.mxu0 %v3502
        %3504 = vmatprep.subr.mxu0 0.0
        %v3505 = vand.u32 %v2392, 4294901760
        %3506 = vmatpush1.msra.mxu0 %v3505
        %3507 = vmatprep.subr.mxu0 0.0
        %v3508 = vand.u32 %v2393, 4294901760
        %3509 = vmatpush1.msra.mxu0 %v3508
        %3510 = vmatprep.subr.mxu0 0.0
        %v3511 = vand.u32 %v2394, 4294901760
        %3512 = vmatpush1.msra.mxu0 %v3511
        %3513 = vmatprep.subr.mxu0 0.0
        %3514 = vmatpush1.msra.mxu0 0.0
        %3515 = vmatprep.subr.mxu0 0.0
        %3516 = vmatpush1.msra.mxu0 0.0
        %3517 = vmatprep.subr.mxu0 0.0
        %3518 = vmatpush1.msra.mxu0 0.0
        %3519 = vmatprep.subr.mxu0 0.0
        %3520 = vmatpush1.msra.mxu0 0.0
        %3521 = vmatprep.subr.mxu0 0.0
        %3522 = vmatpush1.msra.mxu0 0.0
        %3523 = vmatprep.subr.mxu0 0.0
        %3524 = vmatpush1.msra.mxu0 0.0
        %3525 = vmatprep.subr.mxu0 0.0
        %3526 = vmatpush1.msra.mxu0 0.0
        %3527 = vmatprep.subr.mxu0 0.0
        %3528 = vmatpush1.msra.mxu0 0.0
        %3529 = vmatprep.subr.mxu0 0.0
        %3530 = vmatpush1.msra.mxu0 0.0
        %3531 = vmatprep.subr.mxu0 0.0
        %3532 = vmatpush1.msra.mxu0 0.0
        %3533 = vmatprep.subr.mxu0 0.0
        %3534 = vmatpush1.msra.mxu0 0.0
        %3535 = vmatprep.subr.mxu0 0.0
        %3536 = vmatpush1.msra.mxu0 0.0
        %3537 = vmatprep.subr.mxu0 0.0
        %3538 = vmatpush1.msra.mxu0 0.0
        %3539 = vmatprep.subr.mxu0 0.0
        %3540 = vmatpush1.msra.mxu0 0.0
        %3541 = vmatprep.subr.mxu0 0.0
        %3542 = vmatpush1.msra.mxu0 0.0
        %3543 = vmatprep.subr.mxu0 0.0
        %3544 = vmatpush1.msra.mxu0 0.0
        %3545 = vmatprep.subr.mxu0 0.0
        %3546 = vmatpush1.msra.mxu0 0.0
        %3547 = vmatprep.subr.mxu0 0.0
        %3548 = vmatpush1.msra.mxu0 0.0
        %3549 = vmatprep.subr.mxu0 0.0
        %3550 = vmatpush1.msra.mxu0 0.0
        %3551 = vmatprep.subr.mxu0 0.0
        %3552 = vmatpush1.msra.mxu0 0.0
        %3553 = vmatprep.subr.mxu0 0.0
        %3554 = vmatpush1.msra.mxu0 0.0
        %3555 = vmatprep.subr.mxu0 0.0
        %3556 = vmatpush1.msra.mxu0 0.0
        %3557 = vmatprep.subr.mxu0 0.0
        %3558 = vmatpush1.msra.mxu0 0.0
        %3559 = vmatprep.subr.mxu0 0.0
        %3560 = vmatpush1.msra.mxu0 0.0
        %3561 = vmatprep.subr.mxu0 0.0
        %3562 = vmatpush1.msra.mxu0 0.0
        %3563 = vmatprep.subr.mxu0 0.0
        %3564 = vmatpush1.msra.mxu0 0.0
        %3565 = vmatprep.subr.mxu0 0.0
        %3566 = vmatpush1.msra.mxu0 0.0
        %3567 = vmatprep.subr.mxu0 0.0
        %3568 = vmatpush1.msra.mxu0 0.0
        %3569 = vmatprep.mubr.f32.mxu0 0.0
        %v3570 = vand.u32 %v3119, 4294901760
        %v3571 = vsub.f32 %v3119, %v3570
        %v3572 = vand.u32 %v3571, 4294901760
        %3573 = vmatmul.mubr.f32.gmra.mrb[0].mxu0 %v3572
        %v3574 = vpop.f32.mrb[0].mxu0
        %v3575 = vadd.f32 %v3463, %v3574
        %v3576 = vpop.f32.mrb[0].mxu0
        %3577 = vmatprep.mubr.f32.mxu0 0.0
        %v3578 = vand.u32 %v3122, 4294901760
        %v3579 = vsub.f32 %v3122, %v3578
        %v3580 = vand.u32 %v3579, 4294901760
        %3581 = vmatmul.mubr.f32.gmra.mrb[0].mxu0 %v3580
        %v3582 = vpop.f32.mrb[0].mxu0
        %v3583 = vadd.f32 %v3470, %v3582
        %v3584 = vpop.f32.mrb[0].mxu0
        %3585 = vmatprep.mubr.f32.mxu0 0.0
        %v3586 = vand.u32 %v3125, 4294901760
        %v3587 = vsub.f32 %v3125, %v3586
        %v3588 = vand.u32 %v3587, 4294901760
        %3589 = vmatmul.mubr.f32.gmra.mrb[0].mxu0 %v3588
        %v3590 = vpop.f32.mrb[0].mxu0
        %v3591 = vadd.f32 %v3477, %v3590
        %v3592 = vpop.f32.mrb[0].mxu0
        %3593 = vmatprep.mubr.f32.mxu0 0.0
        %v3594 = vand.u32 %v3128, 4294901760
        %v3595 = vsub.f32 %v3128, %v3594
        %v3596 = vand.u32 %v3595, 4294901760
        %3597 = vmatmul.mubr.f32.gmra.mrb[0].mxu0 %v3596
        %v3598 = vpop.f32.mrb[0].mxu0
        %v3599 = vadd.f32 %v3484, %v3598
        %v3600 = vpop.f32.mrb[0].mxu0
        %3601 = vmatprep.mubr.f32.mxu0 0.0
        %v3602 = vand.u32 %v3131, 4294901760
        %v3603 = vsub.f32 %v3131, %v3602
        %v3604 = vand.u32 %v3603, 4294901760
        %3605 = vmatmul.mubr.f32.gmra.mrb[0].mxu0 %v3604
        %v3606 = vpop.f32.mrb[0].mxu0
        %v3607 = vadd.f32 %v3491, %v3606
        %v3608 = vpop.f32.mrb[0].mxu0
        %3609 = vmatprep.mubr.f32.mxu0 0.0
        %v3610 = vand.u32 %v3134, 4294901760
        %v3611 = vsub.f32 %v3134, %v3610
        %v3612 = vand.u32 %v3611, 4294901760
        %3613 = vmatmul.mubr.f32.gmra.mrb[0].mxu0 %v3612
        %v3614 = vpop.f32.mrb[0].mxu0
        %v3615 = vadd.f32 %v3498, %v3614
        %v3616 = vpop.f32.mrb[0].mxu0
        %3617 = vdwg.mxu0
        %3618 = vmatprep.subr.mxu0 0.0
        %v3619 = vand.u32 %v2391, 4294901760
        %v3620 = vsub.f32 %v2391, %v3619
        %v3621 = vand.u32 %v3620, 4294901760
        %3622 = vmatpush1.msra.mxu0 %v3621
        %3623 = vmatprep.subr.mxu0 0.0
        %v3624 = vand.u32 %v2392, 4294901760
        %v3625 = vsub.f32 %v2392, %v3624
        %v3626 = vand.u32 %v3625, 4294901760
        %3627 = vmatpush1.msra.mxu0 %v3626
        %3628 = vmatprep.subr.mxu0 0.0
        %v3629 = vand.u32 %v2393, 4294901760
        %v3630 = vsub.f32 %v2393, %v3629
        %v3631 = vand.u32 %v3630, 4294901760
        %3632 = vmatpush1.msra.mxu0 %v3631
        %3633 = vmatprep.subr.mxu0 0.0
        %v3634 = vand.u32 %v2394, 4294901760
        %v3635 = vsub.f32 %v2394, %v3634
        %v3636 = vand.u32 %v3635, 4294901760
        %3637 = vmatpush1.msra.mxu0 %v3636
        %3638 = vmatprep.subr.mxu0 0.0
        %3639 = vmatpush1.msra.mxu0 0.0
        %3640 = vmatprep.subr.mxu0 0.0
        %3641 = vmatpush1.msra.mxu0 0.0
        %3642 = vmatprep.subr.mxu0 0.0
        %3643 = vmatpush1.msra.mxu0 0.0
        %3644 = vmatprep.subr.mxu0 0.0
        %3645 = vmatpush1.msra.mxu0 0.0
        %3646 = vmatprep.subr.mxu0 0.0
        %3647 = vmatpush1.msra.mxu0 0.0
        %3648 = vmatprep.subr.mxu0 0.0
        %3649 = vmatpush1.msra.mxu0 0.0
        %3650 = vmatprep.subr.mxu0 0.0
        %3651 = vmatpush1.msra.mxu0 0.0
        %3652 = vmatprep.subr.mxu0 0.0
        %3653 = vmatpush1.msra.mxu0 0.0
        %3654 = vmatprep.subr.mxu0 0.0
        %3655 = vmatpush1.msra.mxu0 0.0
        %3656 = vmatprep.subr.mxu0 0.0
        %3657 = vmatpush1.msra.mxu0 0.0
        %3658 = vmatprep.subr.mxu0 0.0
        %3659 = vmatpush1.msra.mxu0 0.0
        %3660 = vmatprep.subr.mxu0 0.0
        %3661 = vmatpush1.msra.mxu0 0.0
        %3662 = vmatprep.subr.mxu0 0.0
        %3663 = vmatpush1.msra.mxu0 0.0
        %3664 = vmatprep.subr.mxu0 0.0
        %3665 = vmatpush1.msra.mxu0 0.0
        %3666 = vmatprep.subr.mxu0 0.0
        %3667 = vmatpush1.msra.mxu0 0.0
        %3668 = vmatprep.subr.mxu0 0.0
        %3669 = vmatpush1.msra.mxu0 0.0
        %3670 = vmatprep.subr.mxu0 0.0
        %3671 = vmatpush1.msra.mxu0 0.0
        %3672 = vmatprep.subr.mxu0 0.0
        %3673 = vmatpush1.msra.mxu0 0.0
        %3674 = vmatprep.subr.mxu0 0.0
        %3675 = vmatpush1.msra.mxu0 0.0
        %3676 = vmatprep.subr.mxu0 0.0
        %3677 = vmatpush1.msra.mxu0 0.0
        %3678 = vmatprep.subr.mxu0 0.0
        %3679 = vmatpush1.msra.mxu0 0.0
        %3680 = vmatprep.subr.mxu0 0.0
        %3681 = vmatpush1.msra.mxu0 0.0
        %3682 = vmatprep.subr.mxu0 0.0
        %3683 = vmatpush1.msra.mxu0 0.0
        %3684 = vmatprep.subr.mxu0 0.0
        %3685 = vmatpush1.msra.mxu0 0.0
        %3686 = vmatprep.subr.mxu0 0.0
        %3687 = vmatpush1.msra.mxu0 0.0
        %3688 = vmatprep.subr.mxu0 0.0
        %3689 = vmatpush1.msra.mxu0 0.0
        %3690 = vmatprep.subr.mxu0 0.0
        %3691 = vmatpush1.msra.mxu0 0.0
        %3692 = vmatprep.subr.mxu0 0.0
        %3693 = vmatpush1.msra.mxu0 0.0
        %3694 = vmatprep.mubr.f32.mxu0 0.0
        %v3695 = vand.u32 %v3119, 4294901760
        %3696 = vmatmul.mubr.f32.gmra.mrb[0].mxu0 %v3695
        %v3697 = vpop.f32.mrb[0].mxu0
        %v3698 = vadd.f32 %v3575, %v3697
        %v3699 = vpop.f32.mrb[0].mxu0
        %3700 = vmatprep.mubr.f32.mxu0 0.0
        %v3701 = vand.u32 %v3122, 4294901760
        %3702 = vmatmul.mubr.f32.gmra.mrb[0].mxu0 %v3701
        %v3703 = vpop.f32.mrb[0].mxu0
        %v3704 = vadd.f32 %v3583, %v3703
        %v3705 = vpop.f32.mrb[0].mxu0
        %3706 = vmatprep.mubr.f32.mxu0 0.0
        %v3707 = vand.u32 %v3125, 4294901760
        %3708 = vmatmul.mubr.f32.gmra.mrb[0].mxu0 %v3707
        %v3709 = vpop.f32.mrb[0].mxu0
        %v3710 = vadd.f32 %v3591, %v3709
        %v3711 = vpop.f32.mrb[0].mxu0
        %3712 = vmatprep.mubr.f32.mxu0 0.0
        %v3713 = vand.u32 %v3128, 4294901760
        %3714 = vmatmul.mubr.f32.gmra.mrb[0].mxu0 %v3713
        %v3715 = vpop.f32.mrb[0].mxu0
        %v3716 = vadd.f32 %v3599, %v3715
        %v3717 = vpop.f32.mrb[0].mxu0
        %3718 = vmatprep.mubr.f32.mxu0 0.0
        %v3719 = vand.u32 %v3131, 4294901760
        %3720 = vmatmul.mubr.f32.gmra.mrb[0].mxu0 %v3719
        %v3721 = vpop.f32.mrb[0].mxu0
        %v3722 = vadd.f32 %v3607, %v3721
        %v3723 = vpop.f32.mrb[0].mxu0
        %3724 = vmatprep.mubr.f32.mxu0 0.0
        %v3725 = vand.u32 %v3134, 4294901760
        %3726 = vmatmul.mubr.f32.gmra.mrb[0].mxu0 %v3725
        %v3727 = vpop.f32.mrb[0].mxu0
        %v3728 = vadd.f32 %v3615, %v3727
        %v3729 = vpop.f32.mrb[0].mxu0
        %3730 = vdwg.mxu0
        %3731 = vmatprep.subr.mxu0 0.0
        %v3732 = vand.u32 %v2391, 4294901760
        %3733 = vmatpush1.msra.mxu0 %v3732
        %3734 = vmatprep.subr.mxu0 0.0
        %v3735 = vand.u32 %v2392, 4294901760
        %3736 = vmatpush1.msra.mxu0 %v3735
        %3737 = vmatprep.subr.mxu0 0.0
        %v3738 = vand.u32 %v2393, 4294901760
        %3739 = vmatpush1.msra.mxu0 %v3738
        %3740 = vmatprep.subr.mxu0 0.0
        %v3741 = vand.u32 %v2394, 4294901760
        %3742 = vmatpush1.msra.mxu0 %v3741
        %3743 = vmatprep.subr.mxu0 0.0
        %3744 = vmatpush1.msra.mxu0 0.0
        %3745 = vmatprep.subr.mxu0 0.0
        %3746 = vmatpush1.msra.mxu0 0.0
        %3747 = vmatprep.subr.mxu0 0.0
        %3748 = vmatpush1.msra.mxu0 0.0
        %3749 = vmatprep.subr.mxu0 0.0
        %3750 = vmatpush1.msra.mxu0 0.0
        %3751 = vmatprep.subr.mxu0 0.0
        %3752 = vmatpush1.msra.mxu0 0.0
        %3753 = vmatprep.subr.mxu0 0.0
        %3754 = vmatpush1.msra.mxu0 0.0
        %3755 = vmatprep.subr.mxu0 0.0
        %3756 = vmatpush1.msra.mxu0 0.0
        %3757 = vmatprep.subr.mxu0 0.0
        %3758 = vmatpush1.msra.mxu0 0.0
        %3759 = vmatprep.subr.mxu0 0.0
        %3760 = vmatpush1.msra.mxu0 0.0
        %3761 = vmatprep.subr.mxu0 0.0
        %3762 = vmatpush1.msra.mxu0 0.0
        %3763 = vmatprep.subr.mxu0 0.0
        %3764 = vmatpush1.msra.mxu0 0.0
        %3765 = vmatprep.subr.mxu0 0.0
        %3766 = vmatpush1.msra.mxu0 0.0
        %3767 = vmatprep.subr.mxu0 0.0
        %3768 = vmatpush1.msra.mxu0 0.0
        %3769 = vmatprep.subr.mxu0 0.0
        %3770 = vmatpush1.msra.mxu0 0.0
        %3771 = vmatprep.subr.mxu0 0.0
        %3772 = vmatpush1.msra.mxu0 0.0
        %3773 = vmatprep.subr.mxu0 0.0
        %3774 = vmatpush1.msra.mxu0 0.0
        %3775 = vmatprep.subr.mxu0 0.0
        %3776 = vmatpush1.msra.mxu0 0.0
        %3777 = vmatprep.subr.mxu0 0.0
        %3778 = vmatpush1.msra.mxu0 0.0
        %3779 = vmatprep.subr.mxu0 0.0
        %3780 = vmatpush1.msra.mxu0 0.0
        %3781 = vmatprep.subr.mxu0 0.0
        %3782 = vmatpush1.msra.mxu0 0.0
        %3783 = vmatprep.subr.mxu0 0.0
        %3784 = vmatpush1.msra.mxu0 0.0
        %3785 = vmatprep.subr.mxu0 0.0
        %3786 = vmatpush1.msra.mxu0 0.0
        %3787 = vmatprep.subr.mxu0 0.0
        %3788 = vmatpush1.msra.mxu0 0.0
        %3789 = vmatprep.subr.mxu0 0.0
        %3790 = vmatpush1.msra.mxu0 0.0
        %3791 = vmatprep.subr.mxu0 0.0
        %3792 = vmatpush1.msra.mxu0 0.0
        %3793 = vmatprep.subr.mxu0 0.0
        %3794 = vmatpush1.msra.mxu0 0.0
        %3795 = vmatprep.subr.mxu0 0.0
        %3796 = vmatpush1.msra.mxu0 0.0
        %3797 = vmatprep.subr.mxu0 0.0
        %3798 = vmatpush1.msra.mxu0 0.0
        %3799 = vmatprep.mubr.f32.mxu0 0.0
        %v3800 = vand.u32 %v3119, 4294901760
        %3801 = vmatmul.mubr.f32.gmra.mrb[0].mxu0 %v3800
        %v3802 = vpop.f32.mrb[0].mxu0
        %v3803 = vadd.f32 %v3698, %v3802
        %v3804 = vpop.f32.mrb[0].mxu0
        %3805 = vmatprep.mubr.f32.mxu0 0.0
        %v3806 = vand.u32 %v3122, 4294901760
        %3807 = vmatmul.mubr.f32.gmra.mrb[0].mxu0 %v3806
        %v3808 = vpop.f32.mrb[0].mxu0
        %v3809 = vadd.f32 %v3704, %v3808
        %v3810 = vpop.f32.mrb[0].mxu0
        %3811 = vmatprep.mubr.f32.mxu0 0.0
        %v3812 = vand.u32 %v3125, 4294901760
        %3813 = vmatmul.mubr.f32.gmra.mrb[0].mxu0 %v3812
        %v3814 = vpop.f32.mrb[0].mxu0
        %v3815 = vadd.f32 %v3710, %v3814
        %v3816 = vpop.f32.mrb[0].mxu0
        %3817 = vmatprep.mubr.f32.mxu0 0.0
        %v3818 = vand.u32 %v3128, 4294901760
        %3819 = vmatmul.mubr.f32.gmra.mrb[0].mxu0 %v3818
        %v3820 = vpop.f32.mrb[0].mxu0
        %v3821 = vadd.f32 %v3716, %v3820
        %v3822 = vpop.f32.mrb[0].mxu0
        %3823 = vmatprep.mubr.f32.mxu0 0.0
        %v3824 = vand.u32 %v3131, 4294901760
        %3825 = vmatmul.mubr.f32.gmra.mrb[0].mxu0 %v3824
        %v3826 = vpop.f32.mrb[0].mxu0
        %v3827 = vadd.f32 %v3722, %v3826
        %v3828 = vpop.f32.mrb[0].mxu0
        %3829 = vmatprep.mubr.f32.mxu0 0.0
        %v3830 = vand.u32 %v3134, 4294901760
        %3831 = vmatmul.mubr.f32.gmra.mrb[0].mxu0 %v3830
        %v3832 = vpop.f32.mrb[0].mxu0
        %v3833 = vadd.f32 %v3728, %v3832
        %v3834 = vpop.f32.mrb[0].mxu0
        %3835 = vdwg.mxu0
        %v3836 = vld [vmem:[%s5 + $0x40] sm:$0xff]
        %v3837 = vld [vmem:[%s5 + $0x48] sm:$0xff]
        %v3838 = vld [vmem:[%s5 + $0x50] sm:$0xff]
        %v3839 = vld [vmem:[%s5 + $0x58] sm:$0xff]
        %v3841 = vsel %vm2399, %v2308, 0
        %v3844 = vsel %vm2399, %v2314, 0
        %v3847 = vsel %vm2399, %v2320, 0
        %v3850 = vsel %vm2399, %v2326, 0
        %v3853 = vsel %vm2399, %v2332, 0
        %v3856 = vsel %vm2399, %v2338, 0
        %3858 = vmatprep.subr.mxu0 0.0
        %v3859 = vand.u32 %v3836, 4294901760
        %3860 = vmatpush1.msra.mxu0 %v3859
        %3861 = vmatprep.subr.mxu0 0.0
        %v3862 = vand.u32 %v3837, 4294901760
        %3863 = vmatpush1.msra.mxu0 %v3862
        %3864 = vmatprep.subr.mxu0 0.0
        %v3865 = vand.u32 %v3838, 4294901760
        %3866 = vmatpush1.msra.mxu0 %v3865
        %3867 = vmatprep.subr.mxu0 0.0
        %v3868 = vand.u32 %v3839, 4294901760
        %3869 = vmatpush1.msra.mxu0 %v3868
        %3870 = vmatprep.subr.mxu0 0.0
        %3871 = vmatpush1.msra.mxu0 0.0
        %3872 = vmatprep.subr.mxu0 0.0
        %3873 = vmatpush1.msra.mxu0 0.0
        %3874 = vmatprep.subr.mxu0 0.0
        %3875 = vmatpush1.msra.mxu0 0.0
        %3876 = vmatprep.subr.mxu0 0.0
        %3877 = vmatpush1.msra.mxu0 0.0
        %3878 = vmatprep.subr.mxu0 0.0
        %3879 = vmatpush1.msra.mxu0 0.0
        %3880 = vmatprep.subr.mxu0 0.0
        %3881 = vmatpush1.msra.mxu0 0.0
        %3882 = vmatprep.subr.mxu0 0.0
        %3883 = vmatpush1.msra.mxu0 0.0
        %3884 = vmatprep.subr.mxu0 0.0
        %3885 = vmatpush1.msra.mxu0 0.0
        %3886 = vmatprep.subr.mxu0 0.0
        %3887 = vmatpush1.msra.mxu0 0.0
        %3888 = vmatprep.subr.mxu0 0.0
        %3889 = vmatpush1.msra.mxu0 0.0
        %3890 = vmatprep.subr.mxu0 0.0
        %3891 = vmatpush1.msra.mxu0 0.0
        %3892 = vmatprep.subr.mxu0 0.0
        %3893 = vmatpush1.msra.mxu0 0.0
        %3894 = vmatprep.subr.mxu0 0.0
        %3895 = vmatpush1.msra.mxu0 0.0
        %3896 = vmatprep.subr.mxu0 0.0
        %3897 = vmatpush1.msra.mxu0 0.0
        %3898 = vmatprep.subr.mxu0 0.0
        %3899 = vmatpush1.msra.mxu0 0.0
        %3900 = vmatprep.subr.mxu0 0.0
        %3901 = vmatpush1.msra.mxu0 0.0
        %3902 = vmatprep.subr.mxu0 0.0
        %3903 = vmatpush1.msra.mxu0 0.0
        %3904 = vmatprep.subr.mxu0 0.0
        %3905 = vmatpush1.msra.mxu0 0.0
        %3906 = vmatprep.subr.mxu0 0.0
        %3907 = vmatpush1.msra.mxu0 0.0
        %3908 = vmatprep.subr.mxu0 0.0
        %3909 = vmatpush1.msra.mxu0 0.0
        %3910 = vmatprep.subr.mxu0 0.0
        %3911 = vmatpush1.msra.mxu0 0.0
        %3912 = vmatprep.subr.mxu0 0.0
        %3913 = vmatpush1.msra.mxu0 0.0
        %3914 = vmatprep.subr.mxu0 0.0
        %3915 = vmatpush1.msra.mxu0 0.0
        %3916 = vmatprep.subr.mxu0 0.0
        %3917 = vmatpush1.msra.mxu0 0.0
        %3918 = vmatprep.subr.mxu0 0.0
        %3919 = vmatpush1.msra.mxu0 0.0
        %3920 = vmatprep.subr.mxu0 0.0
        %3921 = vmatpush1.msra.mxu0 0.0
        %3922 = vmatprep.subr.mxu0 0.0
        %3923 = vmatpush1.msra.mxu0 0.0
        %3924 = vmatprep.subr.mxu0 0.0
        %3925 = vmatpush1.msra.mxu0 0.0
        %3926 = vmatprep.mubr.f32.mxu0 0.0
        %v3927 = vand.u32 %v3841, 4294901760
        %v3928 = vsub.f32 %v3841, %v3927
        %v3929 = vand.u32 %v3928, 4294901760
        %v3930 = vsub.f32 %v3928, %v3929
        %v3931 = vand.u32 %v3930, 4294901760
        %3932 = vmatmul.mubr.f32.gmra.mrb[0].mxu0 %v3931
        %v3933 = vpop.f32.mrb[0].mxu0
        %v3934 = vadd.f32 0.0, %v3933
        %v3935 = vpop.f32.mrb[0].mxu0
        %3936 = vmatprep.mubr.f32.mxu0 0.0
        %v3937 = vand.u32 %v3844, 4294901760
        %v3938 = vsub.f32 %v3844, %v3937
        %v3939 = vand.u32 %v3938, 4294901760
        %v3940 = vsub.f32 %v3938, %v3939
        %v3941 = vand.u32 %v3940, 4294901760
        %3942 = vmatmul.mubr.f32.gmra.mrb[0].mxu0 %v3941
        %v3943 = vpop.f32.mrb[0].mxu0
        %v3944 = vadd.f32 0.0, %v3943
        %v3945 = vpop.f32.mrb[0].mxu0
        %3946 = vmatprep.mubr.f32.mxu0 0.0
        %v3947 = vand.u32 %v3847, 4294901760
        %v3948 = vsub.f32 %v3847, %v3947
        %v3949 = vand.u32 %v3948, 4294901760
        %v3950 = vsub.f32 %v3948, %v3949
        %v3951 = vand.u32 %v3950, 4294901760
        %3952 = vmatmul.mubr.f32.gmra.mrb[0].mxu0 %v3951
        %v3953 = vpop.f32.mrb[0].mxu0
        %v3954 = vadd.f32 0.0, %v3953
        %v3955 = vpop.f32.mrb[0].mxu0
        %3956 = vmatprep.mubr.f32.mxu0 0.0
        %v3957 = vand.u32 %v3850, 4294901760
        %v3958 = vsub.f32 %v3850, %v3957
        %v3959 = vand.u32 %v3958, 4294901760
        %v3960 = vsub.f32 %v3958, %v3959
        %v3961 = vand.u32 %v3960, 4294901760
        %3962 = vmatmul.mubr.f32.gmra.mrb[0].mxu0 %v3961
        %v3963 = vpop.f32.mrb[0].mxu0
        %v3964 = vadd.f32 0.0, %v3963
        %v3965 = vpop.f32.mrb[0].mxu0
        %3966 = vmatprep.mubr.f32.mxu0 0.0
        %v3967 = vand.u32 %v3853, 4294901760
        %v3968 = vsub.f32 %v3853, %v3967
        %v3969 = vand.u32 %v3968, 4294901760
        %v3970 = vsub.f32 %v3968, %v3969
        %v3971 = vand.u32 %v3970, 4294901760
        %3972 = vmatmul.mubr.f32.gmra.mrb[0].mxu0 %v3971
        %v3973 = vpop.f32.mrb[0].mxu0
        %v3974 = vadd.f32 0.0, %v3973
        %v3975 = vpop.f32.mrb[0].mxu0
        %3976 = vmatprep.mubr.f32.mxu0 0.0
        %v3977 = vand.u32 %v3856, 4294901760
        %v3978 = vsub.f32 %v3856, %v3977
        %v3979 = vand.u32 %v3978, 4294901760
        %v3980 = vsub.f32 %v3978, %v3979
        %v3981 = vand.u32 %v3980, 4294901760
        %3982 = vmatmul.mubr.f32.gmra.mrb[0].mxu0 %v3981
        %v3983 = vpop.f32.mrb[0].mxu0
        %v3984 = vadd.f32 0.0, %v3983
        %v3985 = vpop.f32.mrb[0].mxu0
        %3986 = vdwg.mxu0
        %3987 = vmatprep.subr.mxu0 0.0
        %v3988 = vand.u32 %v3836, 4294901760
        %v3989 = vsub.f32 %v3836, %v3988
        %v3990 = vand.u32 %v3989, 4294901760
        %v3991 = vsub.f32 %v3989, %v3990
        %v3992 = vand.u32 %v3991, 4294901760
        %3993 = vmatpush1.msra.mxu0 %v3992
        %3994 = vmatprep.subr.mxu0 0.0
        %v3995 = vand.u32 %v3837, 4294901760
        %v3996 = vsub.f32 %v3837, %v3995
        %v3997 = vand.u32 %v3996, 4294901760
        %v3998 = vsub.f32 %v3996, %v3997
        %v3999 = vand.u32 %v3998, 4294901760
        %4000 = vmatpush1.msra.mxu0 %v3999
        %4001 = vmatprep.subr.mxu0 0.0
        %v4002 = vand.u32 %v3838, 4294901760
        %v4003 = vsub.f32 %v3838, %v4002
        %v4004 = vand.u32 %v4003, 4294901760
        %v4005 = vsub.f32 %v4003, %v4004
        %v4006 = vand.u32 %v4005, 4294901760
        %4007 = vmatpush1.msra.mxu0 %v4006
        %4008 = vmatprep.subr.mxu0 0.0
        %v4009 = vand.u32 %v3839, 4294901760
        %v4010 = vsub.f32 %v3839, %v4009
        %v4011 = vand.u32 %v4010, 4294901760
        %v4012 = vsub.f32 %v4010, %v4011
        %v4013 = vand.u32 %v4012, 4294901760
        %4014 = vmatpush1.msra.mxu0 %v4013
        %4015 = vmatprep.subr.mxu0 0.0
        %4016 = vmatpush1.msra.mxu0 0.0
        %4017 = vmatprep.subr.mxu0 0.0
        %4018 = vmatpush1.msra.mxu0 0.0
        %4019 = vmatprep.subr.mxu0 0.0
        %4020 = vmatpush1.msra.mxu0 0.0
        %4021 = vmatprep.subr.mxu0 0.0
        %4022 = vmatpush1.msra.mxu0 0.0
        %4023 = vmatprep.subr.mxu0 0.0
        %4024 = vmatpush1.msra.mxu0 0.0
        %4025 = vmatprep.subr.mxu0 0.0
        %4026 = vmatpush1.msra.mxu0 0.0
        %4027 = vmatprep.subr.mxu0 0.0
        %4028 = vmatpush1.msra.mxu0 0.0
        %4029 = vmatprep.subr.mxu0 0.0
        %4030 = vmatpush1.msra.mxu0 0.0
        %4031 = vmatprep.subr.mxu0 0.0
        %4032 = vmatpush1.msra.mxu0 0.0
        %4033 = vmatprep.subr.mxu0 0.0
        %4034 = vmatpush1.msra.mxu0 0.0
        %4035 = vmatprep.subr.mxu0 0.0
        %4036 = vmatpush1.msra.mxu0 0.0
        %4037 = vmatprep.subr.mxu0 0.0
        %4038 = vmatpush1.msra.mxu0 0.0
        %4039 = vmatprep.subr.mxu0 0.0
        %4040 = vmatpush1.msra.mxu0 0.0
        %4041 = vmatprep.subr.mxu0 0.0
        %4042 = vmatpush1.msra.mxu0 0.0
        %4043 = vmatprep.subr.mxu0 0.0
        %4044 = vmatpush1.msra.mxu0 0.0
        %4045 = vmatprep.subr.mxu0 0.0
        %4046 = vmatpush1.msra.mxu0 0.0
        %4047 = vmatprep.subr.mxu0 0.0
        %4048 = vmatpush1.msra.mxu0 0.0
        %4049 = vmatprep.subr.mxu0 0.0
        %4050 = vmatpush1.msra.mxu0 0.0
        %4051 = vmatprep.subr.mxu0 0.0
        %4052 = vmatpush1.msra.mxu0 0.0
        %4053 = vmatprep.subr.mxu0 0.0
        %4054 = vmatpush1.msra.mxu0 0.0
        %4055 = vmatprep.subr.mxu0 0.0
        %4056 = vmatpush1.msra.mxu0 0.0
        %4057 = vmatprep.subr.mxu0 0.0
        %4058 = vmatpush1.msra.mxu0 0.0
        %4059 = vmatprep.subr.mxu0 0.0
        %4060 = vmatpush1.msra.mxu0 0.0
        %4061 = vmatprep.subr.mxu0 0.0
        %4062 = vmatpush1.msra.mxu0 0.0
        %4063 = vmatprep.subr.mxu0 0.0
        %4064 = vmatpush1.msra.mxu0 0.0
        %4065 = vmatprep.subr.mxu0 0.0
        %4066 = vmatpush1.msra.mxu0 0.0
        %4067 = vmatprep.subr.mxu0 0.0
        %4068 = vmatpush1.msra.mxu0 0.0
        %4069 = vmatprep.subr.mxu0 0.0
        %4070 = vmatpush1.msra.mxu0 0.0
        %4071 = vmatprep.mubr.f32.mxu0 0.0
        %v4072 = vand.u32 %v3841, 4294901760
        %4073 = vmatmul.mubr.f32.gmra.mrb[0].mxu0 %v4072
        %v4074 = vpop.f32.mrb[0].mxu0
        %v4075 = vadd.f32 %v3934, %v4074
        %v4076 = vpop.f32.mrb[0].mxu0
        %4077 = vmatprep.mubr.f32.mxu0 0.0
        %v4078 = vand.u32 %v3844, 4294901760
        %4079 = vmatmul.mubr.f32.gmra.mrb[0].mxu0 %v4078
        %v4080 = vpop.f32.mrb[0].mxu0
        %v4081 = vadd.f32 %v3944, %v4080
        %v4082 = vpop.f32.mrb[0].mxu0
        %4083 = vmatprep.mubr.f32.mxu0 0.0
        %v4084 = vand.u32 %v3847, 4294901760
        %4085 = vmatmul.mubr.f32.gmra.mrb[0].mxu0 %v4084
        %v4086 = vpop.f32.mrb[0].mxu0
        %v4087 = vadd.f32 %v3954, %v4086
        %v4088 = vpop.f32.mrb[0].mxu0
        %4089 = vmatprep.mubr.f32.mxu0 0.0
        %v4090 = vand.u32 %v3850, 4294901760
        %4091 = vmatmul.mubr.f32.gmra.mrb[0].mxu0 %v4090
        %v4092 = vpop.f32.mrb[0].mxu0
        %v4093 = vadd.f32 %v3964, %v4092
        %v4094 = vpop.f32.mrb[0].mxu0
        %4095 = vmatprep.mubr.f32.mxu0 0.0
        %v4096 = vand.u32 %v3853, 4294901760
        %4097 = vmatmul.mubr.f32.gmra.mrb[0].mxu0 %v4096
        %v4098 = vpop.f32.mrb[0].mxu0
        %v4099 = vadd.f32 %v3974, %v4098
        %v4100 = vpop.f32.mrb[0].mxu0
        %4101 = vmatprep.mubr.f32.mxu0 0.0
        %v4102 = vand.u32 %v3856, 4294901760
        %4103 = vmatmul.mubr.f32.gmra.mrb[0].mxu0 %v4102
        %v4104 = vpop.f32.mrb[0].mxu0
        %v4105 = vadd.f32 %v3984, %v4104
        %v4106 = vpop.f32.mrb[0].mxu0
        %4107 = vdwg.mxu0
        %4108 = vmatprep.subr.mxu0 0.0
        %v4109 = vand.u32 %v3836, 4294901760
        %v4110 = vsub.f32 %v3836, %v4109
        %4111 = vmatpush1.msra.mxu0 %v4110
        %4112 = vmatprep.subr.mxu0 0.0
        %v4113 = vand.u32 %v3837, 4294901760
        %v4114 = vsub.f32 %v3837, %v4113
        %4115 = vmatpush1.msra.mxu0 %v4114
        %4116 = vmatprep.subr.mxu0 0.0
        %v4117 = vand.u32 %v3838, 4294901760
        %v4118 = vsub.f32 %v3838, %v4117
        %4119 = vmatpush1.msra.mxu0 %v4118
        %4120 = vmatprep.subr.mxu0 0.0
        %v4121 = vand.u32 %v3839, 4294901760
        %v4122 = vsub.f32 %v3839, %v4121
        %4123 = vmatpush1.msra.mxu0 %v4122
        %4124 = vmatprep.subr.mxu0 0.0
        %4125 = vmatpush1.msra.mxu0 0.0
        %4126 = vmatprep.subr.mxu0 0.0
        %4127 = vmatpush1.msra.mxu0 0.0
        %4128 = vmatprep.subr.mxu0 0.0
        %4129 = vmatpush1.msra.mxu0 0.0
        %4130 = vmatprep.subr.mxu0 0.0
        %4131 = vmatpush1.msra.mxu0 0.0
        %4132 = vmatprep.subr.mxu0 0.0
        %4133 = vmatpush1.msra.mxu0 0.0
        %4134 = vmatprep.subr.mxu0 0.0
        %4135 = vmatpush1.msra.mxu0 0.0
        %4136 = vmatprep.subr.mxu0 0.0
        %4137 = vmatpush1.msra.mxu0 0.0
        %4138 = vmatprep.subr.mxu0 0.0
        %4139 = vmatpush1.msra.mxu0 0.0
        %4140 = vmatprep.subr.mxu0 0.0
        %4141 = vmatpush1.msra.mxu0 0.0
        %4142 = vmatprep.subr.mxu0 0.0
        %4143 = vmatpush1.msra.mxu0 0.0
        %4144 = vmatprep.subr.mxu0 0.0
        %4145 = vmatpush1.msra.mxu0 0.0
        %4146 = vmatprep.subr.mxu0 0.0
        %4147 = vmatpush1.msra.mxu0 0.0
        %4148 = vmatprep.subr.mxu0 0.0
        %4149 = vmatpush1.msra.mxu0 0.0
        %4150 = vmatprep.subr.mxu0 0.0
        %4151 = vmatpush1.msra.mxu0 0.0
        %4152 = vmatprep.subr.mxu0 0.0
        %4153 = vmatpush1.msra.mxu0 0.0
        %4154 = vmatprep.subr.mxu0 0.0
        %4155 = vmatpush1.msra.mxu0 0.0
        %4156 = vmatprep.subr.mxu0 0.0
        %4157 = vmatpush1.msra.mxu0 0.0
        %4158 = vmatprep.subr.mxu0 0.0
        %4159 = vmatpush1.msra.mxu0 0.0
        %4160 = vmatprep.subr.mxu0 0.0
        %4161 = vmatpush1.msra.mxu0 0.0
        %4162 = vmatprep.subr.mxu0 0.0
        %4163 = vmatpush1.msra.mxu0 0.0
        %4164 = vmatprep.subr.mxu0 0.0
        %4165 = vmatpush1.msra.mxu0 0.0
        %4166 = vmatprep.subr.mxu0 0.0
        %4167 = vmatpush1.msra.mxu0 0.0
        %4168 = vmatprep.subr.mxu0 0.0
        %4169 = vmatpush1.msra.mxu0 0.0
        %4170 = vmatprep.subr.mxu0 0.0
        %4171 = vmatpush1.msra.mxu0 0.0
        %4172 = vmatprep.subr.mxu0 0.0
        %4173 = vmatpush1.msra.mxu0 0.0
        %4174 = vmatprep.subr.mxu0 0.0
        %4175 = vmatpush1.msra.mxu0 0.0
        %4176 = vmatprep.subr.mxu0 0.0
        %4177 = vmatpush1.msra.mxu0 0.0
        %4178 = vmatprep.subr.mxu0 0.0
        %4179 = vmatpush1.msra.mxu0 0.0
        %4180 = vmatprep.mubr.f32.mxu0 0.0
        %v4181 = vand.u32 %v3841, 4294901760
        %v4182 = vsub.f32 %v3841, %v4181
        %4183 = vmatmul.mubr.f32.gmra.mrb[0].mxu0 %v4182
        %v4184 = vpop.f32.mrb[0].mxu0
        %v4185 = vadd.f32 %v4075, %v4184
        %v4186 = vpop.f32.mrb[0].mxu0
        %4187 = vmatprep.mubr.f32.mxu0 0.0
        %v4188 = vand.u32 %v3844, 4294901760
        %v4189 = vsub.f32 %v3844, %v4188
        %4190 = vmatmul.mubr.f32.gmra.mrb[0].mxu0 %v4189
        %v4191 = vpop.f32.mrb[0].mxu0
        %v4192 = vadd.f32 %v4081, %v4191
        %v4193 = vpop.f32.mrb[0].mxu0
        %4194 = vmatprep.mubr.f32.mxu0 0.0
        %v4195 = vand.u32 %v3847, 4294901760
        %v4196 = vsub.f32 %v3847, %v4195
        %4197 = vmatmul.mubr.f32.gmra.mrb[0].mxu0 %v4196
        %v4198 = vpop.f32.mrb[0].mxu0
        %v4199 = vadd.f32 %v4087, %v4198
        %v4200 = vpop.f32.mrb[0].mxu0
        %4201 = vmatprep.mubr.f32.mxu0 0.0
        %v4202 = vand.u32 %v3850, 4294901760
        %v4203 = vsub.f32 %v3850, %v4202
        %4204 = vmatmul.mubr.f32.gmra.mrb[0].mxu0 %v4203
        %v4205 = vpop.f32.mrb[0].mxu0
        %v4206 = vadd.f32 %v4093, %v4205
        %v4207 = vpop.f32.mrb[0].mxu0
        %4208 = vmatprep.mubr.f32.mxu0 0.0
        %v4209 = vand.u32 %v3853, 4294901760
        %v4210 = vsub.f32 %v3853, %v4209
        %4211 = vmatmul.mubr.f32.gmra.mrb[0].mxu0 %v4210
        %v4212 = vpop.f32.mrb[0].mxu0
        %v4213 = vadd.f32 %v4099, %v4212
        %v4214 = vpop.f32.mrb[0].mxu0
        %4215 = vmatprep.mubr.f32.mxu0 0.0
        %v4216 = vand.u32 %v3856, 4294901760
        %v4217 = vsub.f32 %v3856, %v4216
        %4218 = vmatmul.mubr.f32.gmra.mrb[0].mxu0 %v4217
        %v4219 = vpop.f32.mrb[0].mxu0
        %v4220 = vadd.f32 %v4105, %v4219
        %v4221 = vpop.f32.mrb[0].mxu0
        %4222 = vdwg.mxu0
        %4223 = vmatprep.subr.mxu0 0.0
        %v4224 = vand.u32 %v3836, 4294901760
        %4225 = vmatpush1.msra.mxu0 %v4224
        %4226 = vmatprep.subr.mxu0 0.0
        %v4227 = vand.u32 %v3837, 4294901760
        %4228 = vmatpush1.msra.mxu0 %v4227
        %4229 = vmatprep.subr.mxu0 0.0
        %v4230 = vand.u32 %v3838, 4294901760
        %4231 = vmatpush1.msra.mxu0 %v4230
        %4232 = vmatprep.subr.mxu0 0.0
        %v4233 = vand.u32 %v3839, 4294901760
        %4234 = vmatpush1.msra.mxu0 %v4233
        %4235 = vmatprep.subr.mxu0 0.0
        %4236 = vmatpush1.msra.mxu0 0.0
        %4237 = vmatprep.subr.mxu0 0.0
        %4238 = vmatpush1.msra.mxu0 0.0
        %4239 = vmatprep.subr.mxu0 0.0
        %4240 = vmatpush1.msra.mxu0 0.0
        %4241 = vmatprep.subr.mxu0 0.0
        %4242 = vmatpush1.msra.mxu0 0.0
        %4243 = vmatprep.subr.mxu0 0.0
        %4244 = vmatpush1.msra.mxu0 0.0
        %4245 = vmatprep.subr.mxu0 0.0
        %4246 = vmatpush1.msra.mxu0 0.0
        %4247 = vmatprep.subr.mxu0 0.0
        %4248 = vmatpush1.msra.mxu0 0.0
        %4249 = vmatprep.subr.mxu0 0.0
        %4250 = vmatpush1.msra.mxu0 0.0
        %4251 = vmatprep.subr.mxu0 0.0
        %4252 = vmatpush1.msra.mxu0 0.0
        %4253 = vmatprep.subr.mxu0 0.0
        %4254 = vmatpush1.msra.mxu0 0.0
        %4255 = vmatprep.subr.mxu0 0.0
        %4256 = vmatpush1.msra.mxu0 0.0
        %4257 = vmatprep.subr.mxu0 0.0
        %4258 = vmatpush1.msra.mxu0 0.0
        %4259 = vmatprep.subr.mxu0 0.0
        %4260 = vmatpush1.msra.mxu0 0.0
        %4261 = vmatprep.subr.mxu0 0.0
        %4262 = vmatpush1.msra.mxu0 0.0
        %4263 = vmatprep.subr.mxu0 0.0
        %4264 = vmatpush1.msra.mxu0 0.0
        %4265 = vmatprep.subr.mxu0 0.0
        %4266 = vmatpush1.msra.mxu0 0.0
        %4267 = vmatprep.subr.mxu0 0.0
        %4268 = vmatpush1.msra.mxu0 0.0
        %4269 = vmatprep.subr.mxu0 0.0
        %4270 = vmatpush1.msra.mxu0 0.0
        %4271 = vmatprep.subr.mxu0 0.0
        %4272 = vmatpush1.msra.mxu0 0.0
        %4273 = vmatprep.subr.mxu0 0.0
        %4274 = vmatpush1.msra.mxu0 0.0
        %4275 = vmatprep.subr.mxu0 0.0
        %4276 = vmatpush1.msra.mxu0 0.0
        %4277 = vmatprep.subr.mxu0 0.0
        %4278 = vmatpush1.msra.mxu0 0.0
        %4279 = vmatprep.subr.mxu0 0.0
        %4280 = vmatpush1.msra.mxu0 0.0
        %4281 = vmatprep.subr.mxu0 0.0
        %4282 = vmatpush1.msra.mxu0 0.0
        %4283 = vmatprep.subr.mxu0 0.0
        %4284 = vmatpush1.msra.mxu0 0.0
        %4285 = vmatprep.subr.mxu0 0.0
        %4286 = vmatpush1.msra.mxu0 0.0
        %4287 = vmatprep.subr.mxu0 0.0
        %4288 = vmatpush1.msra.mxu0 0.0
        %4289 = vmatprep.subr.mxu0 0.0
        %4290 = vmatpush1.msra.mxu0 0.0
        %4291 = vmatprep.mubr.f32.mxu0 0.0
        %v4292 = vand.u32 %v3841, 4294901760
        %v4293 = vsub.f32 %v3841, %v4292
        %v4294 = vand.u32 %v4293, 4294901760
        %4295 = vmatmul.mubr.f32.gmra.mrb[0].mxu0 %v4294
        %v4296 = vpop.f32.mrb[0].mxu0
        %v4297 = vadd.f32 %v4185, %v4296
        %v4298 = vpop.f32.mrb[0].mxu0
        %4299 = vmatprep.mubr.f32.mxu0 0.0
        %v4300 = vand.u32 %v3844, 4294901760
        %v4301 = vsub.f32 %v3844, %v4300
        %v4302 = vand.u32 %v4301, 4294901760
        %4303 = vmatmul.mubr.f32.gmra.mrb[0].mxu0 %v4302
        %v4304 = vpop.f32.mrb[0].mxu0
        %v4305 = vadd.f32 %v4192, %v4304
        %v4306 = vpop.f32.mrb[0].mxu0
        %4307 = vmatprep.mubr.f32.mxu0 0.0
        %v4308 = vand.u32 %v3847, 4294901760
        %v4309 = vsub.f32 %v3847, %v4308
        %v4310 = vand.u32 %v4309, 4294901760
        %4311 = vmatmul.mubr.f32.gmra.mrb[0].mxu0 %v4310
        %v4312 = vpop.f32.mrb[0].mxu0
        %v4313 = vadd.f32 %v4199, %v4312
        %v4314 = vpop.f32.mrb[0].mxu0
        %4315 = vmatprep.mubr.f32.mxu0 0.0
        %v4316 = vand.u32 %v3850, 4294901760
        %v4317 = vsub.f32 %v3850, %v4316
        %v4318 = vand.u32 %v4317, 4294901760
        %4319 = vmatmul.mubr.f32.gmra.mrb[0].mxu0 %v4318
        %v4320 = vpop.f32.mrb[0].mxu0
        %v4321 = vadd.f32 %v4206, %v4320
        %v4322 = vpop.f32.mrb[0].mxu0
        %4323 = vmatprep.mubr.f32.mxu0 0.0
        %v4324 = vand.u32 %v3853, 4294901760
        %v4325 = vsub.f32 %v3853, %v4324
        %v4326 = vand.u32 %v4325, 4294901760
        %4327 = vmatmul.mubr.f32.gmra.mrb[0].mxu0 %v4326
        %v4328 = vpop.f32.mrb[0].mxu0
        %v4329 = vadd.f32 %v4213, %v4328
        %v4330 = vpop.f32.mrb[0].mxu0
        %4331 = vmatprep.mubr.f32.mxu0 0.0
        %v4332 = vand.u32 %v3856, 4294901760
        %v4333 = vsub.f32 %v3856, %v4332
        %v4334 = vand.u32 %v4333, 4294901760
        %4335 = vmatmul.mubr.f32.gmra.mrb[0].mxu0 %v4334
        %v4336 = vpop.f32.mrb[0].mxu0
        %v4337 = vadd.f32 %v4220, %v4336
        %v4338 = vpop.f32.mrb[0].mxu0
        %4339 = vdwg.mxu0
        %4340 = vmatprep.subr.mxu0 0.0
        %v4341 = vand.u32 %v3836, 4294901760
        %v4342 = vsub.f32 %v3836, %v4341
        %v4343 = vand.u32 %v4342, 4294901760
        %4344 = vmatpush1.msra.mxu0 %v4343
        %4345 = vmatprep.subr.mxu0 0.0
        %v4346 = vand.u32 %v3837, 4294901760
        %v4347 = vsub.f32 %v3837, %v4346
        %v4348 = vand.u32 %v4347, 4294901760
        %4349 = vmatpush1.msra.mxu0 %v4348
        %4350 = vmatprep.subr.mxu0 0.0
        %v4351 = vand.u32 %v3838, 4294901760
        %v4352 = vsub.f32 %v3838, %v4351
        %v4353 = vand.u32 %v4352, 4294901760
        %4354 = vmatpush1.msra.mxu0 %v4353
        %4355 = vmatprep.subr.mxu0 0.0
        %v4356 = vand.u32 %v3839, 4294901760
        %v4357 = vsub.f32 %v3839, %v4356
        %v4358 = vand.u32 %v4357, 4294901760
        %4359 = vmatpush1.msra.mxu0 %v4358
        %4360 = vmatprep.subr.mxu0 0.0
        %4361 = vmatpush1.msra.mxu0 0.0
        %4362 = vmatprep.subr.mxu0 0.0
        %4363 = vmatpush1.msra.mxu0 0.0
        %4364 = vmatprep.subr.mxu0 0.0
        %4365 = vmatpush1.msra.mxu0 0.0
        %4366 = vmatprep.subr.mxu0 0.0
        %4367 = vmatpush1.msra.mxu0 0.0
        %4368 = vmatprep.subr.mxu0 0.0
        %4369 = vmatpush1.msra.mxu0 0.0
        %4370 = vmatprep.subr.mxu0 0.0
        %4371 = vmatpush1.msra.mxu0 0.0
        %4372 = vmatprep.subr.mxu0 0.0
        %4373 = vmatpush1.msra.mxu0 0.0
        %4374 = vmatprep.subr.mxu0 0.0
        %4375 = vmatpush1.msra.mxu0 0.0
        %4376 = vmatprep.subr.mxu0 0.0
        %4377 = vmatpush1.msra.mxu0 0.0
        %4378 = vmatprep.subr.mxu0 0.0
        %4379 = vmatpush1.msra.mxu0 0.0
        %4380 = vmatprep.subr.mxu0 0.0
        %4381 = vmatpush1.msra.mxu0 0.0
        %4382 = vmatprep.subr.mxu0 0.0
        %4383 = vmatpush1.msra.mxu0 0.0
        %4384 = vmatprep.subr.mxu0 0.0
        %4385 = vmatpush1.msra.mxu0 0.0
        %4386 = vmatprep.subr.mxu0 0.0
        %4387 = vmatpush1.msra.mxu0 0.0
        %4388 = vmatprep.subr.mxu0 0.0
        %4389 = vmatpush1.msra.mxu0 0.0
        %4390 = vmatprep.subr.mxu0 0.0
        %4391 = vmatpush1.msra.mxu0 0.0
        %4392 = vmatprep.subr.mxu0 0.0
        %4393 = vmatpush1.msra.mxu0 0.0
        %4394 = vmatprep.subr.mxu0 0.0
        %4395 = vmatpush1.msra.mxu0 0.0
        %4396 = vmatprep.subr.mxu0 0.0
        %4397 = vmatpush1.msra.mxu0 0.0
        %4398 = vmatprep.subr.mxu0 0.0
        %4399 = vmatpush1.msra.mxu0 0.0
        %4400 = vmatprep.subr.mxu0 0.0
        %4401 = vmatpush1.msra.mxu0 0.0
        %4402 = vmatprep.subr.mxu0 0.0
        %4403 = vmatpush1.msra.mxu0 0.0
        %4404 = vmatprep.subr.mxu0 0.0
        %4405 = vmatpush1.msra.mxu0 0.0
        %4406 = vmatprep.subr.mxu0 0.0
        %4407 = vmatpush1.msra.mxu0 0.0
        %4408 = vmatprep.subr.mxu0 0.0
        %4409 = vmatpush1.msra.mxu0 0.0
        %4410 = vmatprep.subr.mxu0 0.0
        %4411 = vmatpush1.msra.mxu0 0.0
        %4412 = vmatprep.subr.mxu0 0.0
        %4413 = vmatpush1.msra.mxu0 0.0
        %4414 = vmatprep.subr.mxu0 0.0
        %4415 = vmatpush1.msra.mxu0 0.0
        %4416 = vmatprep.mubr.f32.mxu0 0.0
        %v4417 = vand.u32 %v3841, 4294901760
        %4418 = vmatmul.mubr.f32.gmra.mrb[0].mxu0 %v4417
        %v4419 = vpop.f32.mrb[0].mxu0
        %v4420 = vadd.f32 %v4297, %v4419
        %v4421 = vpop.f32.mrb[0].mxu0
        %4422 = vmatprep.mubr.f32.mxu0 0.0
        %v4423 = vand.u32 %v3844, 4294901760
        %4424 = vmatmul.mubr.f32.gmra.mrb[0].mxu0 %v4423
        %v4425 = vpop.f32.mrb[0].mxu0
        %v4426 = vadd.f32 %v4305, %v4425
        %v4427 = vpop.f32.mrb[0].mxu0
        %4428 = vmatprep.mubr.f32.mxu0 0.0
        %v4429 = vand.u32 %v3847, 4294901760
        %4430 = vmatmul.mubr.f32.gmra.mrb[0].mxu0 %v4429
        %v4431 = vpop.f32.mrb[0].mxu0
        %v4432 = vadd.f32 %v4313, %v4431
        %v4433 = vpop.f32.mrb[0].mxu0
        %4434 = vmatprep.mubr.f32.mxu0 0.0
        %v4435 = vand.u32 %v3850, 4294901760
        %4436 = vmatmul.mubr.f32.gmra.mrb[0].mxu0 %v4435
        %v4437 = vpop.f32.mrb[0].mxu0
        %v4438 = vadd.f32 %v4321, %v4437
        %v4439 = vpop.f32.mrb[0].mxu0
        %4440 = vmatprep.mubr.f32.mxu0 0.0
        %v4441 = vand.u32 %v3853, 4294901760
        %4442 = vmatmul.mubr.f32.gmra.mrb[0].mxu0 %v4441
        %v4443 = vpop.f32.mrb[0].mxu0
        %v4444 = vadd.f32 %v4329, %v4443
        %v4445 = vpop.f32.mrb[0].mxu0
        %4446 = vmatprep.mubr.f32.mxu0 0.0
        %v4447 = vand.u32 %v3856, 4294901760
        %4448 = vmatmul.mubr.f32.gmra.mrb[0].mxu0 %v4447
        %v4449 = vpop.f32.mrb[0].mxu0
        %v4450 = vadd.f32 %v4337, %v4449
        %v4451 = vpop.f32.mrb[0].mxu0
        %4452 = vdwg.mxu0
        %4453 = vmatprep.subr.mxu0 0.0
        %v4454 = vand.u32 %v3836, 4294901760
        %4455 = vmatpush1.msra.mxu0 %v4454
        %4456 = vmatprep.subr.mxu0 0.0
        %v4457 = vand.u32 %v3837, 4294901760
        %4458 = vmatpush1.msra.mxu0 %v4457
        %4459 = vmatprep.subr.mxu0 0.0
        %v4460 = vand.u32 %v3838, 4294901760
        %4461 = vmatpush1.msra.mxu0 %v4460
        %4462 = vmatprep.subr.mxu0 0.0
        %v4463 = vand.u32 %v3839, 4294901760
        %4464 = vmatpush1.msra.mxu0 %v4463
        %4465 = vmatprep.subr.mxu0 0.0
        %4466 = vmatpush1.msra.mxu0 0.0
        %4467 = vmatprep.subr.mxu0 0.0
        %4468 = vmatpush1.msra.mxu0 0.0
        %4469 = vmatprep.subr.mxu0 0.0
        %4470 = vmatpush1.msra.mxu0 0.0
        %4471 = vmatprep.subr.mxu0 0.0
        %4472 = vmatpush1.msra.mxu0 0.0
        %4473 = vmatprep.subr.mxu0 0.0
        %4474 = vmatpush1.msra.mxu0 0.0
        %4475 = vmatprep.subr.mxu0 0.0
        %4476 = vmatpush1.msra.mxu0 0.0
        %4477 = vmatprep.subr.mxu0 0.0
        %4478 = vmatpush1.msra.mxu0 0.0
        %4479 = vmatprep.subr.mxu0 0.0
        %4480 = vmatpush1.msra.mxu0 0.0
        %4481 = vmatprep.subr.mxu0 0.0
        %4482 = vmatpush1.msra.mxu0 0.0
        %4483 = vmatprep.subr.mxu0 0.0
        %4484 = vmatpush1.msra.mxu0 0.0
        %4485 = vmatprep.subr.mxu0 0.0
        %4486 = vmatpush1.msra.mxu0 0.0
        %4487 = vmatprep.subr.mxu0 0.0
        %4488 = vmatpush1.msra.mxu0 0.0
        %4489 = vmatprep.subr.mxu0 0.0
        %4490 = vmatpush1.msra.mxu0 0.0
        %4491 = vmatprep.subr.mxu0 0.0
        %4492 = vmatpush1.msra.mxu0 0.0
        %4493 = vmatprep.subr.mxu0 0.0
        %4494 = vmatpush1.msra.mxu0 0.0
        %4495 = vmatprep.subr.mxu0 0.0
        %4496 = vmatpush1.msra.mxu0 0.0
        %4497 = vmatprep.subr.mxu0 0.0
        %4498 = vmatpush1.msra.mxu0 0.0
        %4499 = vmatprep.subr.mxu0 0.0
        %4500 = vmatpush1.msra.mxu0 0.0
        %4501 = vmatprep.subr.mxu0 0.0
        %4502 = vmatpush1.msra.mxu0 0.0
        %4503 = vmatprep.subr.mxu0 0.0
        %4504 = vmatpush1.msra.mxu0 0.0
        %4505 = vmatprep.subr.mxu0 0.0
        %4506 = vmatpush1.msra.mxu0 0.0
        %4507 = vmatprep.subr.mxu0 0.0
        %4508 = vmatpush1.msra.mxu0 0.0
        %4509 = vmatprep.subr.mxu0 0.0
        %4510 = vmatpush1.msra.mxu0 0.0
        %4511 = vmatprep.subr.mxu0 0.0
        %4512 = vmatpush1.msra.mxu0 0.0
        %4513 = vmatprep.subr.mxu0 0.0
        %4514 = vmatpush1.msra.mxu0 0.0
        %4515 = vmatprep.subr.mxu0 0.0
        %4516 = vmatpush1.msra.mxu0 0.0
        %4517 = vmatprep.subr.mxu0 0.0
        %4518 = vmatpush1.msra.mxu0 0.0
        %4519 = vmatprep.subr.mxu0 0.0
        %4520 = vmatpush1.msra.mxu0 0.0
        %4521 = vmatprep.mubr.f32.mxu0 0.0
        %v4522 = vand.u32 %v3841, 4294901760
        %4523 = vmatmul.mubr.f32.gmra.mrb[0].mxu0 %v4522
        %v4524 = vpop.f32.mrb[0].mxu0
        %v4525 = vadd.f32 %v4420, %v4524
        %v4526 = vpop.f32.mrb[0].mxu0
        %4527 = vmatprep.mubr.f32.mxu0 0.0
        %v4528 = vand.u32 %v3844, 4294901760
        %4529 = vmatmul.mubr.f32.gmra.mrb[0].mxu0 %v4528
        %v4530 = vpop.f32.mrb[0].mxu0
        %v4531 = vadd.f32 %v4426, %v4530
        %v4532 = vpop.f32.mrb[0].mxu0
        %4533 = vmatprep.mubr.f32.mxu0 0.0
        %v4534 = vand.u32 %v3847, 4294901760
        %4535 = vmatmul.mubr.f32.gmra.mrb[0].mxu0 %v4534
        %v4536 = vpop.f32.mrb[0].mxu0
        %v4537 = vadd.f32 %v4432, %v4536
        %v4538 = vpop.f32.mrb[0].mxu0
        %4539 = vmatprep.mubr.f32.mxu0 0.0
        %v4540 = vand.u32 %v3850, 4294901760
        %4541 = vmatmul.mubr.f32.gmra.mrb[0].mxu0 %v4540
        %v4542 = vpop.f32.mrb[0].mxu0
        %v4543 = vadd.f32 %v4438, %v4542
        %v4544 = vpop.f32.mrb[0].mxu0
        %4545 = vmatprep.mubr.f32.mxu0 0.0
        %v4546 = vand.u32 %v3853, 4294901760
        %4547 = vmatmul.mubr.f32.gmra.mrb[0].mxu0 %v4546
        %v4548 = vpop.f32.mrb[0].mxu0
        %v4549 = vadd.f32 %v4444, %v4548
        %v4550 = vpop.f32.mrb[0].mxu0
        %4551 = vmatprep.mubr.f32.mxu0 0.0
        %v4552 = vand.u32 %v3856, 4294901760
        %4553 = vmatmul.mubr.f32.gmra.mrb[0].mxu0 %v4552
        %v4554 = vpop.f32.mrb[0].mxu0
        %v4555 = vadd.f32 %v4450, %v4554
        %v4556 = vpop.f32.mrb[0].mxu0
        %4557 = vdwg.mxu0
        %v4558 = vadd.f32 %v3803, %v4525
        %v4559 = vadd.f32 %v3809, %v4531
        %v4560 = vadd.f32 %v3815, %v4537
        %v4561 = vadd.f32 %v3821, %v4543
        %v4562 = vadd.f32 %v3827, %v4549
        %v4563 = vadd.f32 %v3833, %v4555
        %v4564 = vld [vmem:[%s6] sm:$0x1]
        %v4566 = vlaneseq
        %v4567 = vshrl.u32 %v4566, 7
        %v4568 = vsub.s32 0, %v4567
        %v4569 = vrot.slane %v4564, %v4568
        %v4571 = vadd.f32 %v4558, %v4569
        %v4572 = vadd.f32 %v4559, %v4569
        %v4573 = vadd.f32 %v4560, %v4569
        %v4574 = vadd.f32 %v4561, %v4569
        %v4575 = vadd.f32 %v4562, %v4569
        %v4576 = vadd.f32 %v4563, %v4569
        %v4577 = vmax.f32 %v4571, 0.0
        %v4578 = vmax.f32 %v4572, 0.0
        %v4579 = vmax.f32 %v4573, 0.0
        %v4580 = vmax.f32 %v4574, 0.0
        %v4581 = vmax.f32 %v4575, 0.0
        %v4582 = vmax.f32 %v4576, 0.0
        %v4583 = vld [vmem:[%s7] sm:$0xff]
        %v4584 = vld [vmem:[%s7 + $0x8] sm:$0xff]
        %v4585 = vld [vmem:[%s7 + $0x10] sm:$0xff]
        %v4586 = vld [vmem:[%s7 + $0x18] sm:$0xff]
        %v4587 = vld [vmem:[%s7 + $0x20] sm:$0xff]
        %v4588 = vld [vmem:[%s7 + $0x28] sm:$0xff]
        %v4589 = vld [vmem:[%s7 + $0x30] sm:$0xff]
        %v4590 = vld [vmem:[%s7 + $0x38] sm:$0xff]
        %v4591 = vld [vmem:[%s7 + $0x40] sm:$0xff]
        %v4592 = vld [vmem:[%s7 + $0x48] sm:$0xff]
        %v4593 = vld [vmem:[%s7 + $0x50] sm:$0xff]
        %v4594 = vld [vmem:[%s7 + $0x58] sm:$0xff]
        %v4595 = vld [vmem:[%s7 + $0x60] sm:$0xff]
        %v4596 = vld [vmem:[%s7 + $0x68] sm:$0xff]
        %v4597 = vld [vmem:[%s7 + $0x70] sm:$0xff]
        %v4598 = vld [vmem:[%s7 + $0x78] sm:$0xff]
        %v4599 = vld [vmem:[%s8] sm:$0x1]
        %v4601 = vlaneseq
        %v4602 = vshrl.u32 %v4601, 7
        %v4603 = vsub.s32 0, %v4602
        %v4604 = vrot.slane %v4599, %v4603
        %4606 = vmatprep.subr.mxu0 0.0
        %v4607 = vand.u32 %v4583, 4294901760
        %4608 = vmatpush1.msra.mxu0 %v4607
        %4609 = vmatprep.subr.mxu0 0.0
        %v4610 = vand.u32 %v4584, 4294901760
        %4611 = vmatpush1.msra.mxu0 %v4610
        %4612 = vmatprep.subr.mxu0 0.0
        %v4613 = vand.u32 %v4585, 4294901760
        %4614 = vmatpush1.msra.mxu0 %v4613
        %4615 = vmatprep.subr.mxu0 0.0
        %v4616 = vand.u32 %v4586, 4294901760
        %4617 = vmatpush1.msra.mxu0 %v4616
        %4618 = vmatprep.subr.mxu0 0.0
        %v4619 = vand.u32 %v4587, 4294901760
        %4620 = vmatpush1.msra.mxu0 %v4619
        %4621 = vmatprep.subr.mxu0 0.0
        %v4622 = vand.u32 %v4588, 4294901760
        %4623 = vmatpush1.msra.mxu0 %v4622
        %4624 = vmatprep.subr.mxu0 0.0
        %v4625 = vand.u32 %v4589, 4294901760
        %4626 = vmatpush1.msra.mxu0 %v4625
        %4627 = vmatprep.subr.mxu0 0.0
        %v4628 = vand.u32 %v4590, 4294901760
        %4629 = vmatpush1.msra.mxu0 %v4628
        %4630 = vmatprep.subr.mxu0 0.0
        %v4631 = vand.u32 %v4591, 4294901760
        %4632 = vmatpush1.msra.mxu0 %v4631
        %4633 = vmatprep.subr.mxu0 0.0
        %v4634 = vand.u32 %v4592, 4294901760
        %4635 = vmatpush1.msra.mxu0 %v4634
        %4636 = vmatprep.subr.mxu0 0.0
        %v4637 = vand.u32 %v4593, 4294901760
        %4638 = vmatpush1.msra.mxu0 %v4637
        %4639 = vmatprep.subr.mxu0 0.0
        %v4640 = vand.u32 %v4594, 4294901760
        %4641 = vmatpush1.msra.mxu0 %v4640
        %4642 = vmatprep.subr.mxu0 0.0
        %v4643 = vand.u32 %v4595, 4294901760
        %4644 = vmatpush1.msra.mxu0 %v4643
        %4645 = vmatprep.subr.mxu0 0.0
        %v4646 = vand.u32 %v4596, 4294901760
        %4647 = vmatpush1.msra.mxu0 %v4646
        %4648 = vmatprep.subr.mxu0 0.0
        %v4649 = vand.u32 %v4597, 4294901760
        %4650 = vmatpush1.msra.mxu0 %v4649
        %4651 = vmatprep.subr.mxu0 0.0
        %v4652 = vand.u32 %v4598, 4294901760
        %4653 = vmatpush1.msra.mxu0 %v4652
        %4654 = vmatprep.subr.mxu0 0.0
        %4655 = vmatpush1.msra.mxu0 0.0
        %4656 = vmatprep.subr.mxu0 0.0
        %4657 = vmatpush1.msra.mxu0 0.0
        %4658 = vmatprep.subr.mxu0 0.0
        %4659 = vmatpush1.msra.mxu0 0.0
        %4660 = vmatprep.subr.mxu0 0.0
        %4661 = vmatpush1.msra.mxu0 0.0
        %4662 = vmatprep.subr.mxu0 0.0
        %4663 = vmatpush1.msra.mxu0 0.0
        %4664 = vmatprep.subr.mxu0 0.0
        %4665 = vmatpush1.msra.mxu0 0.0
        %4666 = vmatprep.subr.mxu0 0.0
        %4667 = vmatpush1.msra.mxu0 0.0
        %4668 = vmatprep.subr.mxu0 0.0
        %4669 = vmatpush1.msra.mxu0 0.0
        %4670 = vmatprep.subr.mxu0 0.0
        %4671 = vmatpush1.msra.mxu0 0.0
        %4672 = vmatprep.subr.mxu0 0.0
        %4673 = vmatpush1.msra.mxu0 0.0
        %4674 = vmatprep.subr.mxu0 0.0
        %4675 = vmatpush1.msra.mxu0 0.0
        %4676 = vmatprep.subr.mxu0 0.0
        %4677 = vmatpush1.msra.mxu0 0.0
        %4678 = vmatprep.subr.mxu0 0.0
        %4679 = vmatpush1.msra.mxu0 0.0
        %4680 = vmatprep.subr.mxu0 0.0
        %4681 = vmatpush1.msra.mxu0 0.0
        %4682 = vmatprep.subr.mxu0 0.0
        %4683 = vmatpush1.msra.mxu0 0.0
        %4684 = vmatprep.subr.mxu0 0.0
        %4685 = vmatpush1.msra.mxu0 0.0
        %4686 = vmatprep.mubr.f32.mxu0 0.0
        %v4687 = vand.u32 %v4577, 4294901760
        %v4688 = vsub.f32 %v4577, %v4687
        %v4689 = vand.u32 %v4688, 4294901760
        %v4690 = vsub.f32 %v4688, %v4689
        %v4691 = vand.u32 %v4690, 4294901760
        %4692 = vmatmul.mubr.f32.gmra.mrb[0].mxu0 %v4691
        %v4693 = vpop.f32.mrb[0].mxu0
        %v4694 = vadd.f32 %v4604, %v4693
        %v4695 = vpop.f32.mrb[0].mxu0
        %4696 = vmatprep.mubr.f32.mxu0 0.0
        %v4697 = vand.u32 %v4578, 4294901760
        %v4698 = vsub.f32 %v4578, %v4697
        %v4699 = vand.u32 %v4698, 4294901760
        %v4700 = vsub.f32 %v4698, %v4699
        %v4701 = vand.u32 %v4700, 4294901760
        %4702 = vmatmul.mubr.f32.gmra.mrb[0].mxu0 %v4701
        %v4703 = vpop.f32.mrb[0].mxu0
        %v4704 = vadd.f32 %v4604, %v4703
        %v4705 = vpop.f32.mrb[0].mxu0
        %4706 = vmatprep.mubr.f32.mxu0 0.0
        %v4707 = vand.u32 %v4579, 4294901760
        %v4708 = vsub.f32 %v4579, %v4707
        %v4709 = vand.u32 %v4708, 4294901760
        %v4710 = vsub.f32 %v4708, %v4709
        %v4711 = vand.u32 %v4710, 4294901760
        %4712 = vmatmul.mubr.f32.gmra.mrb[0].mxu0 %v4711
        %v4713 = vpop.f32.mrb[0].mxu0
        %v4714 = vadd.f32 %v4604, %v4713
        %v4715 = vpop.f32.mrb[0].mxu0
        %4716 = vmatprep.mubr.f32.mxu0 0.0
        %v4717 = vand.u32 %v4580, 4294901760
        %v4718 = vsub.f32 %v4580, %v4717
        %v4719 = vand.u32 %v4718, 4294901760
        %v4720 = vsub.f32 %v4718, %v4719
        %v4721 = vand.u32 %v4720, 4294901760
        %4722 = vmatmul.mubr.f32.gmra.mrb[0].mxu0 %v4721
        %v4723 = vpop.f32.mrb[0].mxu0
        %v4724 = vadd.f32 %v4604, %v4723
        %v4725 = vpop.f32.mrb[0].mxu0
        %4726 = vmatprep.mubr.f32.mxu0 0.0
        %v4727 = vand.u32 %v4581, 4294901760
        %v4728 = vsub.f32 %v4581, %v4727
        %v4729 = vand.u32 %v4728, 4294901760
        %v4730 = vsub.f32 %v4728, %v4729
        %v4731 = vand.u32 %v4730, 4294901760
        %4732 = vmatmul.mubr.f32.gmra.mrb[0].mxu0 %v4731
        %v4733 = vpop.f32.mrb[0].mxu0
        %v4734 = vadd.f32 %v4604, %v4733
        %v4735 = vpop.f32.mrb[0].mxu0
        %4736 = vmatprep.mubr.f32.mxu0 0.0
        %v4737 = vand.u32 %v4582, 4294901760
        %v4738 = vsub.f32 %v4582, %v4737
        %v4739 = vand.u32 %v4738, 4294901760
        %v4740 = vsub.f32 %v4738, %v4739
        %v4741 = vand.u32 %v4740, 4294901760
        %4742 = vmatmul.mubr.f32.gmra.mrb[0].mxu0 %v4741
        %v4743 = vpop.f32.mrb[0].mxu0
        %v4744 = vadd.f32 %v4604, %v4743
        %v4745 = vpop.f32.mrb[0].mxu0
        %4746 = vdwg.mxu0
        %4747 = vmatprep.subr.mxu0 0.0
        %v4748 = vand.u32 %v4583, 4294901760
        %v4749 = vsub.f32 %v4583, %v4748
        %v4750 = vand.u32 %v4749, 4294901760
        %v4751 = vsub.f32 %v4749, %v4750
        %v4752 = vand.u32 %v4751, 4294901760
        %4753 = vmatpush1.msra.mxu0 %v4752
        %4754 = vmatprep.subr.mxu0 0.0
        %v4755 = vand.u32 %v4584, 4294901760
        %v4756 = vsub.f32 %v4584, %v4755
        %v4757 = vand.u32 %v4756, 4294901760
        %v4758 = vsub.f32 %v4756, %v4757
        %v4759 = vand.u32 %v4758, 4294901760
        %4760 = vmatpush1.msra.mxu0 %v4759
        %4761 = vmatprep.subr.mxu0 0.0
        %v4762 = vand.u32 %v4585, 4294901760
        %v4763 = vsub.f32 %v4585, %v4762
        %v4764 = vand.u32 %v4763, 4294901760
        %v4765 = vsub.f32 %v4763, %v4764
        %v4766 = vand.u32 %v4765, 4294901760
        %4767 = vmatpush1.msra.mxu0 %v4766
        %4768 = vmatprep.subr.mxu0 0.0
        %v4769 = vand.u32 %v4586, 4294901760
        %v4770 = vsub.f32 %v4586, %v4769
        %v4771 = vand.u32 %v4770, 4294901760
        %v4772 = vsub.f32 %v4770, %v4771
        %v4773 = vand.u32 %v4772, 4294901760
        %4774 = vmatpush1.msra.mxu0 %v4773
        %4775 = vmatprep.subr.mxu0 0.0
        %v4776 = vand.u32 %v4587, 4294901760
        %v4777 = vsub.f32 %v4587, %v4776
        %v4778 = vand.u32 %v4777, 4294901760
        %v4779 = vsub.f32 %v4777, %v4778
        %v4780 = vand.u32 %v4779, 4294901760
        %4781 = vmatpush1.msra.mxu0 %v4780
        %4782 = vmatprep.subr.mxu0 0.0
        %v4783 = vand.u32 %v4588, 4294901760
        %v4784 = vsub.f32 %v4588, %v4783
        %v4785 = vand.u32 %v4784, 4294901760
        %v4786 = vsub.f32 %v4784, %v4785
        %v4787 = vand.u32 %v4786, 4294901760
        %4788 = vmatpush1.msra.mxu0 %v4787
        %4789 = vmatprep.subr.mxu0 0.0
        %v4790 = vand.u32 %v4589, 4294901760
        %v4791 = vsub.f32 %v4589, %v4790
        %v4792 = vand.u32 %v4791, 4294901760
        %v4793 = vsub.f32 %v4791, %v4792
        %v4794 = vand.u32 %v4793, 4294901760
        %4795 = vmatpush1.msra.mxu0 %v4794
        %4796 = vmatprep.subr.mxu0 0.0
        %v4797 = vand.u32 %v4590, 4294901760
        %v4798 = vsub.f32 %v4590, %v4797
        %v4799 = vand.u32 %v4798, 4294901760
        %v4800 = vsub.f32 %v4798, %v4799
        %v4801 = vand.u32 %v4800, 4294901760
        %4802 = vmatpush1.msra.mxu0 %v4801
        %4803 = vmatprep.subr.mxu0 0.0
        %v4804 = vand.u32 %v4591, 4294901760
        %v4805 = vsub.f32 %v4591, %v4804
        %v4806 = vand.u32 %v4805, 4294901760
        %v4807 = vsub.f32 %v4805, %v4806
        %v4808 = vand.u32 %v4807, 4294901760
        %4809 = vmatpush1.msra.mxu0 %v4808
        %4810 = vmatprep.subr.mxu0 0.0
        %v4811 = vand.u32 %v4592, 4294901760
        %v4812 = vsub.f32 %v4592, %v4811
        %v4813 = vand.u32 %v4812, 4294901760
        %v4814 = vsub.f32 %v4812, %v4813
        %v4815 = vand.u32 %v4814, 4294901760
        %4816 = vmatpush1.msra.mxu0 %v4815
        %4817 = vmatprep.subr.mxu0 0.0
        %v4818 = vand.u32 %v4593, 4294901760
        %v4819 = vsub.f32 %v4593, %v4818
        %v4820 = vand.u32 %v4819, 4294901760
        %v4821 = vsub.f32 %v4819, %v4820
        %v4822 = vand.u32 %v4821, 4294901760
        %4823 = vmatpush1.msra.mxu0 %v4822
        %4824 = vmatprep.subr.mxu0 0.0
        %v4825 = vand.u32 %v4594, 4294901760
        %v4826 = vsub.f32 %v4594, %v4825
        %v4827 = vand.u32 %v4826, 4294901760
        %v4828 = vsub.f32 %v4826, %v4827
        %v4829 = vand.u32 %v4828, 4294901760
        %4830 = vmatpush1.msra.mxu0 %v4829
        %4831 = vmatprep.subr.mxu0 0.0
        %v4832 = vand.u32 %v4595, 4294901760
        %v4833 = vsub.f32 %v4595, %v4832
        %v4834 = vand.u32 %v4833, 4294901760
        %v4835 = vsub.f32 %v4833, %v4834
        %v4836 = vand.u32 %v4835, 4294901760
        %4837 = vmatpush1.msra.mxu0 %v4836
        %4838 = vmatprep.subr.mxu0 0.0
        %v4839 = vand.u32 %v4596, 4294901760
        %v4840 = vsub.f32 %v4596, %v4839
        %v4841 = vand.u32 %v4840, 4294901760
        %v4842 = vsub.f32 %v4840, %v4841
        %v4843 = vand.u32 %v4842, 4294901760
        %4844 = vmatpush1.msra.mxu0 %v4843
        %4845 = vmatprep.subr.mxu0 0.0
        %v4846 = vand.u32 %v4597, 4294901760
        %v4847 = vsub.f32 %v4597, %v4846
        %v4848 = vand.u32 %v4847, 4294901760
        %v4849 = vsub.f32 %v4847, %v4848
        %v4850 = vand.u32 %v4849, 4294901760
        %4851 = vmatpush1.msra.mxu0 %v4850
        %4852 = vmatprep.subr.mxu0 0.0
        %v4853 = vand.u32 %v4598, 4294901760
        %v4854 = vsub.f32 %v4598, %v4853
        %v4855 = vand.u32 %v4854, 4294901760
        %v4856 = vsub.f32 %v4854, %v4855
        %v4857 = vand.u32 %v4856, 4294901760
        %4858 = vmatpush1.msra.mxu0 %v4857
        %4859 = vmatprep.subr.mxu0 0.0
        %4860 = vmatpush1.msra.mxu0 0.0
        %4861 = vmatprep.subr.mxu0 0.0
        %4862 = vmatpush1.msra.mxu0 0.0
        %4863 = vmatprep.subr.mxu0 0.0
        %4864 = vmatpush1.msra.mxu0 0.0
        %4865 = vmatprep.subr.mxu0 0.0
        %4866 = vmatpush1.msra.mxu0 0.0
        %4867 = vmatprep.subr.mxu0 0.0
        %4868 = vmatpush1.msra.mxu0 0.0
        %4869 = vmatprep.subr.mxu0 0.0
        %4870 = vmatpush1.msra.mxu0 0.0
        %4871 = vmatprep.subr.mxu0 0.0
        %4872 = vmatpush1.msra.mxu0 0.0
        %4873 = vmatprep.subr.mxu0 0.0
        %4874 = vmatpush1.msra.mxu0 0.0
        %4875 = vmatprep.subr.mxu0 0.0
        %4876 = vmatpush1.msra.mxu0 0.0
        %4877 = vmatprep.subr.mxu0 0.0
        %4878 = vmatpush1.msra.mxu0 0.0
        %4879 = vmatprep.subr.mxu0 0.0
        %4880 = vmatpush1.msra.mxu0 0.0
        %4881 = vmatprep.subr.mxu0 0.0
        %4882 = vmatpush1.msra.mxu0 0.0
        %4883 = vmatprep.subr.mxu0 0.0
        %4884 = vmatpush1.msra.mxu0 0.0
        %4885 = vmatprep.subr.mxu0 0.0
        %4886 = vmatpush1.msra.mxu0 0.0
        %4887 = vmatprep.subr.mxu0 0.0
        %4888 = vmatpush1.msra.mxu0 0.0
        %4889 = vmatprep.subr.mxu0 0.0
        %4890 = vmatpush1.msra.mxu0 0.0
        %4891 = vmatprep.mubr.f32.mxu0 0.0
        %v4892 = vand.u32 %v4577, 4294901760
        %4893 = vmatmul.mubr.f32.gmra.mrb[0].mxu0 %v4892
        %v4894 = vpop.f32.mrb[0].mxu0
        %v4895 = vadd.f32 %v4694, %v4894
        %v4896 = vpop.f32.mrb[0].mxu0
        %4897 = vmatprep.mubr.f32.mxu0 0.0
        %v4898 = vand.u32 %v4578, 4294901760
        %4899 = vmatmul.mubr.f32.gmra.mrb[0].mxu0 %v4898
        %v4900 = vpop.f32.mrb[0].mxu0
        %v4901 = vadd.f32 %v4704, %v4900
        %v4902 = vpop.f32.mrb[0].mxu0
        %4903 = vmatprep.mubr.f32.mxu0 0.0
        %v4904 = vand.u32 %v4579, 4294901760
        %4905 = vmatmul.mubr.f32.gmra.mrb[0].mxu0 %v4904
        %v4906 = vpop.f32.mrb[0].mxu0
        %v4907 = vadd.f32 %v4714, %v4906
        %v4908 = vpop.f32.mrb[0].mxu0
        %4909 = vmatprep.mubr.f32.mxu0 0.0
        %v4910 = vand.u32 %v4580, 4294901760
        %4911 = vmatmul.mubr.f32.gmra.mrb[0].mxu0 %v4910
        %v4912 = vpop.f32.mrb[0].mxu0
        %v4913 = vadd.f32 %v4724, %v4912
        %v4914 = vpop.f32.mrb[0].mxu0
        %4915 = vmatprep.mubr.f32.mxu0 0.0
        %v4916 = vand.u32 %v4581, 4294901760
        %4917 = vmatmul.mubr.f32.gmra.mrb[0].mxu0 %v4916
        %v4918 = vpop.f32.mrb[0].mxu0
        %v4919 = vadd.f32 %v4734, %v4918
        %v4920 = vpop.f32.mrb[0].mxu0
        %4921 = vmatprep.mubr.f32.mxu0 0.0
        %v4922 = vand.u32 %v4582, 4294901760
        %4923 = vmatmul.mubr.f32.gmra.mrb[0].mxu0 %v4922
        %v4924 = vpop.f32.mrb[0].mxu0
        %v4925 = vadd.f32 %v4744, %v4924
        %v4926 = vpop.f32.mrb[0].mxu0
        %4927 = vdwg.mxu0
        %4928 = vmatprep.subr.mxu0 0.0
        %v4929 = vand.u32 %v4583, 4294901760
        %v4930 = vsub.f32 %v4583, %v4929
        %4931 = vmatpush1.msra.mxu0 %v4930
        %4932 = vmatprep.subr.mxu0 0.0
        %v4933 = vand.u32 %v4584, 4294901760
        %v4934 = vsub.f32 %v4584, %v4933
        %4935 = vmatpush1.msra.mxu0 %v4934
        %4936 = vmatprep.subr.mxu0 0.0
        %v4937 = vand.u32 %v4585, 4294901760
        %v4938 = vsub.f32 %v4585, %v4937
        %4939 = vmatpush1.msra.mxu0 %v4938
        %4940 = vmatprep.subr.mxu0 0.0
        %v4941 = vand.u32 %v4586, 4294901760
        %v4942 = vsub.f32 %v4586, %v4941
        %4943 = vmatpush1.msra.mxu0 %v4942
        %4944 = vmatprep.subr.mxu0 0.0
        %v4945 = vand.u32 %v4587, 4294901760
        %v4946 = vsub.f32 %v4587, %v4945
        %4947 = vmatpush1.msra.mxu0 %v4946
        %4948 = vmatprep.subr.mxu0 0.0
        %v4949 = vand.u32 %v4588, 4294901760
        %v4950 = vsub.f32 %v4588, %v4949
        %4951 = vmatpush1.msra.mxu0 %v4950
        %4952 = vmatprep.subr.mxu0 0.0
        %v4953 = vand.u32 %v4589, 4294901760
        %v4954 = vsub.f32 %v4589, %v4953
        %4955 = vmatpush1.msra.mxu0 %v4954
        %4956 = vmatprep.subr.mxu0 0.0
        %v4957 = vand.u32 %v4590, 4294901760
        %v4958 = vsub.f32 %v4590, %v4957
        %4959 = vmatpush1.msra.mxu0 %v4958
        %4960 = vmatprep.subr.mxu0 0.0
        %v4961 = vand.u32 %v4591, 4294901760
        %v4962 = vsub.f32 %v4591, %v4961
        %4963 = vmatpush1.msra.mxu0 %v4962
        %4964 = vmatprep.subr.mxu0 0.0
        %v4965 = vand.u32 %v4592, 4294901760
        %v4966 = vsub.f32 %v4592, %v4965
        %4967 = vmatpush1.msra.mxu0 %v4966
        %4968 = vmatprep.subr.mxu0 0.0
        %v4969 = vand.u32 %v4593, 4294901760
        %v4970 = vsub.f32 %v4593, %v4969
        %4971 = vmatpush1.msra.mxu0 %v4970
        %4972 = vmatprep.subr.mxu0 0.0
        %v4973 = vand.u32 %v4594, 4294901760
        %v4974 = vsub.f32 %v4594, %v4973
        %4975 = vmatpush1.msra.mxu0 %v4974
        %4976 = vmatprep.subr.mxu0 0.0
        %v4977 = vand.u32 %v4595, 4294901760
        %v4978 = vsub.f32 %v4595, %v4977
        %4979 = vmatpush1.msra.mxu0 %v4978
        %4980 = vmatprep.subr.mxu0 0.0
        %v4981 = vand.u32 %v4596, 4294901760
        %v4982 = vsub.f32 %v4596, %v4981
        %4983 = vmatpush1.msra.mxu0 %v4982
        %4984 = vmatprep.subr.mxu0 0.0
        %v4985 = vand.u32 %v4597, 4294901760
        %v4986 = vsub.f32 %v4597, %v4985
        %4987 = vmatpush1.msra.mxu0 %v4986
        %4988 = vmatprep.subr.mxu0 0.0
        %v4989 = vand.u32 %v4598, 4294901760
        %v4990 = vsub.f32 %v4598, %v4989
        %4991 = vmatpush1.msra.mxu0 %v4990
        %4992 = vmatprep.subr.mxu0 0.0
        %4993 = vmatpush1.msra.mxu0 0.0
        %4994 = vmatprep.subr.mxu0 0.0
        %4995 = vmatpush1.msra.mxu0 0.0
        %4996 = vmatprep.subr.mxu0 0.0
        %4997 = vmatpush1.msra.mxu0 0.0
        %4998 = vmatprep.subr.mxu0 0.0
        %4999 = vmatpush1.msra.mxu0 0.0
        %5000 = vmatprep.subr.mxu0 0.0
        %5001 = vmatpush1.msra.mxu0 0.0
        %5002 = vmatprep.subr.mxu0 0.0
        %5003 = vmatpush1.msra.mxu0 0.0
        %5004 = vmatprep.subr.mxu0 0.0
        %5005 = vmatpush1.msra.mxu0 0.0
        %5006 = vmatprep.subr.mxu0 0.0
        %5007 = vmatpush1.msra.mxu0 0.0
        %5008 = vmatprep.subr.mxu0 0.0
        %5009 = vmatpush1.msra.mxu0 0.0
        %5010 = vmatprep.subr.mxu0 0.0
        %5011 = vmatpush1.msra.mxu0 0.0
        %5012 = vmatprep.subr.mxu0 0.0
        %5013 = vmatpush1.msra.mxu0 0.0
        %5014 = vmatprep.subr.mxu0 0.0
        %5015 = vmatpush1.msra.mxu0 0.0
        %5016 = vmatprep.subr.mxu0 0.0
        %5017 = vmatpush1.msra.mxu0 0.0
        %5018 = vmatprep.subr.mxu0 0.0
        %5019 = vmatpush1.msra.mxu0 0.0
        %5020 = vmatprep.subr.mxu0 0.0
        %5021 = vmatpush1.msra.mxu0 0.0
        %5022 = vmatprep.subr.mxu0 0.0
        %5023 = vmatpush1.msra.mxu0 0.0
        %5024 = vmatprep.mubr.f32.mxu0 0.0
        %v5025 = vand.u32 %v4577, 4294901760
        %v5026 = vsub.f32 %v4577, %v5025
        %5027 = vmatmul.mubr.f32.gmra.mrb[0].mxu0 %v5026
        %v5028 = vpop.f32.mrb[0].mxu0
        %v5029 = vadd.f32 %v4895, %v5028
        %v5030 = vpop.f32.mrb[0].mxu0
        %5031 = vmatprep.mubr.f32.mxu0 0.0
        %v5032 = vand.u32 %v4578, 4294901760
        %v5033 = vsub.f32 %v4578, %v5032
        %5034 = vmatmul.mubr.f32.gmra.mrb[0].mxu0 %v5033
        %v5035 = vpop.f32.mrb[0].mxu0
        %v5036 = vadd.f32 %v4901, %v5035
        %v5037 = vpop.f32.mrb[0].mxu0
        %5038 = vmatprep.mubr.f32.mxu0 0.0
        %v5039 = vand.u32 %v4579, 4294901760
        %v5040 = vsub.f32 %v4579, %v5039
        %5041 = vmatmul.mubr.f32.gmra.mrb[0].mxu0 %v5040
        %v5042 = vpop.f32.mrb[0].mxu0
        %v5043 = vadd.f32 %v4907, %v5042
        %v5044 = vpop.f32.mrb[0].mxu0
        %5045 = vmatprep.mubr.f32.mxu0 0.0
        %v5046 = vand.u32 %v4580, 4294901760
        %v5047 = vsub.f32 %v4580, %v5046
        %5048 = vmatmul.mubr.f32.gmra.mrb[0].mxu0 %v5047
        %v5049 = vpop.f32.mrb[0].mxu0
        %v5050 = vadd.f32 %v4913, %v5049
        %v5051 = vpop.f32.mrb[0].mxu0
        %5052 = vmatprep.mubr.f32.mxu0 0.0
        %v5053 = vand.u32 %v4581, 4294901760
        %v5054 = vsub.f32 %v4581, %v5053
        %5055 = vmatmul.mubr.f32.gmra.mrb[0].mxu0 %v5054
        %v5056 = vpop.f32.mrb[0].mxu0
        %v5057 = vadd.f32 %v4919, %v5056
        %v5058 = vpop.f32.mrb[0].mxu0
        %5059 = vmatprep.mubr.f32.mxu0 0.0
        %v5060 = vand.u32 %v4582, 4294901760
        %v5061 = vsub.f32 %v4582, %v5060
        %5062 = vmatmul.mubr.f32.gmra.mrb[0].mxu0 %v5061
        %v5063 = vpop.f32.mrb[0].mxu0
        %v5064 = vadd.f32 %v4925, %v5063
        %v5065 = vpop.f32.mrb[0].mxu0
        %5066 = vdwg.mxu0
        %5067 = vmatprep.subr.mxu0 0.0
        %v5068 = vand.u32 %v4583, 4294901760
        %5069 = vmatpush1.msra.mxu0 %v5068
        %5070 = vmatprep.subr.mxu0 0.0
        %v5071 = vand.u32 %v4584, 4294901760
        %5072 = vmatpush1.msra.mxu0 %v5071
        %5073 = vmatprep.subr.mxu0 0.0
        %v5074 = vand.u32 %v4585, 4294901760
        %5075 = vmatpush1.msra.mxu0 %v5074
        %5076 = vmatprep.subr.mxu0 0.0
        %v5077 = vand.u32 %v4586, 4294901760
        %5078 = vmatpush1.msra.mxu0 %v5077
        %5079 = vmatprep.subr.mxu0 0.0
        %v5080 = vand.u32 %v4587, 4294901760
        %5081 = vmatpush1.msra.mxu0 %v5080
        %5082 = vmatprep.subr.mxu0 0.0
        %v5083 = vand.u32 %v4588, 4294901760
        %5084 = vmatpush1.msra.mxu0 %v5083
        %5085 = vmatprep.subr.mxu0 0.0
        %v5086 = vand.u32 %v4589, 4294901760
        %5087 = vmatpush1.msra.mxu0 %v5086
        %5088 = vmatprep.subr.mxu0 0.0
        %v5089 = vand.u32 %v4590, 4294901760
        %5090 = vmatpush1.msra.mxu0 %v5089
        %5091 = vmatprep.subr.mxu0 0.0
        %v5092 = vand.u32 %v4591, 4294901760
        %5093 = vmatpush1.msra.mxu0 %v5092
        %5094 = vmatprep.subr.mxu0 0.0
        %v5095 = vand.u32 %v4592, 4294901760
        %5096 = vmatpush1.msra.mxu0 %v5095
        %5097 = vmatprep.subr.mxu0 0.0
        %v5098 = vand.u32 %v4593, 4294901760
        %5099 = vmatpush1.msra.mxu0 %v5098
        %5100 = vmatprep.subr.mxu0 0.0
        %v5101 = vand.u32 %v4594, 4294901760
        %5102 = vmatpush1.msra.mxu0 %v5101
        %5103 = vmatprep.subr.mxu0 0.0
        %v5104 = vand.u32 %v4595, 4294901760
        %5105 = vmatpush1.msra.mxu0 %v5104
        %5106 = vmatprep.subr.mxu0 0.0
        %v5107 = vand.u32 %v4596, 4294901760
        %5108 = vmatpush1.msra.mxu0 %v5107
        %5109 = vmatprep.subr.mxu0 0.0
        %v5110 = vand.u32 %v4597, 4294901760
        %5111 = vmatpush1.msra.mxu0 %v5110
        %5112 = vmatprep.subr.mxu0 0.0
        %v5113 = vand.u32 %v4598, 4294901760
        %5114 = vmatpush1.msra.mxu0 %v5113
        %5115 = vmatprep.subr.mxu0 0.0
        %5116 = vmatpush1.msra.mxu0 0.0
        %5117 = vmatprep.subr.mxu0 0.0
        %5118 = vmatpush1.msra.mxu0 0.0
        %5119 = vmatprep.subr.mxu0 0.0
        %5120 = vmatpush1.msra.mxu0 0.0
        %5121 = vmatprep.subr.mxu0 0.0
        %5122 = vmatpush1.msra.mxu0 0.0
        %5123 = vmatprep.subr.mxu0 0.0
        %5124 = vmatpush1.msra.mxu0 0.0
        %5125 = vmatprep.subr.mxu0 0.0
        %5126 = vmatpush1.msra.mxu0 0.0
        %5127 = vmatprep.subr.mxu0 0.0
        %5128 = vmatpush1.msra.mxu0 0.0
        %5129 = vmatprep.subr.mxu0 0.0
        %5130 = vmatpush1.msra.mxu0 0.0
        %5131 = vmatprep.subr.mxu0 0.0
        %5132 = vmatpush1.msra.mxu0 0.0
        %5133 = vmatprep.subr.mxu0 0.0
        %5134 = vmatpush1.msra.mxu0 0.0
        %5135 = vmatprep.subr.mxu0 0.0
        %5136 = vmatpush1.msra.mxu0 0.0
        %5137 = vmatprep.subr.mxu0 0.0
        %5138 = vmatpush1.msra.mxu0 0.0
        %5139 = vmatprep.subr.mxu0 0.0
        %5140 = vmatpush1.msra.mxu0 0.0
        %5141 = vmatprep.subr.mxu0 0.0
        %5142 = vmatpush1.msra.mxu0 0.0
        %5143 = vmatprep.subr.mxu0 0.0
        %5144 = vmatpush1.msra.mxu0 0.0
        %5145 = vmatprep.subr.mxu0 0.0
        %5146 = vmatpush1.msra.mxu0 0.0
        %5147 = vmatprep.mubr.f32.mxu0 0.0
        %v5148 = vand.u32 %v4577, 4294901760
        %v5149 = vsub.f32 %v4577, %v5148
        %v5150 = vand.u32 %v5149, 4294901760
        %5151 = vmatmul.mubr.f32.gmra.mrb[0].mxu0 %v5150
        %v5152 = vpop.f32.mrb[0].mxu0
        %v5153 = vadd.f32 %v5029, %v5152
        %v5154 = vpop.f32.mrb[0].mxu0
        %5155 = vmatprep.mubr.f32.mxu0 0.0
        %v5156 = vand.u32 %v4578, 4294901760
        %v5157 = vsub.f32 %v4578, %v5156
        %v5158 = vand.u32 %v5157, 4294901760
        %5159 = vmatmul.mubr.f32.gmra.mrb[0].mxu0 %v5158
        %v5160 = vpop.f32.mrb[0].mxu0
        %v5161 = vadd.f32 %v5036, %v5160
        %v5162 = vpop.f32.mrb[0].mxu0
        %5163 = vmatprep.mubr.f32.mxu0 0.0
        %v5164 = vand.u32 %v4579, 4294901760
        %v5165 = vsub.f32 %v4579, %v5164
        %v5166 = vand.u32 %v5165, 4294901760
        %5167 = vmatmul.mubr.f32.gmra.mrb[0].mxu0 %v5166
        %v5168 = vpop.f32.mrb[0].mxu0
        %v5169 = vadd.f32 %v5043, %v5168
        %v5170 = vpop.f32.mrb[0].mxu0
        %5171 = vmatprep.mubr.f32.mxu0 0.0
        %v5172 = vand.u32 %v4580, 4294901760
        %v5173 = vsub.f32 %v4580, %v5172
        %v5174 = vand.u32 %v5173, 4294901760
        %5175 = vmatmul.mubr.f32.gmra.mrb[0].mxu0 %v5174
        %v5176 = vpop.f32.mrb[0].mxu0
        %v5177 = vadd.f32 %v5050, %v5176
        %v5178 = vpop.f32.mrb[0].mxu0
        %5179 = vmatprep.mubr.f32.mxu0 0.0
        %v5180 = vand.u32 %v4581, 4294901760
        %v5181 = vsub.f32 %v4581, %v5180
        %v5182 = vand.u32 %v5181, 4294901760
        %5183 = vmatmul.mubr.f32.gmra.mrb[0].mxu0 %v5182
        %v5184 = vpop.f32.mrb[0].mxu0
        %v5185 = vadd.f32 %v5057, %v5184
        %v5186 = vpop.f32.mrb[0].mxu0
        %5187 = vmatprep.mubr.f32.mxu0 0.0
        %v5188 = vand.u32 %v4582, 4294901760
        %v5189 = vsub.f32 %v4582, %v5188
        %v5190 = vand.u32 %v5189, 4294901760
        %5191 = vmatmul.mubr.f32.gmra.mrb[0].mxu0 %v5190
        %v5192 = vpop.f32.mrb[0].mxu0
        %v5193 = vadd.f32 %v5064, %v5192
        %v5194 = vpop.f32.mrb[0].mxu0
        %5195 = vdwg.mxu0
        %5196 = vmatprep.subr.mxu0 0.0
        %v5197 = vand.u32 %v4583, 4294901760
        %v5198 = vsub.f32 %v4583, %v5197
        %v5199 = vand.u32 %v5198, 4294901760
        %5200 = vmatpush1.msra.mxu0 %v5199
        %5201 = vmatprep.subr.mxu0 0.0
        %v5202 = vand.u32 %v4584, 4294901760
        %v5203 = vsub.f32 %v4584, %v5202
        %v5204 = vand.u32 %v5203, 4294901760
        %5205 = vmatpush1.msra.mxu0 %v5204
        %5206 = vmatprep.subr.mxu0 0.0
        %v5207 = vand.u32 %v4585, 4294901760
        %v5208 = vsub.f32 %v4585, %v5207
        %v5209 = vand.u32 %v5208, 4294901760
        %5210 = vmatpush1.msra.mxu0 %v5209
        %5211 = vmatprep.subr.mxu0 0.0
        %v5212 = vand.u32 %v4586, 4294901760
        %v5213 = vsub.f32 %v4586, %v5212
        %v5214 = vand.u32 %v5213, 4294901760
        %5215 = vmatpush1.msra.mxu0 %v5214
        %5216 = vmatprep.subr.mxu0 0.0
        %v5217 = vand.u32 %v4587, 4294901760
        %v5218 = vsub.f32 %v4587, %v5217
        %v5219 = vand.u32 %v5218, 4294901760
        %5220 = vmatpush1.msra.mxu0 %v5219
        %5221 = vmatprep.subr.mxu0 0.0
        %v5222 = vand.u32 %v4588, 4294901760
        %v5223 = vsub.f32 %v4588, %v5222
        %v5224 = vand.u32 %v5223, 4294901760
        %5225 = vmatpush1.msra.mxu0 %v5224
        %5226 = vmatprep.subr.mxu0 0.0
        %v5227 = vand.u32 %v4589, 4294901760
        %v5228 = vsub.f32 %v4589, %v5227
        %v5229 = vand.u32 %v5228, 4294901760
        %5230 = vmatpush1.msra.mxu0 %v5229
        %5231 = vmatprep.subr.mxu0 0.0
        %v5232 = vand.u32 %v4590, 4294901760
        %v5233 = vsub.f32 %v4590, %v5232
        %v5234 = vand.u32 %v5233, 4294901760
        %5235 = vmatpush1.msra.mxu0 %v5234
        %5236 = vmatprep.subr.mxu0 0.0
        %v5237 = vand.u32 %v4591, 4294901760
        %v5238 = vsub.f32 %v4591, %v5237
        %v5239 = vand.u32 %v5238, 4294901760
        %5240 = vmatpush1.msra.mxu0 %v5239
        %5241 = vmatprep.subr.mxu0 0.0
        %v5242 = vand.u32 %v4592, 4294901760
        %v5243 = vsub.f32 %v4592, %v5242
        %v5244 = vand.u32 %v5243, 4294901760
        %5245 = vmatpush1.msra.mxu0 %v5244
        %5246 = vmatprep.subr.mxu0 0.0
        %v5247 = vand.u32 %v4593, 4294901760
        %v5248 = vsub.f32 %v4593, %v5247
        %v5249 = vand.u32 %v5248, 4294901760
        %5250 = vmatpush1.msra.mxu0 %v5249
        %5251 = vmatprep.subr.mxu0 0.0
        %v5252 = vand.u32 %v4594, 4294901760
        %v5253 = vsub.f32 %v4594, %v5252
        %v5254 = vand.u32 %v5253, 4294901760
        %5255 = vmatpush1.msra.mxu0 %v5254
        %5256 = vmatprep.subr.mxu0 0.0
        %v5257 = vand.u32 %v4595, 4294901760
        %v5258 = vsub.f32 %v4595, %v5257
        %v5259 = vand.u32 %v5258, 4294901760
        %5260 = vmatpush1.msra.mxu0 %v5259
        %5261 = vmatprep.subr.mxu0 0.0
        %v5262 = vand.u32 %v4596, 4294901760
        %v5263 = vsub.f32 %v4596, %v5262
        %v5264 = vand.u32 %v5263, 4294901760
        %5265 = vmatpush1.msra.mxu0 %v5264
        %5266 = vmatprep.subr.mxu0 0.0
        %v5267 = vand.u32 %v4597, 4294901760
        %v5268 = vsub.f32 %v4597, %v5267
        %v5269 = vand.u32 %v5268, 4294901760
        %5270 = vmatpush1.msra.mxu0 %v5269
        %5271 = vmatprep.subr.mxu0 0.0
        %v5272 = vand.u32 %v4598, 4294901760
        %v5273 = vsub.f32 %v4598, %v5272
        %v5274 = vand.u32 %v5273, 4294901760
        %5275 = vmatpush1.msra.mxu0 %v5274
        %5276 = vmatprep.subr.mxu0 0.0
        %5277 = vmatpush1.msra.mxu0 0.0
        %5278 = vmatprep.subr.mxu0 0.0
        %5279 = vmatpush1.msra.mxu0 0.0
        %5280 = vmatprep.subr.mxu0 0.0
        %5281 = vmatpush1.msra.mxu0 0.0
        %5282 = vmatprep.subr.mxu0 0.0
        %5283 = vmatpush1.msra.mxu0 0.0
        %5284 = vmatprep.subr.mxu0 0.0
        %5285 = vmatpush1.msra.mxu0 0.0
        %5286 = vmatprep.subr.mxu0 0.0
        %5287 = vmatpush1.msra.mxu0 0.0
        %5288 = vmatprep.subr.mxu0 0.0
        %5289 = vmatpush1.msra.mxu0 0.0
        %5290 = vmatprep.subr.mxu0 0.0
        %5291 = vmatpush1.msra.mxu0 0.0
        %5292 = vmatprep.subr.mxu0 0.0
        %5293 = vmatpush1.msra.mxu0 0.0
        %5294 = vmatprep.subr.mxu0 0.0
        %5295 = vmatpush1.msra.mxu0 0.0
        %5296 = vmatprep.subr.mxu0 0.0
        %5297 = vmatpush1.msra.mxu0 0.0
        %5298 = vmatprep.subr.mxu0 0.0
        %5299 = vmatpush1.msra.mxu0 0.0
        %5300 = vmatprep.subr.mxu0 0.0
        %5301 = vmatpush1.msra.mxu0 0.0
        %5302 = vmatprep.subr.mxu0 0.0
        %5303 = vmatpush1.msra.mxu0 0.0
        %5304 = vmatprep.subr.mxu0 0.0
        %5305 = vmatpush1.msra.mxu0 0.0
        %5306 = vmatprep.subr.mxu0 0.0
        %5307 = vmatpush1.msra.mxu0 0.0
        %5308 = vmatprep.mubr.f32.mxu0 0.0
        %v5309 = vand.u32 %v4577, 4294901760
        %5310 = vmatmul.mubr.f32.gmra.mrb[0].mxu0 %v5309
        %v5311 = vpop.f32.mrb[0].mxu0
        %v5312 = vadd.f32 %v5153, %v5311
        %v5313 = vpop.f32.mrb[0].mxu0
        %5314 = vmatprep.mubr.f32.mxu0 0.0
        %v5315 = vand.u32 %v4578, 4294901760
        %5316 = vmatmul.mubr.f32.gmra.mrb[0].mxu0 %v5315
        %v5317 = vpop.f32.mrb[0].mxu0
        %v5318 = vadd.f32 %v5161, %v5317
        %v5319 = vpop.f32.mrb[0].mxu0
        %5320 = vmatprep.mubr.f32.mxu0 0.0
        %v5321 = vand.u32 %v4579, 4294901760
        %5322 = vmatmul.mubr.f32.gmra.mrb[0].mxu0 %v5321
        %v5323 = vpop.f32.mrb[0].mxu0
        %v5324 = vadd.f32 %v5169, %v5323
        %v5325 = vpop.f32.mrb[0].mxu0
        %5326 = vmatprep.mubr.f32.mxu0 0.0
        %v5327 = vand.u32 %v4580, 4294901760
        %5328 = vmatmul.mubr.f32.gmra.mrb[0].mxu0 %v5327
        %v5329 = vpop.f32.mrb[0].mxu0
        %v5330 = vadd.f32 %v5177, %v5329
        %v5331 = vpop.f32.mrb[0].mxu0
        %5332 = vmatprep.mubr.f32.mxu0 0.0
        %v5333 = vand.u32 %v4581, 4294901760
        %5334 = vmatmul.mubr.f32.gmra.mrb[0].mxu0 %v5333
        %v5335 = vpop.f32.mrb[0].mxu0
        %v5336 = vadd.f32 %v5185, %v5335
        %v5337 = vpop.f32.mrb[0].mxu0
        %5338 = vmatprep.mubr.f32.mxu0 0.0
        %v5339 = vand.u32 %v4582, 4294901760
        %5340 = vmatmul.mubr.f32.gmra.mrb[0].mxu0 %v5339
        %v5341 = vpop.f32.mrb[0].mxu0
        %v5342 = vadd.f32 %v5193, %v5341
        %v5343 = vpop.f32.mrb[0].mxu0
        %5344 = vdwg.mxu0
        %5345 = vmatprep.subr.mxu0 0.0
        %v5346 = vand.u32 %v4583, 4294901760
        %5347 = vmatpush1.msra.mxu0 %v5346
        %5348 = vmatprep.subr.mxu0 0.0
        %v5349 = vand.u32 %v4584, 4294901760
        %5350 = vmatpush1.msra.mxu0 %v5349
        %5351 = vmatprep.subr.mxu0 0.0
        %v5352 = vand.u32 %v4585, 4294901760
        %5353 = vmatpush1.msra.mxu0 %v5352
        %5354 = vmatprep.subr.mxu0 0.0
        %v5355 = vand.u32 %v4586, 4294901760
        %5356 = vmatpush1.msra.mxu0 %v5355
        %5357 = vmatprep.subr.mxu0 0.0
        %v5358 = vand.u32 %v4587, 4294901760
        %5359 = vmatpush1.msra.mxu0 %v5358
        %5360 = vmatprep.subr.mxu0 0.0
        %v5361 = vand.u32 %v4588, 4294901760
        %5362 = vmatpush1.msra.mxu0 %v5361
        %5363 = vmatprep.subr.mxu0 0.0
        %v5364 = vand.u32 %v4589, 4294901760
        %5365 = vmatpush1.msra.mxu0 %v5364
        %5366 = vmatprep.subr.mxu0 0.0
        %v5367 = vand.u32 %v4590, 4294901760
        %5368 = vmatpush1.msra.mxu0 %v5367
        %5369 = vmatprep.subr.mxu0 0.0
        %v5370 = vand.u32 %v4591, 4294901760
        %5371 = vmatpush1.msra.mxu0 %v5370
        %5372 = vmatprep.subr.mxu0 0.0
        %v5373 = vand.u32 %v4592, 4294901760
        %5374 = vmatpush1.msra.mxu0 %v5373
        %5375 = vmatprep.subr.mxu0 0.0
        %v5376 = vand.u32 %v4593, 4294901760
        %5377 = vmatpush1.msra.mxu0 %v5376
        %5378 = vmatprep.subr.mxu0 0.0
        %v5379 = vand.u32 %v4594, 4294901760
        %5380 = vmatpush1.msra.mxu0 %v5379
        %5381 = vmatprep.subr.mxu0 0.0
        %v5382 = vand.u32 %v4595, 4294901760
        %5383 = vmatpush1.msra.mxu0 %v5382
        %5384 = vmatprep.subr.mxu0 0.0
        %v5385 = vand.u32 %v4596, 4294901760
        %5386 = vmatpush1.msra.mxu0 %v5385
        %5387 = vmatprep.subr.mxu0 0.0
        %v5388 = vand.u32 %v4597, 4294901760
        %5389 = vmatpush1.msra.mxu0 %v5388
        %5390 = vmatprep.subr.mxu0 0.0
        %v5391 = vand.u32 %v4598, 4294901760
        %5392 = vmatpush1.msra.mxu0 %v5391
        %5393 = vmatprep.subr.mxu0 0.0
        %5394 = vmatpush1.msra.mxu0 0.0
        %5395 = vmatprep.subr.mxu0 0.0
        %5396 = vmatpush1.msra.mxu0 0.0
        %5397 = vmatprep.subr.mxu0 0.0
        %5398 = vmatpush1.msra.mxu0 0.0
        %5399 = vmatprep.subr.mxu0 0.0
        %5400 = vmatpush1.msra.mxu0 0.0
        %5401 = vmatprep.subr.mxu0 0.0
        %5402 = vmatpush1.msra.mxu0 0.0
        %5403 = vmatprep.subr.mxu0 0.0
        %5404 = vmatpush1.msra.mxu0 0.0
        %5405 = vmatprep.subr.mxu0 0.0
        %5406 = vmatpush1.msra.mxu0 0.0
        %5407 = vmatprep.subr.mxu0 0.0
        %5408 = vmatpush1.msra.mxu0 0.0
        %5409 = vmatprep.subr.mxu0 0.0
        %5410 = vmatpush1.msra.mxu0 0.0
        %5411 = vmatprep.subr.mxu0 0.0
        %5412 = vmatpush1.msra.mxu0 0.0
        %5413 = vmatprep.subr.mxu0 0.0
        %5414 = vmatpush1.msra.mxu0 0.0
        %5415 = vmatprep.subr.mxu0 0.0
        %5416 = vmatpush1.msra.mxu0 0.0
        %5417 = vmatprep.subr.mxu0 0.0
        %5418 = vmatpush1.msra.mxu0 0.0
        %5419 = vmatprep.subr.mxu0 0.0
        %5420 = vmatpush1.msra.mxu0 0.0
        %5421 = vmatprep.subr.mxu0 0.0
        %5422 = vmatpush1.msra.mxu0 0.0
        %5423 = vmatprep.subr.mxu0 0.0
        %5424 = vmatpush1.msra.mxu0 0.0
        %5425 = vmatprep.mubr.f32.mxu0 0.0
        %v5426 = vand.u32 %v4577, 4294901760
        %5427 = vmatmul.mubr.f32.gmra.mrb[0].mxu0 %v5426
        %v5428 = vpop.f32.mrb[0].mxu0
        %v5429 = vadd.f32 %v5312, %v5428
        %v5430 = vpop.f32.mrb[0].mxu0
        %5431 = vmatprep.mubr.f32.mxu0 0.0
        %v5432 = vand.u32 %v4578, 4294901760
        %5433 = vmatmul.mubr.f32.gmra.mrb[0].mxu0 %v5432
        %v5434 = vpop.f32.mrb[0].mxu0
        %v5435 = vadd.f32 %v5318, %v5434
        %v5436 = vpop.f32.mrb[0].mxu0
        %5437 = vmatprep.mubr.f32.mxu0 0.0
        %v5438 = vand.u32 %v4579, 4294901760
        %5439 = vmatmul.mubr.f32.gmra.mrb[0].mxu0 %v5438
        %v5440 = vpop.f32.mrb[0].mxu0
        %v5441 = vadd.f32 %v5324, %v5440
        %v5442 = vpop.f32.mrb[0].mxu0
        %5443 = vmatprep.mubr.f32.mxu0 0.0
        %v5444 = vand.u32 %v4580, 4294901760
        %5445 = vmatmul.mubr.f32.gmra.mrb[0].mxu0 %v5444
        %v5446 = vpop.f32.mrb[0].mxu0
        %v5447 = vadd.f32 %v5330, %v5446
        %v5448 = vpop.f32.mrb[0].mxu0
        %5449 = vmatprep.mubr.f32.mxu0 0.0
        %v5450 = vand.u32 %v4581, 4294901760
        %5451 = vmatmul.mubr.f32.gmra.mrb[0].mxu0 %v5450
        %v5452 = vpop.f32.mrb[0].mxu0
        %v5453 = vadd.f32 %v5336, %v5452
        %v5454 = vpop.f32.mrb[0].mxu0
        %5455 = vmatprep.mubr.f32.mxu0 0.0
        %v5456 = vand.u32 %v4582, 4294901760
        %5457 = vmatmul.mubr.f32.gmra.mrb[0].mxu0 %v5456
        %v5458 = vpop.f32.mrb[0].mxu0
        %v5459 = vadd.f32 %v5342, %v5458
        %v5460 = vpop.f32.mrb[0].mxu0
        %5461 = vdwg.mxu0
        %v5462 = vld [vmem:[%s496] sm:$0x1]
        %v5463 = vlaneseq
        %v5464 = vshrl.u32 %v5463, 7
        %v5465 = vsub.s32 0, %v5464
        %v5466 = vrot.slane %v5462, %v5465
        %vm5467 = vcmp.eq.s32.totalorder %v521, %v5466
        %vm5468 = vcmp.eq.s32.totalorder %v522, %v5466
        %vm5469 = vcmp.eq.s32.totalorder %v523, %v5466
        %vm5470 = vcmp.eq.s32.totalorder %v524, %v5466
        %v5471 = vsel %vm5467, 1, 0
        %v5472 = vsel %vm5468, 1, 0
        %v5473 = vsel %vm5469, 1, 0
        %v5474 = vsel %vm5470, 1, 0
        %v5475 = vcvt.s32.f32 %v5471
        %v5476 = vcvt.s32.f32 %v5472
        %v5477 = vcvt.s32.f32 %v5473
        %v5478 = vcvt.s32.f32 %v5474
        %vm5479 = vcmask 392192
        %v5481 = vsel %vm5479, %v5475, 0
        %v5484 = vsel %vm5479, %v5476, 0
        %v5487 = vsel %vm5479, %v5477, 0
        %v5490 = vsel %vm5479, %v5478, 0
        %5492 = vmatprep.subr.mxu0 0.0
        %v5493 = vand.u32 %v5429, 4294901760
        %5494 = vmatpush1.msra.mxu0 %v5493
        %5495 = vmatprep.subr.mxu0 0.0
        %v5496 = vand.u32 %v5435, 4294901760
        %5497 = vmatpush1.msra.mxu0 %v5496
        %5498 = vmatprep.subr.mxu0 0.0
        %v5499 = vand.u32 %v5441, 4294901760
        %5500 = vmatpush1.msra.mxu0 %v5499
        %5501 = vmatprep.subr.mxu0 0.0
        %v5502 = vand.u32 %v5447, 4294901760
        %5503 = vmatpush1.msra.mxu0 %v5502
        %5504 = vmatprep.subr.mxu0 0.0
        %v5505 = vand.u32 %v5453, 4294901760
        %5506 = vmatpush1.msra.mxu0 %v5505
        %5507 = vmatprep.subr.mxu0 0.0
        %v5508 = vand.u32 %v5459, 4294901760
        %5509 = vmatpush1.msra.mxu0 %v5508
        %5510 = vmatprep.subr.mxu0 0.0
        %5511 = vmatpush1.msra.mxu0 0.0
        %5512 = vmatprep.subr.mxu0 0.0
        %5513 = vmatpush1.msra.mxu0 0.0
        %5514 = vmatprep.subr.mxu0 0.0
        %5515 = vmatpush1.msra.mxu0 0.0
        %5516 = vmatprep.subr.mxu0 0.0
        %5517 = vmatpush1.msra.mxu0 0.0
        %5518 = vmatprep.subr.mxu0 0.0
        %5519 = vmatpush1.msra.mxu0 0.0
        %5520 = vmatprep.subr.mxu0 0.0
        %5521 = vmatpush1.msra.mxu0 0.0
        %5522 = vmatprep.subr.mxu0 0.0
        %5523 = vmatpush1.msra.mxu0 0.0
        %5524 = vmatprep.subr.mxu0 0.0
        %5525 = vmatpush1.msra.mxu0 0.0
        %5526 = vmatprep.subr.mxu0 0.0
        %5527 = vmatpush1.msra.mxu0 0.0
        %5528 = vmatprep.subr.mxu0 0.0
        %5529 = vmatpush1.msra.mxu0 0.0
        %5530 = vmatprep.subr.mxu0 0.0
        %5531 = vmatpush1.msra.mxu0 0.0
        %5532 = vmatprep.subr.mxu0 0.0
        %5533 = vmatpush1.msra.mxu0 0.0
        %5534 = vmatprep.subr.mxu0 0.0
        %5535 = vmatpush1.msra.mxu0 0.0
        %5536 = vmatprep.subr.mxu0 0.0
        %5537 = vmatpush1.msra.mxu0 0.0
        %5538 = vmatprep.subr.mxu0 0.0
        %5539 = vmatpush1.msra.mxu0 0.0
        %5540 = vmatprep.subr.mxu0 0.0
        %5541 = vmatpush1.msra.mxu0 0.0
        %5542 = vmatprep.subr.mxu0 0.0
        %5543 = vmatpush1.msra.mxu0 0.0
        %5544 = vmatprep.subr.mxu0 0.0
        %5545 = vmatpush1.msra.mxu0 0.0
        %5546 = vmatprep.subr.mxu0 0.0
        %5547 = vmatpush1.msra.mxu0 0.0
        %5548 = vmatprep.subr.mxu0 0.0
        %5549 = vmatpush1.msra.mxu0 0.0
        %5550 = vmatprep.subr.mxu0 0.0
        %5551 = vmatpush1.msra.mxu0 0.0
        %5552 = vmatprep.subr.mxu0 0.0
        %5553 = vmatpush1.msra.mxu0 0.0
        %5554 = vmatprep.subr.mxu0 0.0
        %5555 = vmatpush1.msra.mxu0 0.0
        %5556 = vmatprep.subr.mxu0 0.0
        %5557 = vmatpush1.msra.mxu0 0.0
        %5558 = vmatprep.subr.mxu0 0.0
        %5559 = vmatpush1.msra.mxu0 0.0
        %5560 = vmatprep.subr.mxu0 0.0
        %5561 = vmatpush1.msra.mxu0 0.0
        %5562 = vmatprep.mubr.f32.mxu0 0.0
        %v5563 = vand.u32 %v5481, 4294901760
        %v5564 = vsub.f32 %v5481, %v5563
        %v5565 = vand.u32 %v5564, 4294901760
        %v5566 = vsub.f32 %v5564, %v5565
        %v5567 = vand.u32 %v5566, 4294901760
        %5568 = vmatmul.mubr.f32.gmra.mrb[0].mxu0 %v5567
        %v5569 = vpop.f32.mrb[0].mxu0
        %v5570 = vadd.f32 0.0, %v5569
        %v5571 = vpop.f32.mrb[0].mxu0
        %5572 = vmatprep.mubr.f32.mxu0 0.0
        %v5573 = vand.u32 %v5484, 4294901760
        %v5574 = vsub.f32 %v5484, %v5573
        %v5575 = vand.u32 %v5574, 4294901760
        %v5576 = vsub.f32 %v5574, %v5575
        %v5577 = vand.u32 %v5576, 4294901760
        %5578 = vmatmul.mubr.f32.gmra.mrb[0].mxu0 %v5577
        %v5579 = vpop.f32.mrb[0].mxu0
        %v5580 = vadd.f32 0.0, %v5579
        %v5581 = vpop.f32.mrb[0].mxu0
        %5582 = vmatprep.mubr.f32.mxu0 0.0
        %v5583 = vand.u32 %v5487, 4294901760
        %v5584 = vsub.f32 %v5487, %v5583
        %v5585 = vand.u32 %v5584, 4294901760
        %v5586 = vsub.f32 %v5584, %v5585
        %v5587 = vand.u32 %v5586, 4294901760
        %5588 = vmatmul.mubr.f32.gmra.mrb[0].mxu0 %v5587
        %v5589 = vpop.f32.mrb[0].mxu0
        %v5590 = vadd.f32 0.0, %v5589
        %v5591 = vpop.f32.mrb[0].mxu0
        %5592 = vmatprep.mubr.f32.mxu0 0.0
        %v5593 = vand.u32 %v5490, 4294901760
        %v5594 = vsub.f32 %v5490, %v5593
        %v5595 = vand.u32 %v5594, 4294901760
        %v5596 = vsub.f32 %v5594, %v5595
        %v5597 = vand.u32 %v5596, 4294901760
        %5598 = vmatmul.mubr.f32.gmra.mrb[0].mxu0 %v5597
        %v5599 = vpop.f32.mrb[0].mxu0
        %v5600 = vadd.f32 0.0, %v5599
        %v5601 = vpop.f32.mrb[0].mxu0
        %5602 = vdwg.mxu0
        %5603 = vmatprep.subr.mxu0 0.0
        %v5604 = vand.u32 %v5429, 4294901760
        %v5605 = vsub.f32 %v5429, %v5604
        %v5606 = vand.u32 %v5605, 4294901760
        %v5607 = vsub.f32 %v5605, %v5606
        %v5608 = vand.u32 %v5607, 4294901760
        %5609 = vmatpush1.msra.mxu0 %v5608
        %5610 = vmatprep.subr.mxu0 0.0
        %v5611 = vand.u32 %v5435, 4294901760
        %v5612 = vsub.f32 %v5435, %v5611
        %v5613 = vand.u32 %v5612, 4294901760
        %v5614 = vsub.f32 %v5612, %v5613
        %v5615 = vand.u32 %v5614, 4294901760
        %5616 = vmatpush1.msra.mxu0 %v5615
        %5617 = vmatprep.subr.mxu0 0.0
        %v5618 = vand.u32 %v5441, 4294901760
        %v5619 = vsub.f32 %v5441, %v5618
        %v5620 = vand.u32 %v5619, 4294901760
        %v5621 = vsub.f32 %v5619, %v5620
        %v5622 = vand.u32 %v5621, 4294901760
        %5623 = vmatpush1.msra.mxu0 %v5622
        %5624 = vmatprep.subr.mxu0 0.0
        %v5625 = vand.u32 %v5447, 4294901760
        %v5626 = vsub.f32 %v5447, %v5625
        %v5627 = vand.u32 %v5626, 4294901760
        %v5628 = vsub.f32 %v5626, %v5627
        %v5629 = vand.u32 %v5628, 4294901760
        %5630 = vmatpush1.msra.mxu0 %v5629
        %5631 = vmatprep.subr.mxu0 0.0
        %v5632 = vand.u32 %v5453, 4294901760
        %v5633 = vsub.f32 %v5453, %v5632
        %v5634 = vand.u32 %v5633, 4294901760
        %v5635 = vsub.f32 %v5633, %v5634
        %v5636 = vand.u32 %v5635, 4294901760
        %5637 = vmatpush1.msra.mxu0 %v5636
        %5638 = vmatprep.subr.mxu0 0.0
        %v5639 = vand.u32 %v5459, 4294901760
        %v5640 = vsub.f32 %v5459, %v5639
        %v5641 = vand.u32 %v5640, 4294901760
        %v5642 = vsub.f32 %v5640, %v5641
        %v5643 = vand.u32 %v5642, 4294901760
        %5644 = vmatpush1.msra.mxu0 %v5643
        %5645 = vmatprep.subr.mxu0 0.0
        %5646 = vmatpush1.msra.mxu0 0.0
        %5647 = vmatprep.subr.mxu0 0.0
        %5648 = vmatpush1.msra.mxu0 0.0
        %5649 = vmatprep.subr.mxu0 0.0
        %5650 = vmatpush1.msra.mxu0 0.0
        %5651 = vmatprep.subr.mxu0 0.0
        %5652 = vmatpush1.msra.mxu0 0.0
        %5653 = vmatprep.subr.mxu0 0.0
        %5654 = vmatpush1.msra.mxu0 0.0
        %5655 = vmatprep.subr.mxu0 0.0
        %5656 = vmatpush1.msra.mxu0 0.0
        %5657 = vmatprep.subr.mxu0 0.0
        %5658 = vmatpush1.msra.mxu0 0.0
        %5659 = vmatprep.subr.mxu0 0.0
        %5660 = vmatpush1.msra.mxu0 0.0
        %5661 = vmatprep.subr.mxu0 0.0
        %5662 = vmatpush1.msra.mxu0 0.0
        %5663 = vmatprep.subr.mxu0 0.0
        %5664 = vmatpush1.msra.mxu0 0.0
        %5665 = vmatprep.subr.mxu0 0.0
        %5666 = vmatpush1.msra.mxu0 0.0
        %5667 = vmatprep.subr.mxu0 0.0
        %5668 = vmatpush1.msra.mxu0 0.0
        %5669 = vmatprep.subr.mxu0 0.0
        %5670 = vmatpush1.msra.mxu0 0.0
        %5671 = vmatprep.subr.mxu0 0.0
        %5672 = vmatpush1.msra.mxu0 0.0
        %5673 = vmatprep.subr.mxu0 0.0
        %5674 = vmatpush1.msra.mxu0 0.0
        %5675 = vmatprep.subr.mxu0 0.0
        %5676 = vmatpush1.msra.mxu0 0.0
        %5677 = vmatprep.subr.mxu0 0.0
        %5678 = vmatpush1.msra.mxu0 0.0
        %5679 = vmatprep.subr.mxu0 0.0
        %5680 = vmatpush1.msra.mxu0 0.0
        %5681 = vmatprep.subr.mxu0 0.0
        %5682 = vmatpush1.msra.mxu0 0.0
        %5683 = vmatprep.subr.mxu0 0.0
        %5684 = vmatpush1.msra.mxu0 0.0
        %5685 = vmatprep.subr.mxu0 0.0
        %5686 = vmatpush1.msra.mxu0 0.0
        %5687 = vmatprep.subr.mxu0 0.0
        %5688 = vmatpush1.msra.mxu0 0.0
        %5689 = vmatprep.subr.mxu0 0.0
        %5690 = vmatpush1.msra.mxu0 0.0
        %5691 = vmatprep.subr.mxu0 0.0
        %5692 = vmatpush1.msra.mxu0 0.0
        %5693 = vmatprep.subr.mxu0 0.0
        %5694 = vmatpush1.msra.mxu0 0.0
        %5695 = vmatprep.subr.mxu0 0.0
        %5696 = vmatpush1.msra.mxu0 0.0
        %5697 = vmatprep.mubr.f32.mxu0 0.0
        %v5698 = vand.u32 %v5481, 4294901760
        %5699 = vmatmul.mubr.f32.gmra.mrb[0].mxu0 %v5698
        %v5700 = vpop.f32.mrb[0].mxu0
        %v5701 = vadd.f32 %v5570, %v5700
        %v5702 = vpop.f32.mrb[0].mxu0
        %5703 = vmatprep.mubr.f32.mxu0 0.0
        %v5704 = vand.u32 %v5484, 4294901760
        %5705 = vmatmul.mubr.f32.gmra.mrb[0].mxu0 %v5704
        %v5706 = vpop.f32.mrb[0].mxu0
        %v5707 = vadd.f32 %v5580, %v5706
        %v5708 = vpop.f32.mrb[0].mxu0
        %5709 = vmatprep.mubr.f32.mxu0 0.0
        %v5710 = vand.u32 %v5487, 4294901760
        %5711 = vmatmul.mubr.f32.gmra.mrb[0].mxu0 %v5710
        %v5712 = vpop.f32.mrb[0].mxu0
        %v5713 = vadd.f32 %v5590, %v5712
        %v5714 = vpop.f32.mrb[0].mxu0
        %5715 = vmatprep.mubr.f32.mxu0 0.0
        %v5716 = vand.u32 %v5490, 4294901760
        %5717 = vmatmul.mubr.f32.gmra.mrb[0].mxu0 %v5716
        %v5718 = vpop.f32.mrb[0].mxu0
        %v5719 = vadd.f32 %v5600, %v5718
        %v5720 = vpop.f32.mrb[0].mxu0
        %5721 = vdwg.mxu0
        %5722 = vmatprep.subr.mxu0 0.0
        %v5723 = vand.u32 %v5429, 4294901760
        %v5724 = vsub.f32 %v5429, %v5723
        %5725 = vmatpush1.msra.mxu0 %v5724
        %5726 = vmatprep.subr.mxu0 0.0
        %v5727 = vand.u32 %v5435, 4294901760
        %v5728 = vsub.f32 %v5435, %v5727
        %5729 = vmatpush1.msra.mxu0 %v5728
        %5730 = vmatprep.subr.mxu0 0.0
        %v5731 = vand.u32 %v5441, 4294901760
        %v5732 = vsub.f32 %v5441, %v5731
        %5733 = vmatpush1.msra.mxu0 %v5732
        %5734 = vmatprep.subr.mxu0 0.0
        %v5735 = vand.u32 %v5447, 4294901760
        %v5736 = vsub.f32 %v5447, %v5735
        %5737 = vmatpush1.msra.mxu0 %v5736
        %5738 = vmatprep.subr.mxu0 0.0
        %v5739 = vand.u32 %v5453, 4294901760
        %v5740 = vsub.f32 %v5453, %v5739
        %5741 = vmatpush1.msra.mxu0 %v5740
        %5742 = vmatprep.subr.mxu0 0.0
        %v5743 = vand.u32 %v5459, 4294901760
        %v5744 = vsub.f32 %v5459, %v5743
        %5745 = vmatpush1.msra.mxu0 %v5744
        %5746 = vmatprep.subr.mxu0 0.0
        %5747 = vmatpush1.msra.mxu0 0.0
        %5748 = vmatprep.subr.mxu0 0.0
        %5749 = vmatpush1.msra.mxu0 0.0
        %5750 = vmatprep.subr.mxu0 0.0
        %5751 = vmatpush1.msra.mxu0 0.0
        %5752 = vmatprep.subr.mxu0 0.0
        %5753 = vmatpush1.msra.mxu0 0.0
        %5754 = vmatprep.subr.mxu0 0.0
        %5755 = vmatpush1.msra.mxu0 0.0
        %5756 = vmatprep.subr.mxu0 0.0
        %5757 = vmatpush1.msra.mxu0 0.0
        %5758 = vmatprep.subr.mxu0 0.0
        %5759 = vmatpush1.msra.mxu0 0.0
        %5760 = vmatprep.subr.mxu0 0.0
        %5761 = vmatpush1.msra.mxu0 0.0
        %5762 = vmatprep.subr.mxu0 0.0
        %5763 = vmatpush1.msra.mxu0 0.0
        %5764 = vmatprep.subr.mxu0 0.0
        %5765 = vmatpush1.msra.mxu0 0.0
        %5766 = vmatprep.subr.mxu0 0.0
        %5767 = vmatpush1.msra.mxu0 0.0
        %5768 = vmatprep.subr.mxu0 0.0
        %5769 = vmatpush1.msra.mxu0 0.0
        %5770 = vmatprep.subr.mxu0 0.0
        %5771 = vmatpush1.msra.mxu0 0.0
        %5772 = vmatprep.subr.mxu0 0.0
        %5773 = vmatpush1.msra.mxu0 0.0
        %5774 = vmatprep.subr.mxu0 0.0
        %5775 = vmatpush1.msra.mxu0 0.0
        %5776 = vmatprep.subr.mxu0 0.0
        %5777 = vmatpush1.msra.mxu0 0.0
        %5778 = vmatprep.subr.mxu0 0.0
        %5779 = vmatpush1.msra.mxu0 0.0
        %5780 = vmatprep.subr.mxu0 0.0
        %5781 = vmatpush1.msra.mxu0 0.0
        %5782 = vmatprep.subr.mxu0 0.0
        %5783 = vmatpush1.msra.mxu0 0.0
        %5784 = vmatprep.subr.mxu0 0.0
        %5785 = vmatpush1.msra.mxu0 0.0
        %5786 = vmatprep.subr.mxu0 0.0
        %5787 = vmatpush1.msra.mxu0 0.0
        %5788 = vmatprep.subr.mxu0 0.0
        %5789 = vmatpush1.msra.mxu0 0.0
        %5790 = vmatprep.subr.mxu0 0.0
        %5791 = vmatpush1.msra.mxu0 0.0
        %5792 = vmatprep.subr.mxu0 0.0
        %5793 = vmatpush1.msra.mxu0 0.0
        %5794 = vmatprep.subr.mxu0 0.0
        %5795 = vmatpush1.msra.mxu0 0.0
        %5796 = vmatprep.subr.mxu0 0.0
        %5797 = vmatpush1.msra.mxu0 0.0
        %5798 = vmatprep.mubr.f32.mxu0 0.0
        %v5799 = vand.u32 %v5481, 4294901760
        %v5800 = vsub.f32 %v5481, %v5799
        %5801 = vmatmul.mubr.f32.gmra.mrb[0].mxu0 %v5800
        %v5802 = vpop.f32.mrb[0].mxu0
        %v5803 = vadd.f32 %v5701, %v5802
        %v5804 = vpop.f32.mrb[0].mxu0
        %5805 = vmatprep.mubr.f32.mxu0 0.0
        %v5806 = vand.u32 %v5484, 4294901760
        %v5807 = vsub.f32 %v5484, %v5806
        %5808 = vmatmul.mubr.f32.gmra.mrb[0].mxu0 %v5807
        %v5809 = vpop.f32.mrb[0].mxu0
        %v5810 = vadd.f32 %v5707, %v5809
        %v5811 = vpop.f32.mrb[0].mxu0
        %5812 = vmatprep.mubr.f32.mxu0 0.0
        %v5813 = vand.u32 %v5487, 4294901760
        %v5814 = vsub.f32 %v5487, %v5813
        %5815 = vmatmul.mubr.f32.gmra.mrb[0].mxu0 %v5814
        %v5816 = vpop.f32.mrb[0].mxu0
        %v5817 = vadd.f32 %v5713, %v5816
        %v5818 = vpop.f32.mrb[0].mxu0
        %5819 = vmatprep.mubr.f32.mxu0 0.0
        %v5820 = vand.u32 %v5490, 4294901760
        %v5821 = vsub.f32 %v5490, %v5820
        %5822 = vmatmul.mubr.f32.gmra.mrb[0].mxu0 %v5821
        %v5823 = vpop.f32.mrb[0].mxu0
        %v5824 = vadd.f32 %v5719, %v5823
        %v5825 = vpop.f32.mrb[0].mxu0
        %5826 = vdwg.mxu0
        %5827 = vmatprep.subr.mxu0 0.0
        %v5828 = vand.u32 %v5429, 4294901760
        %5829 = vmatpush1.msra.mxu0 %v5828
        %5830 = vmatprep.subr.mxu0 0.0
        %v5831 = vand.u32 %v5435, 4294901760
        %5832 = vmatpush1.msra.mxu0 %v5831
        %5833 = vmatprep.subr.mxu0 0.0
        %v5834 = vand.u32 %v5441, 4294901760
        %5835 = vmatpush1.msra.mxu0 %v5834
        %5836 = vmatprep.subr.mxu0 0.0
        %v5837 = vand.u32 %v5447, 4294901760
        %5838 = vmatpush1.msra.mxu0 %v5837
        %5839 = vmatprep.subr.mxu0 0.0
        %v5840 = vand.u32 %v5453, 4294901760
        %5841 = vmatpush1.msra.mxu0 %v5840
        %5842 = vmatprep.subr.mxu0 0.0
        %v5843 = vand.u32 %v5459, 4294901760
        %5844 = vmatpush1.msra.mxu0 %v5843
        %5845 = vmatprep.subr.mxu0 0.0
        %5846 = vmatpush1.msra.mxu0 0.0
        %5847 = vmatprep.subr.mxu0 0.0
        %5848 = vmatpush1.msra.mxu0 0.0
        %5849 = vmatprep.subr.mxu0 0.0
        %5850 = vmatpush1.msra.mxu0 0.0
        %5851 = vmatprep.subr.mxu0 0.0
        %5852 = vmatpush1.msra.mxu0 0.0
        %5853 = vmatprep.subr.mxu0 0.0
        %5854 = vmatpush1.msra.mxu0 0.0
        %5855 = vmatprep.subr.mxu0 0.0
        %5856 = vmatpush1.msra.mxu0 0.0
        %5857 = vmatprep.subr.mxu0 0.0
        %5858 = vmatpush1.msra.mxu0 0.0
        %5859 = vmatprep.subr.mxu0 0.0
        %5860 = vmatpush1.msra.mxu0 0.0
        %5861 = vmatprep.subr.mxu0 0.0
        %5862 = vmatpush1.msra.mxu0 0.0
        %5863 = vmatprep.subr.mxu0 0.0
        %5864 = vmatpush1.msra.mxu0 0.0
        %5865 = vmatprep.subr.mxu0 0.0
        %5866 = vmatpush1.msra.mxu0 0.0
        %5867 = vmatprep.subr.mxu0 0.0
        %5868 = vmatpush1.msra.mxu0 0.0
        %5869 = vmatprep.subr.mxu0 0.0
        %5870 = vmatpush1.msra.mxu0 0.0
        %5871 = vmatprep.subr.mxu0 0.0
        %5872 = vmatpush1.msra.mxu0 0.0
        %5873 = vmatprep.subr.mxu0 0.0
        %5874 = vmatpush1.msra.mxu0 0.0
        %5875 = vmatprep.subr.mxu0 0.0
        %5876 = vmatpush1.msra.mxu0 0.0
        %5877 = vmatprep.subr.mxu0 0.0
        %5878 = vmatpush1.msra.mxu0 0.0
        %5879 = vmatprep.subr.mxu0 0.0
        %5880 = vmatpush1.msra.mxu0 0.0
        %5881 = vmatprep.subr.mxu0 0.0
        %5882 = vmatpush1.msra.mxu0 0.0
        %5883 = vmatprep.subr.mxu0 0.0
        %5884 = vmatpush1.msra.mxu0 0.0
        %5885 = vmatprep.subr.mxu0 0.0
        %5886 = vmatpush1.msra.mxu0 0.0
        %5887 = vmatprep.subr.mxu0 0.0
        %5888 = vmatpush1.msra.mxu0 0.0
        %5889 = vmatprep.subr.mxu0 0.0
        %5890 = vmatpush1.msra.mxu0 0.0
        %5891 = vmatprep.subr.mxu0 0.0
        %5892 = vmatpush1.msra.mxu0 0.0
        %5893 = vmatprep.subr.mxu0 0.0
        %5894 = vmatpush1.msra.mxu0 0.0
        %5895 = vmatprep.subr.mxu0 0.0
        %5896 = vmatpush1.msra.mxu0 0.0
        %5897 = vmatprep.mubr.f32.mxu0 0.0
        %v5898 = vand.u32 %v5481, 4294901760
        %v5899 = vsub.f32 %v5481, %v5898
        %v5900 = vand.u32 %v5899, 4294901760
        %5901 = vmatmul.mubr.f32.gmra.mrb[0].mxu0 %v5900
        %v5902 = vpop.f32.mrb[0].mxu0
        %v5903 = vadd.f32 %v5803, %v5902
        %v5904 = vpop.f32.mrb[0].mxu0
        %5905 = vmatprep.mubr.f32.mxu0 0.0
        %v5906 = vand.u32 %v5484, 4294901760
        %v5907 = vsub.f32 %v5484, %v5906
        %v5908 = vand.u32 %v5907, 4294901760
        %5909 = vmatmul.mubr.f32.gmra.mrb[0].mxu0 %v5908
        %v5910 = vpop.f32.mrb[0].mxu0
        %v5911 = vadd.f32 %v5810, %v5910
        %v5912 = vpop.f32.mrb[0].mxu0
        %5913 = vmatprep.mubr.f32.mxu0 0.0
        %v5914 = vand.u32 %v5487, 4294901760
        %v5915 = vsub.f32 %v5487, %v5914
        %v5916 = vand.u32 %v5915, 4294901760
        %5917 = vmatmul.mubr.f32.gmra.mrb[0].mxu0 %v5916
        %v5918 = vpop.f32.mrb[0].mxu0
        %v5919 = vadd.f32 %v5817, %v5918
        %v5920 = vpop.f32.mrb[0].mxu0
        %5921 = vmatprep.mubr.f32.mxu0 0.0
        %v5922 = vand.u32 %v5490, 4294901760
        %v5923 = vsub.f32 %v5490, %v5922
        %v5924 = vand.u32 %v5923, 4294901760
        %5925 = vmatmul.mubr.f32.gmra.mrb[0].mxu0 %v5924
        %v5926 = vpop.f32.mrb[0].mxu0
        %v5927 = vadd.f32 %v5824, %v5926
        %v5928 = vpop.f32.mrb[0].mxu0
        %5929 = vdwg.mxu0
        %5930 = vmatprep.subr.mxu0 0.0
        %v5931 = vand.u32 %v5429, 4294901760
        %v5932 = vsub.f32 %v5429, %v5931
        %v5933 = vand.u32 %v5932, 4294901760
        %5934 = vmatpush1.msra.mxu0 %v5933
        %5935 = vmatprep.subr.mxu0 0.0
        %v5936 = vand.u32 %v5435, 4294901760
        %v5937 = vsub.f32 %v5435, %v5936
        %v5938 = vand.u32 %v5937, 4294901760
        %5939 = vmatpush1.msra.mxu0 %v5938
        %5940 = vmatprep.subr.mxu0 0.0
        %v5941 = vand.u32 %v5441, 4294901760
        %v5942 = vsub.f32 %v5441, %v5941
        %v5943 = vand.u32 %v5942, 4294901760
        %5944 = vmatpush1.msra.mxu0 %v5943
        %5945 = vmatprep.subr.mxu0 0.0
        %v5946 = vand.u32 %v5447, 4294901760
        %v5947 = vsub.f32 %v5447, %v5946
        %v5948 = vand.u32 %v5947, 4294901760
        %5949 = vmatpush1.msra.mxu0 %v5948
        %5950 = vmatprep.subr.mxu0 0.0
        %v5951 = vand.u32 %v5453, 4294901760
        %v5952 = vsub.f32 %v5453, %v5951
        %v5953 = vand.u32 %v5952, 4294901760
        %5954 = vmatpush1.msra.mxu0 %v5953
        %5955 = vmatprep.subr.mxu0 0.0
        %v5956 = vand.u32 %v5459, 4294901760
        %v5957 = vsub.f32 %v5459, %v5956
        %v5958 = vand.u32 %v5957, 4294901760
        %5959 = vmatpush1.msra.mxu0 %v5958
        %5960 = vmatprep.subr.mxu0 0.0
        %5961 = vmatpush1.msra.mxu0 0.0
        %5962 = vmatprep.subr.mxu0 0.0
        %5963 = vmatpush1.msra.mxu0 0.0
        %5964 = vmatprep.subr.mxu0 0.0
        %5965 = vmatpush1.msra.mxu0 0.0
        %5966 = vmatprep.subr.mxu0 0.0
        %5967 = vmatpush1.msra.mxu0 0.0
        %5968 = vmatprep.subr.mxu0 0.0
        %5969 = vmatpush1.msra.mxu0 0.0
        %5970 = vmatprep.subr.mxu0 0.0
        %5971 = vmatpush1.msra.mxu0 0.0
        %5972 = vmatprep.subr.mxu0 0.0
        %5973 = vmatpush1.msra.mxu0 0.0
        %5974 = vmatprep.subr.mxu0 0.0
        %5975 = vmatpush1.msra.mxu0 0.0
        %5976 = vmatprep.subr.mxu0 0.0
        %5977 = vmatpush1.msra.mxu0 0.0
        %5978 = vmatprep.subr.mxu0 0.0
        %5979 = vmatpush1.msra.mxu0 0.0
        %5980 = vmatprep.subr.mxu0 0.0
        %5981 = vmatpush1.msra.mxu0 0.0
        %5982 = vmatprep.subr.mxu0 0.0
        %5983 = vmatpush1.msra.mxu0 0.0
        %5984 = vmatprep.subr.mxu0 0.0
        %5985 = vmatpush1.msra.mxu0 0.0
        %5986 = vmatprep.subr.mxu0 0.0
        %5987 = vmatpush1.msra.mxu0 0.0
        %5988 = vmatprep.subr.mxu0 0.0
        %5989 = vmatpush1.msra.mxu0 0.0
        %5990 = vmatprep.subr.mxu0 0.0
        %5991 = vmatpush1.msra.mxu0 0.0
        %5992 = vmatprep.subr.mxu0 0.0
        %5993 = vmatpush1.msra.mxu0 0.0
        %5994 = vmatprep.subr.mxu0 0.0
        %5995 = vmatpush1.msra.mxu0 0.0
        %5996 = vmatprep.subr.mxu0 0.0
        %5997 = vmatpush1.msra.mxu0 0.0
        %5998 = vmatprep.subr.mxu0 0.0
        %5999 = vmatpush1.msra.mxu0 0.0
        %6000 = vmatprep.subr.mxu0 0.0
        %6001 = vmatpush1.msra.mxu0 0.0
        %6002 = vmatprep.subr.mxu0 0.0
        %6003 = vmatpush1.msra.mxu0 0.0
        %6004 = vmatprep.subr.mxu0 0.0
        %6005 = vmatpush1.msra.mxu0 0.0
        %6006 = vmatprep.subr.mxu0 0.0
        %6007 = vmatpush1.msra.mxu0 0.0
        %6008 = vmatprep.subr.mxu0 0.0
        %6009 = vmatpush1.msra.mxu0 0.0
        %6010 = vmatprep.subr.mxu0 0.0
        %6011 = vmatpush1.msra.mxu0 0.0
        %6012 = vmatprep.mubr.f32.mxu0 0.0
        %v6013 = vand.u32 %v5481, 4294901760
        %6014 = vmatmul.mubr.f32.gmra.mrb[0].mxu0 %v6013
        %v6015 = vpop.f32.mrb[0].mxu0
        %v6016 = vadd.f32 %v5903, %v6015
        %v6017 = vpop.f32.mrb[0].mxu0
        %6018 = vmatprep.mubr.f32.mxu0 0.0
        %v6019 = vand.u32 %v5484, 4294901760
        %6020 = vmatmul.mubr.f32.gmra.mrb[0].mxu0 %v6019
        %v6021 = vpop.f32.mrb[0].mxu0
        %v6022 = vadd.f32 %v5911, %v6021
        %v6023 = vpop.f32.mrb[0].mxu0
        %6024 = vmatprep.mubr.f32.mxu0 0.0
        %v6025 = vand.u32 %v5487, 4294901760
        %6026 = vmatmul.mubr.f32.gmra.mrb[0].mxu0 %v6025
        %v6027 = vpop.f32.mrb[0].mxu0
        %v6028 = vadd.f32 %v5919, %v6027
        %v6029 = vpop.f32.mrb[0].mxu0
        %6030 = vmatprep.mubr.f32.mxu0 0.0
        %v6031 = vand.u32 %v5490, 4294901760
        %6032 = vmatmul.mubr.f32.gmra.mrb[0].mxu0 %v6031
        %v6033 = vpop.f32.mrb[0].mxu0
        %v6034 = vadd.f32 %v5927, %v6033
        %v6035 = vpop.f32.mrb[0].mxu0
        %6036 = vdwg.mxu0
        %6037 = vmatprep.subr.mxu0 0.0
        %v6038 = vand.u32 %v5429, 4294901760
        %6039 = vmatpush1.msra.mxu0 %v6038
        %6040 = vmatprep.subr.mxu0 0.0
        %v6041 = vand.u32 %v5435, 4294901760
        %6042 = vmatpush1.msra.mxu0 %v6041
        %6043 = vmatprep.subr.mxu0 0.0
        %v6044 = vand.u32 %v5441, 4294901760
        %6045 = vmatpush1.msra.mxu0 %v6044
        %6046 = vmatprep.subr.mxu0 0.0
        %v6047 = vand.u32 %v5447, 4294901760
        %6048 = vmatpush1.msra.mxu0 %v6047
        %6049 = vmatprep.subr.mxu0 0.0
        %v6050 = vand.u32 %v5453, 4294901760
        %6051 = vmatpush1.msra.mxu0 %v6050
        %6052 = vmatprep.subr.mxu0 0.0
        %v6053 = vand.u32 %v5459, 4294901760
        %6054 = vmatpush1.msra.mxu0 %v6053
        %6055 = vmatprep.subr.mxu0 0.0
        %6056 = vmatpush1.msra.mxu0 0.0
        %6057 = vmatprep.subr.mxu0 0.0
        %6058 = vmatpush1.msra.mxu0 0.0
        %6059 = vmatprep.subr.mxu0 0.0
        %6060 = vmatpush1.msra.mxu0 0.0
        %6061 = vmatprep.subr.mxu0 0.0
        %6062 = vmatpush1.msra.mxu0 0.0
        %6063 = vmatprep.subr.mxu0 0.0
        %6064 = vmatpush1.msra.mxu0 0.0
        %6065 = vmatprep.subr.mxu0 0.0
        %6066 = vmatpush1.msra.mxu0 0.0
        %6067 = vmatprep.subr.mxu0 0.0
        %6068 = vmatpush1.msra.mxu0 0.0
        %6069 = vmatprep.subr.mxu0 0.0
        %6070 = vmatpush1.msra.mxu0 0.0
        %6071 = vmatprep.subr.mxu0 0.0
        %6072 = vmatpush1.msra.mxu0 0.0
        %6073 = vmatprep.subr.mxu0 0.0
        %6074 = vmatpush1.msra.mxu0 0.0
        %6075 = vmatprep.subr.mxu0 0.0
        %6076 = vmatpush1.msra.mxu0 0.0
        %6077 = vmatprep.subr.mxu0 0.0
        %6078 = vmatpush1.msra.mxu0 0.0
        %6079 = vmatprep.subr.mxu0 0.0
        %6080 = vmatpush1.msra.mxu0 0.0
        %6081 = vmatprep.subr.mxu0 0.0
        %6082 = vmatpush1.msra.mxu0 0.0
        %6083 = vmatprep.subr.mxu0 0.0
        %6084 = vmatpush1.msra.mxu0 0.0
        %6085 = vmatprep.subr.mxu0 0.0
        %6086 = vmatpush1.msra.mxu0 0.0
        %6087 = vmatprep.subr.mxu0 0.0
        %6088 = vmatpush1.msra.mxu0 0.0
        %6089 = vmatprep.subr.mxu0 0.0
        %6090 = vmatpush1.msra.mxu0 0.0
        %6091 = vmatprep.subr.mxu0 0.0
        %6092 = vmatpush1.msra.mxu0 0.0
        %6093 = vmatprep.subr.mxu0 0.0
        %6094 = vmatpush1.msra.mxu0 0.0
        %6095 = vmatprep.subr.mxu0 0.0
        %6096 = vmatpush1.msra.mxu0 0.0
        %6097 = vmatprep.subr.mxu0 0.0
        %6098 = vmatpush1.msra.mxu0 0.0
        %6099 = vmatprep.subr.mxu0 0.0
        %6100 = vmatpush1.msra.mxu0 0.0
        %6101 = vmatprep.subr.mxu0 0.0
        %6102 = vmatpush1.msra.mxu0 0.0
        %6103 = vmatprep.subr.mxu0 0.0
        %6104 = vmatpush1.msra.mxu0 0.0
        %6105 = vmatprep.subr.mxu0 0.0
        %6106 = vmatpush1.msra.mxu0 0.0
        %6107 = vmatprep.mubr.f32.mxu0 0.0
        %v6108 = vand.u32 %v5481, 4294901760
        %6109 = vmatmul.mubr.f32.gmra.mrb[0].mxu0 %v6108
        %v6110 = vpop.f32.mrb[0].mxu0
        %v6111 = vadd.f32 %v6016, %v6110
        %v6112 = vpop.f32.mrb[0].mxu0
        %6113 = vmatprep.mubr.f32.mxu0 0.0
        %v6114 = vand.u32 %v5484, 4294901760
        %6115 = vmatmul.mubr.f32.gmra.mrb[0].mxu0 %v6114
        %v6116 = vpop.f32.mrb[0].mxu0
        %v6117 = vadd.f32 %v6022, %v6116
        %v6118 = vpop.f32.mrb[0].mxu0
        %6119 = vmatprep.mubr.f32.mxu0 0.0
        %v6120 = vand.u32 %v5487, 4294901760
        %6121 = vmatmul.mubr.f32.gmra.mrb[0].mxu0 %v6120
        %v6122 = vpop.f32.mrb[0].mxu0
        %v6123 = vadd.f32 %v6028, %v6122
        %v6124 = vpop.f32.mrb[0].mxu0
        %6125 = vmatprep.mubr.f32.mxu0 0.0
        %v6126 = vand.u32 %v5490, 4294901760
        %6127 = vmatmul.mubr.f32.gmra.mrb[0].mxu0 %v6126
        %v6128 = vpop.f32.mrb[0].mxu0
        %v6129 = vadd.f32 %v6034, %v6128
        %v6130 = vpop.f32.mrb[0].mxu0
        %6131 = vdwg.mxu0
        %v6132 = vsel %vm5479, %v5475, 0.0
        %6133 = vadd.xlane.f32.xlu0 %v6132
        %v6134 = vpop.xlane.xlu0 %6133
        %v6135 = vsel %vm5479, %v5476, 0.0
        %6136 = vadd.xlane.f32.xlu0 %v6135
        %v6137 = vpop.xlane.xlu0 %6136
        %v6138 = vsel %vm5479, %v5477, 0.0
        %6139 = vadd.xlane.f32.xlu0 %v6138
        %v6140 = vpop.xlane.xlu0 %6139
        %v6141 = vsel %vm5479, %v5478, 0.0
        %6142 = vadd.xlane.f32.xlu0 %v6141
        %v6143 = vpop.xlane.xlu0 %6142
        %v6144 = vmax.f32 %v6134, 1.0
        %v6145 = vmax.f32 %v6137, 1.0
        %v6146 = vmax.f32 %v6140, 1.0
        %v6147 = vmax.f32 %v6143, 1.0
        %v6148 = vrcp.pop %v6144
        %v6149 = vmul.f32 %v6111, %v6148
        %v6150 = vrcp.pop %v6145
        %v6151 = vmul.f32 %v6117, %v6150
        %v6152 = vrcp.pop %v6146
        %v6153 = vmul.f32 %v6123, %v6152
        %v6154 = vrcp.pop %v6147
        %v6155 = vmul.f32 %v6129, %v6154
        %v6156 = vld [vmem:[%s9] sm:$0xff]
        %v6157 = vld [vmem:[%s9 + $0x8] sm:$0xff]
        %v6158 = vld [vmem:[%s9 + $0x10] sm:$0xff]
        %v6159 = vld [vmem:[%s9 + $0x18] sm:$0xff]
        %v6160 = vld [vmem:[%s9 + $0x20] sm:$0xff]
        %v6161 = vld [vmem:[%s9 + $0x28] sm:$0xff]
        %v6162 = vld [vmem:[%s9 + $0x30] sm:$0xff]
        %v6163 = vld [vmem:[%s9 + $0x38] sm:$0xff]
        %v6164 = vld [vmem:[%s9 + $0x40] sm:$0xff]
        %v6165 = vld [vmem:[%s9 + $0x48] sm:$0xff]
        %v6166 = vld [vmem:[%s9 + $0x50] sm:$0xff]
        %v6167 = vld [vmem:[%s9 + $0x58] sm:$0xff]
        %v6168 = vld [vmem:[%s9 + $0x60] sm:$0xff]
        %v6169 = vld [vmem:[%s9 + $0x68] sm:$0xff]
        %v6170 = vld [vmem:[%s9 + $0x70] sm:$0xff]
        %v6171 = vld [vmem:[%s9 + $0x78] sm:$0xff]
        %v6173 = vsel %vm2399, %v2384, 0
        %v6176 = vsel %vm2399, %v2386, 0
        %v6179 = vsel %vm2399, %v2388, 0
        %v6182 = vsel %vm2399, %v2390, 0
        %6184 = vmatprep.subr.mxu0 0.0
        %v6185 = vand.u32 %v6168, 4294901760
        %6186 = vmatpush1.msra.mxu0 %v6185
        %6187 = vmatprep.subr.mxu0 0.0
        %v6188 = vand.u32 %v6169, 4294901760
        %6189 = vmatpush1.msra.mxu0 %v6188
        %6190 = vmatprep.subr.mxu0 0.0
        %v6191 = vand.u32 %v6170, 4294901760
        %6192 = vmatpush1.msra.mxu0 %v6191
        %6193 = vmatprep.subr.mxu0 0.0
        %v6194 = vand.u32 %v6171, 4294901760
        %6195 = vmatpush1.msra.mxu0 %v6194
        %6196 = vmatprep.subr.mxu0 0.0
        %6197 = vmatpush1.msra.mxu0 0.0
        %6198 = vmatprep.subr.mxu0 0.0
        %6199 = vmatpush1.msra.mxu0 0.0
        %6200 = vmatprep.subr.mxu0 0.0
        %6201 = vmatpush1.msra.mxu0 0.0
        %6202 = vmatprep.subr.mxu0 0.0
        %6203 = vmatpush1.msra.mxu0 0.0
        %6204 = vmatprep.subr.mxu0 0.0
        %6205 = vmatpush1.msra.mxu0 0.0
        %6206 = vmatprep.subr.mxu0 0.0
        %6207 = vmatpush1.msra.mxu0 0.0
        %6208 = vmatprep.subr.mxu0 0.0
        %6209 = vmatpush1.msra.mxu0 0.0
        %6210 = vmatprep.subr.mxu0 0.0
        %6211 = vmatpush1.msra.mxu0 0.0
        %6212 = vmatprep.subr.mxu0 0.0
        %6213 = vmatpush1.msra.mxu0 0.0
        %6214 = vmatprep.subr.mxu0 0.0
        %6215 = vmatpush1.msra.mxu0 0.0
        %6216 = vmatprep.subr.mxu0 0.0
        %6217 = vmatpush1.msra.mxu0 0.0
        %6218 = vmatprep.subr.mxu0 0.0
        %6219 = vmatpush1.msra.mxu0 0.0
        %6220 = vmatprep.subr.mxu0 0.0
        %6221 = vmatpush1.msra.mxu0 0.0
        %6222 = vmatprep.subr.mxu0 0.0
        %6223 = vmatpush1.msra.mxu0 0.0
        %6224 = vmatprep.subr.mxu0 0.0
        %6225 = vmatpush1.msra.mxu0 0.0
        %6226 = vmatprep.subr.mxu0 0.0
        %6227 = vmatpush1.msra.mxu0 0.0
        %6228 = vmatprep.subr.mxu0 0.0
        %6229 = vmatpush1.msra.mxu0 0.0
        %6230 = vmatprep.subr.mxu0 0.0
        %6231 = vmatpush1.msra.mxu0 0.0
        %6232 = vmatprep.subr.mxu0 0.0
        %6233 = vmatpush1.msra.mxu0 0.0
        %6234 = vmatprep.subr.mxu0 0.0
        %6235 = vmatpush1.msra.mxu0 0.0
        %6236 = vmatprep.subr.mxu0 0.0
        %6237 = vmatpush1.msra.mxu0 0.0
        %6238 = vmatprep.subr.mxu0 0.0
        %6239 = vmatpush1.msra.mxu0 0.0
        %6240 = vmatprep.subr.mxu0 0.0
        %6241 = vmatpush1.msra.mxu0 0.0
        %6242 = vmatprep.subr.mxu0 0.0
        %6243 = vmatpush1.msra.mxu0 0.0
        %6244 = vmatprep.subr.mxu0 0.0
        %6245 = vmatpush1.msra.mxu0 0.0
        %6246 = vmatprep.subr.mxu0 0.0
        %6247 = vmatpush1.msra.mxu0 0.0
        %6248 = vmatprep.subr.mxu0 0.0
        %6249 = vmatpush1.msra.mxu0 0.0
        %6250 = vmatprep.subr.mxu0 0.0
        %6251 = vmatpush1.msra.mxu0 0.0
        %6252 = vmatprep.mubr.f32.mxu0 0.0
        %v6253 = vand.u32 %v6173, 4294901760
        %v6254 = vsub.f32 %v6173, %v6253
        %v6255 = vand.u32 %v6254, 4294901760
        %v6256 = vsub.f32 %v6254, %v6255
        %v6257 = vand.u32 %v6256, 4294901760
        %6258 = vmatmul.mubr.f32.gmra.mrb[0].mxu0 %v6257
        %v6259 = vpop.f32.mrb[0].mxu0
        %v6260 = vadd.f32 0.0, %v6259
        %v6261 = vpop.f32.mrb[0].mxu0
        %6262 = vmatprep.mubr.f32.mxu0 0.0
        %v6263 = vand.u32 %v6176, 4294901760
        %v6264 = vsub.f32 %v6176, %v6263
        %v6265 = vand.u32 %v6264, 4294901760
        %v6266 = vsub.f32 %v6264, %v6265
        %v6267 = vand.u32 %v6266, 4294901760
        %6268 = vmatmul.mubr.f32.gmra.mrb[0].mxu0 %v6267
        %v6269 = vpop.f32.mrb[0].mxu0
        %v6270 = vadd.f32 0.0, %v6269
        %v6271 = vpop.f32.mrb[0].mxu0
        %6272 = vmatprep.mubr.f32.mxu0 0.0
        %v6273 = vand.u32 %v6179, 4294901760
        %v6274 = vsub.f32 %v6179, %v6273
        %v6275 = vand.u32 %v6274, 4294901760
        %v6276 = vsub.f32 %v6274, %v6275
        %v6277 = vand.u32 %v6276, 4294901760
        %6278 = vmatmul.mubr.f32.gmra.mrb[0].mxu0 %v6277
        %v6279 = vpop.f32.mrb[0].mxu0
        %v6280 = vadd.f32 0.0, %v6279
        %v6281 = vpop.f32.mrb[0].mxu0
        %6282 = vmatprep.mubr.f32.mxu0 0.0
        %v6283 = vand.u32 %v6182, 4294901760
        %v6284 = vsub.f32 %v6182, %v6283
        %v6285 = vand.u32 %v6284, 4294901760
        %v6286 = vsub.f32 %v6284, %v6285
        %v6287 = vand.u32 %v6286, 4294901760
        %6288 = vmatmul.mubr.f32.gmra.mrb[0].mxu0 %v6287
        %v6289 = vpop.f32.mrb[0].mxu0
        %v6290 = vadd.f32 0.0, %v6289
        %v6291 = vpop.f32.mrb[0].mxu0
        %6292 = vdwg.mxu0
        %6293 = vmatprep.subr.mxu0 0.0
        %v6294 = vand.u32 %v6168, 4294901760
        %v6295 = vsub.f32 %v6168, %v6294
        %v6296 = vand.u32 %v6295, 4294901760
        %v6297 = vsub.f32 %v6295, %v6296
        %v6298 = vand.u32 %v6297, 4294901760
        %6299 = vmatpush1.msra.mxu0 %v6298
        %6300 = vmatprep.subr.mxu0 0.0
        %v6301 = vand.u32 %v6169, 4294901760
        %v6302 = vsub.f32 %v6169, %v6301
        %v6303 = vand.u32 %v6302, 4294901760
        %v6304 = vsub.f32 %v6302, %v6303
        %v6305 = vand.u32 %v6304, 4294901760
        %6306 = vmatpush1.msra.mxu0 %v6305
        %6307 = vmatprep.subr.mxu0 0.0
        %v6308 = vand.u32 %v6170, 4294901760
        %v6309 = vsub.f32 %v6170, %v6308
        %v6310 = vand.u32 %v6309, 4294901760
        %v6311 = vsub.f32 %v6309, %v6310
        %v6312 = vand.u32 %v6311, 4294901760
        %6313 = vmatpush1.msra.mxu0 %v6312
        %6314 = vmatprep.subr.mxu0 0.0
        %v6315 = vand.u32 %v6171, 4294901760
        %v6316 = vsub.f32 %v6171, %v6315
        %v6317 = vand.u32 %v6316, 4294901760
        %v6318 = vsub.f32 %v6316, %v6317
        %v6319 = vand.u32 %v6318, 4294901760
        %6320 = vmatpush1.msra.mxu0 %v6319
        %6321 = vmatprep.subr.mxu0 0.0
        %6322 = vmatpush1.msra.mxu0 0.0
        %6323 = vmatprep.subr.mxu0 0.0
        %6324 = vmatpush1.msra.mxu0 0.0
        %6325 = vmatprep.subr.mxu0 0.0
        %6326 = vmatpush1.msra.mxu0 0.0
        %6327 = vmatprep.subr.mxu0 0.0
        %6328 = vmatpush1.msra.mxu0 0.0
        %6329 = vmatprep.subr.mxu0 0.0
        %6330 = vmatpush1.msra.mxu0 0.0
        %6331 = vmatprep.subr.mxu0 0.0
        %6332 = vmatpush1.msra.mxu0 0.0
        %6333 = vmatprep.subr.mxu0 0.0
        %6334 = vmatpush1.msra.mxu0 0.0
        %6335 = vmatprep.subr.mxu0 0.0
        %6336 = vmatpush1.msra.mxu0 0.0
        %6337 = vmatprep.subr.mxu0 0.0
        %6338 = vmatpush1.msra.mxu0 0.0
        %6339 = vmatprep.subr.mxu0 0.0
        %6340 = vmatpush1.msra.mxu0 0.0
        %6341 = vmatprep.subr.mxu0 0.0
        %6342 = vmatpush1.msra.mxu0 0.0
        %6343 = vmatprep.subr.mxu0 0.0
        %6344 = vmatpush1.msra.mxu0 0.0
        %6345 = vmatprep.subr.mxu0 0.0
        %6346 = vmatpush1.msra.mxu0 0.0
        %6347 = vmatprep.subr.mxu0 0.0
        %6348 = vmatpush1.msra.mxu0 0.0
        %6349 = vmatprep.subr.mxu0 0.0
        %6350 = vmatpush1.msra.mxu0 0.0
        %6351 = vmatprep.subr.mxu0 0.0
        %6352 = vmatpush1.msra.mxu0 0.0
        %6353 = vmatprep.subr.mxu0 0.0
        %6354 = vmatpush1.msra.mxu0 0.0
        %6355 = vmatprep.subr.mxu0 0.0
        %6356 = vmatpush1.msra.mxu0 0.0
        %6357 = vmatprep.subr.mxu0 0.0
        %6358 = vmatpush1.msra.mxu0 0.0
        %6359 = vmatprep.subr.mxu0 0.0
        %6360 = vmatpush1.msra.mxu0 0.0
        %6361 = vmatprep.subr.mxu0 0.0
        %6362 = vmatpush1.msra.mxu0 0.0
        %6363 = vmatprep.subr.mxu0 0.0
        %6364 = vmatpush1.msra.mxu0 0.0
        %6365 = vmatprep.subr.mxu0 0.0
        %6366 = vmatpush1.msra.mxu0 0.0
        %6367 = vmatprep.subr.mxu0 0.0
        %6368 = vmatpush1.msra.mxu0 0.0
        %6369 = vmatprep.subr.mxu0 0.0
        %6370 = vmatpush1.msra.mxu0 0.0
        %6371 = vmatprep.subr.mxu0 0.0
        %6372 = vmatpush1.msra.mxu0 0.0
        %6373 = vmatprep.subr.mxu0 0.0
        %6374 = vmatpush1.msra.mxu0 0.0
        %6375 = vmatprep.subr.mxu0 0.0
        %6376 = vmatpush1.msra.mxu0 0.0
        %6377 = vmatprep.mubr.f32.mxu0 0.0
        %v6378 = vand.u32 %v6173, 4294901760
        %6379 = vmatmul.mubr.f32.gmra.mrb[0].mxu0 %v6378
        %v6380 = vpop.f32.mrb[0].mxu0
        %v6381 = vadd.f32 %v6260, %v6380
        %v6382 = vpop.f32.mrb[0].mxu0
        %6383 = vmatprep.mubr.f32.mxu0 0.0
        %v6384 = vand.u32 %v6176, 4294901760
        %6385 = vmatmul.mubr.f32.gmra.mrb[0].mxu0 %v6384
        %v6386 = vpop.f32.mrb[0].mxu0
        %v6387 = vadd.f32 %v6270, %v6386
        %v6388 = vpop.f32.mrb[0].mxu0
        %6389 = vmatprep.mubr.f32.mxu0 0.0
        %v6390 = vand.u32 %v6179, 4294901760
        %6391 = vmatmul.mubr.f32.gmra.mrb[0].mxu0 %v6390
        %v6392 = vpop.f32.mrb[0].mxu0
        %v6393 = vadd.f32 %v6280, %v6392
        %v6394 = vpop.f32.mrb[0].mxu0
        %6395 = vmatprep.mubr.f32.mxu0 0.0
        %v6396 = vand.u32 %v6182, 4294901760
        %6397 = vmatmul.mubr.f32.gmra.mrb[0].mxu0 %v6396
        %v6398 = vpop.f32.mrb[0].mxu0
        %v6399 = vadd.f32 %v6290, %v6398
        %v6400 = vpop.f32.mrb[0].mxu0
        %6401 = vdwg.mxu0
        %6402 = vmatprep.subr.mxu0 0.0
        %v6403 = vand.u32 %v6168, 4294901760
        %v6404 = vsub.f32 %v6168, %v6403
        %6405 = vmatpush1.msra.mxu0 %v6404
        %6406 = vmatprep.subr.mxu0 0.0
        %v6407 = vand.u32 %v6169, 4294901760
        %v6408 = vsub.f32 %v6169, %v6407
        %6409 = vmatpush1.msra.mxu0 %v6408
        %6410 = vmatprep.subr.mxu0 0.0
        %v6411 = vand.u32 %v6170, 4294901760
        %v6412 = vsub.f32 %v6170, %v6411
        %6413 = vmatpush1.msra.mxu0 %v6412
        %6414 = vmatprep.subr.mxu0 0.0
        %v6415 = vand.u32 %v6171, 4294901760
        %v6416 = vsub.f32 %v6171, %v6415
        %6417 = vmatpush1.msra.mxu0 %v6416
        %6418 = vmatprep.subr.mxu0 0.0
        %6419 = vmatpush1.msra.mxu0 0.0
        %6420 = vmatprep.subr.mxu0 0.0
        %6421 = vmatpush1.msra.mxu0 0.0
        %6422 = vmatprep.subr.mxu0 0.0
        %6423 = vmatpush1.msra.mxu0 0.0
        %6424 = vmatprep.subr.mxu0 0.0
        %6425 = vmatpush1.msra.mxu0 0.0
        %6426 = vmatprep.subr.mxu0 0.0
        %6427 = vmatpush1.msra.mxu0 0.0
        %6428 = vmatprep.subr.mxu0 0.0
        %6429 = vmatpush1.msra.mxu0 0.0
        %6430 = vmatprep.subr.mxu0 0.0
        %6431 = vmatpush1.msra.mxu0 0.0
        %6432 = vmatprep.subr.mxu0 0.0
        %6433 = vmatpush1.msra.mxu0 0.0
        %6434 = vmatprep.subr.mxu0 0.0
        %6435 = vmatpush1.msra.mxu0 0.0
        %6436 = vmatprep.subr.mxu0 0.0
        %6437 = vmatpush1.msra.mxu0 0.0
        %6438 = vmatprep.subr.mxu0 0.0
        %6439 = vmatpush1.msra.mxu0 0.0
        %6440 = vmatprep.subr.mxu0 0.0
        %6441 = vmatpush1.msra.mxu0 0.0
        %6442 = vmatprep.subr.mxu0 0.0
        %6443 = vmatpush1.msra.mxu0 0.0
        %6444 = vmatprep.subr.mxu0 0.0
        %6445 = vmatpush1.msra.mxu0 0.0
        %6446 = vmatprep.subr.mxu0 0.0
        %6447 = vmatpush1.msra.mxu0 0.0
        %6448 = vmatprep.subr.mxu0 0.0
        %6449 = vmatpush1.msra.mxu0 0.0
        %6450 = vmatprep.subr.mxu0 0.0
        %6451 = vmatpush1.msra.mxu0 0.0
        %6452 = vmatprep.subr.mxu0 0.0
        %6453 = vmatpush1.msra.mxu0 0.0
        %6454 = vmatprep.subr.mxu0 0.0
        %6455 = vmatpush1.msra.mxu0 0.0
        %6456 = vmatprep.subr.mxu0 0.0
        %6457 = vmatpush1.msra.mxu0 0.0
        %6458 = vmatprep.subr.mxu0 0.0
        %6459 = vmatpush1.msra.mxu0 0.0
        %6460 = vmatprep.subr.mxu0 0.0
        %6461 = vmatpush1.msra.mxu0 0.0
        %6462 = vmatprep.subr.mxu0 0.0
        %6463 = vmatpush1.msra.mxu0 0.0
        %6464 = vmatprep.subr.mxu0 0.0
        %6465 = vmatpush1.msra.mxu0 0.0
        %6466 = vmatprep.subr.mxu0 0.0
        %6467 = vmatpush1.msra.mxu0 0.0
        %6468 = vmatprep.subr.mxu0 0.0
        %6469 = vmatpush1.msra.mxu0 0.0
        %6470 = vmatprep.subr.mxu0 0.0
        %6471 = vmatpush1.msra.mxu0 0.0
        %6472 = vmatprep.subr.mxu0 0.0
        %6473 = vmatpush1.msra.mxu0 0.0
        %6474 = vmatprep.mubr.f32.mxu0 0.0
        %v6475 = vand.u32 %v6173, 4294901760
        %v6476 = vsub.f32 %v6173, %v6475
        %6477 = vmatmul.mubr.f32.gmra.mrb[0].mxu0 %v6476
        %v6478 = vpop.f32.mrb[0].mxu0
        %v6479 = vadd.f32 %v6381, %v6478
        %v6480 = vpop.f32.mrb[0].mxu0
        %6481 = vmatprep.mubr.f32.mxu0 0.0
        %v6482 = vand.u32 %v6176, 4294901760
        %v6483 = vsub.f32 %v6176, %v6482
        %6484 = vmatmul.mubr.f32.gmra.mrb[0].mxu0 %v6483
        %v6485 = vpop.f32.mrb[0].mxu0
        %v6486 = vadd.f32 %v6387, %v6485
        %v6487 = vpop.f32.mrb[0].mxu0
        %6488 = vmatprep.mubr.f32.mxu0 0.0
        %v6489 = vand.u32 %v6179, 4294901760
        %v6490 = vsub.f32 %v6179, %v6489
        %6491 = vmatmul.mubr.f32.gmra.mrb[0].mxu0 %v6490
        %v6492 = vpop.f32.mrb[0].mxu0
        %v6493 = vadd.f32 %v6393, %v6492
        %v6494 = vpop.f32.mrb[0].mxu0
        %6495 = vmatprep.mubr.f32.mxu0 0.0
        %v6496 = vand.u32 %v6182, 4294901760
        %v6497 = vsub.f32 %v6182, %v6496
        %6498 = vmatmul.mubr.f32.gmra.mrb[0].mxu0 %v6497
        %v6499 = vpop.f32.mrb[0].mxu0
        %v6500 = vadd.f32 %v6399, %v6499
        %v6501 = vpop.f32.mrb[0].mxu0
        %6502 = vdwg.mxu0
        %6503 = vmatprep.subr.mxu0 0.0
        %v6504 = vand.u32 %v6168, 4294901760
        %6505 = vmatpush1.msra.mxu0 %v6504
        %6506 = vmatprep.subr.mxu0 0.0
        %v6507 = vand.u32 %v6169, 4294901760
        %6508 = vmatpush1.msra.mxu0 %v6507
        %6509 = vmatprep.subr.mxu0 0.0
        %v6510 = vand.u32 %v6170, 4294901760
        %6511 = vmatpush1.msra.mxu0 %v6510
        %6512 = vmatprep.subr.mxu0 0.0
        %v6513 = vand.u32 %v6171, 4294901760
        %6514 = vmatpush1.msra.mxu0 %v6513
        %6515 = vmatprep.subr.mxu0 0.0
        %6516 = vmatpush1.msra.mxu0 0.0
        %6517 = vmatprep.subr.mxu0 0.0
        %6518 = vmatpush1.msra.mxu0 0.0
        %6519 = vmatprep.subr.mxu0 0.0
        %6520 = vmatpush1.msra.mxu0 0.0
        %6521 = vmatprep.subr.mxu0 0.0
        %6522 = vmatpush1.msra.mxu0 0.0
        %6523 = vmatprep.subr.mxu0 0.0
        %6524 = vmatpush1.msra.mxu0 0.0
        %6525 = vmatprep.subr.mxu0 0.0
        %6526 = vmatpush1.msra.mxu0 0.0
        %6527 = vmatprep.subr.mxu0 0.0
        %6528 = vmatpush1.msra.mxu0 0.0
        %6529 = vmatprep.subr.mxu0 0.0
        %6530 = vmatpush1.msra.mxu0 0.0
        %6531 = vmatprep.subr.mxu0 0.0
        %6532 = vmatpush1.msra.mxu0 0.0
        %6533 = vmatprep.subr.mxu0 0.0
        %6534 = vmatpush1.msra.mxu0 0.0
        %6535 = vmatprep.subr.mxu0 0.0
        %6536 = vmatpush1.msra.mxu0 0.0
        %6537 = vmatprep.subr.mxu0 0.0
        %6538 = vmatpush1.msra.mxu0 0.0
        %6539 = vmatprep.subr.mxu0 0.0
        %6540 = vmatpush1.msra.mxu0 0.0
        %6541 = vmatprep.subr.mxu0 0.0
        %6542 = vmatpush1.msra.mxu0 0.0
        %6543 = vmatprep.subr.mxu0 0.0
        %6544 = vmatpush1.msra.mxu0 0.0
        %6545 = vmatprep.subr.mxu0 0.0
        %6546 = vmatpush1.msra.mxu0 0.0
        %6547 = vmatprep.subr.mxu0 0.0
        %6548 = vmatpush1.msra.mxu0 0.0
        %6549 = vmatprep.subr.mxu0 0.0
        %6550 = vmatpush1.msra.mxu0 0.0
        %6551 = vmatprep.subr.mxu0 0.0
        %6552 = vmatpush1.msra.mxu0 0.0
        %6553 = vmatprep.subr.mxu0 0.0
        %6554 = vmatpush1.msra.mxu0 0.0
        %6555 = vmatprep.subr.mxu0 0.0
        %6556 = vmatpush1.msra.mxu0 0.0
        %6557 = vmatprep.subr.mxu0 0.0
        %6558 = vmatpush1.msra.mxu0 0.0
        %6559 = vmatprep.subr.mxu0 0.0
        %6560 = vmatpush1.msra.mxu0 0.0
        %6561 = vmatprep.subr.mxu0 0.0
        %6562 = vmatpush1.msra.mxu0 0.0
        %6563 = vmatprep.subr.mxu0 0.0
        %6564 = vmatpush1.msra.mxu0 0.0
        %6565 = vmatprep.subr.mxu0 0.0
        %6566 = vmatpush1.msra.mxu0 0.0
        %6567 = vmatprep.subr.mxu0 0.0
        %6568 = vmatpush1.msra.mxu0 0.0
        %6569 = vmatprep.subr.mxu0 0.0
        %6570 = vmatpush1.msra.mxu0 0.0
        %6571 = vmatprep.mubr.f32.mxu0 0.0
        %v6572 = vand.u32 %v6173, 4294901760
        %v6573 = vsub.f32 %v6173, %v6572
        %v6574 = vand.u32 %v6573, 4294901760
        %6575 = vmatmul.mubr.f32.gmra.mrb[0].mxu0 %v6574
        %v6576 = vpop.f32.mrb[0].mxu0
        %v6577 = vadd.f32 %v6479, %v6576
        %v6578 = vpop.f32.mrb[0].mxu0
        %6579 = vmatprep.mubr.f32.mxu0 0.0
        %v6580 = vand.u32 %v6176, 4294901760
        %v6581 = vsub.f32 %v6176, %v6580
        %v6582 = vand.u32 %v6581, 4294901760
        %6583 = vmatmul.mubr.f32.gmra.mrb[0].mxu0 %v6582
        %v6584 = vpop.f32.mrb[0].mxu0
        %v6585 = vadd.f32 %v6486, %v6584
        %v6586 = vpop.f32.mrb[0].mxu0
        %6587 = vmatprep.mubr.f32.mxu0 0.0
        %v6588 = vand.u32 %v6179, 4294901760
        %v6589 = vsub.f32 %v6179, %v6588
        %v6590 = vand.u32 %v6589, 4294901760
        %6591 = vmatmul.mubr.f32.gmra.mrb[0].mxu0 %v6590
        %v6592 = vpop.f32.mrb[0].mxu0
        %v6593 = vadd.f32 %v6493, %v6592
        %v6594 = vpop.f32.mrb[0].mxu0
        %6595 = vmatprep.mubr.f32.mxu0 0.0
        %v6596 = vand.u32 %v6182, 4294901760
        %v6597 = vsub.f32 %v6182, %v6596
        %v6598 = vand.u32 %v6597, 4294901760
        %6599 = vmatmul.mubr.f32.gmra.mrb[0].mxu0 %v6598
        %v6600 = vpop.f32.mrb[0].mxu0
        %v6601 = vadd.f32 %v6500, %v6600
        %v6602 = vpop.f32.mrb[0].mxu0
        %6603 = vdwg.mxu0
        %6604 = vmatprep.subr.mxu0 0.0
        %v6605 = vand.u32 %v6168, 4294901760
        %v6606 = vsub.f32 %v6168, %v6605
        %v6607 = vand.u32 %v6606, 4294901760
        %6608 = vmatpush1.msra.mxu0 %v6607
        %6609 = vmatprep.subr.mxu0 0.0
        %v6610 = vand.u32 %v6169, 4294901760
        %v6611 = vsub.f32 %v6169, %v6610
        %v6612 = vand.u32 %v6611, 4294901760
        %6613 = vmatpush1.msra.mxu0 %v6612
        %6614 = vmatprep.subr.mxu0 0.0
        %v6615 = vand.u32 %v6170, 4294901760
        %v6616 = vsub.f32 %v6170, %v6615
        %v6617 = vand.u32 %v6616, 4294901760
        %6618 = vmatpush1.msra.mxu0 %v6617
        %6619 = vmatprep.subr.mxu0 0.0
        %v6620 = vand.u32 %v6171, 4294901760
        %v6621 = vsub.f32 %v6171, %v6620
        %v6622 = vand.u32 %v6621, 4294901760
        %6623 = vmatpush1.msra.mxu0 %v6622
        %6624 = vmatprep.subr.mxu0 0.0
        %6625 = vmatpush1.msra.mxu0 0.0
        %6626 = vmatprep.subr.mxu0 0.0
        %6627 = vmatpush1.msra.mxu0 0.0
        %6628 = vmatprep.subr.mxu0 0.0
        %6629 = vmatpush1.msra.mxu0 0.0
        %6630 = vmatprep.subr.mxu0 0.0
        %6631 = vmatpush1.msra.mxu0 0.0
        %6632 = vmatprep.subr.mxu0 0.0
        %6633 = vmatpush1.msra.mxu0 0.0
        %6634 = vmatprep.subr.mxu0 0.0
        %6635 = vmatpush1.msra.mxu0 0.0
        %6636 = vmatprep.subr.mxu0 0.0
        %6637 = vmatpush1.msra.mxu0 0.0
        %6638 = vmatprep.subr.mxu0 0.0
        %6639 = vmatpush1.msra.mxu0 0.0
        %6640 = vmatprep.subr.mxu0 0.0
        %6641 = vmatpush1.msra.mxu0 0.0
        %6642 = vmatprep.subr.mxu0 0.0
        %6643 = vmatpush1.msra.mxu0 0.0
        %6644 = vmatprep.subr.mxu0 0.0
        %6645 = vmatpush1.msra.mxu0 0.0
        %6646 = vmatprep.subr.mxu0 0.0
        %6647 = vmatpush1.msra.mxu0 0.0
        %6648 = vmatprep.subr.mxu0 0.0
        %6649 = vmatpush1.msra.mxu0 0.0
        %6650 = vmatprep.subr.mxu0 0.0
        %6651 = vmatpush1.msra.mxu0 0.0
        %6652 = vmatprep.subr.mxu0 0.0
        %6653 = vmatpush1.msra.mxu0 0.0
        %6654 = vmatprep.subr.mxu0 0.0
        %6655 = vmatpush1.msra.mxu0 0.0
        %6656 = vmatprep.subr.mxu0 0.0
        %6657 = vmatpush1.msra.mxu0 0.0
        %6658 = vmatprep.subr.mxu0 0.0
        %6659 = vmatpush1.msra.mxu0 0.0
        %6660 = vmatprep.subr.mxu0 0.0
        %6661 = vmatpush1.msra.mxu0 0.0
        %6662 = vmatprep.subr.mxu0 0.0
        %6663 = vmatpush1.msra.mxu0 0.0
        %6664 = vmatprep.subr.mxu0 0.0
        %6665 = vmatpush1.msra.mxu0 0.0
        %6666 = vmatprep.subr.mxu0 0.0
        %6667 = vmatpush1.msra.mxu0 0.0
        %6668 = vmatprep.subr.mxu0 0.0
        %6669 = vmatpush1.msra.mxu0 0.0
        %6670 = vmatprep.subr.mxu0 0.0
        %6671 = vmatpush1.msra.mxu0 0.0
        %6672 = vmatprep.subr.mxu0 0.0
        %6673 = vmatpush1.msra.mxu0 0.0
        %6674 = vmatprep.subr.mxu0 0.0
        %6675 = vmatpush1.msra.mxu0 0.0
        %6676 = vmatprep.subr.mxu0 0.0
        %6677 = vmatpush1.msra.mxu0 0.0
        %6678 = vmatprep.subr.mxu0 0.0
        %6679 = vmatpush1.msra.mxu0 0.0
        %6680 = vmatprep.mubr.f32.mxu0 0.0
        %v6681 = vand.u32 %v6173, 4294901760
        %6682 = vmatmul.mubr.f32.gmra.mrb[0].mxu0 %v6681
        %v6683 = vpop.f32.mrb[0].mxu0
        %v6684 = vadd.f32 %v6577, %v6683
        %v6685 = vpop.f32.mrb[0].mxu0
        %6686 = vmatprep.mubr.f32.mxu0 0.0
        %v6687 = vand.u32 %v6176, 4294901760
        %6688 = vmatmul.mubr.f32.gmra.mrb[0].mxu0 %v6687
        %v6689 = vpop.f32.mrb[0].mxu0
        %v6690 = vadd.f32 %v6585, %v6689
        %v6691 = vpop.f32.mrb[0].mxu0
        %6692 = vmatprep.mubr.f32.mxu0 0.0
        %v6693 = vand.u32 %v6179, 4294901760
        %6694 = vmatmul.mubr.f32.gmra.mrb[0].mxu0 %v6693
        %v6695 = vpop.f32.mrb[0].mxu0
        %v6696 = vadd.f32 %v6593, %v6695
        %v6697 = vpop.f32.mrb[0].mxu0
        %6698 = vmatprep.mubr.f32.mxu0 0.0
        %v6699 = vand.u32 %v6182, 4294901760
        %6700 = vmatmul.mubr.f32.gmra.mrb[0].mxu0 %v6699
        %v6701 = vpop.f32.mrb[0].mxu0
        %v6702 = vadd.f32 %v6601, %v6701
        %v6703 = vpop.f32.mrb[0].mxu0
        %6704 = vdwg.mxu0
        %6705 = vmatprep.subr.mxu0 0.0
        %v6706 = vand.u32 %v6168, 4294901760
        %6707 = vmatpush1.msra.mxu0 %v6706
        %6708 = vmatprep.subr.mxu0 0.0
        %v6709 = vand.u32 %v6169, 4294901760
        %6710 = vmatpush1.msra.mxu0 %v6709
        %6711 = vmatprep.subr.mxu0 0.0
        %v6712 = vand.u32 %v6170, 4294901760
        %6713 = vmatpush1.msra.mxu0 %v6712
        %6714 = vmatprep.subr.mxu0 0.0
        %v6715 = vand.u32 %v6171, 4294901760
        %6716 = vmatpush1.msra.mxu0 %v6715
        %6717 = vmatprep.subr.mxu0 0.0
        %6718 = vmatpush1.msra.mxu0 0.0
        %6719 = vmatprep.subr.mxu0 0.0
        %6720 = vmatpush1.msra.mxu0 0.0
        %6721 = vmatprep.subr.mxu0 0.0
        %6722 = vmatpush1.msra.mxu0 0.0
        %6723 = vmatprep.subr.mxu0 0.0
        %6724 = vmatpush1.msra.mxu0 0.0
        %6725 = vmatprep.subr.mxu0 0.0
        %6726 = vmatpush1.msra.mxu0 0.0
        %6727 = vmatprep.subr.mxu0 0.0
        %6728 = vmatpush1.msra.mxu0 0.0
        %6729 = vmatprep.subr.mxu0 0.0
        %6730 = vmatpush1.msra.mxu0 0.0
        %6731 = vmatprep.subr.mxu0 0.0
        %6732 = vmatpush1.msra.mxu0 0.0
        %6733 = vmatprep.subr.mxu0 0.0
        %6734 = vmatpush1.msra.mxu0 0.0
        %6735 = vmatprep.subr.mxu0 0.0
        %6736 = vmatpush1.msra.mxu0 0.0
        %6737 = vmatprep.subr.mxu0 0.0
        %6738 = vmatpush1.msra.mxu0 0.0
        %6739 = vmatprep.subr.mxu0 0.0
        %6740 = vmatpush1.msra.mxu0 0.0
        %6741 = vmatprep.subr.mxu0 0.0
        %6742 = vmatpush1.msra.mxu0 0.0
        %6743 = vmatprep.subr.mxu0 0.0
        %6744 = vmatpush1.msra.mxu0 0.0
        %6745 = vmatprep.subr.mxu0 0.0
        %6746 = vmatpush1.msra.mxu0 0.0
        %6747 = vmatprep.subr.mxu0 0.0
        %6748 = vmatpush1.msra.mxu0 0.0
        %6749 = vmatprep.subr.mxu0 0.0
        %6750 = vmatpush1.msra.mxu0 0.0
        %6751 = vmatprep.subr.mxu0 0.0
        %6752 = vmatpush1.msra.mxu0 0.0
        %6753 = vmatprep.subr.mxu0 0.0
        %6754 = vmatpush1.msra.mxu0 0.0
        %6755 = vmatprep.subr.mxu0 0.0
        %6756 = vmatpush1.msra.mxu0 0.0
        %6757 = vmatprep.subr.mxu0 0.0
        %6758 = vmatpush1.msra.mxu0 0.0
        %6759 = vmatprep.subr.mxu0 0.0
        %6760 = vmatpush1.msra.mxu0 0.0
        %6761 = vmatprep.subr.mxu0 0.0
        %6762 = vmatpush1.msra.mxu0 0.0
        %6763 = vmatprep.subr.mxu0 0.0
        %6764 = vmatpush1.msra.mxu0 0.0
        %6765 = vmatprep.subr.mxu0 0.0
        %6766 = vmatpush1.msra.mxu0 0.0
        %6767 = vmatprep.subr.mxu0 0.0
        %6768 = vmatpush1.msra.mxu0 0.0
        %6769 = vmatprep.subr.mxu0 0.0
        %6770 = vmatpush1.msra.mxu0 0.0
        %6771 = vmatprep.subr.mxu0 0.0
        %6772 = vmatpush1.msra.mxu0 0.0
        %6773 = vmatprep.mubr.f32.mxu0 0.0
        %v6774 = vand.u32 %v6173, 4294901760
        %6775 = vmatmul.mubr.f32.gmra.mrb[0].mxu0 %v6774
        %v6776 = vpop.f32.mrb[0].mxu0
        %v6777 = vadd.f32 %v6684, %v6776
        %v6778 = vpop.f32.mrb[0].mxu0
        %6779 = vmatprep.mubr.f32.mxu0 0.0
        %v6780 = vand.u32 %v6176, 4294901760
        %6781 = vmatmul.mubr.f32.gmra.mrb[0].mxu0 %v6780
        %v6782 = vpop.f32.mrb[0].mxu0
        %v6783 = vadd.f32 %v6690, %v6782
        %v6784 = vpop.f32.mrb[0].mxu0
        %6785 = vmatprep.mubr.f32.mxu0 0.0
        %v6786 = vand.u32 %v6179, 4294901760
        %6787 = vmatmul.mubr.f32.gmra.mrb[0].mxu0 %v6786
        %v6788 = vpop.f32.mrb[0].mxu0
        %v6789 = vadd.f32 %v6696, %v6788
        %v6790 = vpop.f32.mrb[0].mxu0
        %6791 = vmatprep.mubr.f32.mxu0 0.0
        %v6792 = vand.u32 %v6182, 4294901760
        %6793 = vmatmul.mubr.f32.gmra.mrb[0].mxu0 %v6792
        %v6794 = vpop.f32.mrb[0].mxu0
        %v6795 = vadd.f32 %v6702, %v6794
        %v6796 = vpop.f32.mrb[0].mxu0
        %6797 = vdwg.mxu0
        %6798 = vmatprep.subr.mxu0 0.0
        %v6799 = vand.u32 %v6156, 4294901760
        %6800 = vmatpush1.msra.mxu0 %v6799
        %6801 = vmatprep.subr.mxu0 0.0
        %v6802 = vand.u32 %v6157, 4294901760
        %6803 = vmatpush1.msra.mxu0 %v6802
        %6804 = vmatprep.subr.mxu0 0.0
        %v6805 = vand.u32 %v6158, 4294901760
        %6806 = vmatpush1.msra.mxu0 %v6805
        %6807 = vmatprep.subr.mxu0 0.0
        %v6808 = vand.u32 %v6159, 4294901760
        %6809 = vmatpush1.msra.mxu0 %v6808
        %6810 = vmatprep.subr.mxu0 0.0
        %v6811 = vand.u32 %v6160, 4294901760
        %6812 = vmatpush1.msra.mxu0 %v6811
        %6813 = vmatprep.subr.mxu0 0.0
        %v6814 = vand.u32 %v6161, 4294901760
        %6815 = vmatpush1.msra.mxu0 %v6814
        %6816 = vmatprep.subr.mxu0 0.0
        %v6817 = vand.u32 %v6162, 4294901760
        %6818 = vmatpush1.msra.mxu0 %v6817
        %6819 = vmatprep.subr.mxu0 0.0
        %v6820 = vand.u32 %v6163, 4294901760
        %6821 = vmatpush1.msra.mxu0 %v6820
        %6822 = vmatprep.subr.mxu0 0.0
        %v6823 = vand.u32 %v6164, 4294901760
        %6824 = vmatpush1.msra.mxu0 %v6823
        %6825 = vmatprep.subr.mxu0 0.0
        %v6826 = vand.u32 %v6165, 4294901760
        %6827 = vmatpush1.msra.mxu0 %v6826
        %6828 = vmatprep.subr.mxu0 0.0
        %v6829 = vand.u32 %v6166, 4294901760
        %6830 = vmatpush1.msra.mxu0 %v6829
        %6831 = vmatprep.subr.mxu0 0.0
        %v6832 = vand.u32 %v6167, 4294901760
        %6833 = vmatpush1.msra.mxu0 %v6832
        %6834 = vmatprep.subr.mxu0 0.0
        %v6835 = vand.u32 %v6168, 4294901760
        %6836 = vmatpush1.msra.mxu0 %v6835
        %6837 = vmatprep.subr.mxu0 0.0
        %v6838 = vand.u32 %v6169, 4294901760
        %6839 = vmatpush1.msra.mxu0 %v6838
        %6840 = vmatprep.subr.mxu0 0.0
        %v6841 = vand.u32 %v6170, 4294901760
        %6842 = vmatpush1.msra.mxu0 %v6841
        %6843 = vmatprep.subr.mxu0 0.0
        %v6844 = vand.u32 %v6171, 4294901760
        %6845 = vmatpush1.msra.mxu0 %v6844
        %6846 = vmatprep.subr.mxu0 0.0
        %6847 = vmatpush1.msra.mxu0 0.0
        %6848 = vmatprep.subr.mxu0 0.0
        %6849 = vmatpush1.msra.mxu0 0.0
        %6850 = vmatprep.subr.mxu0 0.0
        %6851 = vmatpush1.msra.mxu0 0.0
        %6852 = vmatprep.subr.mxu0 0.0
        %6853 = vmatpush1.msra.mxu0 0.0
        %6854 = vmatprep.subr.mxu0 0.0
        %6855 = vmatpush1.msra.mxu0 0.0
        %6856 = vmatprep.subr.mxu0 0.0
        %6857 = vmatpush1.msra.mxu0 0.0
        %6858 = vmatprep.subr.mxu0 0.0
        %6859 = vmatpush1.msra.mxu0 0.0
        %6860 = vmatprep.subr.mxu0 0.0
        %6861 = vmatpush1.msra.mxu0 0.0
        %6862 = vmatprep.subr.mxu0 0.0
        %6863 = vmatpush1.msra.mxu0 0.0
        %6864 = vmatprep.subr.mxu0 0.0
        %6865 = vmatpush1.msra.mxu0 0.0
        %6866 = vmatprep.subr.mxu0 0.0
        %6867 = vmatpush1.msra.mxu0 0.0
        %6868 = vmatprep.subr.mxu0 0.0
        %6869 = vmatpush1.msra.mxu0 0.0
        %6870 = vmatprep.subr.mxu0 0.0
        %6871 = vmatpush1.msra.mxu0 0.0
        %6872 = vmatprep.subr.mxu0 0.0
        %6873 = vmatpush1.msra.mxu0 0.0
        %6874 = vmatprep.subr.mxu0 0.0
        %6875 = vmatpush1.msra.mxu0 0.0
        %6876 = vmatprep.subr.mxu0 0.0
        %6877 = vmatpush1.msra.mxu0 0.0
        %6878 = vmatprep.mubr.f32.mxu0 0.0
        %v6879 = vand.u32 %v6149, 4294901760
        %v6880 = vsub.f32 %v6149, %v6879
        %v6881 = vand.u32 %v6880, 4294901760
        %v6882 = vsub.f32 %v6880, %v6881
        %v6883 = vand.u32 %v6882, 4294901760
        %6884 = vmatmul.mubr.f32.gmra.mrb[0].mxu0 %v6883
        %v6885 = vpop.f32.mrb[0].mxu0
        %v6886 = vadd.f32 %v6777, %v6885
        %v6887 = vpop.f32.mrb[0].mxu0
        %6888 = vmatprep.mubr.f32.mxu0 0.0
        %v6889 = vand.u32 %v6151, 4294901760
        %v6890 = vsub.f32 %v6151, %v6889
        %v6891 = vand.u32 %v6890, 4294901760
        %v6892 = vsub.f32 %v6890, %v6891
        %v6893 = vand.u32 %v6892, 4294901760
        %6894 = vmatmul.mubr.f32.gmra.mrb[0].mxu0 %v6893
        %v6895 = vpop.f32.mrb[0].mxu0
        %v6896 = vadd.f32 %v6783, %v6895
        %v6897 = vpop.f32.mrb[0].mxu0
        %6898 = vmatprep.mubr.f32.mxu0 0.0
        %v6899 = vand.u32 %v6153, 4294901760
        %v6900 = vsub.f32 %v6153, %v6899
        %v6901 = vand.u32 %v6900, 4294901760
        %v6902 = vsub.f32 %v6900, %v6901
        %v6903 = vand.u32 %v6902, 4294901760
        %6904 = vmatmul.mubr.f32.gmra.mrb[0].mxu0 %v6903
        %v6905 = vpop.f32.mrb[0].mxu0
        %v6906 = vadd.f32 %v6789, %v6905
        %v6907 = vpop.f32.mrb[0].mxu0
        %6908 = vmatprep.mubr.f32.mxu0 0.0
        %v6909 = vand.u32 %v6155, 4294901760
        %v6910 = vsub.f32 %v6155, %v6909
        %v6911 = vand.u32 %v6910, 4294901760
        %v6912 = vsub.f32 %v6910, %v6911
        %v6913 = vand.u32 %v6912, 4294901760
        %6914 = vmatmul.mubr.f32.gmra.mrb[0].mxu0 %v6913
        %v6915 = vpop.f32.mrb[0].mxu0
        %v6916 = vadd.f32 %v6795, %v6915
        %v6917 = vpop.f32.mrb[0].mxu0
        %6918 = vdwg.mxu0
        %6919 = vmatprep.subr.mxu0 0.0
        %v6920 = vand.u32 %v6156, 4294901760
        %v6921 = vsub.f32 %v6156, %v6920
        %v6922 = vand.u32 %v6921, 4294901760
        %v6923 = vsub.f32 %v6921, %v6922
        %v6924 = vand.u32 %v6923, 4294901760
        %6925 = vmatpush1.msra.mxu0 %v6924
        %6926 = vmatprep.subr.mxu0 0.0
        %v6927 = vand.u32 %v6157, 4294901760
        %v6928 = vsub.f32 %v6157, %v6927
        %v6929 = vand.u32 %v6928, 4294901760
        %v6930 = vsub.f32 %v6928, %v6929
        %v6931 = vand.u32 %v6930, 4294901760
        %6932 = vmatpush1.msra.mxu0 %v6931
        %6933 = vmatprep.subr.mxu0 0.0
        %v6934 = vand.u32 %v6158, 4294901760
        %v6935 = vsub.f32 %v6158, %v6934
        %v6936 = vand.u32 %v6935, 4294901760
        %v6937 = vsub.f32 %v6935, %v6936
        %v6938 = vand.u32 %v6937, 4294901760
        %6939 = vmatpush1.msra.mxu0 %v6938
        %6940 = vmatprep.subr.mxu0 0.0
        %v6941 = vand.u32 %v6159, 4294901760
        %v6942 = vsub.f32 %v6159, %v6941
        %v6943 = vand.u32 %v6942, 4294901760
        %v6944 = vsub.f32 %v6942, %v6943
        %v6945 = vand.u32 %v6944, 4294901760
        %6946 = vmatpush1.msra.mxu0 %v6945
        %6947 = vmatprep.subr.mxu0 0.0
        %v6948 = vand.u32 %v6160, 4294901760
        %v6949 = vsub.f32 %v6160, %v6948
        %v6950 = vand.u32 %v6949, 4294901760
        %v6951 = vsub.f32 %v6949, %v6950
        %v6952 = vand.u32 %v6951, 4294901760
        %6953 = vmatpush1.msra.mxu0 %v6952
        %6954 = vmatprep.subr.mxu0 0.0
        %v6955 = vand.u32 %v6161, 4294901760
        %v6956 = vsub.f32 %v6161, %v6955
        %v6957 = vand.u32 %v6956, 4294901760
        %v6958 = vsub.f32 %v6956, %v6957
        %v6959 = vand.u32 %v6958, 4294901760
        %6960 = vmatpush1.msra.mxu0 %v6959
        %6961 = vmatprep.subr.mxu0 0.0
        %v6962 = vand.u32 %v6162, 4294901760
        %v6963 = vsub.f32 %v6162, %v6962
        %v6964 = vand.u32 %v6963, 4294901760
        %v6965 = vsub.f32 %v6963, %v6964
        %v6966 = vand.u32 %v6965, 4294901760
        %6967 = vmatpush1.msra.mxu0 %v6966
        %6968 = vmatprep.subr.mxu0 0.0
        %v6969 = vand.u32 %v6163, 4294901760
        %v6970 = vsub.f32 %v6163, %v6969
        %v6971 = vand.u32 %v6970, 4294901760
        %v6972 = vsub.f32 %v6970, %v6971
        %v6973 = vand.u32 %v6972, 4294901760
        %6974 = vmatpush1.msra.mxu0 %v6973
        %6975 = vmatprep.subr.mxu0 0.0
        %v6976 = vand.u32 %v6164, 4294901760
        %v6977 = vsub.f32 %v6164, %v6976
        %v6978 = vand.u32 %v6977, 4294901760
        %v6979 = vsub.f32 %v6977, %v6978
        %v6980 = vand.u32 %v6979, 4294901760
        %6981 = vmatpush1.msra.mxu0 %v6980
        %6982 = vmatprep.subr.mxu0 0.0
        %v6983 = vand.u32 %v6165, 4294901760
        %v6984 = vsub.f32 %v6165, %v6983
        %v6985 = vand.u32 %v6984, 4294901760
        %v6986 = vsub.f32 %v6984, %v6985
        %v6987 = vand.u32 %v6986, 4294901760
        %6988 = vmatpush1.msra.mxu0 %v6987
        %6989 = vmatprep.subr.mxu0 0.0
        %v6990 = vand.u32 %v6166, 4294901760
        %v6991 = vsub.f32 %v6166, %v6990
        %v6992 = vand.u32 %v6991, 4294901760
        %v6993 = vsub.f32 %v6991, %v6992
        %v6994 = vand.u32 %v6993, 4294901760
        %6995 = vmatpush1.msra.mxu0 %v6994
        %6996 = vmatprep.subr.mxu0 0.0
        %v6997 = vand.u32 %v6167, 4294901760
        %v6998 = vsub.f32 %v6167, %v6997
        %v6999 = vand.u32 %v6998, 4294901760
        %v7000 = vsub.f32 %v6998, %v6999
        %v7001 = vand.u32 %v7000, 4294901760
        %7002 = vmatpush1.msra.mxu0 %v7001
        %7003 = vmatprep.subr.mxu0 0.0
        %v7004 = vand.u32 %v6168, 4294901760
        %v7005 = vsub.f32 %v6168, %v7004
        %v7006 = vand.u32 %v7005, 4294901760
        %v7007 = vsub.f32 %v7005, %v7006
        %v7008 = vand.u32 %v7007, 4294901760
        %7009 = vmatpush1.msra.mxu0 %v7008
        %7010 = vmatprep.subr.mxu0 0.0
        %v7011 = vand.u32 %v6169, 4294901760
        %v7012 = vsub.f32 %v6169, %v7011
        %v7013 = vand.u32 %v7012, 4294901760
        %v7014 = vsub.f32 %v7012, %v7013
        %v7015 = vand.u32 %v7014, 4294901760
        %7016 = vmatpush1.msra.mxu0 %v7015
        %7017 = vmatprep.subr.mxu0 0.0
        %v7018 = vand.u32 %v6170, 4294901760
        %v7019 = vsub.f32 %v6170, %v7018
        %v7020 = vand.u32 %v7019, 4294901760
        %v7021 = vsub.f32 %v7019, %v7020
        %v7022 = vand.u32 %v7021, 4294901760
        %7023 = vmatpush1.msra.mxu0 %v7022
        %7024 = vmatprep.subr.mxu0 0.0
        %v7025 = vand.u32 %v6171, 4294901760
        %v7026 = vsub.f32 %v6171, %v7025
        %v7027 = vand.u32 %v7026, 4294901760
        %v7028 = vsub.f32 %v7026, %v7027
        %v7029 = vand.u32 %v7028, 4294901760
        %7030 = vmatpush1.msra.mxu0 %v7029
        %7031 = vmatprep.subr.mxu0 0.0
        %7032 = vmatpush1.msra.mxu0 0.0
        %7033 = vmatprep.subr.mxu0 0.0
        %7034 = vmatpush1.msra.mxu0 0.0
        %7035 = vmatprep.subr.mxu0 0.0
        %7036 = vmatpush1.msra.mxu0 0.0
        %7037 = vmatprep.subr.mxu0 0.0
        %7038 = vmatpush1.msra.mxu0 0.0
        %7039 = vmatprep.subr.mxu0 0.0
        %7040 = vmatpush1.msra.mxu0 0.0
        %7041 = vmatprep.subr.mxu0 0.0
        %7042 = vmatpush1.msra.mxu0 0.0
        %7043 = vmatprep.subr.mxu0 0.0
        %7044 = vmatpush1.msra.mxu0 0.0
        %7045 = vmatprep.subr.mxu0 0.0
        %7046 = vmatpush1.msra.mxu0 0.0
        %7047 = vmatprep.subr.mxu0 0.0
        %7048 = vmatpush1.msra.mxu0 0.0
        %7049 = vmatprep.subr.mxu0 0.0
        %7050 = vmatpush1.msra.mxu0 0.0
        %7051 = vmatprep.subr.mxu0 0.0
        %7052 = vmatpush1.msra.mxu0 0.0
        %7053 = vmatprep.subr.mxu0 0.0
        %7054 = vmatpush1.msra.mxu0 0.0
        %7055 = vmatprep.subr.mxu0 0.0
        %7056 = vmatpush1.msra.mxu0 0.0
        %7057 = vmatprep.subr.mxu0 0.0
        %7058 = vmatpush1.msra.mxu0 0.0
        %7059 = vmatprep.subr.mxu0 0.0
        %7060 = vmatpush1.msra.mxu0 0.0
        %7061 = vmatprep.subr.mxu0 0.0
        %7062 = vmatpush1.msra.mxu0 0.0
        %7063 = vmatprep.mubr.f32.mxu0 0.0
        %v7064 = vand.u32 %v6149, 4294901760
        %7065 = vmatmul.mubr.f32.gmra.mrb[0].mxu0 %v7064
        %v7066 = vpop.f32.mrb[0].mxu0
        %v7067 = vadd.f32 %v6886, %v7066
        %v7068 = vpop.f32.mrb[0].mxu0
        %7069 = vmatprep.mubr.f32.mxu0 0.0
        %v7070 = vand.u32 %v6151, 4294901760
        %7071 = vmatmul.mubr.f32.gmra.mrb[0].mxu0 %v7070
        %v7072 = vpop.f32.mrb[0].mxu0
        %v7073 = vadd.f32 %v6896, %v7072
        %v7074 = vpop.f32.mrb[0].mxu0
        %7075 = vmatprep.mubr.f32.mxu0 0.0
        %v7076 = vand.u32 %v6153, 4294901760
        %7077 = vmatmul.mubr.f32.gmra.mrb[0].mxu0 %v7076
        %v7078 = vpop.f32.mrb[0].mxu0
        %v7079 = vadd.f32 %v6906, %v7078
        %v7080 = vpop.f32.mrb[0].mxu0
        %7081 = vmatprep.mubr.f32.mxu0 0.0
        %v7082 = vand.u32 %v6155, 4294901760
        %7083 = vmatmul.mubr.f32.gmra.mrb[0].mxu0 %v7082
        %v7084 = vpop.f32.mrb[0].mxu0
        %v7085 = vadd.f32 %v6916, %v7084
        %v7086 = vpop.f32.mrb[0].mxu0
        %7087 = vdwg.mxu0
        %7088 = vmatprep.subr.mxu0 0.0
        %v7089 = vand.u32 %v6156, 4294901760
        %v7090 = vsub.f32 %v6156, %v7089
        %7091 = vmatpush1.msra.mxu0 %v7090
        %7092 = vmatprep.subr.mxu0 0.0
        %v7093 = vand.u32 %v6157, 4294901760
        %v7094 = vsub.f32 %v6157, %v7093
        %7095 = vmatpush1.msra.mxu0 %v7094
        %7096 = vmatprep.subr.mxu0 0.0
        %v7097 = vand.u32 %v6158, 4294901760
        %v7098 = vsub.f32 %v6158, %v7097
        %7099 = vmatpush1.msra.mxu0 %v7098
        %7100 = vmatprep.subr.mxu0 0.0
        %v7101 = vand.u32 %v6159, 4294901760
        %v7102 = vsub.f32 %v6159, %v7101
        %7103 = vmatpush1.msra.mxu0 %v7102
        %7104 = vmatprep.subr.mxu0 0.0
        %v7105 = vand.u32 %v6160, 4294901760
        %v7106 = vsub.f32 %v6160, %v7105
        %7107 = vmatpush1.msra.mxu0 %v7106
        %7108 = vmatprep.subr.mxu0 0.0
        %v7109 = vand.u32 %v6161, 4294901760
        %v7110 = vsub.f32 %v6161, %v7109
        %7111 = vmatpush1.msra.mxu0 %v7110
        %7112 = vmatprep.subr.mxu0 0.0
        %v7113 = vand.u32 %v6162, 4294901760
        %v7114 = vsub.f32 %v6162, %v7113
        %7115 = vmatpush1.msra.mxu0 %v7114
        %7116 = vmatprep.subr.mxu0 0.0
        %v7117 = vand.u32 %v6163, 4294901760
        %v7118 = vsub.f32 %v6163, %v7117
        %7119 = vmatpush1.msra.mxu0 %v7118
        %7120 = vmatprep.subr.mxu0 0.0
        %v7121 = vand.u32 %v6164, 4294901760
        %v7122 = vsub.f32 %v6164, %v7121
        %7123 = vmatpush1.msra.mxu0 %v7122
        %7124 = vmatprep.subr.mxu0 0.0
        %v7125 = vand.u32 %v6165, 4294901760
        %v7126 = vsub.f32 %v6165, %v7125
        %7127 = vmatpush1.msra.mxu0 %v7126
        %7128 = vmatprep.subr.mxu0 0.0
        %v7129 = vand.u32 %v6166, 4294901760
        %v7130 = vsub.f32 %v6166, %v7129
        %7131 = vmatpush1.msra.mxu0 %v7130
        %7132 = vmatprep.subr.mxu0 0.0
        %v7133 = vand.u32 %v6167, 4294901760
        %v7134 = vsub.f32 %v6167, %v7133
        %7135 = vmatpush1.msra.mxu0 %v7134
        %7136 = vmatprep.subr.mxu0 0.0
        %v7137 = vand.u32 %v6168, 4294901760
        %v7138 = vsub.f32 %v6168, %v7137
        %7139 = vmatpush1.msra.mxu0 %v7138
        %7140 = vmatprep.subr.mxu0 0.0
        %v7141 = vand.u32 %v6169, 4294901760
        %v7142 = vsub.f32 %v6169, %v7141
        %7143 = vmatpush1.msra.mxu0 %v7142
        %7144 = vmatprep.subr.mxu0 0.0
        %v7145 = vand.u32 %v6170, 4294901760
        %v7146 = vsub.f32 %v6170, %v7145
        %7147 = vmatpush1.msra.mxu0 %v7146
        %7148 = vmatprep.subr.mxu0 0.0
        %v7149 = vand.u32 %v6171, 4294901760
        %v7150 = vsub.f32 %v6171, %v7149
        %7151 = vmatpush1.msra.mxu0 %v7150
        %7152 = vmatprep.subr.mxu0 0.0
        %7153 = vmatpush1.msra.mxu0 0.0
        %7154 = vmatprep.subr.mxu0 0.0
        %7155 = vmatpush1.msra.mxu0 0.0
        %7156 = vmatprep.subr.mxu0 0.0
        %7157 = vmatpush1.msra.mxu0 0.0
        %7158 = vmatprep.subr.mxu0 0.0
        %7159 = vmatpush1.msra.mxu0 0.0
        %7160 = vmatprep.subr.mxu0 0.0
        %7161 = vmatpush1.msra.mxu0 0.0
        %7162 = vmatprep.subr.mxu0 0.0
        %7163 = vmatpush1.msra.mxu0 0.0
        %7164 = vmatprep.subr.mxu0 0.0
        %7165 = vmatpush1.msra.mxu0 0.0
        %7166 = vmatprep.subr.mxu0 0.0
        %7167 = vmatpush1.msra.mxu0 0.0
        %7168 = vmatprep.subr.mxu0 0.0
        %7169 = vmatpush1.msra.mxu0 0.0
        %7170 = vmatprep.subr.mxu0 0.0
        %7171 = vmatpush1.msra.mxu0 0.0
        %7172 = vmatprep.subr.mxu0 0.0
        %7173 = vmatpush1.msra.mxu0 0.0
        %7174 = vmatprep.subr.mxu0 0.0
        %7175 = vmatpush1.msra.mxu0 0.0
        %7176 = vmatprep.subr.mxu0 0.0
        %7177 = vmatpush1.msra.mxu0 0.0
        %7178 = vmatprep.subr.mxu0 0.0
        %7179 = vmatpush1.msra.mxu0 0.0
        %7180 = vmatprep.subr.mxu0 0.0
        %7181 = vmatpush1.msra.mxu0 0.0
        %7182 = vmatprep.subr.mxu0 0.0
        %7183 = vmatpush1.msra.mxu0 0.0
        %7184 = vmatprep.mubr.f32.mxu0 0.0
        %v7185 = vand.u32 %v6149, 4294901760
        %v7186 = vsub.f32 %v6149, %v7185
        %7187 = vmatmul.mubr.f32.gmra.mrb[0].mxu0 %v7186
        %v7188 = vpop.f32.mrb[0].mxu0
        %v7189 = vadd.f32 %v7067, %v7188
        %v7190 = vpop.f32.mrb[0].mxu0
        %7191 = vmatprep.mubr.f32.mxu0 0.0
        %v7192 = vand.u32 %v6151, 4294901760
        %v7193 = vsub.f32 %v6151, %v7192
        %7194 = vmatmul.mubr.f32.gmra.mrb[0].mxu0 %v7193
        %v7195 = vpop.f32.mrb[0].mxu0
        %v7196 = vadd.f32 %v7073, %v7195
        %v7197 = vpop.f32.mrb[0].mxu0
        %7198 = vmatprep.mubr.f32.mxu0 0.0
        %v7199 = vand.u32 %v6153, 4294901760
        %v7200 = vsub.f32 %v6153, %v7199
        %7201 = vmatmul.mubr.f32.gmra.mrb[0].mxu0 %v7200
        %v7202 = vpop.f32.mrb[0].mxu0
        %v7203 = vadd.f32 %v7079, %v7202
        %v7204 = vpop.f32.mrb[0].mxu0
        %7205 = vmatprep.mubr.f32.mxu0 0.0
        %v7206 = vand.u32 %v6155, 4294901760
        %v7207 = vsub.f32 %v6155, %v7206
        %7208 = vmatmul.mubr.f32.gmra.mrb[0].mxu0 %v7207
        %v7209 = vpop.f32.mrb[0].mxu0
        %v7210 = vadd.f32 %v7085, %v7209
        %v7211 = vpop.f32.mrb[0].mxu0
        %7212 = vdwg.mxu0
        %7213 = vmatprep.subr.mxu0 0.0
        %v7214 = vand.u32 %v6156, 4294901760
        %7215 = vmatpush1.msra.mxu0 %v7214
        %7216 = vmatprep.subr.mxu0 0.0
        %v7217 = vand.u32 %v6157, 4294901760
        %7218 = vmatpush1.msra.mxu0 %v7217
        %7219 = vmatprep.subr.mxu0 0.0
        %v7220 = vand.u32 %v6158, 4294901760
        %7221 = vmatpush1.msra.mxu0 %v7220
        %7222 = vmatprep.subr.mxu0 0.0
        %v7223 = vand.u32 %v6159, 4294901760
        %7224 = vmatpush1.msra.mxu0 %v7223
        %7225 = vmatprep.subr.mxu0 0.0
        %v7226 = vand.u32 %v6160, 4294901760
        %7227 = vmatpush1.msra.mxu0 %v7226
        %7228 = vmatprep.subr.mxu0 0.0
        %v7229 = vand.u32 %v6161, 4294901760
        %7230 = vmatpush1.msra.mxu0 %v7229
        %7231 = vmatprep.subr.mxu0 0.0
        %v7232 = vand.u32 %v6162, 4294901760
        %7233 = vmatpush1.msra.mxu0 %v7232
        %7234 = vmatprep.subr.mxu0 0.0
        %v7235 = vand.u32 %v6163, 4294901760
        %7236 = vmatpush1.msra.mxu0 %v7235
        %7237 = vmatprep.subr.mxu0 0.0
        %v7238 = vand.u32 %v6164, 4294901760
        %7239 = vmatpush1.msra.mxu0 %v7238
        %7240 = vmatprep.subr.mxu0 0.0
        %v7241 = vand.u32 %v6165, 4294901760
        %7242 = vmatpush1.msra.mxu0 %v7241
        %7243 = vmatprep.subr.mxu0 0.0
        %v7244 = vand.u32 %v6166, 4294901760
        %7245 = vmatpush1.msra.mxu0 %v7244
        %7246 = vmatprep.subr.mxu0 0.0
        %v7247 = vand.u32 %v6167, 4294901760
        %7248 = vmatpush1.msra.mxu0 %v7247
        %7249 = vmatprep.subr.mxu0 0.0
        %v7250 = vand.u32 %v6168, 4294901760
        %7251 = vmatpush1.msra.mxu0 %v7250
        %7252 = vmatprep.subr.mxu0 0.0
        %v7253 = vand.u32 %v6169, 4294901760
        %7254 = vmatpush1.msra.mxu0 %v7253
        %7255 = vmatprep.subr.mxu0 0.0
        %v7256 = vand.u32 %v6170, 4294901760
        %7257 = vmatpush1.msra.mxu0 %v7256
        %7258 = vmatprep.subr.mxu0 0.0
        %v7259 = vand.u32 %v6171, 4294901760
        %7260 = vmatpush1.msra.mxu0 %v7259
        %7261 = vmatprep.subr.mxu0 0.0
        %7262 = vmatpush1.msra.mxu0 0.0
        %7263 = vmatprep.subr.mxu0 0.0
        %7264 = vmatpush1.msra.mxu0 0.0
        %7265 = vmatprep.subr.mxu0 0.0
        %7266 = vmatpush1.msra.mxu0 0.0
        %7267 = vmatprep.subr.mxu0 0.0
        %7268 = vmatpush1.msra.mxu0 0.0
        %7269 = vmatprep.subr.mxu0 0.0
        %7270 = vmatpush1.msra.mxu0 0.0
        %7271 = vmatprep.subr.mxu0 0.0
        %7272 = vmatpush1.msra.mxu0 0.0
        %7273 = vmatprep.subr.mxu0 0.0
        %7274 = vmatpush1.msra.mxu0 0.0
        %7275 = vmatprep.subr.mxu0 0.0
        %7276 = vmatpush1.msra.mxu0 0.0
        %7277 = vmatprep.subr.mxu0 0.0
        %7278 = vmatpush1.msra.mxu0 0.0
        %7279 = vmatprep.subr.mxu0 0.0
        %7280 = vmatpush1.msra.mxu0 0.0
        %7281 = vmatprep.subr.mxu0 0.0
        %7282 = vmatpush1.msra.mxu0 0.0
        %7283 = vmatprep.subr.mxu0 0.0
        %7284 = vmatpush1.msra.mxu0 0.0
        %7285 = vmatprep.subr.mxu0 0.0
        %7286 = vmatpush1.msra.mxu0 0.0
        %7287 = vmatprep.subr.mxu0 0.0
        %7288 = vmatpush1.msra.mxu0 0.0
        %7289 = vmatprep.subr.mxu0 0.0
        %7290 = vmatpush1.msra.mxu0 0.0
        %7291 = vmatprep.subr.mxu0 0.0
        %7292 = vmatpush1.msra.mxu0 0.0
        %7293 = vmatprep.mubr.f32.mxu0 0.0
        %v7294 = vand.u32 %v6149, 4294901760
        %v7295 = vsub.f32 %v6149, %v7294
        %v7296 = vand.u32 %v7295, 4294901760
        %7297 = vmatmul.mubr.f32.gmra.mrb[0].mxu0 %v7296
        %v7298 = vpop.f32.mrb[0].mxu0
        %v7299 = vadd.f32 %v7189, %v7298
        %v7300 = vpop.f32.mrb[0].mxu0
        %7301 = vmatprep.mubr.f32.mxu0 0.0
        %v7302 = vand.u32 %v6151, 4294901760
        %v7303 = vsub.f32 %v6151, %v7302
        %v7304 = vand.u32 %v7303, 4294901760
        %7305 = vmatmul.mubr.f32.gmra.mrb[0].mxu0 %v7304
        %v7306 = vpop.f32.mrb[0].mxu0
        %v7307 = vadd.f32 %v7196, %v7306
        %v7308 = vpop.f32.mrb[0].mxu0
        %7309 = vmatprep.mubr.f32.mxu0 0.0
        %v7310 = vand.u32 %v6153, 4294901760
        %v7311 = vsub.f32 %v6153, %v7310
        %v7312 = vand.u32 %v7311, 4294901760
        %7313 = vmatmul.mubr.f32.gmra.mrb[0].mxu0 %v7312
        %v7314 = vpop.f32.mrb[0].mxu0
        %v7315 = vadd.f32 %v7203, %v7314
        %v7316 = vpop.f32.mrb[0].mxu0
        %7317 = vmatprep.mubr.f32.mxu0 0.0
        %v7318 = vand.u32 %v6155, 4294901760
        %v7319 = vsub.f32 %v6155, %v7318
        %v7320 = vand.u32 %v7319, 4294901760
        %7321 = vmatmul.mubr.f32.gmra.mrb[0].mxu0 %v7320
        %v7322 = vpop.f32.mrb[0].mxu0
        %v7323 = vadd.f32 %v7210, %v7322
        %v7324 = vpop.f32.mrb[0].mxu0
        %7325 = vdwg.mxu0
        %7326 = vmatprep.subr.mxu0 0.0
        %v7327 = vand.u32 %v6156, 4294901760
        %v7328 = vsub.f32 %v6156, %v7327
        %v7329 = vand.u32 %v7328, 4294901760
        %7330 = vmatpush1.msra.mxu0 %v7329
        %7331 = vmatprep.subr.mxu0 0.0
        %v7332 = vand.u32 %v6157, 4294901760
        %v7333 = vsub.f32 %v6157, %v7332
        %v7334 = vand.u32 %v7333, 4294901760
        %7335 = vmatpush1.msra.mxu0 %v7334
        %7336 = vmatprep.subr.mxu0 0.0
        %v7337 = vand.u32 %v6158, 4294901760
        %v7338 = vsub.f32 %v6158, %v7337
        %v7339 = vand.u32 %v7338, 4294901760
        %7340 = vmatpush1.msra.mxu0 %v7339
        %7341 = vmatprep.subr.mxu0 0.0
        %v7342 = vand.u32 %v6159, 4294901760
        %v7343 = vsub.f32 %v6159, %v7342
        %v7344 = vand.u32 %v7343, 4294901760
        %7345 = vmatpush1.msra.mxu0 %v7344
        %7346 = vmatprep.subr.mxu0 0.0
        %v7347 = vand.u32 %v6160, 4294901760
        %v7348 = vsub.f32 %v6160, %v7347
        %v7349 = vand.u32 %v7348, 4294901760
        %7350 = vmatpush1.msra.mxu0 %v7349
        %7351 = vmatprep.subr.mxu0 0.0
        %v7352 = vand.u32 %v6161, 4294901760
        %v7353 = vsub.f32 %v6161, %v7352
        %v7354 = vand.u32 %v7353, 4294901760
        %7355 = vmatpush1.msra.mxu0 %v7354
        %7356 = vmatprep.subr.mxu0 0.0
        %v7357 = vand.u32 %v6162, 4294901760
        %v7358 = vsub.f32 %v6162, %v7357
        %v7359 = vand.u32 %v7358, 4294901760
        %7360 = vmatpush1.msra.mxu0 %v7359
        %7361 = vmatprep.subr.mxu0 0.0
        %v7362 = vand.u32 %v6163, 4294901760
        %v7363 = vsub.f32 %v6163, %v7362
        %v7364 = vand.u32 %v7363, 4294901760
        %7365 = vmatpush1.msra.mxu0 %v7364
        %7366 = vmatprep.subr.mxu0 0.0
        %v7367 = vand.u32 %v6164, 4294901760
        %v7368 = vsub.f32 %v6164, %v7367
        %v7369 = vand.u32 %v7368, 4294901760
        %7370 = vmatpush1.msra.mxu0 %v7369
        %7371 = vmatprep.subr.mxu0 0.0
        %v7372 = vand.u32 %v6165, 4294901760
        %v7373 = vsub.f32 %v6165, %v7372
        %v7374 = vand.u32 %v7373, 4294901760
        %7375 = vmatpush1.msra.mxu0 %v7374
        %7376 = vmatprep.subr.mxu0 0.0
        %v7377 = vand.u32 %v6166, 4294901760
        %v7378 = vsub.f32 %v6166, %v7377
        %v7379 = vand.u32 %v7378, 4294901760
        %7380 = vmatpush1.msra.mxu0 %v7379
        %7381 = vmatprep.subr.mxu0 0.0
        %v7382 = vand.u32 %v6167, 4294901760
        %v7383 = vsub.f32 %v6167, %v7382
        %v7384 = vand.u32 %v7383, 4294901760
        %7385 = vmatpush1.msra.mxu0 %v7384
        %7386 = vmatprep.subr.mxu0 0.0
        %v7387 = vand.u32 %v6168, 4294901760
        %v7388 = vsub.f32 %v6168, %v7387
        %v7389 = vand.u32 %v7388, 4294901760
        %7390 = vmatpush1.msra.mxu0 %v7389
        %7391 = vmatprep.subr.mxu0 0.0
        %v7392 = vand.u32 %v6169, 4294901760
        %v7393 = vsub.f32 %v6169, %v7392
        %v7394 = vand.u32 %v7393, 4294901760
        %7395 = vmatpush1.msra.mxu0 %v7394
        %7396 = vmatprep.subr.mxu0 0.0
        %v7397 = vand.u32 %v6170, 4294901760
        %v7398 = vsub.f32 %v6170, %v7397
        %v7399 = vand.u32 %v7398, 4294901760
        %7400 = vmatpush1.msra.mxu0 %v7399
        %7401 = vmatprep.subr.mxu0 0.0
        %v7402 = vand.u32 %v6171, 4294901760
        %v7403 = vsub.f32 %v6171, %v7402
        %v7404 = vand.u32 %v7403, 4294901760
        %7405 = vmatpush1.msra.mxu0 %v7404
        %7406 = vmatprep.subr.mxu0 0.0
        %7407 = vmatpush1.msra.mxu0 0.0
        %7408 = vmatprep.subr.mxu0 0.0
        %7409 = vmatpush1.msra.mxu0 0.0
        %7410 = vmatprep.subr.mxu0 0.0
        %7411 = vmatpush1.msra.mxu0 0.0
        %7412 = vmatprep.subr.mxu0 0.0
        %7413 = vmatpush1.msra.mxu0 0.0
        %7414 = vmatprep.subr.mxu0 0.0
        %7415 = vmatpush1.msra.mxu0 0.0
        %7416 = vmatprep.subr.mxu0 0.0
        %7417 = vmatpush1.msra.mxu0 0.0
        %7418 = vmatprep.subr.mxu0 0.0
        %7419 = vmatpush1.msra.mxu0 0.0
        %7420 = vmatprep.subr.mxu0 0.0
        %7421 = vmatpush1.msra.mxu0 0.0
        %7422 = vmatprep.subr.mxu0 0.0
        %7423 = vmatpush1.msra.mxu0 0.0
        %7424 = vmatprep.subr.mxu0 0.0
        %7425 = vmatpush1.msra.mxu0 0.0
        %7426 = vmatprep.subr.mxu0 0.0
        %7427 = vmatpush1.msra.mxu0 0.0
        %7428 = vmatprep.subr.mxu0 0.0
        %7429 = vmatpush1.msra.mxu0 0.0
        %7430 = vmatprep.subr.mxu0 0.0
        %7431 = vmatpush1.msra.mxu0 0.0
        %7432 = vmatprep.subr.mxu0 0.0
        %7433 = vmatpush1.msra.mxu0 0.0
        %7434 = vmatprep.subr.mxu0 0.0
        %7435 = vmatpush1.msra.mxu0 0.0
        %7436 = vmatprep.subr.mxu0 0.0
        %7437 = vmatpush1.msra.mxu0 0.0
        %7438 = vmatprep.mubr.f32.mxu0 0.0
        %v7439 = vand.u32 %v6149, 4294901760
        %7440 = vmatmul.mubr.f32.gmra.mrb[0].mxu0 %v7439
        %v7441 = vpop.f32.mrb[0].mxu0
        %v7442 = vadd.f32 %v7299, %v7441
        %v7443 = vpop.f32.mrb[0].mxu0
        %7444 = vmatprep.mubr.f32.mxu0 0.0
        %v7445 = vand.u32 %v6151, 4294901760
        %7446 = vmatmul.mubr.f32.gmra.mrb[0].mxu0 %v7445
        %v7447 = vpop.f32.mrb[0].mxu0
        %v7448 = vadd.f32 %v7307, %v7447
        %v7449 = vpop.f32.mrb[0].mxu0
        %7450 = vmatprep.mubr.f32.mxu0 0.0
        %v7451 = vand.u32 %v6153, 4294901760
        %7452 = vmatmul.mubr.f32.gmra.mrb[0].mxu0 %v7451
        %v7453 = vpop.f32.mrb[0].mxu0
        %v7454 = vadd.f32 %v7315, %v7453
        %v7455 = vpop.f32.mrb[0].mxu0
        %7456 = vmatprep.mubr.f32.mxu0 0.0
        %v7457 = vand.u32 %v6155, 4294901760
        %7458 = vmatmul.mubr.f32.gmra.mrb[0].mxu0 %v7457
        %v7459 = vpop.f32.mrb[0].mxu0
        %v7460 = vadd.f32 %v7323, %v7459
        %v7461 = vpop.f32.mrb[0].mxu0
        %7462 = vdwg.mxu0
        %7463 = vmatprep.subr.mxu0 0.0
        %v7464 = vand.u32 %v6156, 4294901760
        %7465 = vmatpush1.msra.mxu0 %v7464
        %7466 = vmatprep.subr.mxu0 0.0
        %v7467 = vand.u32 %v6157, 4294901760
        %7468 = vmatpush1.msra.mxu0 %v7467
        %7469 = vmatprep.subr.mxu0 0.0
        %v7470 = vand.u32 %v6158, 4294901760
        %7471 = vmatpush1.msra.mxu0 %v7470
        %7472 = vmatprep.subr.mxu0 0.0
        %v7473 = vand.u32 %v6159, 4294901760
        %7474 = vmatpush1.msra.mxu0 %v7473
        %7475 = vmatprep.subr.mxu0 0.0
        %v7476 = vand.u32 %v6160, 4294901760
        %7477 = vmatpush1.msra.mxu0 %v7476
        %7478 = vmatprep.subr.mxu0 0.0
        %v7479 = vand.u32 %v6161, 4294901760
        %7480 = vmatpush1.msra.mxu0 %v7479
        %7481 = vmatprep.subr.mxu0 0.0
        %v7482 = vand.u32 %v6162, 4294901760
        %7483 = vmatpush1.msra.mxu0 %v7482
        %7484 = vmatprep.subr.mxu0 0.0
        %v7485 = vand.u32 %v6163, 4294901760
        %7486 = vmatpush1.msra.mxu0 %v7485
        %7487 = vmatprep.subr.mxu0 0.0
        %v7488 = vand.u32 %v6164, 4294901760
        %7489 = vmatpush1.msra.mxu0 %v7488
        %7490 = vmatprep.subr.mxu0 0.0
        %v7491 = vand.u32 %v6165, 4294901760
        %7492 = vmatpush1.msra.mxu0 %v7491
        %7493 = vmatprep.subr.mxu0 0.0
        %v7494 = vand.u32 %v6166, 4294901760
        %7495 = vmatpush1.msra.mxu0 %v7494
        %7496 = vmatprep.subr.mxu0 0.0
        %v7497 = vand.u32 %v6167, 4294901760
        %7498 = vmatpush1.msra.mxu0 %v7497
        %7499 = vmatprep.subr.mxu0 0.0
        %v7500 = vand.u32 %v6168, 4294901760
        %7501 = vmatpush1.msra.mxu0 %v7500
        %7502 = vmatprep.subr.mxu0 0.0
        %v7503 = vand.u32 %v6169, 4294901760
        %7504 = vmatpush1.msra.mxu0 %v7503
        %7505 = vmatprep.subr.mxu0 0.0
        %v7506 = vand.u32 %v6170, 4294901760
        %7507 = vmatpush1.msra.mxu0 %v7506
        %7508 = vmatprep.subr.mxu0 0.0
        %v7509 = vand.u32 %v6171, 4294901760
        %7510 = vmatpush1.msra.mxu0 %v7509
        %7511 = vmatprep.subr.mxu0 0.0
        %7512 = vmatpush1.msra.mxu0 0.0
        %7513 = vmatprep.subr.mxu0 0.0
        %7514 = vmatpush1.msra.mxu0 0.0
        %7515 = vmatprep.subr.mxu0 0.0
        %7516 = vmatpush1.msra.mxu0 0.0
        %7517 = vmatprep.subr.mxu0 0.0
        %7518 = vmatpush1.msra.mxu0 0.0
        %7519 = vmatprep.subr.mxu0 0.0
        %7520 = vmatpush1.msra.mxu0 0.0
        %7521 = vmatprep.subr.mxu0 0.0
        %7522 = vmatpush1.msra.mxu0 0.0
        %7523 = vmatprep.subr.mxu0 0.0
        %7524 = vmatpush1.msra.mxu0 0.0
        %7525 = vmatprep.subr.mxu0 0.0
        %7526 = vmatpush1.msra.mxu0 0.0
        %7527 = vmatprep.subr.mxu0 0.0
        %7528 = vmatpush1.msra.mxu0 0.0
        %7529 = vmatprep.subr.mxu0 0.0
        %7530 = vmatpush1.msra.mxu0 0.0
        %7531 = vmatprep.subr.mxu0 0.0
        %7532 = vmatpush1.msra.mxu0 0.0
        %7533 = vmatprep.subr.mxu0 0.0
        %7534 = vmatpush1.msra.mxu0 0.0
        %7535 = vmatprep.subr.mxu0 0.0
        %7536 = vmatpush1.msra.mxu0 0.0
        %7537 = vmatprep.subr.mxu0 0.0
        %7538 = vmatpush1.msra.mxu0 0.0
        %7539 = vmatprep.subr.mxu0 0.0
        %7540 = vmatpush1.msra.mxu0 0.0
        %7541 = vmatprep.subr.mxu0 0.0
        %7542 = vmatpush1.msra.mxu0 0.0
        %7543 = vmatprep.mubr.f32.mxu0 0.0
        %v7544 = vand.u32 %v6149, 4294901760
        %7545 = vmatmul.mubr.f32.gmra.mrb[0].mxu0 %v7544
        %v7546 = vpop.f32.mrb[0].mxu0
        %v7547 = vadd.f32 %v7442, %v7546
        %v7548 = vpop.f32.mrb[0].mxu0
        %7549 = vmatprep.mubr.f32.mxu0 0.0
        %v7550 = vand.u32 %v6151, 4294901760
        %7551 = vmatmul.mubr.f32.gmra.mrb[0].mxu0 %v7550
        %v7552 = vpop.f32.mrb[0].mxu0
        %v7553 = vadd.f32 %v7448, %v7552
        %v7554 = vpop.f32.mrb[0].mxu0
        %7555 = vmatprep.mubr.f32.mxu0 0.0
        %v7556 = vand.u32 %v6153, 4294901760
        %7557 = vmatmul.mubr.f32.gmra.mrb[0].mxu0 %v7556
        %v7558 = vpop.f32.mrb[0].mxu0
        %v7559 = vadd.f32 %v7454, %v7558
        %v7560 = vpop.f32.mrb[0].mxu0
        %7561 = vmatprep.mubr.f32.mxu0 0.0
        %v7562 = vand.u32 %v6155, 4294901760
        %7563 = vmatmul.mubr.f32.gmra.mrb[0].mxu0 %v7562
        %v7564 = vpop.f32.mrb[0].mxu0
        %v7565 = vadd.f32 %v7460, %v7564
        %v7566 = vpop.f32.mrb[0].mxu0
        %7567 = vdwg.mxu0
        %v7568 = vld [vmem:[%s10] sm:$0x1]
        %v7570 = vlaneseq
        %v7571 = vshrl.u32 %v7570, 7
        %v7572 = vsub.s32 0, %v7571
        %v7573 = vrot.slane %v7568, %v7572
        %v7575 = vadd.f32 %v7547, %v7573
        %v7576 = vadd.f32 %v7553, %v7573
        %v7577 = vadd.f32 %v7559, %v7573
        %v7578 = vadd.f32 %v7565, %v7573
        %v7579 = vmax.f32 %v7575, 0.0
        %v7580 = vmax.f32 %v7576, 0.0
        %v7581 = vmax.f32 %v7577, 0.0
        %v7582 = vmax.f32 %v7578, 0.0
        %v7583 = vld [vmem:[%s11] sm:$0xff]
        %v7584 = vld [vmem:[%s11 + $0x8] sm:$0xff]
        %v7585 = vld [vmem:[%s11 + $0x10] sm:$0xff]
        %v7586 = vld [vmem:[%s11 + $0x18] sm:$0xff]
        %v7587 = vld [vmem:[%s11 + $0x20] sm:$0xff]
        %v7588 = vld [vmem:[%s11 + $0x28] sm:$0xff]
        %v7589 = vld [vmem:[%s11 + $0x30] sm:$0xff]
        %v7590 = vld [vmem:[%s11 + $0x38] sm:$0xff]
        %v7591 = vld [vmem:[%s11 + $0x40] sm:$0xff]
        %v7592 = vld [vmem:[%s11 + $0x48] sm:$0xff]
        %v7593 = vld [vmem:[%s11 + $0x50] sm:$0xff]
        %v7594 = vld [vmem:[%s11 + $0x58] sm:$0xff]
        %v7595 = vld [vmem:[%s11 + $0x60] sm:$0xff]
        %v7596 = vld [vmem:[%s11 + $0x68] sm:$0xff]
        %v7597 = vld [vmem:[%s11 + $0x70] sm:$0xff]
        %v7598 = vld [vmem:[%s11 + $0x78] sm:$0xff]
        %v7599 = vld [vmem:[%s12] sm:$0x1]
        %v7601 = vlaneseq
        %v7602 = vshrl.u32 %v7601, 7
        %v7603 = vsub.s32 0, %v7602
        %v7604 = vrot.slane %v7599, %v7603
        %7606 = vmatprep.subr.mxu0 0.0
        %v7607 = vand.u32 %v7583, 4294901760
        %7608 = vmatpush1.msra.mxu0 %v7607
        %7609 = vmatprep.subr.mxu0 0.0
        %v7610 = vand.u32 %v7584, 4294901760
        %7611 = vmatpush1.msra.mxu0 %v7610
        %7612 = vmatprep.subr.mxu0 0.0
        %v7613 = vand.u32 %v7585, 4294901760
        %7614 = vmatpush1.msra.mxu0 %v7613
        %7615 = vmatprep.subr.mxu0 0.0
        %v7616 = vand.u32 %v7586, 4294901760
        %7617 = vmatpush1.msra.mxu0 %v7616
        %7618 = vmatprep.subr.mxu0 0.0
        %v7619 = vand.u32 %v7587, 4294901760
        %7620 = vmatpush1.msra.mxu0 %v7619
        %7621 = vmatprep.subr.mxu0 0.0
        %v7622 = vand.u32 %v7588, 4294901760
        %7623 = vmatpush1.msra.mxu0 %v7622
        %7624 = vmatprep.subr.mxu0 0.0
        %v7625 = vand.u32 %v7589, 4294901760
        %7626 = vmatpush1.msra.mxu0 %v7625
        %7627 = vmatprep.subr.mxu0 0.0
        %v7628 = vand.u32 %v7590, 4294901760
        %7629 = vmatpush1.msra.mxu0 %v7628
        %7630 = vmatprep.subr.mxu0 0.0
        %v7631 = vand.u32 %v7591, 4294901760
        %7632 = vmatpush1.msra.mxu0 %v7631
        %7633 = vmatprep.subr.mxu0 0.0
        %v7634 = vand.u32 %v7592, 4294901760
        %7635 = vmatpush1.msra.mxu0 %v7634
        %7636 = vmatprep.subr.mxu0 0.0
        %v7637 = vand.u32 %v7593, 4294901760
        %7638 = vmatpush1.msra.mxu0 %v7637
        %7639 = vmatprep.subr.mxu0 0.0
        %v7640 = vand.u32 %v7594, 4294901760
        %7641 = vmatpush1.msra.mxu0 %v7640
        %7642 = vmatprep.subr.mxu0 0.0
        %v7643 = vand.u32 %v7595, 4294901760
        %7644 = vmatpush1.msra.mxu0 %v7643
        %7645 = vmatprep.subr.mxu0 0.0
        %v7646 = vand.u32 %v7596, 4294901760
        %7647 = vmatpush1.msra.mxu0 %v7646
        %7648 = vmatprep.subr.mxu0 0.0
        %v7649 = vand.u32 %v7597, 4294901760
        %7650 = vmatpush1.msra.mxu0 %v7649
        %7651 = vmatprep.subr.mxu0 0.0
        %v7652 = vand.u32 %v7598, 4294901760
        %7653 = vmatpush1.msra.mxu0 %v7652
        %7654 = vmatprep.subr.mxu0 0.0
        %7655 = vmatpush1.msra.mxu0 0.0
        %7656 = vmatprep.subr.mxu0 0.0
        %7657 = vmatpush1.msra.mxu0 0.0
        %7658 = vmatprep.subr.mxu0 0.0
        %7659 = vmatpush1.msra.mxu0 0.0
        %7660 = vmatprep.subr.mxu0 0.0
        %7661 = vmatpush1.msra.mxu0 0.0
        %7662 = vmatprep.subr.mxu0 0.0
        %7663 = vmatpush1.msra.mxu0 0.0
        %7664 = vmatprep.subr.mxu0 0.0
        %7665 = vmatpush1.msra.mxu0 0.0
        %7666 = vmatprep.subr.mxu0 0.0
        %7667 = vmatpush1.msra.mxu0 0.0
        %7668 = vmatprep.subr.mxu0 0.0
        %7669 = vmatpush1.msra.mxu0 0.0
        %7670 = vmatprep.subr.mxu0 0.0
        %7671 = vmatpush1.msra.mxu0 0.0
        %7672 = vmatprep.subr.mxu0 0.0
        %7673 = vmatpush1.msra.mxu0 0.0
        %7674 = vmatprep.subr.mxu0 0.0
        %7675 = vmatpush1.msra.mxu0 0.0
        %7676 = vmatprep.subr.mxu0 0.0
        %7677 = vmatpush1.msra.mxu0 0.0
        %7678 = vmatprep.subr.mxu0 0.0
        %7679 = vmatpush1.msra.mxu0 0.0
        %7680 = vmatprep.subr.mxu0 0.0
        %7681 = vmatpush1.msra.mxu0 0.0
        %7682 = vmatprep.subr.mxu0 0.0
        %7683 = vmatpush1.msra.mxu0 0.0
        %7684 = vmatprep.subr.mxu0 0.0
        %7685 = vmatpush1.msra.mxu0 0.0
        %7686 = vmatprep.mubr.f32.mxu0 0.0
        %v7687 = vand.u32 %v7579, 4294901760
        %v7688 = vsub.f32 %v7579, %v7687
        %v7689 = vand.u32 %v7688, 4294901760
        %v7690 = vsub.f32 %v7688, %v7689
        %v7691 = vand.u32 %v7690, 4294901760
        %7692 = vmatmul.mubr.f32.gmra.mrb[0].mxu0 %v7691
        %v7693 = vpop.f32.mrb[0].mxu0
        %v7694 = vadd.f32 %v7604, %v7693
        %v7695 = vpop.f32.mrb[0].mxu0
        %7696 = vmatprep.mubr.f32.mxu0 0.0
        %v7697 = vand.u32 %v7580, 4294901760
        %v7698 = vsub.f32 %v7580, %v7697
        %v7699 = vand.u32 %v7698, 4294901760
        %v7700 = vsub.f32 %v7698, %v7699
        %v7701 = vand.u32 %v7700, 4294901760
        %7702 = vmatmul.mubr.f32.gmra.mrb[0].mxu0 %v7701
        %v7703 = vpop.f32.mrb[0].mxu0
        %v7704 = vadd.f32 %v7604, %v7703
        %v7705 = vpop.f32.mrb[0].mxu0
        %7706 = vmatprep.mubr.f32.mxu0 0.0
        %v7707 = vand.u32 %v7581, 4294901760
        %v7708 = vsub.f32 %v7581, %v7707
        %v7709 = vand.u32 %v7708, 4294901760
        %v7710 = vsub.f32 %v7708, %v7709
        %v7711 = vand.u32 %v7710, 4294901760
        %7712 = vmatmul.mubr.f32.gmra.mrb[0].mxu0 %v7711
        %v7713 = vpop.f32.mrb[0].mxu0
        %v7714 = vadd.f32 %v7604, %v7713
        %v7715 = vpop.f32.mrb[0].mxu0
        %7716 = vmatprep.mubr.f32.mxu0 0.0
        %v7717 = vand.u32 %v7582, 4294901760
        %v7718 = vsub.f32 %v7582, %v7717
        %v7719 = vand.u32 %v7718, 4294901760
        %v7720 = vsub.f32 %v7718, %v7719
        %v7721 = vand.u32 %v7720, 4294901760
        %7722 = vmatmul.mubr.f32.gmra.mrb[0].mxu0 %v7721
        %v7723 = vpop.f32.mrb[0].mxu0
        %v7724 = vadd.f32 %v7604, %v7723
        %v7725 = vpop.f32.mrb[0].mxu0
        %7726 = vdwg.mxu0
        %7727 = vmatprep.subr.mxu0 0.0
        %v7728 = vand.u32 %v7583, 4294901760
        %v7729 = vsub.f32 %v7583, %v7728
        %v7730 = vand.u32 %v7729, 4294901760
        %v7731 = vsub.f32 %v7729, %v7730
        %v7732 = vand.u32 %v7731, 4294901760
        %7733 = vmatpush1.msra.mxu0 %v7732
        %7734 = vmatprep.subr.mxu0 0.0
        %v7735 = vand.u32 %v7584, 4294901760
        %v7736 = vsub.f32 %v7584, %v7735
        %v7737 = vand.u32 %v7736, 4294901760
        %v7738 = vsub.f32 %v7736, %v7737
        %v7739 = vand.u32 %v7738, 4294901760
        %7740 = vmatpush1.msra.mxu0 %v7739
        %7741 = vmatprep.subr.mxu0 0.0
        %v7742 = vand.u32 %v7585, 4294901760
        %v7743 = vsub.f32 %v7585, %v7742
        %v7744 = vand.u32 %v7743, 4294901760
        %v7745 = vsub.f32 %v7743, %v7744
        %v7746 = vand.u32 %v7745, 4294901760
        %7747 = vmatpush1.msra.mxu0 %v7746
        %7748 = vmatprep.subr.mxu0 0.0
        %v7749 = vand.u32 %v7586, 4294901760
        %v7750 = vsub.f32 %v7586, %v7749
        %v7751 = vand.u32 %v7750, 4294901760
        %v7752 = vsub.f32 %v7750, %v7751
        %v7753 = vand.u32 %v7752, 4294901760
        %7754 = vmatpush1.msra.mxu0 %v7753
        %7755 = vmatprep.subr.mxu0 0.0
        %v7756 = vand.u32 %v7587, 4294901760
        %v7757 = vsub.f32 %v7587, %v7756
        %v7758 = vand.u32 %v7757, 4294901760
        %v7759 = vsub.f32 %v7757, %v7758
        %v7760 = vand.u32 %v7759, 4294901760
        %7761 = vmatpush1.msra.mxu0 %v7760
        %7762 = vmatprep.subr.mxu0 0.0
        %v7763 = vand.u32 %v7588, 4294901760
        %v7764 = vsub.f32 %v7588, %v7763
        %v7765 = vand.u32 %v7764, 4294901760
        %v7766 = vsub.f32 %v7764, %v7765
        %v7767 = vand.u32 %v7766, 4294901760
        %7768 = vmatpush1.msra.mxu0 %v7767
        %7769 = vmatprep.subr.mxu0 0.0
        %v7770 = vand.u32 %v7589, 4294901760
        %v7771 = vsub.f32 %v7589, %v7770
        %v7772 = vand.u32 %v7771, 4294901760
        %v7773 = vsub.f32 %v7771, %v7772
        %v7774 = vand.u32 %v7773, 4294901760
        %7775 = vmatpush1.msra.mxu0 %v7774
        %7776 = vmatprep.subr.mxu0 0.0
        %v7777 = vand.u32 %v7590, 4294901760
        %v7778 = vsub.f32 %v7590, %v7777
        %v7779 = vand.u32 %v7778, 4294901760
        %v7780 = vsub.f32 %v7778, %v7779
        %v7781 = vand.u32 %v7780, 4294901760
        %7782 = vmatpush1.msra.mxu0 %v7781
        %7783 = vmatprep.subr.mxu0 0.0
        %v7784 = vand.u32 %v7591, 4294901760
        %v7785 = vsub.f32 %v7591, %v7784
        %v7786 = vand.u32 %v7785, 4294901760
        %v7787 = vsub.f32 %v7785, %v7786
        %v7788 = vand.u32 %v7787, 4294901760
        %7789 = vmatpush1.msra.mxu0 %v7788
        %7790 = vmatprep.subr.mxu0 0.0
        %v7791 = vand.u32 %v7592, 4294901760
        %v7792 = vsub.f32 %v7592, %v7791
        %v7793 = vand.u32 %v7792, 4294901760
        %v7794 = vsub.f32 %v7792, %v7793
        %v7795 = vand.u32 %v7794, 4294901760
        %7796 = vmatpush1.msra.mxu0 %v7795
        %7797 = vmatprep.subr.mxu0 0.0
        %v7798 = vand.u32 %v7593, 4294901760
        %v7799 = vsub.f32 %v7593, %v7798
        %v7800 = vand.u32 %v7799, 4294901760
        %v7801 = vsub.f32 %v7799, %v7800
        %v7802 = vand.u32 %v7801, 4294901760
        %7803 = vmatpush1.msra.mxu0 %v7802
        %7804 = vmatprep.subr.mxu0 0.0
        %v7805 = vand.u32 %v7594, 4294901760
        %v7806 = vsub.f32 %v7594, %v7805
        %v7807 = vand.u32 %v7806, 4294901760
        %v7808 = vsub.f32 %v7806, %v7807
        %v7809 = vand.u32 %v7808, 4294901760
        %7810 = vmatpush1.msra.mxu0 %v7809
        %7811 = vmatprep.subr.mxu0 0.0
        %v7812 = vand.u32 %v7595, 4294901760
        %v7813 = vsub.f32 %v7595, %v7812
        %v7814 = vand.u32 %v7813, 4294901760
        %v7815 = vsub.f32 %v7813, %v7814
        %v7816 = vand.u32 %v7815, 4294901760
        %7817 = vmatpush1.msra.mxu0 %v7816
        %7818 = vmatprep.subr.mxu0 0.0
        %v7819 = vand.u32 %v7596, 4294901760
        %v7820 = vsub.f32 %v7596, %v7819
        %v7821 = vand.u32 %v7820, 4294901760
        %v7822 = vsub.f32 %v7820, %v7821
        %v7823 = vand.u32 %v7822, 4294901760
        %7824 = vmatpush1.msra.mxu0 %v7823
        %7825 = vmatprep.subr.mxu0 0.0
        %v7826 = vand.u32 %v7597, 4294901760
        %v7827 = vsub.f32 %v7597, %v7826
        %v7828 = vand.u32 %v7827, 4294901760
        %v7829 = vsub.f32 %v7827, %v7828
        %v7830 = vand.u32 %v7829, 4294901760
        %7831 = vmatpush1.msra.mxu0 %v7830
        %7832 = vmatprep.subr.mxu0 0.0
        %v7833 = vand.u32 %v7598, 4294901760
        %v7834 = vsub.f32 %v7598, %v7833
        %v7835 = vand.u32 %v7834, 4294901760
        %v7836 = vsub.f32 %v7834, %v7835
        %v7837 = vand.u32 %v7836, 4294901760
        %7838 = vmatpush1.msra.mxu0 %v7837
        %7839 = vmatprep.subr.mxu0 0.0
        %7840 = vmatpush1.msra.mxu0 0.0
        %7841 = vmatprep.subr.mxu0 0.0
        %7842 = vmatpush1.msra.mxu0 0.0
        %7843 = vmatprep.subr.mxu0 0.0
        %7844 = vmatpush1.msra.mxu0 0.0
        %7845 = vmatprep.subr.mxu0 0.0
        %7846 = vmatpush1.msra.mxu0 0.0
        %7847 = vmatprep.subr.mxu0 0.0
        %7848 = vmatpush1.msra.mxu0 0.0
        %7849 = vmatprep.subr.mxu0 0.0
        %7850 = vmatpush1.msra.mxu0 0.0
        %7851 = vmatprep.subr.mxu0 0.0
        %7852 = vmatpush1.msra.mxu0 0.0
        %7853 = vmatprep.subr.mxu0 0.0
        %7854 = vmatpush1.msra.mxu0 0.0
        %7855 = vmatprep.subr.mxu0 0.0
        %7856 = vmatpush1.msra.mxu0 0.0
        %7857 = vmatprep.subr.mxu0 0.0
        %7858 = vmatpush1.msra.mxu0 0.0
        %7859 = vmatprep.subr.mxu0 0.0
        %7860 = vmatpush1.msra.mxu0 0.0
        %7861 = vmatprep.subr.mxu0 0.0
        %7862 = vmatpush1.msra.mxu0 0.0
        %7863 = vmatprep.subr.mxu0 0.0
        %7864 = vmatpush1.msra.mxu0 0.0
        %7865 = vmatprep.subr.mxu0 0.0
        %7866 = vmatpush1.msra.mxu0 0.0
        %7867 = vmatprep.subr.mxu0 0.0
        %7868 = vmatpush1.msra.mxu0 0.0
        %7869 = vmatprep.subr.mxu0 0.0
        %7870 = vmatpush1.msra.mxu0 0.0
        %7871 = vmatprep.mubr.f32.mxu0 0.0
        %v7872 = vand.u32 %v7579, 4294901760
        %7873 = vmatmul.mubr.f32.gmra.mrb[0].mxu0 %v7872
        %v7874 = vpop.f32.mrb[0].mxu0
        %v7875 = vadd.f32 %v7694, %v7874
        %v7876 = vpop.f32.mrb[0].mxu0
        %7877 = vmatprep.mubr.f32.mxu0 0.0
        %v7878 = vand.u32 %v7580, 4294901760
        %7879 = vmatmul.mubr.f32.gmra.mrb[0].mxu0 %v7878
        %v7880 = vpop.f32.mrb[0].mxu0
        %v7881 = vadd.f32 %v7704, %v7880
        %v7882 = vpop.f32.mrb[0].mxu0
        %7883 = vmatprep.mubr.f32.mxu0 0.0
        %v7884 = vand.u32 %v7581, 4294901760
        %7885 = vmatmul.mubr.f32.gmra.mrb[0].mxu0 %v7884
        %v7886 = vpop.f32.mrb[0].mxu0
        %v7887 = vadd.f32 %v7714, %v7886
        %v7888 = vpop.f32.mrb[0].mxu0
        %7889 = vmatprep.mubr.f32.mxu0 0.0
        %v7890 = vand.u32 %v7582, 4294901760
        %7891 = vmatmul.mubr.f32.gmra.mrb[0].mxu0 %v7890
        %v7892 = vpop.f32.mrb[0].mxu0
        %v7893 = vadd.f32 %v7724, %v7892
        %v7894 = vpop.f32.mrb[0].mxu0
        %7895 = vdwg.mxu0
        %7896 = vmatprep.subr.mxu0 0.0
        %v7897 = vand.u32 %v7583, 4294901760
        %v7898 = vsub.f32 %v7583, %v7897
        %7899 = vmatpush1.msra.mxu0 %v7898
        %7900 = vmatprep.subr.mxu0 0.0
        %v7901 = vand.u32 %v7584, 4294901760
        %v7902 = vsub.f32 %v7584, %v7901
        %7903 = vmatpush1.msra.mxu0 %v7902
        %7904 = vmatprep.subr.mxu0 0.0
        %v7905 = vand.u32 %v7585, 4294901760
        %v7906 = vsub.f32 %v7585, %v7905
        %7907 = vmatpush1.msra.mxu0 %v7906
        %7908 = vmatprep.subr.mxu0 0.0
        %v7909 = vand.u32 %v7586, 4294901760
        %v7910 = vsub.f32 %v7586, %v7909
        %7911 = vmatpush1.msra.mxu0 %v7910
        %7912 = vmatprep.subr.mxu0 0.0
        %v7913 = vand.u32 %v7587, 4294901760
        %v7914 = vsub.f32 %v7587, %v7913
        %7915 = vmatpush1.msra.mxu0 %v7914
        %7916 = vmatprep.subr.mxu0 0.0
        %v7917 = vand.u32 %v7588, 4294901760
        %v7918 = vsub.f32 %v7588, %v7917
        %7919 = vmatpush1.msra.mxu0 %v7918
        %7920 = vmatprep.subr.mxu0 0.0
        %v7921 = vand.u32 %v7589, 4294901760
        %v7922 = vsub.f32 %v7589, %v7921
        %7923 = vmatpush1.msra.mxu0 %v7922
        %7924 = vmatprep.subr.mxu0 0.0
        %v7925 = vand.u32 %v7590, 4294901760
        %v7926 = vsub.f32 %v7590, %v7925
        %7927 = vmatpush1.msra.mxu0 %v7926
        %7928 = vmatprep.subr.mxu0 0.0
        %v7929 = vand.u32 %v7591, 4294901760
        %v7930 = vsub.f32 %v7591, %v7929
        %7931 = vmatpush1.msra.mxu0 %v7930
        %7932 = vmatprep.subr.mxu0 0.0
        %v7933 = vand.u32 %v7592, 4294901760
        %v7934 = vsub.f32 %v7592, %v7933
        %7935 = vmatpush1.msra.mxu0 %v7934
        %7936 = vmatprep.subr.mxu0 0.0
        %v7937 = vand.u32 %v7593, 4294901760
        %v7938 = vsub.f32 %v7593, %v7937
        %7939 = vmatpush1.msra.mxu0 %v7938
        %7940 = vmatprep.subr.mxu0 0.0
        %v7941 = vand.u32 %v7594, 4294901760
        %v7942 = vsub.f32 %v7594, %v7941
        %7943 = vmatpush1.msra.mxu0 %v7942
        %7944 = vmatprep.subr.mxu0 0.0
        %v7945 = vand.u32 %v7595, 4294901760
        %v7946 = vsub.f32 %v7595, %v7945
        %7947 = vmatpush1.msra.mxu0 %v7946
        %7948 = vmatprep.subr.mxu0 0.0
        %v7949 = vand.u32 %v7596, 4294901760
        %v7950 = vsub.f32 %v7596, %v7949
        %7951 = vmatpush1.msra.mxu0 %v7950
        %7952 = vmatprep.subr.mxu0 0.0
        %v7953 = vand.u32 %v7597, 4294901760
        %v7954 = vsub.f32 %v7597, %v7953
        %7955 = vmatpush1.msra.mxu0 %v7954
        %7956 = vmatprep.subr.mxu0 0.0
        %v7957 = vand.u32 %v7598, 4294901760
        %v7958 = vsub.f32 %v7598, %v7957
        %7959 = vmatpush1.msra.mxu0 %v7958
        %7960 = vmatprep.subr.mxu0 0.0
        %7961 = vmatpush1.msra.mxu0 0.0
        %7962 = vmatprep.subr.mxu0 0.0
        %7963 = vmatpush1.msra.mxu0 0.0
        %7964 = vmatprep.subr.mxu0 0.0
        %7965 = vmatpush1.msra.mxu0 0.0
        %7966 = vmatprep.subr.mxu0 0.0
        %7967 = vmatpush1.msra.mxu0 0.0
        %7968 = vmatprep.subr.mxu0 0.0
        %7969 = vmatpush1.msra.mxu0 0.0
        %7970 = vmatprep.subr.mxu0 0.0
        %7971 = vmatpush1.msra.mxu0 0.0
        %7972 = vmatprep.subr.mxu0 0.0
        %7973 = vmatpush1.msra.mxu0 0.0
        %7974 = vmatprep.subr.mxu0 0.0
        %7975 = vmatpush1.msra.mxu0 0.0
        %7976 = vmatprep.subr.mxu0 0.0
        %7977 = vmatpush1.msra.mxu0 0.0
        %7978 = vmatprep.subr.mxu0 0.0
        %7979 = vmatpush1.msra.mxu0 0.0
        %7980 = vmatprep.subr.mxu0 0.0
        %7981 = vmatpush1.msra.mxu0 0.0
        %7982 = vmatprep.subr.mxu0 0.0
        %7983 = vmatpush1.msra.mxu0 0.0
        %7984 = vmatprep.subr.mxu0 0.0
        %7985 = vmatpush1.msra.mxu0 0.0
        %7986 = vmatprep.subr.mxu0 0.0
        %7987 = vmatpush1.msra.mxu0 0.0
        %7988 = vmatprep.subr.mxu0 0.0
        %7989 = vmatpush1.msra.mxu0 0.0
        %7990 = vmatprep.subr.mxu0 0.0
        %7991 = vmatpush1.msra.mxu0 0.0
        %7992 = vmatprep.mubr.f32.mxu0 0.0
        %v7993 = vand.u32 %v7579, 4294901760
        %v7994 = vsub.f32 %v7579, %v7993
        %7995 = vmatmul.mubr.f32.gmra.mrb[0].mxu0 %v7994
        %v7996 = vpop.f32.mrb[0].mxu0
        %v7997 = vadd.f32 %v7875, %v7996
        %v7998 = vpop.f32.mrb[0].mxu0
        %7999 = vmatprep.mubr.f32.mxu0 0.0
        %v8000 = vand.u32 %v7580, 4294901760
        %v8001 = vsub.f32 %v7580, %v8000
        %8002 = vmatmul.mubr.f32.gmra.mrb[0].mxu0 %v8001
        %v8003 = vpop.f32.mrb[0].mxu0
        %v8004 = vadd.f32 %v7881, %v8003
        %v8005 = vpop.f32.mrb[0].mxu0
        %8006 = vmatprep.mubr.f32.mxu0 0.0
        %v8007 = vand.u32 %v7581, 4294901760
        %v8008 = vsub.f32 %v7581, %v8007
        %8009 = vmatmul.mubr.f32.gmra.mrb[0].mxu0 %v8008
        %v8010 = vpop.f32.mrb[0].mxu0
        %v8011 = vadd.f32 %v7887, %v8010
        %v8012 = vpop.f32.mrb[0].mxu0
        %8013 = vmatprep.mubr.f32.mxu0 0.0
        %v8014 = vand.u32 %v7582, 4294901760
        %v8015 = vsub.f32 %v7582, %v8014
        %8016 = vmatmul.mubr.f32.gmra.mrb[0].mxu0 %v8015
        %v8017 = vpop.f32.mrb[0].mxu0
        %v8018 = vadd.f32 %v7893, %v8017
        %v8019 = vpop.f32.mrb[0].mxu0
        %8020 = vdwg.mxu0
        %8021 = vmatprep.subr.mxu0 0.0
        %v8022 = vand.u32 %v7583, 4294901760
        %8023 = vmatpush1.msra.mxu0 %v8022
        %8024 = vmatprep.subr.mxu0 0.0
        %v8025 = vand.u32 %v7584, 4294901760
        %8026 = vmatpush1.msra.mxu0 %v8025
        %8027 = vmatprep.subr.mxu0 0.0
        %v8028 = vand.u32 %v7585, 4294901760
        %8029 = vmatpush1.msra.mxu0 %v8028
        %8030 = vmatprep.subr.mxu0 0.0
        %v8031 = vand.u32 %v7586, 4294901760
        %8032 = vmatpush1.msra.mxu0 %v8031
        %8033 = vmatprep.subr.mxu0 0.0
        %v8034 = vand.u32 %v7587, 4294901760
        %8035 = vmatpush1.msra.mxu0 %v8034
        %8036 = vmatprep.subr.mxu0 0.0
        %v8037 = vand.u32 %v7588, 4294901760
        %8038 = vmatpush1.msra.mxu0 %v8037
        %8039 = vmatprep.subr.mxu0 0.0
        %v8040 = vand.u32 %v7589, 4294901760
        %8041 = vmatpush1.msra.mxu0 %v8040
        %8042 = vmatprep.subr.mxu0 0.0
        %v8043 = vand.u32 %v7590, 4294901760
        %8044 = vmatpush1.msra.mxu0 %v8043
        %8045 = vmatprep.subr.mxu0 0.0
        %v8046 = vand.u32 %v7591, 4294901760
        %8047 = vmatpush1.msra.mxu0 %v8046
        %8048 = vmatprep.subr.mxu0 0.0
        %v8049 = vand.u32 %v7592, 4294901760
        %8050 = vmatpush1.msra.mxu0 %v8049
        %8051 = vmatprep.subr.mxu0 0.0
        %v8052 = vand.u32 %v7593, 4294901760
        %8053 = vmatpush1.msra.mxu0 %v8052
        %8054 = vmatprep.subr.mxu0 0.0
        %v8055 = vand.u32 %v7594, 4294901760
        %8056 = vmatpush1.msra.mxu0 %v8055
        %8057 = vmatprep.subr.mxu0 0.0
        %v8058 = vand.u32 %v7595, 4294901760
        %8059 = vmatpush1.msra.mxu0 %v8058
        %8060 = vmatprep.subr.mxu0 0.0
        %v8061 = vand.u32 %v7596, 4294901760
        %8062 = vmatpush1.msra.mxu0 %v8061
        %8063 = vmatprep.subr.mxu0 0.0
        %v8064 = vand.u32 %v7597, 4294901760
        %8065 = vmatpush1.msra.mxu0 %v8064
        %8066 = vmatprep.subr.mxu0 0.0
        %v8067 = vand.u32 %v7598, 4294901760
        %8068 = vmatpush1.msra.mxu0 %v8067
        %8069 = vmatprep.subr.mxu0 0.0
        %8070 = vmatpush1.msra.mxu0 0.0
        %8071 = vmatprep.subr.mxu0 0.0
        %8072 = vmatpush1.msra.mxu0 0.0
        %8073 = vmatprep.subr.mxu0 0.0
        %8074 = vmatpush1.msra.mxu0 0.0
        %8075 = vmatprep.subr.mxu0 0.0
        %8076 = vmatpush1.msra.mxu0 0.0
        %8077 = vmatprep.subr.mxu0 0.0
        %8078 = vmatpush1.msra.mxu0 0.0
        %8079 = vmatprep.subr.mxu0 0.0
        %8080 = vmatpush1.msra.mxu0 0.0
        %8081 = vmatprep.subr.mxu0 0.0
        %8082 = vmatpush1.msra.mxu0 0.0
        %8083 = vmatprep.subr.mxu0 0.0
        %8084 = vmatpush1.msra.mxu0 0.0
        %8085 = vmatprep.subr.mxu0 0.0
        %8086 = vmatpush1.msra.mxu0 0.0
        %8087 = vmatprep.subr.mxu0 0.0
        %8088 = vmatpush1.msra.mxu0 0.0
        %8089 = vmatprep.subr.mxu0 0.0
        %8090 = vmatpush1.msra.mxu0 0.0
        %8091 = vmatprep.subr.mxu0 0.0
        %8092 = vmatpush1.msra.mxu0 0.0
        %8093 = vmatprep.subr.mxu0 0.0
        %8094 = vmatpush1.msra.mxu0 0.0
        %8095 = vmatprep.subr.mxu0 0.0
        %8096 = vmatpush1.msra.mxu0 0.0
        %8097 = vmatprep.subr.mxu0 0.0
        %8098 = vmatpush1.msra.mxu0 0.0
        %8099 = vmatprep.subr.mxu0 0.0
        %8100 = vmatpush1.msra.mxu0 0.0
        %8101 = vmatprep.mubr.f32.mxu0 0.0
        %v8102 = vand.u32 %v7579, 4294901760
        %v8103 = vsub.f32 %v7579, %v8102
        %v8104 = vand.u32 %v8103, 4294901760
        %8105 = vmatmul.mubr.f32.gmra.mrb[0].mxu0 %v8104
        %v8106 = vpop.f32.mrb[0].mxu0
        %v8107 = vadd.f32 %v7997, %v8106
        %v8108 = vpop.f32.mrb[0].mxu0
        %8109 = vmatprep.mubr.f32.mxu0 0.0
        %v8110 = vand.u32 %v7580, 4294901760
        %v8111 = vsub.f32 %v7580, %v8110
        %v8112 = vand.u32 %v8111, 4294901760
        %8113 = vmatmul.mubr.f32.gmra.mrb[0].mxu0 %v8112
        %v8114 = vpop.f32.mrb[0].mxu0
        %v8115 = vadd.f32 %v8004, %v8114
        %v8116 = vpop.f32.mrb[0].mxu0
        %8117 = vmatprep.mubr.f32.mxu0 0.0
        %v8118 = vand.u32 %v7581, 4294901760
        %v8119 = vsub.f32 %v7581, %v8118
        %v8120 = vand.u32 %v8119, 4294901760
        %8121 = vmatmul.mubr.f32.gmra.mrb[0].mxu0 %v8120
        %v8122 = vpop.f32.mrb[0].mxu0
        %v8123 = vadd.f32 %v8011, %v8122
        %v8124 = vpop.f32.mrb[0].mxu0
        %8125 = vmatprep.mubr.f32.mxu0 0.0
        %v8126 = vand.u32 %v7582, 4294901760
        %v8127 = vsub.f32 %v7582, %v8126
        %v8128 = vand.u32 %v8127, 4294901760
        %8129 = vmatmul.mubr.f32.gmra.mrb[0].mxu0 %v8128
        %v8130 = vpop.f32.mrb[0].mxu0
        %v8131 = vadd.f32 %v8018, %v8130
        %v8132 = vpop.f32.mrb[0].mxu0
        %8133 = vdwg.mxu0
        %8134 = vmatprep.subr.mxu0 0.0
        %v8135 = vand.u32 %v7583, 4294901760
        %v8136 = vsub.f32 %v7583, %v8135
        %v8137 = vand.u32 %v8136, 4294901760
        %8138 = vmatpush1.msra.mxu0 %v8137
        %8139 = vmatprep.subr.mxu0 0.0
        %v8140 = vand.u32 %v7584, 4294901760
        %v8141 = vsub.f32 %v7584, %v8140
        %v8142 = vand.u32 %v8141, 4294901760
        %8143 = vmatpush1.msra.mxu0 %v8142
        %8144 = vmatprep.subr.mxu0 0.0
        %v8145 = vand.u32 %v7585, 4294901760
        %v8146 = vsub.f32 %v7585, %v8145
        %v8147 = vand.u32 %v8146, 4294901760
        %8148 = vmatpush1.msra.mxu0 %v8147
        %8149 = vmatprep.subr.mxu0 0.0
        %v8150 = vand.u32 %v7586, 4294901760
        %v8151 = vsub.f32 %v7586, %v8150
        %v8152 = vand.u32 %v8151, 4294901760
        %8153 = vmatpush1.msra.mxu0 %v8152
        %8154 = vmatprep.subr.mxu0 0.0
        %v8155 = vand.u32 %v7587, 4294901760
        %v8156 = vsub.f32 %v7587, %v8155
        %v8157 = vand.u32 %v8156, 4294901760
        %8158 = vmatpush1.msra.mxu0 %v8157
        %8159 = vmatprep.subr.mxu0 0.0
        %v8160 = vand.u32 %v7588, 4294901760
        %v8161 = vsub.f32 %v7588, %v8160
        %v8162 = vand.u32 %v8161, 4294901760
        %8163 = vmatpush1.msra.mxu0 %v8162
        %8164 = vmatprep.subr.mxu0 0.0
        %v8165 = vand.u32 %v7589, 4294901760
        %v8166 = vsub.f32 %v7589, %v8165
        %v8167 = vand.u32 %v8166, 4294901760
        %8168 = vmatpush1.msra.mxu0 %v8167
        %8169 = vmatprep.subr.mxu0 0.0
        %v8170 = vand.u32 %v7590, 4294901760
        %v8171 = vsub.f32 %v7590, %v8170
        %v8172 = vand.u32 %v8171, 4294901760
        %8173 = vmatpush1.msra.mxu0 %v8172
        %8174 = vmatprep.subr.mxu0 0.0
        %v8175 = vand.u32 %v7591, 4294901760
        %v8176 = vsub.f32 %v7591, %v8175
        %v8177 = vand.u32 %v8176, 4294901760
        %8178 = vmatpush1.msra.mxu0 %v8177
        %8179 = vmatprep.subr.mxu0 0.0
        %v8180 = vand.u32 %v7592, 4294901760
        %v8181 = vsub.f32 %v7592, %v8180
        %v8182 = vand.u32 %v8181, 4294901760
        %8183 = vmatpush1.msra.mxu0 %v8182
        %8184 = vmatprep.subr.mxu0 0.0
        %v8185 = vand.u32 %v7593, 4294901760
        %v8186 = vsub.f32 %v7593, %v8185
        %v8187 = vand.u32 %v8186, 4294901760
        %8188 = vmatpush1.msra.mxu0 %v8187
        %8189 = vmatprep.subr.mxu0 0.0
        %v8190 = vand.u32 %v7594, 4294901760
        %v8191 = vsub.f32 %v7594, %v8190
        %v8192 = vand.u32 %v8191, 4294901760
        %8193 = vmatpush1.msra.mxu0 %v8192
        %8194 = vmatprep.subr.mxu0 0.0
        %v8195 = vand.u32 %v7595, 4294901760
        %v8196 = vsub.f32 %v7595, %v8195
        %v8197 = vand.u32 %v8196, 4294901760
        %8198 = vmatpush1.msra.mxu0 %v8197
        %8199 = vmatprep.subr.mxu0 0.0
        %v8200 = vand.u32 %v7596, 4294901760
        %v8201 = vsub.f32 %v7596, %v8200
        %v8202 = vand.u32 %v8201, 4294901760
        %8203 = vmatpush1.msra.mxu0 %v8202
        %8204 = vmatprep.subr.mxu0 0.0
        %v8205 = vand.u32 %v7597, 4294901760
        %v8206 = vsub.f32 %v7597, %v8205
        %v8207 = vand.u32 %v8206, 4294901760
        %8208 = vmatpush1.msra.mxu0 %v8207
        %8209 = vmatprep.subr.mxu0 0.0
        %v8210 = vand.u32 %v7598, 4294901760
        %v8211 = vsub.f32 %v7598, %v8210
        %v8212 = vand.u32 %v8211, 4294901760
        %8213 = vmatpush1.msra.mxu0 %v8212
        %8214 = vmatprep.subr.mxu0 0.0
        %8215 = vmatpush1.msra.mxu0 0.0
        %8216 = vmatprep.subr.mxu0 0.0
        %8217 = vmatpush1.msra.mxu0 0.0
        %8218 = vmatprep.subr.mxu0 0.0
        %8219 = vmatpush1.msra.mxu0 0.0
        %8220 = vmatprep.subr.mxu0 0.0
        %8221 = vmatpush1.msra.mxu0 0.0
        %8222 = vmatprep.subr.mxu0 0.0
        %8223 = vmatpush1.msra.mxu0 0.0
        %8224 = vmatprep.subr.mxu0 0.0
        %8225 = vmatpush1.msra.mxu0 0.0
        %8226 = vmatprep.subr.mxu0 0.0
        %8227 = vmatpush1.msra.mxu0 0.0
        %8228 = vmatprep.subr.mxu0 0.0
        %8229 = vmatpush1.msra.mxu0 0.0
        %8230 = vmatprep.subr.mxu0 0.0
        %8231 = vmatpush1.msra.mxu0 0.0
        %8232 = vmatprep.subr.mxu0 0.0
        %8233 = vmatpush1.msra.mxu0 0.0
        %8234 = vmatprep.subr.mxu0 0.0
        %8235 = vmatpush1.msra.mxu0 0.0
        %8236 = vmatprep.subr.mxu0 0.0
        %8237 = vmatpush1.msra.mxu0 0.0
        %8238 = vmatprep.subr.mxu0 0.0
        %8239 = vmatpush1.msra.mxu0 0.0
        %8240 = vmatprep.subr.mxu0 0.0
        %8241 = vmatpush1.msra.mxu0 0.0
        %8242 = vmatprep.subr.mxu0 0.0
        %8243 = vmatpush1.msra.mxu0 0.0
        %8244 = vmatprep.subr.mxu0 0.0
        %8245 = vmatpush1.msra.mxu0 0.0
        %8246 = vmatprep.mubr.f32.mxu0 0.0
        %v8247 = vand.u32 %v7579, 4294901760
        %8248 = vmatmul.mubr.f32.gmra.mrb[0].mxu0 %v8247
        %v8249 = vpop.f32.mrb[0].mxu0
        %v8250 = vadd.f32 %v8107, %v8249
        %v8251 = vpop.f32.mrb[0].mxu0
        %8252 = vmatprep.mubr.f32.mxu0 0.0
        %v8253 = vand.u32 %v7580, 4294901760
        %8254 = vmatmul.mubr.f32.gmra.mrb[0].mxu0 %v8253
        %v8255 = vpop.f32.mrb[0].mxu0
        %v8256 = vadd.f32 %v8115, %v8255
        %v8257 = vpop.f32.mrb[0].mxu0
        %8258 = vmatprep.mubr.f32.mxu0 0.0
        %v8259 = vand.u32 %v7581, 4294901760
        %8260 = vmatmul.mubr.f32.gmra.mrb[0].mxu0 %v8259
        %v8261 = vpop.f32.mrb[0].mxu0
        %v8262 = vadd.f32 %v8123, %v8261
        %v8263 = vpop.f32.mrb[0].mxu0
        %8264 = vmatprep.mubr.f32.mxu0 0.0
        %v8265 = vand.u32 %v7582, 4294901760
        %8266 = vmatmul.mubr.f32.gmra.mrb[0].mxu0 %v8265
        %v8267 = vpop.f32.mrb[0].mxu0
        %v8268 = vadd.f32 %v8131, %v8267
        %v8269 = vpop.f32.mrb[0].mxu0
        %8270 = vdwg.mxu0
        %8271 = vmatprep.subr.mxu0 0.0
        %v8272 = vand.u32 %v7583, 4294901760
        %8273 = vmatpush1.msra.mxu0 %v8272
        %8274 = vmatprep.subr.mxu0 0.0
        %v8275 = vand.u32 %v7584, 4294901760
        %8276 = vmatpush1.msra.mxu0 %v8275
        %8277 = vmatprep.subr.mxu0 0.0
        %v8278 = vand.u32 %v7585, 4294901760
        %8279 = vmatpush1.msra.mxu0 %v8278
        %8280 = vmatprep.subr.mxu0 0.0
        %v8281 = vand.u32 %v7586, 4294901760
        %8282 = vmatpush1.msra.mxu0 %v8281
        %8283 = vmatprep.subr.mxu0 0.0
        %v8284 = vand.u32 %v7587, 4294901760
        %8285 = vmatpush1.msra.mxu0 %v8284
        %8286 = vmatprep.subr.mxu0 0.0
        %v8287 = vand.u32 %v7588, 4294901760
        %8288 = vmatpush1.msra.mxu0 %v8287
        %8289 = vmatprep.subr.mxu0 0.0
        %v8290 = vand.u32 %v7589, 4294901760
        %8291 = vmatpush1.msra.mxu0 %v8290
        %8292 = vmatprep.subr.mxu0 0.0
        %v8293 = vand.u32 %v7590, 4294901760
        %8294 = vmatpush1.msra.mxu0 %v8293
        %8295 = vmatprep.subr.mxu0 0.0
        %v8296 = vand.u32 %v7591, 4294901760
        %8297 = vmatpush1.msra.mxu0 %v8296
        %8298 = vmatprep.subr.mxu0 0.0
        %v8299 = vand.u32 %v7592, 4294901760
        %8300 = vmatpush1.msra.mxu0 %v8299
        %8301 = vmatprep.subr.mxu0 0.0
        %v8302 = vand.u32 %v7593, 4294901760
        %8303 = vmatpush1.msra.mxu0 %v8302
        %8304 = vmatprep.subr.mxu0 0.0
        %v8305 = vand.u32 %v7594, 4294901760
        %8306 = vmatpush1.msra.mxu0 %v8305
        %8307 = vmatprep.subr.mxu0 0.0
        %v8308 = vand.u32 %v7595, 4294901760
        %8309 = vmatpush1.msra.mxu0 %v8308
        %8310 = vmatprep.subr.mxu0 0.0
        %v8311 = vand.u32 %v7596, 4294901760
        %8312 = vmatpush1.msra.mxu0 %v8311
        %8313 = vmatprep.subr.mxu0 0.0
        %v8314 = vand.u32 %v7597, 4294901760
        %8315 = vmatpush1.msra.mxu0 %v8314
        %8316 = vmatprep.subr.mxu0 0.0
        %v8317 = vand.u32 %v7598, 4294901760
        %8318 = vmatpush1.msra.mxu0 %v8317
        %8319 = vmatprep.subr.mxu0 0.0
        %8320 = vmatpush1.msra.mxu0 0.0
        %8321 = vmatprep.subr.mxu0 0.0
        %8322 = vmatpush1.msra.mxu0 0.0
        %8323 = vmatprep.subr.mxu0 0.0
        %8324 = vmatpush1.msra.mxu0 0.0
        %8325 = vmatprep.subr.mxu0 0.0
        %8326 = vmatpush1.msra.mxu0 0.0
        %8327 = vmatprep.subr.mxu0 0.0
        %8328 = vmatpush1.msra.mxu0 0.0
        %8329 = vmatprep.subr.mxu0 0.0
        %8330 = vmatpush1.msra.mxu0 0.0
        %8331 = vmatprep.subr.mxu0 0.0
        %8332 = vmatpush1.msra.mxu0 0.0
        %8333 = vmatprep.subr.mxu0 0.0
        %8334 = vmatpush1.msra.mxu0 0.0
        %8335 = vmatprep.subr.mxu0 0.0
        %8336 = vmatpush1.msra.mxu0 0.0
        %8337 = vmatprep.subr.mxu0 0.0
        %8338 = vmatpush1.msra.mxu0 0.0
        %8339 = vmatprep.subr.mxu0 0.0
        %8340 = vmatpush1.msra.mxu0 0.0
        %8341 = vmatprep.subr.mxu0 0.0
        %8342 = vmatpush1.msra.mxu0 0.0
        %8343 = vmatprep.subr.mxu0 0.0
        %8344 = vmatpush1.msra.mxu0 0.0
        %8345 = vmatprep.subr.mxu0 0.0
        %8346 = vmatpush1.msra.mxu0 0.0
        %8347 = vmatprep.subr.mxu0 0.0
        %8348 = vmatpush1.msra.mxu0 0.0
        %8349 = vmatprep.subr.mxu0 0.0
        %8350 = vmatpush1.msra.mxu0 0.0
        %8351 = vmatprep.mubr.f32.mxu0 0.0
        %v8352 = vand.u32 %v7579, 4294901760
        %8353 = vmatmul.mubr.f32.gmra.mrb[0].mxu0 %v8352
        %v8354 = vpop.f32.mrb[0].mxu0
        %v8355 = vadd.f32 %v8250, %v8354
        %v8356 = vpop.f32.mrb[0].mxu0
        %8357 = vmatprep.mubr.f32.mxu0 0.0
        %v8358 = vand.u32 %v7580, 4294901760
        %8359 = vmatmul.mubr.f32.gmra.mrb[0].mxu0 %v8358
        %v8360 = vpop.f32.mrb[0].mxu0
        %v8361 = vadd.f32 %v8256, %v8360
        %v8362 = vpop.f32.mrb[0].mxu0
        %8363 = vmatprep.mubr.f32.mxu0 0.0
        %v8364 = vand.u32 %v7581, 4294901760
        %8365 = vmatmul.mubr.f32.gmra.mrb[0].mxu0 %v8364
        %v8366 = vpop.f32.mrb[0].mxu0
        %v8367 = vadd.f32 %v8262, %v8366
        %v8368 = vpop.f32.mrb[0].mxu0
        %8369 = vmatprep.mubr.f32.mxu0 0.0
        %v8370 = vand.u32 %v7582, 4294901760
        %8371 = vmatmul.mubr.f32.gmra.mrb[0].mxu0 %v8370
        %v8372 = vpop.f32.mrb[0].mxu0
        %v8373 = vadd.f32 %v8268, %v8372
        %v8374 = vpop.f32.mrb[0].mxu0
        %8375 = vdwg.mxu0
        %8376 = vst [vmem:[%s482] sm:$0xff] %v8355
        %8377 = vst [vmem:[%s482 + $0x8] sm:$0xff] %v8361
        %8378 = vst [vmem:[%s482 + $0x10] sm:$0xff] %v8367
        %8379 = vst [vmem:[%s482 + $0x18] sm:$0xff] %v8373
        %s8380 = sand.u32 %s333, 1
        %s8381 = scalar_lea.sflag [#allocation3], %s8380
        %s8382 = sand.u32 %s333, 1
        %s8383 = smul.addr %s8382, 32
        %s8384 = scalar_lea.vmem [#allocation2], %s8383
        // Predicated region
        $region73: #{tpu_custom_call.1} parent=71 // pred_check
          %p8385 = pneg %p343
        $region74: #{tpu_custom_call.1} parent=71 // pred_check_branch
          %8387 = sbr.rel (%p8385) target = $region76
        $region75: #{tpu_custom_call.1} parent=71 // pred_region
          %s8388 = smul.u32 4, %s27
          %s8390 = ssub.s32 512, 512
          %8391 = vsyncadd %s8381, %s8390
          %s8392 = smul.addr %s8388, 128
          %s8393 = scalar_lea.hbm %s13, %s8392
          %s8394 = sshll.u32 %s8384, 4
          %s8395 = int_to_ptr.vmem [resolvable:$true] %s8394
          %8400 = dma.vmem_to_hbm [thread:$0]  %s8395, 512, %s8393, %s8381, 128, 128, 8
        $region76: #{tpu_custom_call.1} parent=71 // pred_fallthru
          _
      $region72: #{tpu_custom_call.1} parent=5 // pred_fallthru
        _
      %p8401 = scmp.le.s32.totalorder 2, %s22
      // Predicated region
      $region77: #{tpu_custom_call.1} parent=5 // pred_check
        %p8402 = pneg %p8401
      $region78: #{tpu_custom_call.1} parent=5 // pred_check_branch
        %8404 = sbr.rel (%p8402) target = $region80
      $region79: #{tpu_custom_call.1} parent=5 // pred_region
        %s8405 = ssub.s32 %s22, 2
        // Predicated region
        $region81: #{tpu_custom_call.1} parent=79 // pred_check
          %p8406 = pneg %p349
        $region82: #{tpu_custom_call.1} parent=79 // pred_check_branch
          %8408 = sbr.rel (%p8406) target = $region84
        $region83: #{tpu_custom_call.1} parent=79 // pred_region
          %s8409 = sand.u32 %s334, 1
          %s8410 = scalar_lea.sflag [#allocation3], %s8409
          %s8411 = sand.u32 %s334, 1
          %s8412 = smul.addr %s8411, 32
          %s8413 = scalar_lea.vmem [#allocation2], %s8412
          %8414 = dma.done %s8410, 512
        $region84: #{tpu_custom_call.1} parent=79 // pred_fallthru
          _
      $region80: #{tpu_custom_call.1} parent=5 // pred_fallthru
        _
    $region6: #{tpu_custom_call.1} parent=1 // loop_footer
      %s26 = sadd.s32 1, %s22
    $region7: #{tpu_custom_call.1} parent=1 // loop_footer_branch
      %21 = sbr.rel target = $region3
    $region8: #{tpu_custom_call.1} parent=1 // loop_exit
      _
    %8415 = vsyncpa [#allocation3], 1
    %s8416 = scalar_lea.sflag [#allocation3], 1
    %8417 = vsyncpa %s8416, 1

</llo_original>
